<compile_context>
chip_gen: v5e
topology: v5e:2x2
jax: 0.10.0
libtpu: 0.0.40
codegen_flags: <defaults>
</compile_context>

<pallas_src>
import functools

import jax
import jax.numpy as jnp
from jax import lax
from jax.experimental import pallas as pl
from jax.experimental.pallas import tpu as pltpu

EPS = 1e-5


# ---------------------------------------------------------------------------
# per-generation sizing (VMEM-aware tile targets)
# ---------------------------------------------------------------------------
def _tpu_vmem_bytes():
    try:
        info = pltpu.get_tpu_info()
        for attr in ("vmem_capacity_bytes", "vmem_bytes", "vmem_size_bytes"):
            v = getattr(info, attr, None)
            if v:
                return int(v)
    except Exception:
        pass
    return 64 * 1024 * 1024          # conservative (v7x per-TensorCore)


_VMEM_BYTES = _tpu_vmem_bytes()
_BIG_VMEM = _VMEM_BYTES >= 96 * 1024 * 1024            # v5e / v6e (128 MiB)
_VMEM_LIMIT_BYTES = min(int(_VMEM_BYTES * 3 // 4), 100 * 1024 * 1024)
_TARGET_ROWS_CONV = 4096 if _BIG_VMEM else 2048         # rows (= TH*Wo) per conv tile
_TARGET_ROWS_EPILOGUE = 16384 if _BIG_VMEM else 8192    # rows per epilogue tile
_STRIP_ROWS = 512                                       # rows per vreg accumulator strip


# ---------------------------------------------------------------------------
# small static helpers
# ---------------------------------------------------------------------------
def _round_up(x, m):
    return (x + m - 1) // m * m


def _pick_row_tile(ho, wo, target_rows):
    """Largest TH dividing Ho with TH*Wo <= target_rows (falls back to 1)."""
    for cand in range(ho, 0, -1):
        if ho % cand == 0 and cand * wo <= target_rows:
            return cand
    return 1


def _pick_strip(th, wo, target_rows=_STRIP_ROWS):
    """Largest divisor of TH with strip*Wo <= target_rows (accumulator fits vregs)."""
    cap = max(1, target_rows // max(wo, 1))
    for cand in range(min(th, cap), 0, -1):
        if th % cand == 0:
            return cand
    return 1


def _pick_m_tile(total, target, quantum=8):
    """Divisor of `total` that is a multiple of `quantum`: largest <= target,
    else the smallest one above; falls back to `total` (legal: full-dim block)."""
    divisors = set()
    i = 1
    while i * i <= total:
        if total % i == 0:
            divisors.add(i)
            divisors.add(total // i)
        i += 1
    good = sorted(d for d in divisors if d % quantum == 0)
    below = [d for d in good if d <= target]
    if below:
        return below[-1]
    if good:
        return good[0]
    return total


# ---------------------------------------------------------------------------
# Pallas kernels
# ---------------------------------------------------------------------------
def _conv_kernel(*refs, taps, th, wo, sh, fuse_pre):
    """One (batch, row-tile) step of a 3x3 conv.

    9 tap matmuls per row strip, accumulated as a chained dot sum (vregs / MRB,
    no VMEM scratch).  Optionally applies relu(z*scale+bias)*mask to every patch
    before the dot (fused bn1+relu1 for conv2).  Also emits per-channel
    (sum, sum-of-squares) partials taken from the f32 accumulator.
    """
    if fuse_pre:
        x_ref, m_ref, s_ref, b_ref, w_ref, z_ref, stats_ref = refs
        scale = s_ref[...].reshape(1, 1, -1)
        bias = b_ref[...].reshape(1, 1, -1)
    else:
        x_ref, w_ref, z_ref, stats_ref = refs

    fs = z_ref.shape[-1]
    s_tot = jnp.zeros((1, fs), jnp.float32)
    ss_tot = jnp.zeros((1, fs), jnp.float32)

    for strip0 in range(0, th, sh):                      # static strip unroll
        acc = None
        for t, (r0, dw) in enumerate(taps):              # static 9-way tap unroll
            patch = x_ref[0, r0 + strip0:r0 + strip0 + sh, dw:dw + wo, :]
            if fuse_pre:
                a = patch.astype(jnp.float32) * scale + bias
                a = jnp.maximum(a, 0.0)
                a = a * m_ref[0, r0 + strip0:r0 + strip0 + sh, dw:dw + wo, :]
                patch = a.astype(jnp.bfloat16)
            d = jnp.dot(patch.reshape(sh * wo, patch.shape[-1]), w_ref[t],
                        preferred_element_type=jnp.float32)
            acc = d if acc is None else acc + d          # chained dot-sum (no RMW)
        z_ref[0, strip0:strip0 + sh, :, :] = (
            acc.reshape(sh, wo, fs).astype(z_ref.dtype))
        s_tot = s_tot + jnp.sum(acc, axis=0, keepdims=True)
        ss_tot = ss_tot + jnp.sum(acc * acc, axis=0, keepdims=True)

    stats_ref[...] = jnp.concatenate([s_tot, ss_tot], axis=0).reshape(stats_ref.shape)


def _bn_relu_kernel(z_ref, s_ref, b_ref, o_ref):
    o_ref[...] = jnp.maximum(
        z_ref[...].astype(jnp.float32) * s_ref[...] + b_ref[...], 0.0)


def _bn_res_relu_kernel(z_ref, s_ref, b_ref, r_ref, o_ref):
    o_ref[...] = jnp.maximum(
        z_ref[...].astype(jnp.float32) * s_ref[...] + b_ref[...] + r_ref[...], 0.0)


# ---------------------------------------------------------------------------
# pallas_call wrappers
# ---------------------------------------------------------------------------
def _conv_call(slabs, w_taps, mask_slabs, pre_scale, pre_bias, *,
               n, ho, wo, th, sh, n_ht, taps, fs, out_dtype):
    fuse = pre_scale is not None
    kernel = functools.partial(_conv_kernel, taps=taps, th=th, wo=wo, sh=sh,
                               fuse_pre=fuse)
    slab_block = (1,) + tuple(slabs.shape[1:])
    in_specs = [pl.BlockSpec(slab_block, lambda i, j: (i * n_ht + j, 0, 0, 0))]
    operands = [slabs]
    if fuse:
        mask_block = (1,) + tuple(mask_slabs.shape[1:])
        in_specs.append(pl.BlockSpec(mask_block, lambda i, j: (j, 0, 0, 0)))
        in_specs.append(pl.BlockSpec((1, fs), lambda i, j: (0, 0)))
        in_specs.append(pl.BlockSpec((1, fs), lambda i, j: (0, 0)))
        operands += [mask_slabs, pre_scale, pre_bias]
    in_specs.append(pl.BlockSpec(tuple(w_taps.shape), lambda i, j: (0, 0, 0)))
    operands.append(w_taps)

    return pl.pallas_call(
        kernel,
        grid=(n, n_ht),
        in_specs=in_specs,
        out_specs=(
            pl.BlockSpec((1, th, wo, fs), lambda i, j: (i, j, 0, 0)),
            pl.BlockSpec((1, 2, fs), lambda i, j: (i * n_ht + j, 0, 0)),
        ),
        out_shape=(
            jax.ShapeDtypeStruct((n, ho, wo, fs), out_dtype),
            jax.ShapeDtypeStruct((n * n_ht, 2, fs), jnp.float32),
        ),
        compiler_params=pltpu.CompilerParams(
            dimension_semantics=("parallel", "parallel"),
            vmem_limit_bytes=_VMEM_LIMIT_BYTES,
        ),
    )(*operands)


def _bn_relu_pass(z2d, scale, bias, residual=None):
    m, fs = z2d.shape
    bytes_per_row = fs * (z2d.dtype.itemsize + 4 + (4 if residual is not None else 0))
    budget = max(_VMEM_LIMIT_BYTES // 6, 1)
    target = max(256, min(_TARGET_ROWS_EPILOGUE, budget // max(bytes_per_row, 1)))
    tm = _pick_m_tile(m, target)

    row_spec = pl.BlockSpec((tm, fs), lambda i: (i, 0))
    vec_spec = pl.BlockSpec((1, fs), lambda i: (0, 0))
    if residual is None:          # shortcuts=False: no residual DMA at all
        kernel = _bn_relu_kernel
        operands = (z2d, scale, bias)
        in_specs = [row_spec, vec_spec, vec_spec]
    else:
        kernel = _bn_res_relu_kernel
        operands = (z2d, scale, bias, residual)
        in_specs = [row_spec, vec_spec, vec_spec, row_spec]
    return pl.pallas_call(
        kernel,
        grid=(m // tm,),
        in_specs=in_specs,
        out_specs=row_spec,
        out_shape=jax.ShapeDtypeStruct((m, fs), jnp.float32),
        compiler_params=pltpu.CompilerParams(
            dimension_semantics=("parallel",),
            vmem_limit_bytes=_VMEM_LIMIT_BYTES,
        ),
    )(*operands)


# ---------------------------------------------------------------------------
# layout / conv plumbing (pure XLA glue; minimal HBM traffic)
# ---------------------------------------------------------------------------
def _make_planes(x_nhwc, stride):
    """Spatially pad by 1 and (for stride 2) split into 4 parity planes so that
    every 3x3 tap becomes an unstrided static window into exactly one plane."""
    n, h, w, c = x_nhwc.shape
    xp = jnp.pad(x_nhwc, ((0, 0), (1, 1), (1, 1), (0, 0)))
    if stride == 1:
        return [xp], h, w, 2
    assert h % 2 == 0 and w % 2 == 0, "stride-2 path assumes even spatial dims"
    planes = [xp[:, rp::2, cp::2, :] for rp in (0, 1) for cp in (0, 1)]
    return planes, h // 2, w // 2, 1


def _make_taps(stride, th_in):
    """Static (row_offset_in_slab, col_offset) per 3x3 tap, kh-major order."""
    taps = []
    for kh in range(3):
        for kw in range(3):
            if stride == 1:
                p, dh, dw = 0, kh, kw
            else:
                p, dh, dw = (kh % 2) * 2 + (kw % 2), kh // 2, kw // 2
            taps.append((p * th_in + dh, dw))
    return tuple(taps)


def _build_slabs(planes, th, halo, n_ht):
    """(N*n_ht, P*(TH+halo), Ws, C) row-tile slabs; NO copy when n_ht == 1 and a
    single plane (the whole padded image is the slab)."""
    n, _, ws, c = planes[0].shape
    th_in = th + halo
    if n_ht == 1:
        slab = planes[0] if len(planes) == 1 else jnp.concatenate(planes, axis=1)
        return slab, th_in
    tiles = []
    for ht in range(n_ht):
        chunks = [p[:, ht * th: ht * th + th_in, :, :] for p in planes]
        tiles.append(chunks[0] if len(chunks) == 1 else jnp.concatenate(chunks, axis=1))
    slabs = jnp.stack(tiles, axis=1)                  # (N, n_ht, P*TH_in, Ws, C)
    return slabs.reshape(n * n_ht, len(planes) * th_in, ws, c), th_in


def _prep_weight(w_oihw, k_pad, n_pad):
    """torch (F, C, 3, 3) -> (9, k_pad, n_pad) bf16, tap-major (kh, kw)."""
    f, c = int(w_oihw.shape[0]), int(w_oihw.shape[1])
    w = jnp.transpose(w_oihw, (2, 3, 1, 0)).reshape(9, c, f)
    w = jnp.pad(w, ((0, 0), (0, k_pad - c), (0, n_pad - f)))
    return w.astype(jnp.bfloat16)


def _conv3x3_pass(x_nhwc, w_taps, stride, fs, *, pre_scale=None, pre_bias=None,
                  out_dtype=jnp.bfloat16):
    """3x3 conv (padding=1) + per-channel batch-stat partials, optionally with a
    fused relu(x*scale+bias) pre-activation applied to each loaded patch."""
    n = x_nhwc.shape[0]
    planes, ho, wo, halo = _make_planes(x_nhwc, stride)
    th = _pick_row_tile(ho, wo, _TARGET_ROWS_CONV)
    n_ht = ho // th
    slabs, th_in = _build_slabs(planes, th, halo, n_ht)
    taps = _make_taps(stride, th_in)
    sh = _pick_strip(th, wo)

    mask_slabs = None
    if pre_scale is not None:
        # 0/1 spatial mask so the conv's zero-padding stays zero after the fused
        # affine+relu (relu(0*s + b) would otherwise leak into border pixels).
        mask = jnp.ones((1,) + tuple(x_nhwc.shape[1:3]) + (x_nhwc.shape[-1],),
                        jnp.float32)
        mplanes, _, _, _ = _make_planes(mask, stride)
        mask_slabs, _ = _build_slabs(mplanes, th, halo, n_ht)

    z, stats = _conv_call(slabs, w_taps, mask_slabs, pre_scale, pre_bias,
                          n=n, ho=ho, wo=wo, th=th, sh=sh, n_ht=n_ht, taps=taps,
                          fs=fs, out_dtype=out_dtype)
    return z, stats, ho, wo


def _bn_scale_bias(stats, gamma_pad, beta_pad, count):
    """Fold per-tile (sum, sum-of-squares) partials into per-channel scale/bias."""
    # TODO(synk): E[x^2]-E[x]^2 can cancel for |mean| >> std; a Chan-style merge of
    # per-tile (count, mean, M2) would be numerically safer.
    sums = jnp.sum(stats[:, 0, :], axis=0)
    sqs = jnp.sum(stats[:, 1, :], axis=0)
    mean = sums / count
    var = jnp.maximum(sqs / count - mean * mean, 0.0)
    scale = gamma_pad * lax.rsqrt(var + EPS)           # rsqrt runs on the EUP
    bias = beta_pad - mean * scale
    return scale.reshape(1, -1), bias.reshape(1, -1)


# ---------------------------------------------------------------------------
# module: params + forward
# ---------------------------------------------------------------------------
def init_block_params(key, filters, subsample=False):
    s = 0.5 if subsample else 1.0
    cin = int(filters * s)
    k1, k2 = jax.random.split(key)
    std = (2.0 / (9.0 * filters)) ** 0.5               # kaiming_normal_(fan_out, relu)
    w1 = jax.random.normal(k1, (filters, cin, 3, 3), jnp.float32) * std
    w2 = jax.random.normal(k2, (filters, filters, 3, 3), jnp.float32) * std
    ones = jnp.ones((filters,), jnp.float32)
    zeros = jnp.zeros((filters,), jnp.float32)
    return dict(w1=w1, w2=w2, g1=ones, b1=zeros, g2=ones, b2=zeros)


def resnet_block_forward(x_nchw, params, *, subsample=False, shortcuts=False):
    f = int(params["w1"].shape[0])
    fs = _round_up(f, 16)                              # internal channel width
    x = jnp.transpose(x_nchw, (0, 2, 3, 1)).astype(jnp.float32)   # NCHW -> NHWC
    n, h, w, cin = x.shape
    stride1 = 2 if subsample else 1
    cin_p = _round_up(cin, 16)

    # ---- conv1 (stats only; bn1/relu1 are fused into the conv2 pass) ----
    x_bf = x.astype(jnp.bfloat16)
    if cin_p != cin:
        x_bf = jnp.pad(x_bf, ((0, 0), (0, 0), (0, 0), (0, cin_p - cin)))
    w1 = _prep_weight(params["w1"], cin_p, fs)
    z1, st1, ho, wo = _conv3x3_pass(x_bf, w1, stride1, fs)         # z1: bf16 (n,ho,wo,fs)
    m1 = n * ho * wo
    g1 = jnp.pad(params["g1"], (0, fs - f))
    b1 = jnp.pad(params["b1"], (0, fs - f))
    sc1, bi1 = _bn_scale_bias(st1, g1, b1, float(m1))

    # ---- conv2 with bn1+relu1 applied to each loaded patch ----
    w2 = _prep_weight(params["w2"], fs, fs)
    z2, st2, ho2, wo2 = _conv3x3_pass(z1, w2, 1, fs, pre_scale=sc1, pre_bias=bi1)
    m2 = n * ho2 * wo2
    g2 = jnp.pad(params["g2"], (0, fs - f))
    b2 = jnp.pad(params["b2"], (0, fs - f))
    sc2, bi2 = _bn_scale_bias(st2, g2, b2, float(m2))

    # ---- bn2 -> (+shortcut) -> relu2 epilogue ----
    residual = None
    if shortcuts:
        if (h, w, cin) == (ho2, wo2, f):
            res = x                                              # identity shortcut
        else:
            d = x[:, ::2, ::2, :]                                # AvgPool2d(1, stride=2)
            res = jnp.concatenate([d, jnp.zeros_like(d)], axis=-1)
        if res.shape[-1] != fs:
            res = jnp.pad(res, ((0, 0), (0, 0), (0, 0), (0, fs - res.shape[-1])))
        residual = res.reshape(m2, fs)
    out = _bn_relu_pass(z2.reshape(m2, fs), sc2, bi2, residual=residual)
    out = out.reshape(n, ho2, wo2, fs)[..., :f]                  # strip channel padding
    return jnp.transpose(out, (0, 3, 1, 2))                      # NHWC -> NCHW


# ---------------------------------------------------------------------------
# pure-XLA reference (training-mode BN) for correctness checking
# ---------------------------------------------------------------------------
def _reference_forward(x_nchw, params, *, subsample=False, shortcuts=False):
    x = jnp.transpose(x_nchw, (0, 2, 3, 1)).astype(jnp.float32)

    def conv(inp, w_oihw, stride):
        wt = jnp.transpose(w_oihw, (2, 3, 1, 0))                 # HWIO
        return lax.conv_general_dilated(
            inp, wt, (stride, stride), ((1, 1), (1, 1)),
            dimension_numbers=("NHWC", "HWIO", "NHWC"))

    def bn(z, g, b):
        mean = jnp.mean(z, axis=(0, 1, 2))
        var = jnp.mean(jnp.square(z - mean), axis=(0, 1, 2))
        return (z - mean) * lax.rsqrt(var + EPS) * g + b

    z = jax.nn.relu(bn(conv(x, params["w1"], 2 if subsample else 1),
                       params["g1"], params["b1"]))
    z = bn(conv(z, params["w2"], 1), params["g2"], params["b2"])
    if shortcuts:
        if x.shape == z.shape:
            z = z + x
        else:
            d = x[:, ::2, ::2, :]
            z = z + jnp.concatenate([d, jnp.zeros_like(d)], axis=-1)
    z = jax.nn.relu(z)
    return jnp.transpose(z, (0, 3, 1, 2))


if __name__ == "__main__":
    key = jax.random.PRNGKey(0)
    kp, kx1, kx2 = jax.random.split(key, 3)
    filters = 8

    # (a) identity shortcut, stride 1
    params_a = init_block_params(kp, filters, subsample=False)
    xa = jax.random.normal(kx1, (2, filters, 16, 16), jnp.float32)
    fwd_a = jax.jit(functools.partial(resnet_block_forward, subsample=False, shortcuts=True))
    out_a = jax.block_until_ready(fwd_a(xa, params_a))
    ref_a = _reference_forward(xa, params_a, subsample=False, shortcuts=True)
    assert out_a.shape == (2, filters, 16, 16)
    assert bool(jnp.all(out_a >= 0.0))
    assert float(jnp.max(jnp.abs(out_a - ref_a))) < 1e-1

    # (b) subsample: stride-2 conv1 + zero-padded downsampled shortcut
    params_b = init_block_params(kp, filters, subsample=True)
    xb = jax.random.normal(kx2, (2, filters // 2, 16, 16), jnp.float32)
    fwd_b = jax.jit(functools.partial(resnet_block_forward, subsample=True, shortcuts=True))
    out_b = jax.block_until_ready(fwd_b(xb, params_b))
    ref_b = _reference_forward(xb, params_b, subsample=True, shortcuts=True)
    assert out_b.shape == (2, filters, 8, 8)
    assert float(jnp.max(jnp.abs(out_b - ref_b))) < 1e-1

    # (c) no shortcut: exercises the residual-free epilogue kernel (no residual DMA)
    fwd_c = jax.jit(functools.partial(resnet_block_forward, subsample=False, shortcuts=False))
    out_c = jax.block_until_ready(fwd_c(xa, params_a))
    ref_c = _reference_forward(xa, params_a, subsample=False, shortcuts=False)
    assert float(jnp.max(jnp.abs(out_c - ref_c))) < 1e-1

    print("KERNEL_OK")
</pallas_src>

<mosaic_0001>
module attributes {stable_mosaic.version = 11 : i64} {
  func.func @_conv_kernel(%arg0: i32, %arg1: i32, %arg2: memref<1x18x18x16xbf16, #tpu.memory_space<vmem>>, %arg3: memref<9x16x16xbf16, #tpu.memory_space<vmem>>, %arg4: memref<1x16x16x16xbf16, #tpu.memory_space<vmem>>, %arg5: memref<1x2x16xf32, #tpu.memory_space<vmem>>) attributes {dimension_semantics = [#tpu.dimension_semantics<parallel>, #tpu.dimension_semantics<parallel>], iteration_bounds = array<i64: 2, 1>, scalar_prefetch = 0 : i64, scratch_operands = 0 : i64, tpu.core_type = #tpu.core_type<tc>, window_params = [{transform_indices = @transform_0, window_bounds = array<i64: 1, 18, 18, 16>}, {pipeline_mode = #tpu.pipeline_mode<synchronous>, transform_indices = @transform_1, window_bounds = array<i64: 9, 16, 16>}, {transform_indices = @transform_2, window_bounds = array<i64: 1, 16, 16, 16>}, {transform_indices = @transform_3, window_bounds = array<i64: 1, 2, 16>}]} {
    %cst = arith.constant 0.000000e+00 : f32
    %0 = vector.broadcast %cst : f32 to vector<1x16xf32>
    %cst_0 = arith.constant 0.000000e+00 : f32
    %1 = vector.broadcast %cst_0 : f32 to vector<1x16xf32>
    %c0 = arith.constant 0 : index
    %c0_1 = arith.constant 0 : index
    %c0_2 = arith.constant 0 : index
    %c0_3 = arith.constant 0 : index
    %2 = vector.load %arg2[%c0, %c0_1, %c0_2, %c0_3] : memref<1x18x18x16xbf16, #tpu.memory_space<vmem>>, vector<1x16x16x16xbf16>
    %3 = vector.shape_cast %2 : vector<1x16x16x16xbf16> to vector<16x16x16xbf16>
    %4 = vector.shape_cast %3 : vector<16x16x16xbf16> to vector<256x16xbf16>
    %c0_4 = arith.constant 0 : index
    %c0_5 = arith.constant 0 : index
    %c0_6 = arith.constant 0 : index
    %5 = vector.load %arg3[%c0_4, %c0_5, %c0_6] : memref<9x16x16xbf16, #tpu.memory_space<vmem>>, vector<1x16x16xbf16>
    %6 = vector.shape_cast %5 : vector<1x16x16xbf16> to vector<16x16xbf16>
    %cst_7 = arith.constant dense<0.000000e+00> : vector<256x16xf32>
    %7 = tpu.matmul %4, %6, %cst_7 {dimension_numbers = #tpu.dot_dimension_numbers<[1], [0], [0], [1], [0, 0, 1, 1], [], []>} : vector<256x16xbf16>, vector<16x16xbf16>, vector<256x16xf32> -> vector<256x16xf32>
    %c0_8 = arith.constant 0 : index
    %c0_9 = arith.constant 0 : index
    %c1 = arith.constant 1 : index
    %c0_10 = arith.constant 0 : index
    %8 = vector.load %arg2[%c0_8, %c0_9, %c1, %c0_10] : memref<1x18x18x16xbf16, #tpu.memory_space<vmem>>, vector<1x16x16x16xbf16>
    %9 = vector.shape_cast %8 : vector<1x16x16x16xbf16> to vector<16x16x16xbf16>
    %10 = vector.shape_cast %9 : vector<16x16x16xbf16> to vector<256x16xbf16>
    %c1_11 = arith.constant 1 : index
    %c0_12 = arith.constant 0 : index
    %c0_13 = arith.constant 0 : index
    %11 = vector.load %arg3[%c1_11, %c0_12, %c0_13] : memref<9x16x16xbf16, #tpu.memory_space<vmem>>, vector<1x16x16xbf16>
    %12 = vector.shape_cast %11 : vector<1x16x16xbf16> to vector<16x16xbf16>
    %cst_14 = arith.constant dense<0.000000e+00> : vector<256x16xf32>
    %13 = tpu.matmul %10, %12, %cst_14 {dimension_numbers = #tpu.dot_dimension_numbers<[1], [0], [0], [1], [0, 0, 1, 1], [], []>} : vector<256x16xbf16>, vector<16x16xbf16>, vector<256x16xf32> -> vector<256x16xf32>
    %14 = arith.addf %7, %13 : vector<256x16xf32>
    %c0_15 = arith.constant 0 : index
    %c0_16 = arith.constant 0 : index
    %c2 = arith.constant 2 : index
    %c0_17 = arith.constant 0 : index
    %15 = vector.load %arg2[%c0_15, %c0_16, %c2, %c0_17] : memref<1x18x18x16xbf16, #tpu.memory_space<vmem>>, vector<1x16x16x16xbf16>
    %16 = vector.shape_cast %15 : vector<1x16x16x16xbf16> to vector<16x16x16xbf16>
    %17 = vector.shape_cast %16 : vector<16x16x16xbf16> to vector<256x16xbf16>
    %c2_18 = arith.constant 2 : index
    %c0_19 = arith.constant 0 : index
    %c0_20 = arith.constant 0 : index
    %18 = vector.load %arg3[%c2_18, %c0_19, %c0_20] : memref<9x16x16xbf16, #tpu.memory_space<vmem>>, vector<1x16x16xbf16>
    %19 = vector.shape_cast %18 : vector<1x16x16xbf16> to vector<16x16xbf16>
    %cst_21 = arith.constant dense<0.000000e+00> : vector<256x16xf32>
    %20 = tpu.matmul %17, %19, %cst_21 {dimension_numbers = #tpu.dot_dimension_numbers<[1], [0], [0], [1], [0, 0, 1, 1], [], []>} : vector<256x16xbf16>, vector<16x16xbf16>, vector<256x16xf32> -> vector<256x16xf32>
    %21 = arith.addf %14, %20 : vector<256x16xf32>
    %c0_22 = arith.constant 0 : index
    %c1_23 = arith.constant 1 : index
    %c0_24 = arith.constant 0 : index
    %c0_25 = arith.constant 0 : index
    %22 = vector.load %arg2[%c0_22, %c1_23, %c0_24, %c0_25] : memref<1x18x18x16xbf16, #tpu.memory_space<vmem>>, vector<1x16x16x16xbf16>
    %23 = vector.shape_cast %22 : vector<1x16x16x16xbf16> to vector<16x16x16xbf16>
    %24 = vector.shape_cast %23 : vector<16x16x16xbf16> to vector<256x16xbf16>
    %c3 = arith.constant 3 : index
    %c0_26 = arith.constant 0 : index
    %c0_27 = arith.constant 0 : index
    %25 = vector.load %arg3[%c3, %c0_26, %c0_27] : memref<9x16x16xbf16, #tpu.memory_space<vmem>>, vector<1x16x16xbf16>
    %26 = vector.shape_cast %25 : vector<1x16x16xbf16> to vector<16x16xbf16>
    %cst_28 = arith.constant dense<0.000000e+00> : vector<256x16xf32>
    %27 = tpu.matmul %24, %26, %cst_28 {dimension_numbers = #tpu.dot_dimension_numbers<[1], [0], [0], [1], [0, 0, 1, 1], [], []>} : vector<256x16xbf16>, vector<16x16xbf16>, vector<256x16xf32> -> vector<256x16xf32>
    %28 = arith.addf %21, %27 : vector<256x16xf32>
    %c0_29 = arith.constant 0 : index
    %c1_30 = arith.constant 1 : index
    %c1_31 = arith.constant 1 : index
    %c0_32 = arith.constant 0 : index
    %29 = vector.load %arg2[%c0_29, %c1_30, %c1_31, %c0_32] : memref<1x18x18x16xbf16, #tpu.memory_space<vmem>>, vector<1x16x16x16xbf16>
    %30 = vector.shape_cast %29 : vector<1x16x16x16xbf16> to vector<16x16x16xbf16>
    %31 = vector.shape_cast %30 : vector<16x16x16xbf16> to vector<256x16xbf16>
    %c4 = arith.constant 4 : index
    %c0_33 = arith.constant 0 : index
    %c0_34 = arith.constant 0 : index
    %32 = vector.load %arg3[%c4, %c0_33, %c0_34] : memref<9x16x16xbf16, #tpu.memory_space<vmem>>, vector<1x16x16xbf16>
    %33 = vector.shape_cast %32 : vector<1x16x16xbf16> to vector<16x16xbf16>
    %cst_35 = arith.constant dense<0.000000e+00> : vector<256x16xf32>
    %34 = tpu.matmul %31, %33, %cst_35 {dimension_numbers = #tpu.dot_dimension_numbers<[1], [0], [0], [1], [0, 0, 1, 1], [], []>} : vector<256x16xbf16>, vector<16x16xbf16>, vector<256x16xf32> -> vector<256x16xf32>
    %35 = arith.addf %28, %34 : vector<256x16xf32>
    %c0_36 = arith.constant 0 : index
    %c1_37 = arith.constant 1 : index
    %c2_38 = arith.constant 2 : index
    %c0_39 = arith.constant 0 : index
    %36 = vector.load %arg2[%c0_36, %c1_37, %c2_38, %c0_39] : memref<1x18x18x16xbf16, #tpu.memory_space<vmem>>, vector<1x16x16x16xbf16>
    %37 = vector.shape_cast %36 : vector<1x16x16x16xbf16> to vector<16x16x16xbf16>
    %38 = vector.shape_cast %37 : vector<16x16x16xbf16> to vector<256x16xbf16>
    %c5 = arith.constant 5 : index
    %c0_40 = arith.constant 0 : index
    %c0_41 = arith.constant 0 : index
    %39 = vector.load %arg3[%c5, %c0_40, %c0_41] : memref<9x16x16xbf16, #tpu.memory_space<vmem>>, vector<1x16x16xbf16>
    %40 = vector.shape_cast %39 : vector<1x16x16xbf16> to vector<16x16xbf16>
    %cst_42 = arith.constant dense<0.000000e+00> : vector<256x16xf32>
    %41 = tpu.matmul %38, %40, %cst_42 {dimension_numbers = #tpu.dot_dimension_numbers<[1], [0], [0], [1], [0, 0, 1, 1], [], []>} : vector<256x16xbf16>, vector<16x16xbf16>, vector<256x16xf32> -> vector<256x16xf32>
    %42 = arith.addf %35, %41 : vector<256x16xf32>
    %c0_43 = arith.constant 0 : index
    %c2_44 = arith.constant 2 : index
    %c0_45 = arith.constant 0 : index
    %c0_46 = arith.constant 0 : index
    %43 = vector.load %arg2[%c0_43, %c2_44, %c0_45, %c0_46] : memref<1x18x18x16xbf16, #tpu.memory_space<vmem>>, vector<1x16x16x16xbf16>
    %44 = vector.shape_cast %43 : vector<1x16x16x16xbf16> to vector<16x16x16xbf16>
    %45 = vector.shape_cast %44 : vector<16x16x16xbf16> to vector<256x16xbf16>
    %c6 = arith.constant 6 : index
    %c0_47 = arith.constant 0 : index
    %c0_48 = arith.constant 0 : index
    %46 = vector.load %arg3[%c6, %c0_47, %c0_48] : memref<9x16x16xbf16, #tpu.memory_space<vmem>>, vector<1x16x16xbf16>
    %47 = vector.shape_cast %46 : vector<1x16x16xbf16> to vector<16x16xbf16>
    %cst_49 = arith.constant dense<0.000000e+00> : vector<256x16xf32>
    %48 = tpu.matmul %45, %47, %cst_49 {dimension_numbers = #tpu.dot_dimension_numbers<[1], [0], [0], [1], [0, 0, 1, 1], [], []>} : vector<256x16xbf16>, vector<16x16xbf16>, vector<256x16xf32> -> vector<256x16xf32>
    %49 = arith.addf %42, %48 : vector<256x16xf32>
    %c0_50 = arith.constant 0 : index
    %c2_51 = arith.constant 2 : index
    %c1_52 = arith.constant 1 : index
    %c0_53 = arith.constant 0 : index
    %50 = vector.load %arg2[%c0_50, %c2_51, %c1_52, %c0_53] : memref<1x18x18x16xbf16, #tpu.memory_space<vmem>>, vector<1x16x16x16xbf16>
    %51 = vector.shape_cast %50 : vector<1x16x16x16xbf16> to vector<16x16x16xbf16>
    %52 = vector.shape_cast %51 : vector<16x16x16xbf16> to vector<256x16xbf16>
    %c7 = arith.constant 7 : index
    %c0_54 = arith.constant 0 : index
    %c0_55 = arith.constant 0 : index
    %53 = vector.load %arg3[%c7, %c0_54, %c0_55] : memref<9x16x16xbf16, #tpu.memory_space<vmem>>, vector<1x16x16xbf16>
    %54 = vector.shape_cast %53 : vector<1x16x16xbf16> to vector<16x16xbf16>
    %cst_56 = arith.constant dense<0.000000e+00> : vector<256x16xf32>
    %55 = tpu.matmul %52, %54, %cst_56 {dimension_numbers = #tpu.dot_dimension_numbers<[1], [0], [0], [1], [0, 0, 1, 1], [], []>} : vector<256x16xbf16>, vector<16x16xbf16>, vector<256x16xf32> -> vector<256x16xf32>
    %56 = arith.addf %49, %55 : vector<256x16xf32>
    %c0_57 = arith.constant 0 : index
    %c2_58 = arith.constant 2 : index
    %c2_59 = arith.constant 2 : index
    %c0_60 = arith.constant 0 : index
    %57 = vector.load %arg2[%c0_57, %c2_58, %c2_59, %c0_60] : memref<1x18x18x16xbf16, #tpu.memory_space<vmem>>, vector<1x16x16x16xbf16>
    %58 = vector.shape_cast %57 : vector<1x16x16x16xbf16> to vector<16x16x16xbf16>
    %59 = vector.shape_cast %58 : vector<16x16x16xbf16> to vector<256x16xbf16>
    %c8 = arith.constant 8 : index
    %c0_61 = arith.constant 0 : index
    %c0_62 = arith.constant 0 : index
    %60 = vector.load %arg3[%c8, %c0_61, %c0_62] : memref<9x16x16xbf16, #tpu.memory_space<vmem>>, vector<1x16x16xbf16>
    %61 = vector.shape_cast %60 : vector<1x16x16xbf16> to vector<16x16xbf16>
    %cst_63 = arith.constant dense<0.000000e+00> : vector<256x16xf32>
    %62 = tpu.matmul %59, %61, %cst_63 {dimension_numbers = #tpu.dot_dimension_numbers<[1], [0], [0], [1], [0, 0, 1, 1], [], []>} : vector<256x16xbf16>, vector<16x16xbf16>, vector<256x16xf32> -> vector<256x16xf32>
    %63 = arith.addf %56, %62 : vector<256x16xf32>
    %64 = vector.shape_cast %63 : vector<256x16xf32> to vector<16x16x16xf32>
    %65 = arith.truncf %64 : vector<16x16x16xf32> to vector<16x16x16xbf16>
    %c0_64 = arith.constant 0 : index
    %c0_65 = arith.constant 0 : index
    %c0_66 = arith.constant 0 : index
    %c0_67 = arith.constant 0 : index
    %66 = vector.load %arg4[%c0_64, %c0_65, %c0_66, %c0_67] : memref<1x16x16x16xbf16, #tpu.memory_space<vmem>>, vector<1x16x16x16xbf16>
    %67 = vector.shape_cast %66 : vector<1x16x16x16xbf16> to vector<16x16x16xbf16>
    %68 = vector.shape_cast %65 : vector<16x16x16xbf16> to vector<1x16x16x16xbf16>
    tpu.vector_store %arg4[%c0_64, %c0_65, %c0_66, %c0_67], %68 {strides = array<i32>} : memref<1x16x16x16xbf16, #tpu.memory_space<vmem>>, vector<1x16x16x16xbf16>,
    %cst_68 = arith.constant dense<0.000000e+00> : vector<16xf32>
    %69 = vector.multi_reduction <add>, %63, %cst_68 [0] : vector<256x16xf32> to vector<16xf32>
    %70 = vector.shape_cast %69 : vector<16xf32> to vector<1x16xf32>
    %71 = arith.addf %0, %70 : vector<1x16xf32>
    %72 = arith.mulf %63, %63 : vector<256x16xf32>
    %cst_69 = arith.constant dense<0.000000e+00> : vector<16xf32>
    %73 = vector.multi_reduction <add>, %72, %cst_69 [0] : vector<256x16xf32> to vector<16xf32>
    %74 = vector.shape_cast %73 : vector<16xf32> to vector<1x16xf32>
    %75 = arith.addf %1, %74 : vector<1x16xf32>
    %76 = tpu.concatenate %71, %75 in 0 : vector<1x16xf32>, vector<1x16xf32> -> vector<2x16xf32>
    %77 = vector.shape_cast %76 : vector<2x16xf32> to vector<1x2x16xf32>
    %c0_70 = arith.constant 0 : index
    %c0_71 = arith.constant 0 : index
    %c0_72 = arith.constant 0 : index
    %78 = vector.load %arg5[%c0_70, %c0_71, %c0_72] : memref<1x2x16xf32, #tpu.memory_space<vmem>>, vector<1x2x16xf32>
    tpu.vector_store %arg5[%c0_70, %c0_71, %c0_72], %77 {strides = array<i32>} : memref<1x2x16xf32, #tpu.memory_space<vmem>>, vector<1x2x16xf32>,
    return
  }
  func.func @transform_0(%arg0: i32, %arg1: i32) -> (i32, i32, i32, i32) {
    %c1_i32 = arith.constant 1 : i32
    %0 = arith.muli %arg0, %c1_i32 : i32
    %1 = arith.addi %0, %arg1 : i32
    %c0_i32 = arith.constant 0 : i32
    %c0_i32_0 = arith.constant 0 : i32
    %c0_i32_1 = arith.constant 0 : i32
    %c0_i32_2 = arith.constant 0 : i32
    return %1, %c0_i32, %c0_i32_0, %c0_i32_1 : i32, i32, i32, i32
  }
  func.func @transform_1(%arg0: i32, %arg1: i32) -> (i32, i32, i32) {
    %c0_i32 = arith.constant 0 : i32
    %c0_i32_0 = arith.constant 0 : i32
    %c0_i32_1 = arith.constant 0 : i32
    %c0_i32_2 = arith.constant 0 : i32
    return %c0_i32, %c0_i32_0, %c0_i32_1 : i32, i32, i32
  }
  func.func @transform_2(%arg0: i32, %arg1: i32) -> (i32, i32, i32, i32) {
    %c0_i32 = arith.constant 0 : i32
    %c0_i32_0 = arith.constant 0 : i32
    %c0_i32_1 = arith.constant 0 : i32
    return %arg0, %arg1, %c0_i32, %c0_i32_0 : i32, i32, i32, i32
  }
  func.func @transform_3(%arg0: i32, %arg1: i32) -> (i32, i32, i32) {
    %c1_i32 = arith.constant 1 : i32
    %0 = arith.muli %arg0, %c1_i32 : i32
    %1 = arith.addi %0, %arg1 : i32
    %c0_i32 = arith.constant 0 : i32
    %c0_i32_0 = arith.constant 0 : i32
    %c0_i32_1 = arith.constant 0 : i32
    return %1, %c0_i32, %c0_i32_0 : i32, i32, i32
  }
}

module attributes {stable_mosaic.version = 11 : i64} {
  func.func @_bn_res_relu_kernel(%arg0: i32, %arg1: memref<512x16xbf16, #tpu.memory_space<vmem>>, %arg2: memref<1x16xf32, #tpu.memory_space<vmem>>, %arg3: memref<1x16xf32, #tpu.memory_space<vmem>>, %arg4: memref<512x16xf32, #tpu.memory_space<vmem>>, %arg5: memref<512x16xf32, #tpu.memory_space<vmem>>) attributes {dimension_semantics = [#tpu.dimension_semantics<parallel>], iteration_bounds = array<i64: 1>, scalar_prefetch = 0 : i64, scratch_operands = 0 : i64, tpu.core_type = #tpu.core_type<tc>, window_params = [{transform_indices = @transform_0, window_bounds = array<i64: 512, 16>}, {pipeline_mode = #tpu.pipeline_mode<synchronous>, transform_indices = @transform_1, window_bounds = array<i64: 1, 16>}, {pipeline_mode = #tpu.pipeline_mode<synchronous>, transform_indices = @transform_2, window_bounds = array<i64: 1, 16>}, {transform_indices = @transform_3, window_bounds = array<i64: 512, 16>}, {transform_indices = @transform_4, window_bounds = array<i64: 512, 16>}]} {
    %c0 = arith.constant 0 : index
    %c0_0 = arith.constant 0 : index
    %0 = vector.load %arg1[%c0, %c0_0] : memref<512x16xbf16, #tpu.memory_space<vmem>>, vector<512x16xbf16>
    %1 = arith.extf %0 : vector<512x16xbf16> to vector<512x16xf32>
    %c0_1 = arith.constant 0 : index
    %c0_2 = arith.constant 0 : index
    %2 = vector.load %arg2[%c0_1, %c0_2] : memref<1x16xf32, #tpu.memory_space<vmem>>, vector<1x16xf32>
    %3 = vector.broadcast %2 : vector<1x16xf32> to vector<512x16xf32>
    %4 = arith.mulf %1, %3 : vector<512x16xf32>
    %c0_3 = arith.constant 0 : index
    %c0_4 = arith.constant 0 : index
    %5 = vector.load %arg3[%c0_3, %c0_4] : memref<1x16xf32, #tpu.memory_space<vmem>>, vector<1x16xf32>
    %6 = vector.broadcast %5 : vector<1x16xf32> to vector<512x16xf32>
    %7 = arith.addf %4, %6 : vector<512x16xf32>
    %c0_5 = arith.constant 0 : index
    %c0_6 = arith.constant 0 : index
    %8 = vector.load %arg4[%c0_5, %c0_6] : memref<512x16xf32, #tpu.memory_space<vmem>>, vector<512x16xf32>
    %9 = arith.addf %7, %8 : vector<512x16xf32>
    %cst = arith.constant 0.000000e+00 : f32
    %10 = vector.broadcast %cst : f32 to vector<512x16xf32>
    %11 = arith.maximumf %9, %10 : vector<512x16xf32>
    %c0_7 = arith.constant 0 : index
    %c0_8 = arith.constant 0 : index
    %12 = vector.load %arg5[%c0_7, %c0_8] : memref<512x16xf32, #tpu.memory_space<vmem>>, vector<512x16xf32>
    tpu.vector_store %arg5[%c0_7, %c0_8], %11 {strides = array<i32>} : memref<512x16xf32, #tpu.memory_space<vmem>>, vector<512x16xf32>,
    return
  }
  func.func @transform_0(%arg0: i32) -> (i32, i32) {
    %c0_i32 = arith.constant 0 : i32
    %c0_i32_0 = arith.constant 0 : i32
    return %arg0, %c0_i32 : i32, i32
  }
  func.func @transform_1(%arg0: i32) -> (i32, i32) {
    %c0_i32 = arith.constant 0 : i32
    %c0_i32_0 = arith.constant 0 : i32
    %c0_i32_1 = arith.constant 0 : i32
    return %c0_i32, %c0_i32_0 : i32, i32
  }
  func.func @transform_2(%arg0: i32) -> (i32, i32) {
    %c0_i32 = arith.constant 0 : i32
    %c0_i32_0 = arith.constant 0 : i32
    %c0_i32_1 = arith.constant 0 : i32
    return %c0_i32, %c0_i32_0 : i32, i32
  }
  func.func @transform_3(%arg0: i32) -> (i32, i32) {
    %c0_i32 = arith.constant 0 : i32
    %c0_i32_0 = arith.constant 0 : i32
    return %arg0, %c0_i32 : i32, i32
  }
  func.func @transform_4(%arg0: i32) -> (i32, i32) {
    %c0_i32 = arith.constant 0 : i32
    %c0_i32_0 = arith.constant 0 : i32
    return %arg0, %c0_i32 : i32, i32
  }
}

module attributes {stable_mosaic.version = 11 : i64} {
  func.func @_conv_kernel(%arg0: i32, %arg1: i32, %arg2: memref<1x18x18x16xbf16, #tpu.memory_space<vmem>>, %arg3: memref<1x18x18x16xf32, #tpu.memory_space<vmem>>, %arg4: memref<1x16xf32, #tpu.memory_space<vmem>>, %arg5: memref<1x16xf32, #tpu.memory_space<vmem>>, %arg6: memref<9x16x16xbf16, #tpu.memory_space<vmem>>, %arg7: memref<1x16x16x16xbf16, #tpu.memory_space<vmem>>, %arg8: memref<1x2x16xf32, #tpu.memory_space<vmem>>) attributes {dimension_semantics = [#tpu.dimension_semantics<parallel>, #tpu.dimension_semantics<parallel>], iteration_bounds = array<i64: 2, 1>, scalar_prefetch = 0 : i64, scratch_operands = 0 : i64, tpu.core_type = #tpu.core_type<tc>, window_params = [{transform_indices = @transform_0, window_bounds = array<i64: 1, 18, 18, 16>}, {transform_indices = @transform_1, window_bounds = array<i64: 1, 18, 18, 16>}, {pipeline_mode = #tpu.pipeline_mode<synchronous>, transform_indices = @transform_2, window_bounds = array<i64: 1, 16>}, {pipeline_mode = #tpu.pipeline_mode<synchronous>, transform_indices = @transform_3, window_bounds = array<i64: 1, 16>}, {pipeline_mode = #tpu.pipeline_mode<synchronous>, transform_indices = @transform_4, window_bounds = array<i64: 9, 16, 16>}, {transform_indices = @transform_5, window_bounds = array<i64: 1, 16, 16, 16>}, {transform_indices = @transform_6, window_bounds = array<i64: 1, 2, 16>}]} {
    %c0 = arith.constant 0 : index
    %c0_0 = arith.constant 0 : index
    %0 = vector.load %arg4[%c0, %c0_0] : memref<1x16xf32, #tpu.memory_space<vmem>>, vector<1x16xf32>
    %1 = vector.shape_cast %0 : vector<1x16xf32> to vector<1x1x16xf32>
    %c0_1 = arith.constant 0 : index
    %c0_2 = arith.constant 0 : index
    %2 = vector.load %arg5[%c0_1, %c0_2] : memref<1x16xf32, #tpu.memory_space<vmem>>, vector<1x16xf32>
    %3 = vector.shape_cast %2 : vector<1x16xf32> to vector<1x1x16xf32>
    %cst = arith.constant 0.000000e+00 : f32
    %4 = vector.broadcast %cst : f32 to vector<1x16xf32>
    %cst_3 = arith.constant 0.000000e+00 : f32
    %5 = vector.broadcast %cst_3 : f32 to vector<1x16xf32>
    %c0_4 = arith.constant 0 : index
    %c0_5 = arith.constant 0 : index
    %c0_6 = arith.constant 0 : index
    %c0_7 = arith.constant 0 : index
    %6 = vector.load %arg2[%c0_4, %c0_5, %c0_6, %c0_7] : memref<1x18x18x16xbf16, #tpu.memory_space<vmem>>, vector<1x16x16x16xbf16>
    %7 = vector.shape_cast %6 : vector<1x16x16x16xbf16> to vector<16x16x16xbf16>
    %8 = arith.extf %7 : vector<16x16x16xbf16> to vector<16x16x16xf32>
    %9 = vector.broadcast %1 : vector<1x1x16xf32> to vector<16x16x16xf32>
    %10 = arith.mulf %8, %9 : vector<16x16x16xf32>
    %11 = vector.broadcast %3 : vector<1x1x16xf32> to vector<16x16x16xf32>
    %12 = arith.addf %10, %11 : vector<16x16x16xf32>
    %cst_8 = arith.constant 0.000000e+00 : f32
    %13 = vector.broadcast %cst_8 : f32 to vector<16x16x16xf32>
    %14 = arith.maximumf %12, %13 : vector<16x16x16xf32>
    %c0_9 = arith.constant 0 : index
    %c0_10 = arith.constant 0 : index
    %c0_11 = arith.constant 0 : index
    %c0_12 = arith.constant 0 : index
    %15 = vector.load %arg3[%c0_9, %c0_10, %c0_11, %c0_12] : memref<1x18x18x16xf32, #tpu.memory_space<vmem>>, vector<1x16x16x16xf32>
    %16 = vector.shape_cast %15 : vector<1x16x16x16xf32> to vector<16x16x16xf32>
    %17 = arith.mulf %14, %16 : vector<16x16x16xf32>
    %18 = arith.truncf %17 : vector<16x16x16xf32> to vector<16x16x16xbf16>
    %19 = vector.shape_cast %18 : vector<16x16x16xbf16> to vector<256x16xbf16>
    %c0_13 = arith.constant 0 : index
    %c0_14 = arith.constant 0 : index
    %c0_15 = arith.constant 0 : index
    %20 = vector.load %arg6[%c0_13, %c0_14, %c0_15] : memref<9x16x16xbf16, #tpu.memory_space<vmem>>, vector<1x16x16xbf16>
    %21 = vector.shape_cast %20 : vector<1x16x16xbf16> to vector<16x16xbf16>
    %cst_16 = arith.constant dense<0.000000e+00> : vector<256x16xf32>
    %22 = tpu.matmul %19, %21, %cst_16 {dimension_numbers = #tpu.dot_dimension_numbers<[1], [0], [0], [1], [0, 0, 1, 1], [], []>} : vector<256x16xbf16>, vector<16x16xbf16>, vector<256x16xf32> -> vector<256x16xf32>
    %c0_17 = arith.constant 0 : index
    %c0_18 = arith.constant 0 : index
    %c1 = arith.constant 1 : index
    %c0_19 = arith.constant 0 : index
    %23 = vector.load %arg2[%c0_17, %c0_18, %c1, %c0_19] : memref<1x18x18x16xbf16, #tpu.memory_space<vmem>>, vector<1x16x16x16xbf16>
    %24 = vector.shape_cast %23 : vector<1x16x16x16xbf16> to vector<16x16x16xbf16>
    %25 = arith.extf %24 : vector<16x16x16xbf16> to vector<16x16x16xf32>
    %26 = vector.broadcast %1 : vector<1x1x16xf32> to vector<16x16x16xf32>
    %27 = arith.mulf %25, %26 : vector<16x16x16xf32>
    %28 = vector.broadcast %3 : vector<1x1x16xf32> to vector<16x16x16xf32>
    %29 = arith.addf %27, %28 : vector<16x16x16xf32>
    %cst_20 = arith.constant 0.000000e+00 : f32
    %30 = vector.broadcast %cst_20 : f32 to vector<16x16x16xf32>
    %31 = arith.maximumf %29, %30 : vector<16x16x16xf32>
    %c0_21 = arith.constant 0 : index
    %c0_22 = arith.constant 0 : index
    %c1_23 = arith.constant 1 : index
    %c0_24 = arith.constant 0 : index
    %32 = vector.load %arg3[%c0_21, %c0_22, %c1_23, %c0_24] : memref<1x18x18x16xf32, #tpu.memory_space<vmem>>, vector<1x16x16x16xf32>
    %33 = vector.shape_cast %32 : vector<1x16x16x16xf32> to vector<16x16x16xf32>
    %34 = arith.mulf %31, %33 : vector<16x16x16xf32>
    %35 = arith.truncf %34 : vector<16x16x16xf32> to vector<16x16x16xbf16>
    %36 = vector.shape_cast %35 : vector<16x16x16xbf16> to vector<256x16xbf16>
    %c1_25 = arith.constant 1 : index
    %c0_26 = arith.constant 0 : index
    %c0_27 = arith.constant 0 : index
    %37 = vector.load %arg6[%c1_25, %c0_26, %c0_27] : memref<9x16x16xbf16, #tpu.memory_space<vmem>>, vector<1x16x16xbf16>
    %38 = vector.shape_cast %37 : vector<1x16x16xbf16> to vector<16x16xbf16>
    %cst_28 = arith.constant dense<0.000000e+00> : vector<256x16xf32>
    %39 = tpu.matmul %36, %38, %cst_28 {dimension_numbers = #tpu.dot_dimension_numbers<[1], [0], [0], [1], [0, 0, 1, 1], [], []>} : vector<256x16xbf16>, vector<16x16xbf16>, vector<256x16xf32> -> vector<256x16xf32>
    %40 = arith.addf %22, %39 : vector<256x16xf32>
    %c0_29 = arith.constant 0 : index
    %c0_30 = arith.constant 0 : index
    %c2 = arith.constant 2 : index
    %c0_31 = arith.constant 0 : index
    %41 = vector.load %arg2[%c0_29, %c0_30, %c2, %c0_31] : memref<1x18x18x16xbf16, #tpu.memory_space<vmem>>, vector<1x16x16x16xbf16>
    %42 = vector.shape_cast %41 : vector<1x16x16x16xbf16> to vector<16x16x16xbf16>
    %43 = arith.extf %42 : vector<16x16x16xbf16> to vector<16x16x16xf32>
    %44 = vector.broadcast %1 : vector<1x1x16xf32> to vector<16x16x16xf32>
    %45 = arith.mulf %43, %44 : vector<16x16x16xf32>
    %46 = vector.broadcast %3 : vector<1x1x16xf32> to vector<16x16x16xf32>
    %47 = arith.addf %45, %46 : vector<16x16x16xf32>
    %cst_32 = arith.constant 0.000000e+00 : f32
    %48 = vector.broadcast %cst_32 : f32 to vector<16x16x16xf32>
    %49 = arith.maximumf %47, %48 : vector<16x16x16xf32>
    %c0_33 = arith.constant 0 : index
    %c0_34 = arith.constant 0 : index
    %c2_35 = arith.constant 2 : index
    %c0_36 = arith.constant 0 : index
    %50 = vector.load %arg3[%c0_33, %c0_34, %c2_35, %c0_36] : memref<1x18x18x16xf32, #tpu.memory_space<vmem>>, vector<1x16x16x16xf32>
    %51 = vector.shape_cast %50 : vector<1x16x16x16xf32> to vector<16x16x16xf32>
    %52 = arith.mulf %49, %51 : vector<16x16x16xf32>
    %53 = arith.truncf %52 : vector<16x16x16xf32> to vector<16x16x16xbf16>
    %54 = vector.shape_cast %53 : vector<16x16x16xbf16> to vector<256x16xbf16>
    %c2_37 = arith.constant 2 : index
    %c0_38 = arith.constant 0 : index
    %c0_39 = arith.constant 0 : index
    %55 = vector.load %arg6[%c2_37, %c0_38, %c0_39] : memref<9x16x16xbf16, #tpu.memory_space<vmem>>, vector<1x16x16xbf16>
    %56 = vector.shape_cast %55 : vector<1x16x16xbf16> to vector<16x16xbf16>
    %cst_40 = arith.constant dense<0.000000e+00> : vector<256x16xf32>
    %57 = tpu.matmul %54, %56, %cst_40 {dimension_numbers = #tpu.dot_dimension_numbers<[1], [0], [0], [1], [0, 0, 1, 1], [], []>} : vector<256x16xbf16>, vector<16x16xbf16>, vector<256x16xf32> -> vector<256x16xf32>
    %58 = arith.addf %40, %57 : vector<256x16xf32>
    %c0_41 = arith.constant 0 : index
    %c1_42 = arith.constant 1 : index
    %c0_43 = arith.constant 0 : index
    %c0_44 = arith.constant 0 : index
    %59 = vector.load %arg2[%c0_41, %c1_42, %c0_43, %c0_44] : memref<1x18x18x16xbf16, #tpu.memory_space<vmem>>, vector<1x16x16x16xbf16>
    %60 = vector.shape_cast %59 : vector<1x16x16x16xbf16> to vector<16x16x16xbf16>
    %61 = arith.extf %60 : vector<16x16x16xbf16> to vector<16x16x16xf32>
    %62 = vector.broadcast %1 : vector<1x1x16xf32> to vector<16x16x16xf32>
    %63 = arith.mulf %61, %62 : vector<16x16x16xf32>
    %64 = vector.broadcast %3 : vector<1x1x16xf32> to vector<16x16x16xf32>
    %65 = arith.addf %63, %64 : vector<16x16x16xf32>
    %cst_45 = arith.constant 0.000000e+00 : f32
    %66 = vector.broadcast %cst_45 : f32 to vector<16x16x16xf32>
    %67 = arith.maximumf %65, %66 : vector<16x16x16xf32>
    %c0_46 = arith.constant 0 : index
    %c1_47 = arith.constant 1 : index
    %c0_48 = arith.constant 0 : index
    %c0_49 = arith.constant 0 : index
    %68 = vector.load %arg3[%c0_46, %c1_47, %c0_48, %c0_49] : memref<1x18x18x16xf32, #tpu.memory_space<vmem>>, vector<1x16x16x16xf32>
    %69 = vector.shape_cast %68 : vector<1x16x16x16xf32> to vector<16x16x16xf32>
    %70 = arith.mulf %67, %69 : vector<16x16x16xf32>
    %71 = arith.truncf %70 : vector<16x16x16xf32> to vector<16x16x16xbf16>
    %72 = vector.shape_cast %71 : vector<16x16x16xbf16> to vector<256x16xbf16>
    %c3 = arith.constant 3 : index
    %c0_50 = arith.constant 0 : index
    %c0_51 = arith.constant 0 : index
    %73 = vector.load %arg6[%c3, %c0_50, %c0_51] : memref<9x16x16xbf16, #tpu.memory_space<vmem>>, vector<1x16x16xbf16>
    %74 = vector.shape_cast %73 : vector<1x16x16xbf16> to vector<16x16xbf16>
    %cst_52 = arith.constant dense<0.000000e+00> : vector<256x16xf32>
    %75 = tpu.matmul %72, %74, %cst_52 {dimension_numbers = #tpu.dot_dimension_numbers<[1], [0], [0], [1], [0, 0, 1, 1], [], []>} : vector<256x16xbf16>, vector<16x16xbf16>, vector<256x16xf32> -> vector<256x16xf32>
    %76 = arith.addf %58, %75 : vector<256x16xf32>
    %c0_53 = arith.constant 0 : index
    %c1_54 = arith.constant 1 : index
    %c1_55 = arith.constant 1 : index
    %c0_56 = arith.constant 0 : index
    %77 = vector.load %arg2[%c0_53, %c1_54, %c1_55, %c0_56] : memref<1x18x18x16xbf16, #tpu.memory_space<vmem>>, vector<1x16x16x16xbf16>
    %78 = vector.shape_cast %77 : vector<1x16x16x16xbf16> to vector<16x16x16xbf16>
    %79 = arith.extf %78 : vector<16x16x16xbf16> to vector<16x16x16xf32>
    %80 = vector.broadcast %1 : vector<1x1x16xf32> to vector<16x16x16xf32>
    %81 = arith.mulf %79, %80 : vector<16x16x16xf32>
    %82 = vector.broadcast %3 : vector<1x1x16xf32> to vector<16x16x16xf32>
    %83 = arith.addf %81, %82 : vector<16x16x16xf32>
    %cst_57 = arith.constant 0.000000e+00 : f32
    %84 = vector.broadcast %cst_57 : f32 to vector<16x16x16xf32>
    %85 = arith.maximumf %83, %84 : vector<16x16x16xf32>
    %c0_58 = arith.constant 0 : index
    %c1_59 = arith.constant 1 : index
    %c1_60 = arith.constant 1 : index
    %c0_61 = arith.constant 0 : index
    %86 = vector.load %arg3[%c0_58, %c1_59, %c1_60, %c0_61] : memref<1x18x18x16xf32, #tpu.memory_space<vmem>>, vector<1x16x16x16xf32>
    %87 = vector.shape_cast %86 : vector<1x16x16x16xf32> to vector<16x16x16xf32>
    %88 = arith.mulf %85, %87 : vector<16x16x16xf32>
    %89 = arith.truncf %88 : vector<16x16x16xf32> to vector<16x16x16xbf16>
    %90 = vector.shape_cast %89 : vector<16x16x16xbf16> to vector<256x16xbf16>
    %c4 = arith.constant 4 : index
    %c0_62 = arith.constant 0 : index
    %c0_63 = arith.constant 0 : index
    %91 = vector.load %arg6[%c4, %c0_62, %c0_63] : memref<9x16x16xbf16, #tpu.memory_space<vmem>>, vector<1x16x16xbf16>
    %92 = vector.shape_cast %91 : vector<1x16x16xbf16> to vector<16x16xbf16>
    %cst_64 = arith.constant dense<0.000000e+00> : vector<256x16xf32>
    %93 = tpu.matmul %90, %92, %cst_64 {dimension_numbers = #tpu.dot_dimension_numbers<[1], [0], [0], [1], [0, 0, 1, 1], [], []>} : vector<256x16xbf16>, vector<16x16xbf16>, vector<256x16xf32> -> vector<256x16xf32>
    %94 = arith.addf %76, %93 : vector<256x16xf32>
    %c0_65 = arith.constant 0 : index
    %c1_66 = arith.constant 1 : index
    %c2_67 = arith.constant 2 : index
    %c0_68 = arith.constant 0 : index
    %95 = vector.load %arg2[%c0_65, %c1_66, %c2_67, %c0_68] : memref<1x18x18x16xbf16, #tpu.memory_space<vmem>>, vector<1x16x16x16xbf16>
    %96 = vector.shape_cast %95 : vector<1x16x16x16xbf16> to vector<16x16x16xbf16>
    %97 = arith.extf %96 : vector<16x16x16xbf16> to vector<16x16x16xf32>
    %98 = vector.broadcast %1 : vector<1x1x16xf32> to vector<16x16x16xf32>
    %99 = arith.mulf %97, %98 : vector<16x16x16xf32>
    %100 = vector.broadcast %3 : vector<1x1x16xf32> to vector<16x16x16xf32>
    %101 = arith.addf %99, %100 : vector<16x16x16xf32>
    %cst_69 = arith.constant 0.000000e+00 : f32
    %102 = vector.broadcast %cst_69 : f32 to vector<16x16x16xf32>
    %103 = arith.maximumf %101, %102 : vector<16x16x16xf32>
    %c0_70 = arith.constant 0 : index
    %c1_71 = arith.constant 1 : index
    %c2_72 = arith.constant 2 : index
    %c0_73 = arith.constant 0 : index
    %104 = vector.load %arg3[%c0_70, %c1_71, %c2_72, %c0_73] : memref<1x18x18x16xf32, #tpu.memory_space<vmem>>, vector<1x16x16x16xf32>
    %105 = vector.shape_cast %104 : vector<1x16x16x16xf32> to vector<16x16x16xf32>
    %106 = arith.mulf %103, %105 : vector<16x16x16xf32>
    %107 = arith.truncf %106 : vector<16x16x16xf32> to vector<16x16x16xbf16>
    %108 = vector.shape_cast %107 : vector<16x16x16xbf16> to vector<256x16xbf16>
    %c5 = arith.constant 5 : index
    %c0_74 = arith.constant 0 : index
    %c0_75 = arith.constant 0 : index
    %109 = vector.load %arg6[%c5, %c0_74, %c0_75] : memref<9x16x16xbf16, #tpu.memory_space<vmem>>, vector<1x16x16xbf16>
    %110 = vector.shape_cast %109 : vector<1x16x16xbf16> to vector<16x16xbf16>
    %cst_76 = arith.constant dense<0.000000e+00> : vector<256x16xf32>
    %111 = tpu.matmul %108, %110, %cst_76 {dimension_numbers = #tpu.dot_dimension_numbers<[1], [0], [0], [1], [0, 0, 1, 1], [], []>} : vector<256x16xbf16>, vector<16x16xbf16>, vector<256x16xf32> -> vector<256x16xf32>
    %112 = arith.addf %94, %111 : vector<256x16xf32>
    %c0_77 = arith.constant 0 : index
    %c2_78 = arith.constant 2 : index
    %c0_79 = arith.constant 0 : index
    %c0_80 = arith.constant 0 : index
    %113 = vector.load %arg2[%c0_77, %c2_78, %c0_79, %c0_80] : memref<1x18x18x16xbf16, #tpu.memory_space<vmem>>, vector<1x16x16x16xbf16>
    %114 = vector.shape_cast %113 : vector<1x16x16x16xbf16> to vector<16x16x16xbf16>
    %115 = arith.extf %114 : vector<16x16x16xbf16> to vector<16x16x16xf32>
    %116 = vector.broadcast %1 : vector<1x1x16xf32> to vector<16x16x16xf32>
    %117 = arith.mulf %115, %116 : vector<16x16x16xf32>
    %118 = vector.broadcast %3 : vector<1x1x16xf32> to vector<16x16x16xf32>
    %119 = arith.addf %117, %118 : vector<16x16x16xf32>
    %cst_81 = arith.constant 0.000000e+00 : f32
    %120 = vector.broadcast %cst_81 : f32 to vector<16x16x16xf32>
    %121 = arith.maximumf %119, %120 : vector<16x16x16xf32>
    %c0_82 = arith.constant 0 : index
    %c2_83 = arith.constant 2 : index
    %c0_84 = arith.constant 0 : index
    %c0_85 = arith.constant 0 : index
    %122 = vector.load %arg3[%c0_82, %c2_83, %c0_84, %c0_85] : memref<1x18x18x16xf32, #tpu.memory_space<vmem>>, vector<1x16x16x16xf32>
    %123 = vector.shape_cast %122 : vector<1x16x16x16xf32> to vector<16x16x16xf32>
    %124 = arith.mulf %121, %123 : vector<16x16x16xf32>
    %125 = arith.truncf %124 : vector<16x16x16xf32> to vector<16x16x16xbf16>
    %126 = vector.shape_cast %125 : vector<16x16x16xbf16> to vector<256x16xbf16>
    %c6 = arith.constant 6 : index
    %c0_86 = arith.constant 0 : index
    %c0_87 = arith.constant 0 : index
    %127 = vector.load %arg6[%c6, %c0_86, %c0_87] : memref<9x16x16xbf16, #tpu.memory_space<vmem>>, vector<1x16x16xbf16>
    %128 = vector.shape_cast %127 : vector<1x16x16xbf16> to vector<16x16xbf16>
    %cst_88 = arith.constant dense<0.000000e+00> : vector<256x16xf32>
    %129 = tpu.matmul %126, %128, %cst_88 {dimension_numbers = #tpu.dot_dimension_numbers<[1], [0], [0], [1], [0, 0, 1, 1], [], []>} : vector<256x16xbf16>, vector<16x16xbf16>, vector<256x16xf32> -> vector<256x16xf32>
    %130 = arith.addf %112, %129 : vector<256x16xf32>
    %c0_89 = arith.constant 0 : index
    %c2_90 = arith.constant 2 : index
    %c1_91 = arith.constant 1 : index
    %c0_92 = arith.constant 0 : index
    %131 = vector.load %arg2[%c0_89, %c2_90, %c1_91, %c0_92] : memref<1x18x18x16xbf16, #tpu.memory_space<vmem>>, vector<1x16x16x16xbf16>
    %132 = vector.shape_cast %131 : vector<1x16x16x16xbf16> to vector<16x16x16xbf16>
    %133 = arith.extf %132 : vector<16x16x16xbf16> to vector<16x16x16xf32>
    %134 = vector.broadcast %1 : vector<1x1x16xf32> to vector<16x16x16xf32>
    %135 = arith.mulf %133, %134 : vector<16x16x16xf32>
    %136 = vector.broadcast %3 : vector<1x1x16xf32> to vector<16x16x16xf32>
    %137 = arith.addf %135, %136 : vector<16x16x16xf32>
    %cst_93 = arith.constant 0.000000e+00 : f32
    %138 = vector.broadcast %cst_93 : f32 to vector<16x16x16xf32>
    %139 = arith.maximumf %137, %138 : vector<16x16x16xf32>
    %c0_94 = arith.constant 0 : index
    %c2_95 = arith.constant 2 : index
    %c1_96 = arith.constant 1 : index
    %c0_97 = arith.constant 0 : index
    %140 = vector.load %arg3[%c0_94, %c2_95, %c1_96, %c0_97] : memref<1x18x18x16xf32, #tpu.memory_space<vmem>>, vector<1x16x16x16xf32>
    %141 = vector.shape_cast %140 : vector<1x16x16x16xf32> to vector<16x16x16xf32>
    %142 = arith.mulf %139, %141 : vector<16x16x16xf32>
    %143 = arith.truncf %142 : vector<16x16x16xf32> to vector<16x16x16xbf16>
    %144 = vector.shape_cast %143 : vector<16x16x16xbf16> to vector<256x16xbf16>
    %c7 = arith.constant 7 : index
    %c0_98 = arith.constant 0 : index
    %c0_99 = arith.constant 0 : index
    %145 = vector.load %arg6[%c7, %c0_98, %c0_99] : memref<9x16x16xbf16, #tpu.memory_space<vmem>>, vector<1x16x16xbf16>
    %146 = vector.shape_cast %145 : vector<1x16x16xbf16> to vector<16x16xbf16>
    %cst_100 = arith.constant dense<0.000000e+00> : vector<256x16xf32>
    %147 = tpu.matmul %144, %146, %cst_100 {dimension_numbers = #tpu.dot_dimension_numbers<[1], [0], [0], [1], [0, 0, 1, 1], [], []>} : vector<256x16xbf16>, vector<16x16xbf16>, vector<256x16xf32> -> vector<256x16xf32>
    %148 = arith.addf %130, %147 : vector<256x16xf32>
    %c0_101 = arith.constant 0 : index
    %c2_102 = arith.constant 2 : index
    %c2_103 = arith.constant 2 : index
    %c0_104 = arith.constant 0 : index
    %149 = vector.load %arg2[%c0_101, %c2_102, %c2_103, %c0_104] : memref<1x18x18x16xbf16, #tpu.memory_space<vmem>>, vector<1x16x16x16xbf16>
    %150 = vector.shape_cast %149 : vector<1x16x16x16xbf16> to vector<16x16x16xbf16>
    %151 = arith.extf %150 : vector<16x16x16xbf16> to vector<16x16x16xf32>
    %152 = vector.broadcast %1 : vector<1x1x16xf32> to vector<16x16x16xf32>
    %153 = arith.mulf %151, %152 : vector<16x16x16xf32>
    %154 = vector.broadcast %3 : vector<1x1x16xf32> to vector<16x16x16xf32>
    %155 = arith.addf %153, %154 : vector<16x16x16xf32>
    %cst_105 = arith.constant 0.000000e+00 : f32
    %156 = vector.broadcast %cst_105 : f32 to vector<16x16x16xf32>
    %157 = arith.maximumf %155, %156 : vector<16x16x16xf32>
    %c0_106 = arith.constant 0 : index
    %c2_107 = arith.constant 2 : index
    %c2_108 = arith.constant 2 : index
    %c0_109 = arith.constant 0 : index
    %158 = vector.load %arg3[%c0_106, %c2_107, %c2_108, %c0_109] : memref<1x18x18x16xf32, #tpu.memory_space<vmem>>, vector<1x16x16x16xf32>
    %159 = vector.shape_cast %158 : vector<1x16x16x16xf32> to vector<16x16x16xf32>
    %160 = arith.mulf %157, %159 : vector<16x16x16xf32>
    %161 = arith.truncf %160 : vector<16x16x16xf32> to vector<16x16x16xbf16>
    %162 = vector.shape_cast %161 : vector<16x16x16xbf16> to vector<256x16xbf16>
    %c8 = arith.constant 8 : index
    %c0_110 = arith.constant 0 : index
    %c0_111 = arith.constant 0 : index
    %163 = vector.load %arg6[%c8, %c0_110, %c0_111] : memref<9x16x16xbf16, #tpu.memory_space<vmem>>, vector<1x16x16xbf16>
    %164 = vector.shape_cast %163 : vector<1x16x16xbf16> to vector<16x16xbf16>
    %cst_112 = arith.constant dense<0.000000e+00> : vector<256x16xf32>
    %165 = tpu.matmul %162, %164, %cst_112 {dimension_numbers = #tpu.dot_dimension_numbers<[1], [0], [0], [1], [0, 0, 1, 1], [], []>} : vector<256x16xbf16>, vector<16x16xbf16>, vector<256x16xf32> -> vector<256x16xf32>
    %166 = arith.addf %148, %165 : vector<256x16xf32>
    %167 = vector.shape_cast %166 : vector<256x16xf32> to vector<16x16x16xf32>
    %168 = arith.truncf %167 : vector<16x16x16xf32> to vector<16x16x16xbf16>
    %c0_113 = arith.constant 0 : index
    %c0_114 = arith.constant 0 : index
    %c0_115 = arith.constant 0 : index
    %c0_116 = arith.constant 0 : index
    %169 = vector.load %arg7[%c0_113, %c0_114, %c0_115, %c0_116] : memref<1x16x16x16xbf16, #tpu.memory_space<vmem>>, vector<1x16x16x16xbf16>
    %170 = vector.shape_cast %169 : vector<1x16x16x16xbf16> to vector<16x16x16xbf16>
    %171 = vector.shape_cast %168 : vector<16x16x16xbf16> to vector<1x16x16x16xbf16>
    tpu.vector_store %arg7[%c0_113, %c0_114, %c0_115, %c0_116], %171 {strides = array<i32>} : memref<1x16x16x16xbf16, #tpu.memory_space<vmem>>, vector<1x16x16x16xbf16>,
    %cst_117 = arith.constant dense<0.000000e+00> : vector<16xf32>
    %172 = vector.multi_reduction <add>, %166, %cst_117 [0] : vector<256x16xf32> to vector<16xf32>
    %173 = vector.shape_cast %172 : vector<16xf32> to vector<1x16xf32>
    %174 = arith.addf %4, %173 : vector<1x16xf32>
    %175 = arith.mulf %166, %166 : vector<256x16xf32>
    %cst_118 = arith.constant dense<0.000000e+00> : vector<16xf32>
    %176 = vector.multi_reduction <add>, %175, %cst_118 [0] : vector<256x16xf32> to vector<16xf32>
    %177 = vector.shape_cast %176 : vector<16xf32> to vector<1x16xf32>
    %178 = arith.addf %5, %177 : vector<1x16xf32>
    %179 = tpu.concatenate %174, %178 in 0 : vector<1x16xf32>, vector<1x16xf32> -> vector<2x16xf32>
    %180 = vector.shape_cast %179 : vector<2x16xf32> to vector<1x2x16xf32>
    %c0_119 = arith.constant 0 : index
    %c0_120 = arith.constant 0 : index
    %c0_121 = arith.constant 0 : index
    %181 = vector.load %arg8[%c0_119, %c0_120, %c0_121] : memref<1x2x16xf32, #tpu.memory_space<vmem>>, vector<1x2x16xf32>
    tpu.vector_store %arg8[%c0_119, %c0_120, %c0_121], %180 {strides = array<i32>} : memref<1x2x16xf32, #tpu.memory_space<vmem>>, vector<1x2x16xf32>,
    return
  }
  func.func @transform_0(%arg0: i32, %arg1: i32) -> (i32, i32, i32, i32) {
    %c1_i32 = arith.constant 1 : i32
    %0 = arith.muli %arg0, %c1_i32 : i32
    %1 = arith.addi %0, %arg1 : i32
    %c0_i32 = arith.constant 0 : i32
    %c0_i32_0 = arith.constant 0 : i32
    %c0_i32_1 = arith.constant 0 : i32
    %c0_i32_2 = arith.constant 0 : i32
    return %1, %c0_i32, %c0_i32_0, %c0_i32_1 : i32, i32, i32, i32
  }
  func.func @transform_1(%arg0: i32, %arg1: i32) -> (i32, i32, i32, i32) {
    %c0_i32 = arith.constant 0 : i32
    %c0_i32_0 = arith.constant 0 : i32
    %c0_i32_1 = arith.constant 0 : i32
    %c0_i32_2 = arith.constant 0 : i32
    return %arg1, %c0_i32, %c0_i32_0, %c0_i32_1 : i32, i32, i32, i32
  }
  func.func @transform_2(%arg0: i32, %arg1: i32) -> (i32, i32) {
    %c0_i32 = arith.constant 0 : i32
    %c0_i32_0 = arith.constant 0 : i32
    %c0_i32_1 = arith.constant 0 : i32
    return %c0_i32, %c0_i32_0 : i32, i32
  }
  func.func @transform_3(%arg0: i32, %arg1: i32) -> (i32, i32) {
    %c0_i32 = arith.constant 0 : i32
    %c0_i32_0 = arith.constant 0 : i32
    %c0_i32_1 = arith.constant 0 : i32
    return %c0_i32, %c0_i32_0 : i32, i32
  }
  func.func @transform_4(%arg0: i32, %arg1: i32) -> (i32, i32, i32) {
    %c0_i32 = arith.constant 0 : i32
    %c0_i32_0 = arith.constant 0 : i32
    %c0_i32_1 = arith.constant 0 : i32
    %c0_i32_2 = arith.constant 0 : i32
    return %c0_i32, %c0_i32_0, %c0_i32_1 : i32, i32, i32
  }
  func.func @transform_5(%arg0: i32, %arg1: i32) -> (i32, i32, i32, i32) {
    %c0_i32 = arith.constant 0 : i32
    %c0_i32_0 = arith.constant 0 : i32
    %c0_i32_1 = arith.constant 0 : i32
    return %arg0, %arg1, %c0_i32, %c0_i32_0 : i32, i32, i32, i32
  }
  func.func @transform_6(%arg0: i32, %arg1: i32) -> (i32, i32, i32) {
    %c1_i32 = arith.constant 1 : i32
    %0 = arith.muli %arg0, %c1_i32 : i32
    %1 = arith.addi %0, %arg1 : i32
    %c0_i32 = arith.constant 0 : i32
    %c0_i32_0 = arith.constant 0 : i32
    %c0_i32_1 = arith.constant 0 : i32
    return %1, %c0_i32, %c0_i32_0 : i32, i32, i32
  }
}

</mosaic_0001>

<llo_original>
// kernel: resnet_block_forward.5
$region0: #{resnet_block_forward.5}
  #allocation0 [shape = 'u32[]', space=smem, size = 0x4, offset = 0x4, fixed_abs, tag = 'smem constant byte address 0x4 - core index']
  #allocation1 [shape = 'u32[72,128]{1,0:T(1,128)}', space=vmem, size = 0x9000, scoped, tag = 'internal scratch']
  %s0 = inlined_call_operand.vmem [shape: bf16[512,16], index: 0, kind: input, shape index: {}]
  %s1 = inlined_call_operand.vmem [shape: f32[1,16], index: 1, kind: input, shape index: {}]
  %s2 = inlined_call_operand.vmem [shape: f32[1,16], index: 2, kind: input, shape index: {}]
  %s3 = inlined_call_operand.vmem [shape: f32[512,16], index: 3, kind: input, shape index: {}]
  %s4 = inlined_call_operand.vmem [shape: f32[512,16], index: 4, kind: output, shape index: {}]
  %s5 = sld [smem:[#allocation0]]
  $region26: #{resnet_block_forward.5} parent=0
    _
  %s7 = ssub.s32 1, %s5
  %s8 = scalar_select 0, %s7, %s5
  // Predicated region
  $region2: #{resnet_block_forward.5} parent=0 // pred_check
    _
  $region3: #{resnet_block_forward.5} parent=0 // pred_check_branch
    %10 = sbr.rel (0) target = $region5
  $region4: #{resnet_block_forward.5} parent=0 // pred_region
    _
  $region5: #{resnet_block_forward.5} parent=0 // pred_fallthru
    _
  // Predicated region
  $region6: #{resnet_block_forward.5} parent=0 // pred_check
    _
  $region7: #{resnet_block_forward.5} parent=0 // pred_check_branch
    %12 = sbr.rel (0) target = $region9
  $region8: #{resnet_block_forward.5} parent=0 // pred_region
    _
  $region9: #{resnet_block_forward.5} parent=0 // pred_fallthru
    _
  // Predicated region
  $region10: #{resnet_block_forward.5} parent=0 // pred_check
    _
  $region11: #{resnet_block_forward.5} parent=0 // pred_check_branch
    %14 = sbr.rel (0) target = $region13
  $region12: #{resnet_block_forward.5} parent=0 // pred_region
    _
  $region13: #{resnet_block_forward.5} parent=0 // pred_fallthru
    _
  // Predicated region
  $region14: #{resnet_block_forward.5} parent=0 // pred_check
    _
  $region15: #{resnet_block_forward.5} parent=0 // pred_check_branch
    %16 = sbr.rel (0) target = $region17
  $region16: #{resnet_block_forward.5} parent=0 // pred_region
    _
  $region17: #{resnet_block_forward.5} parent=0 // pred_fallthru
    _
  %v17 = vld [vmem:[%s0] sm:$0xf]
  %v18 = vld [vmem:[%s0 + $0x4] sm:$0xf]
  %v19 = vld [vmem:[%s0 + $0x8] sm:$0xf]
  %v20 = vld [vmem:[%s0 + $0xc] sm:$0xf]
  %v21 = vld [vmem:[%s0 + $0x10] sm:$0xf]
  %v22 = vld [vmem:[%s0 + $0x14] sm:$0xf]
  %v23 = vld [vmem:[%s0 + $0x18] sm:$0xf]
  %v24 = vld [vmem:[%s0 + $0x1c] sm:$0xf]
  %v25 = vld [vmem:[%s0 + $0x20] sm:$0xf]
  %v26 = vld [vmem:[%s0 + $0x24] sm:$0xf]
  %v27 = vld [vmem:[%s0 + $0x28] sm:$0xf]
  %v28 = vld [vmem:[%s0 + $0x2c] sm:$0xf]
  %v29 = vld [vmem:[%s0 + $0x30] sm:$0xf]
  %v30 = vld [vmem:[%s0 + $0x34] sm:$0xf]
  %v31 = vld [vmem:[%s0 + $0x38] sm:$0xf]
  %v32 = vld [vmem:[%s0 + $0x3c] sm:$0xf]
  %v33 = vld [vmem:[%s0 + $0x40] sm:$0xf]
  %v34 = vld [vmem:[%s0 + $0x44] sm:$0xf]
  %v35 = vld [vmem:[%s0 + $0x48] sm:$0xf]
  %v36 = vld [vmem:[%s0 + $0x4c] sm:$0xf]
  %v37 = vld [vmem:[%s0 + $0x50] sm:$0xf]
  %v38 = vld [vmem:[%s0 + $0x54] sm:$0xf]
  %v39 = vld [vmem:[%s0 + $0x58] sm:$0xf]
  %v40 = vld [vmem:[%s0 + $0x5c] sm:$0xf]
  %v41 = vld [vmem:[%s0 + $0x60] sm:$0xf]
  %v42 = vld [vmem:[%s0 + $0x64] sm:$0xf]
  %v43 = vld [vmem:[%s0 + $0x68] sm:$0xf]
  %v44 = vld [vmem:[%s0 + $0x6c] sm:$0xf]
  %v45 = vld [vmem:[%s0 + $0x70] sm:$0xf]
  %v46 = vld [vmem:[%s0 + $0x74] sm:$0xf]
  %v47 = vld [vmem:[%s0 + $0x78] sm:$0xf]
  %v48 = vld [vmem:[%s0 + $0x7c] sm:$0xf]
  %v49 = vld [vmem:[%s0 + $0x80] sm:$0xf]
  %v50 = vld [vmem:[%s0 + $0x84] sm:$0xf]
  %v51 = vld [vmem:[%s0 + $0x88] sm:$0xf]
  %v52 = vld [vmem:[%s0 + $0x8c] sm:$0xf]
  %v53 = vld [vmem:[%s0 + $0x90] sm:$0xf]
  %v54 = vld [vmem:[%s0 + $0x94] sm:$0xf]
  %v55 = vld [vmem:[%s0 + $0x98] sm:$0xf]
  %v56 = vld [vmem:[%s0 + $0x9c] sm:$0xf]
  %v57 = vld [vmem:[%s0 + $0xa0] sm:$0xf]
  %v58 = vld [vmem:[%s0 + $0xa4] sm:$0xf]
  %v59 = vld [vmem:[%s0 + $0xa8] sm:$0xf]
  %v60 = vld [vmem:[%s0 + $0xac] sm:$0xf]
  %v61 = vld [vmem:[%s0 + $0xb0] sm:$0xf]
  %v62 = vld [vmem:[%s0 + $0xb4] sm:$0xf]
  %v63 = vld [vmem:[%s0 + $0xb8] sm:$0xf]
  %v64 = vld [vmem:[%s0 + $0xbc] sm:$0xf]
  %v65 = vld [vmem:[%s0 + $0xc0] sm:$0xf]
  %v66 = vld [vmem:[%s0 + $0xc4] sm:$0xf]
  %v67 = vld [vmem:[%s0 + $0xc8] sm:$0xf]
  %v68 = vld [vmem:[%s0 + $0xcc] sm:$0xf]
  %v69 = vld [vmem:[%s0 + $0xd0] sm:$0xf]
  %v70 = vld [vmem:[%s0 + $0xd4] sm:$0xf]
  %v71 = vld [vmem:[%s0 + $0xd8] sm:$0xf]
  %v72 = vld [vmem:[%s0 + $0xdc] sm:$0xf]
  %v73 = vld [vmem:[%s0 + $0xe0] sm:$0xf]
  %v74 = vld [vmem:[%s0 + $0xe4] sm:$0xf]
  %v75 = vld [vmem:[%s0 + $0xe8] sm:$0xf]
  %v76 = vld [vmem:[%s0 + $0xec] sm:$0xf]
  %v77 = vld [vmem:[%s0 + $0xf0] sm:$0xf]
  %v78 = vld [vmem:[%s0 + $0xf4] sm:$0xf]
  %v79 = vld [vmem:[%s0 + $0xf8] sm:$0xf]
  %v80 = vld [vmem:[%s0 + $0xfc] sm:$0xf]
  %v81 = vunpack.c.l.bf16 %v17
  %v82 = vunpack.c.l.bf16 %v18
  %v83 = vunpack.c.l.bf16 %v19
  %v84 = vunpack.c.l.bf16 %v20
  %v85 = vunpack.c.l.bf16 %v21
  %v86 = vunpack.c.l.bf16 %v22
  %v87 = vunpack.c.l.bf16 %v23
  %v88 = vunpack.c.l.bf16 %v24
  %v89 = vunpack.c.l.bf16 %v25
  %v90 = vunpack.c.l.bf16 %v26
  %v91 = vunpack.c.l.bf16 %v27
  %v92 = vunpack.c.l.bf16 %v28
  %v93 = vunpack.c.l.bf16 %v29
  %v94 = vunpack.c.l.bf16 %v30
  %v95 = vunpack.c.l.bf16 %v31
  %v96 = vunpack.c.l.bf16 %v32
  %v97 = vunpack.c.l.bf16 %v33
  %v98 = vunpack.c.l.bf16 %v34
  %v99 = vunpack.c.l.bf16 %v35
  %v100 = vunpack.c.l.bf16 %v36
  %v101 = vunpack.c.l.bf16 %v37
  %v102 = vunpack.c.l.bf16 %v38
  %v103 = vunpack.c.l.bf16 %v39
  %v104 = vunpack.c.l.bf16 %v40
  %v105 = vunpack.c.l.bf16 %v41
  %v106 = vunpack.c.l.bf16 %v42
  %v107 = vunpack.c.l.bf16 %v43
  %v108 = vunpack.c.l.bf16 %v44
  %v109 = vunpack.c.l.bf16 %v45
  %v110 = vunpack.c.l.bf16 %v46
  %v111 = vunpack.c.l.bf16 %v47
  %v112 = vunpack.c.l.bf16 %v48
  %v113 = vunpack.c.l.bf16 %v49
  %v114 = vunpack.c.l.bf16 %v50
  %v115 = vunpack.c.l.bf16 %v51
  %v116 = vunpack.c.l.bf16 %v52
  %v117 = vunpack.c.l.bf16 %v53
  %v118 = vunpack.c.l.bf16 %v54
  %v119 = vunpack.c.l.bf16 %v55
  %v120 = vunpack.c.l.bf16 %v56
  %v121 = vunpack.c.l.bf16 %v57
  %v122 = vunpack.c.l.bf16 %v58
  %v123 = vunpack.c.l.bf16 %v59
  %v124 = vunpack.c.l.bf16 %v60
  %v125 = vunpack.c.l.bf16 %v61
  %v126 = vunpack.c.l.bf16 %v62
  %v127 = vunpack.c.l.bf16 %v63
  %v128 = vunpack.c.l.bf16 %v64
  %v129 = vunpack.c.l.bf16 %v65
  %v130 = vunpack.c.l.bf16 %v66
  %v131 = vunpack.c.l.bf16 %v67
  %v132 = vunpack.c.l.bf16 %v68
  %v133 = vunpack.c.l.bf16 %v69
  %v134 = vunpack.c.l.bf16 %v70
  %v135 = vunpack.c.l.bf16 %v71
  %v136 = vunpack.c.l.bf16 %v72
  %v137 = vunpack.c.l.bf16 %v73
  %v138 = vunpack.c.l.bf16 %v74
  %v139 = vunpack.c.l.bf16 %v75
  %v140 = vunpack.c.l.bf16 %v76
  %v141 = vunpack.c.l.bf16 %v77
  %v142 = vunpack.c.l.bf16 %v78
  %v143 = vunpack.c.l.bf16 %v79
  %v144 = vunpack.c.l.bf16 %v80
  %v145 = vld [vmem:[%s1] sm:$0x1]
  %v147 = vperm.slane %v145, 0
  %v149 = vmul.f32 %v81, %v147
  %v150 = vmul.f32 %v82, %v147
  %v151 = vmul.f32 %v83, %v147
  %v152 = vmul.f32 %v84, %v147
  %v153 = vmul.f32 %v85, %v147
  %v154 = vmul.f32 %v86, %v147
  %v155 = vmul.f32 %v87, %v147
  %v156 = vmul.f32 %v88, %v147
  %v157 = vmul.f32 %v89, %v147
  %v158 = vmul.f32 %v90, %v147
  %v159 = vmul.f32 %v91, %v147
  %v160 = vmul.f32 %v92, %v147
  %v161 = vmul.f32 %v93, %v147
  %v162 = vmul.f32 %v94, %v147
  %v163 = vmul.f32 %v95, %v147
  %v164 = vmul.f32 %v96, %v147
  %v165 = vmul.f32 %v97, %v147
  %v166 = vmul.f32 %v98, %v147
  %v167 = vmul.f32 %v99, %v147
  %v168 = vmul.f32 %v100, %v147
  %v169 = vmul.f32 %v101, %v147
  %v170 = vmul.f32 %v102, %v147
  %v171 = vmul.f32 %v103, %v147
  %v172 = vmul.f32 %v104, %v147
  %v173 = vmul.f32 %v105, %v147
  %v174 = vmul.f32 %v106, %v147
  %v175 = vmul.f32 %v107, %v147
  %v176 = vmul.f32 %v108, %v147
  %v177 = vmul.f32 %v109, %v147
  %v178 = vmul.f32 %v110, %v147
  %v179 = vmul.f32 %v111, %v147
  %v180 = vmul.f32 %v112, %v147
  %v181 = vmul.f32 %v113, %v147
  %v182 = vmul.f32 %v114, %v147
  %v183 = vmul.f32 %v115, %v147
  %v184 = vmul.f32 %v116, %v147
  %v185 = vmul.f32 %v117, %v147
  %v186 = vmul.f32 %v118, %v147
  %v187 = vmul.f32 %v119, %v147
  %v188 = vmul.f32 %v120, %v147
  %v189 = vmul.f32 %v121, %v147
  %v190 = vmul.f32 %v122, %v147
  %v191 = vmul.f32 %v123, %v147
  %v192 = vmul.f32 %v124, %v147
  %v193 = vmul.f32 %v125, %v147
  %v194 = vmul.f32 %v126, %v147
  %v195 = vmul.f32 %v127, %v147
  %v196 = vmul.f32 %v128, %v147
  %v197 = vmul.f32 %v129, %v147
  %v198 = vmul.f32 %v130, %v147
  %v199 = vmul.f32 %v131, %v147
  %v200 = vmul.f32 %v132, %v147
  %v201 = vmul.f32 %v133, %v147
  %v202 = vmul.f32 %v134, %v147
  %v203 = vmul.f32 %v135, %v147
  %v204 = vmul.f32 %v136, %v147
  %v205 = vmul.f32 %v137, %v147
  %v206 = vmul.f32 %v138, %v147
  %v207 = vmul.f32 %v139, %v147
  %v208 = vmul.f32 %v140, %v147
  %v209 = vmul.f32 %v141, %v147
  %v210 = vmul.f32 %v142, %v147
  %v211 = vmul.f32 %v143, %v147
  %v212 = vmul.f32 %v144, %v147
  %v213 = vld [vmem:[%s2] sm:$0x1]
  %v215 = vperm.slane %v213, 0
  %v217 = vadd.f32 %v149, %v215
  %v218 = vadd.f32 %v150, %v215
  %v219 = vadd.f32 %v151, %v215
  %v220 = vadd.f32 %v152, %v215
  %v221 = vadd.f32 %v153, %v215
  %v222 = vadd.f32 %v154, %v215
  %v223 = vadd.f32 %v155, %v215
  %v224 = vadd.f32 %v156, %v215
  %v225 = vadd.f32 %v157, %v215
  %v226 = vadd.f32 %v158, %v215
  %v227 = vadd.f32 %v159, %v215
  %v228 = vadd.f32 %v160, %v215
  %v229 = vadd.f32 %v161, %v215
  %v230 = vadd.f32 %v162, %v215
  %v231 = vadd.f32 %v163, %v215
  %v232 = vadd.f32 %v164, %v215
  %v233 = vadd.f32 %v165, %v215
  %v234 = vadd.f32 %v166, %v215
  %v235 = vadd.f32 %v167, %v215
  %v236 = vadd.f32 %v168, %v215
  %v237 = vadd.f32 %v169, %v215
  %v238 = vadd.f32 %v170, %v215
  %v239 = vadd.f32 %v171, %v215
  %v240 = vadd.f32 %v172, %v215
  %v241 = vadd.f32 %v173, %v215
  %v242 = vadd.f32 %v174, %v215
  %v243 = vadd.f32 %v175, %v215
  %v244 = vadd.f32 %v176, %v215
  %v245 = vadd.f32 %v177, %v215
  %v246 = vadd.f32 %v178, %v215
  %v247 = vadd.f32 %v179, %v215
  %v248 = vadd.f32 %v180, %v215
  %v249 = vadd.f32 %v181, %v215
  %v250 = vadd.f32 %v182, %v215
  %v251 = vadd.f32 %v183, %v215
  %v252 = vadd.f32 %v184, %v215
  %v253 = vadd.f32 %v185, %v215
  %v254 = vadd.f32 %v186, %v215
  %v255 = vadd.f32 %v187, %v215
  %v256 = vadd.f32 %v188, %v215
  %v257 = vadd.f32 %v189, %v215
  %v258 = vadd.f32 %v190, %v215
  %v259 = vadd.f32 %v191, %v215
  %v260 = vadd.f32 %v192, %v215
  %v261 = vadd.f32 %v193, %v215
  %v262 = vadd.f32 %v194, %v215
  %v263 = vadd.f32 %v195, %v215
  %v264 = vadd.f32 %v196, %v215
  %v265 = vadd.f32 %v197, %v215
  %v266 = vadd.f32 %v198, %v215
  %v267 = vadd.f32 %v199, %v215
  %v268 = vadd.f32 %v200, %v215
  %v269 = vadd.f32 %v201, %v215
  %v270 = vadd.f32 %v202, %v215
  %v271 = vadd.f32 %v203, %v215
  %v272 = vadd.f32 %v204, %v215
  %v273 = vadd.f32 %v205, %v215
  %v274 = vadd.f32 %v206, %v215
  %v275 = vadd.f32 %v207, %v215
  %v276 = vadd.f32 %v208, %v215
  %v277 = vadd.f32 %v209, %v215
  %v278 = vadd.f32 %v210, %v215
  %v279 = vadd.f32 %v211, %v215
  %v280 = vadd.f32 %v212, %v215
  %v281 = vld [vmem:[%s3] sm:$0xff]
  %v282 = vld [vmem:[%s3 + $0x8] sm:$0xff]
  %v283 = vld [vmem:[%s3 + $0x10] sm:$0xff]
  %v284 = vld [vmem:[%s3 + $0x18] sm:$0xff]
  %v285 = vld [vmem:[%s3 + $0x20] sm:$0xff]
  %v286 = vld [vmem:[%s3 + $0x28] sm:$0xff]
  %v287 = vld [vmem:[%s3 + $0x30] sm:$0xff]
  %v288 = vld [vmem:[%s3 + $0x38] sm:$0xff]
  %v289 = vld [vmem:[%s3 + $0x40] sm:$0xff]
  %v290 = vld [vmem:[%s3 + $0x48] sm:$0xff]
  %v291 = vld [vmem:[%s3 + $0x50] sm:$0xff]
  %v292 = vld [vmem:[%s3 + $0x58] sm:$0xff]
  %v293 = vld [vmem:[%s3 + $0x60] sm:$0xff]
  %v294 = vld [vmem:[%s3 + $0x68] sm:$0xff]
  %v295 = vld [vmem:[%s3 + $0x70] sm:$0xff]
  %v296 = vld [vmem:[%s3 + $0x78] sm:$0xff]
  %v297 = vld [vmem:[%s3 + $0x80] sm:$0xff]
  %v298 = vld [vmem:[%s3 + $0x88] sm:$0xff]
  %v299 = vld [vmem:[%s3 + $0x90] sm:$0xff]
  %v300 = vld [vmem:[%s3 + $0x98] sm:$0xff]
  %v301 = vld [vmem:[%s3 + $0xa0] sm:$0xff]
  %v302 = vld [vmem:[%s3 + $0xa8] sm:$0xff]
  %v303 = vld [vmem:[%s3 + $0xb0] sm:$0xff]
  %v304 = vld [vmem:[%s3 + $0xb8] sm:$0xff]
  %v305 = vld [vmem:[%s3 + $0xc0] sm:$0xff]
  %v306 = vld [vmem:[%s3 + $0xc8] sm:$0xff]
  %v307 = vld [vmem:[%s3 + $0xd0] sm:$0xff]
  %v308 = vld [vmem:[%s3 + $0xd8] sm:$0xff]
  %v309 = vld [vmem:[%s3 + $0xe0] sm:$0xff]
  %v310 = vld [vmem:[%s3 + $0xe8] sm:$0xff]
  %v311 = vld [vmem:[%s3 + $0xf0] sm:$0xff]
  %v312 = vld [vmem:[%s3 + $0xf8] sm:$0xff]
  %v313 = vld [vmem:[%s3 + $0x100] sm:$0xff]
  %v314 = vld [vmem:[%s3 + $0x108] sm:$0xff]
  %v315 = vld [vmem:[%s3 + $0x110] sm:$0xff]
  %v316 = vld [vmem:[%s3 + $0x118] sm:$0xff]
  %v317 = vld [vmem:[%s3 + $0x120] sm:$0xff]
  %v318 = vld [vmem:[%s3 + $0x128] sm:$0xff]
  %v319 = vld [vmem:[%s3 + $0x130] sm:$0xff]
  %v320 = vld [vmem:[%s3 + $0x138] sm:$0xff]
  %v321 = vld [vmem:[%s3 + $0x140] sm:$0xff]
  %v322 = vld [vmem:[%s3 + $0x148] sm:$0xff]
  %v323 = vld [vmem:[%s3 + $0x150] sm:$0xff]
  %v324 = vld [vmem:[%s3 + $0x158] sm:$0xff]
  %v325 = vld [vmem:[%s3 + $0x160] sm:$0xff]
  %v326 = vld [vmem:[%s3 + $0x168] sm:$0xff]
  %v327 = vld [vmem:[%s3 + $0x170] sm:$0xff]
  %v328 = vld [vmem:[%s3 + $0x178] sm:$0xff]
  %v329 = vld [vmem:[%s3 + $0x180] sm:$0xff]
  %v330 = vld [vmem:[%s3 + $0x188] sm:$0xff]
  %v331 = vld [vmem:[%s3 + $0x190] sm:$0xff]
  %v332 = vld [vmem:[%s3 + $0x198] sm:$0xff]
  %v333 = vld [vmem:[%s3 + $0x1a0] sm:$0xff]
  %v334 = vld [vmem:[%s3 + $0x1a8] sm:$0xff]
  %v335 = vld [vmem:[%s3 + $0x1b0] sm:$0xff]
  %v336 = vld [vmem:[%s3 + $0x1b8] sm:$0xff]
  %v337 = vld [vmem:[%s3 + $0x1c0] sm:$0xff]
  %v338 = vld [vmem:[%s3 + $0x1c8] sm:$0xff]
  %v339 = vld [vmem:[%s3 + $0x1d0] sm:$0xff]
  %v340 = vld [vmem:[%s3 + $0x1d8] sm:$0xff]
  %v341 = vld [vmem:[%s3 + $0x1e0] sm:$0xff]
  %v342 = vld [vmem:[%s3 + $0x1e8] sm:$0xff]
  %v343 = vld [vmem:[%s3 + $0x1f0] sm:$0xff]
  %v344 = vld [vmem:[%s3 + $0x1f8] sm:$0xff]
  %v345 = vadd.f32 %v217, %v281
  %v346 = vadd.f32 %v218, %v282
  %v347 = vadd.f32 %v219, %v283
  %v348 = vadd.f32 %v220, %v284
  %v349 = vadd.f32 %v221, %v285
  %v350 = vadd.f32 %v222, %v286
  %v351 = vadd.f32 %v223, %v287
  %v352 = vadd.f32 %v224, %v288
  %v353 = vadd.f32 %v225, %v289
  %v354 = vadd.f32 %v226, %v290
  %v355 = vadd.f32 %v227, %v291
  %v356 = vadd.f32 %v228, %v292
  %v357 = vadd.f32 %v229, %v293
  %v358 = vadd.f32 %v230, %v294
  %v359 = vadd.f32 %v231, %v295
  %v360 = vadd.f32 %v232, %v296
  %v361 = vadd.f32 %v233, %v297
  %v362 = vadd.f32 %v234, %v298
  %v363 = vadd.f32 %v235, %v299
  %v364 = vadd.f32 %v236, %v300
  %v365 = vadd.f32 %v237, %v301
  %v366 = vadd.f32 %v238, %v302
  %v367 = vadd.f32 %v239, %v303
  %v368 = vadd.f32 %v240, %v304
  %v369 = vadd.f32 %v241, %v305
  %v370 = vadd.f32 %v242, %v306
  %v371 = vadd.f32 %v243, %v307
  %v372 = vadd.f32 %v244, %v308
  %v373 = vadd.f32 %v245, %v309
  %v374 = vadd.f32 %v246, %v310
  %v375 = vadd.f32 %v247, %v311
  %v376 = vadd.f32 %v248, %v312
  %v377 = vadd.f32 %v249, %v313
  %v378 = vadd.f32 %v250, %v314
  %v379 = vadd.f32 %v251, %v315
  %v380 = vadd.f32 %v252, %v316
  %v381 = vadd.f32 %v253, %v317
  %v382 = vadd.f32 %v254, %v318
  %v383 = vadd.f32 %v255, %v319
  %v384 = vadd.f32 %v256, %v320
  %v385 = vadd.f32 %v257, %v321
  %v386 = vadd.f32 %v258, %v322
  %v387 = vadd.f32 %v259, %v323
  %v388 = vadd.f32 %v260, %v324
  %v389 = vadd.f32 %v261, %v325
  %v390 = vadd.f32 %v262, %v326
  %v391 = vadd.f32 %v263, %v327
  %v392 = vadd.f32 %v264, %v328
  %v393 = vadd.f32 %v265, %v329
  %v394 = vadd.f32 %v266, %v330
  %v395 = vadd.f32 %v267, %v331
  %v396 = vadd.f32 %v268, %v332
  %v397 = vadd.f32 %v269, %v333
  %v398 = vadd.f32 %v270, %v334
  %v399 = vadd.f32 %v271, %v335
  %v400 = vadd.f32 %v272, %v336
  %v401 = vadd.f32 %v273, %v337
  %v402 = vadd.f32 %v274, %v338
  %v403 = vadd.f32 %v275, %v339
  %v404 = vadd.f32 %v276, %v340
  %v405 = vadd.f32 %v277, %v341
  %v406 = vadd.f32 %v278, %v342
  %v407 = vadd.f32 %v279, %v343
  %v408 = vadd.f32 %v280, %v344
  %v409 = vmax.f32 %v345, 0.0
  %v410 = vmax.f32 %v346, 0.0
  %v411 = vmax.f32 %v347, 0.0
  %v412 = vmax.f32 %v348, 0.0
  %v413 = vmax.f32 %v349, 0.0
  %v414 = vmax.f32 %v350, 0.0
  %v415 = vmax.f32 %v351, 0.0
  %v416 = vmax.f32 %v352, 0.0
  %v417 = vmax.f32 %v353, 0.0
  %v418 = vmax.f32 %v354, 0.0
  %v419 = vmax.f32 %v355, 0.0
  %v420 = vmax.f32 %v356, 0.0
  %v421 = vmax.f32 %v357, 0.0
  %v422 = vmax.f32 %v358, 0.0
  %v423 = vmax.f32 %v359, 0.0
  %v424 = vmax.f32 %v360, 0.0
  %v425 = vmax.f32 %v361, 0.0
  %v426 = vmax.f32 %v362, 0.0
  %v427 = vmax.f32 %v363, 0.0
  %v428 = vmax.f32 %v364, 0.0
  %v429 = vmax.f32 %v365, 0.0
  %v430 = vmax.f32 %v366, 0.0
  %v431 = vmax.f32 %v367, 0.0
  %v432 = vmax.f32 %v368, 0.0
  %v433 = vmax.f32 %v369, 0.0
  %v434 = vmax.f32 %v370, 0.0
  %v435 = vmax.f32 %v371, 0.0
  %v436 = vmax.f32 %v372, 0.0
  %v437 = vmax.f32 %v373, 0.0
  %v438 = vmax.f32 %v374, 0.0
  %v439 = vmax.f32 %v375, 0.0
  %v440 = vmax.f32 %v376, 0.0
  %v441 = vmax.f32 %v377, 0.0
  %v442 = vmax.f32 %v378, 0.0
  %v443 = vmax.f32 %v379, 0.0
  %v444 = vmax.f32 %v380, 0.0
  %v445 = vmax.f32 %v381, 0.0
  %v446 = vmax.f32 %v382, 0.0
  %v447 = vmax.f32 %v383, 0.0
  %v448 = vmax.f32 %v384, 0.0
  %v449 = vmax.f32 %v385, 0.0
  %v450 = vmax.f32 %v386, 0.0
  %v451 = vmax.f32 %v387, 0.0
  %v452 = vmax.f32 %v388, 0.0
  %v453 = vmax.f32 %v389, 0.0
  %v454 = vmax.f32 %v390, 0.0
  %v455 = vmax.f32 %v391, 0.0
  %v456 = vmax.f32 %v392, 0.0
  %v457 = vmax.f32 %v393, 0.0
  %v458 = vmax.f32 %v394, 0.0
  %v459 = vmax.f32 %v395, 0.0
  %v460 = vmax.f32 %v396, 0.0
  %v461 = vmax.f32 %v397, 0.0
  %v462 = vmax.f32 %v398, 0.0
  %v463 = vmax.f32 %v399, 0.0
  %v464 = vmax.f32 %v400, 0.0
  %v465 = vmax.f32 %v401, 0.0
  %v466 = vmax.f32 %v402, 0.0
  %v467 = vmax.f32 %v403, 0.0
  %v468 = vmax.f32 %v404, 0.0
  %v469 = vmax.f32 %v405, 0.0
  %v470 = vmax.f32 %v406, 0.0
  %v471 = vmax.f32 %v407, 0.0
  %v472 = vmax.f32 %v408, 0.0
  %vm473 = vcmask 130048
  %474 = vst.msk [vmem:[%s4] sm:$0xff] %vm473, %v409
  %475 = vst.msk [vmem:[%s4 + $0x8] sm:$0xff] %vm473, %v410
  %476 = vst.msk [vmem:[%s4 + $0x10] sm:$0xff] %vm473, %v411
  %477 = vst.msk [vmem:[%s4 + $0x18] sm:$0xff] %vm473, %v412
  %478 = vst.msk [vmem:[%s4 + $0x20] sm:$0xff] %vm473, %v413
  %479 = vst.msk [vmem:[%s4 + $0x28] sm:$0xff] %vm473, %v414
  %480 = vst.msk [vmem:[%s4 + $0x30] sm:$0xff] %vm473, %v415
  %481 = vst.msk [vmem:[%s4 + $0x38] sm:$0xff] %vm473, %v416
  %482 = vst.msk [vmem:[%s4 + $0x40] sm:$0xff] %vm473, %v417
  %483 = vst.msk [vmem:[%s4 + $0x48] sm:$0xff] %vm473, %v418
  %484 = vst.msk [vmem:[%s4 + $0x50] sm:$0xff] %vm473, %v419
  %485 = vst.msk [vmem:[%s4 + $0x58] sm:$0xff] %vm473, %v420
  %486 = vst.msk [vmem:[%s4 + $0x60] sm:$0xff] %vm473, %v421
  %487 = vst.msk [vmem:[%s4 + $0x68] sm:$0xff] %vm473, %v422
  %488 = vst.msk [vmem:[%s4 + $0x70] sm:$0xff] %vm473, %v423
  %489 = vst.msk [vmem:[%s4 + $0x78] sm:$0xff] %vm473, %v424
  %490 = vst.msk [vmem:[%s4 + $0x80] sm:$0xff] %vm473, %v425
  %491 = vst.msk [vmem:[%s4 + $0x88] sm:$0xff] %vm473, %v426
  %492 = vst.msk [vmem:[%s4 + $0x90] sm:$0xff] %vm473, %v427
  %493 = vst.msk [vmem:[%s4 + $0x98] sm:$0xff] %vm473, %v428
  %494 = vst.msk [vmem:[%s4 + $0xa0] sm:$0xff] %vm473, %v429
  %495 = vst.msk [vmem:[%s4 + $0xa8] sm:$0xff] %vm473, %v430
  %496 = vst.msk [vmem:[%s4 + $0xb0] sm:$0xff] %vm473, %v431
  %497 = vst.msk [vmem:[%s4 + $0xb8] sm:$0xff] %vm473, %v432
  %498 = vst.msk [vmem:[%s4 + $0xc0] sm:$0xff] %vm473, %v433
  %499 = vst.msk [vmem:[%s4 + $0xc8] sm:$0xff] %vm473, %v434
  %500 = vst.msk [vmem:[%s4 + $0xd0] sm:$0xff] %vm473, %v435
  %501 = vst.msk [vmem:[%s4 + $0xd8] sm:$0xff] %vm473, %v436
  %502 = vst.msk [vmem:[%s4 + $0xe0] sm:$0xff] %vm473, %v437
  %503 = vst.msk [vmem:[%s4 + $0xe8] sm:$0xff] %vm473, %v438
  %504 = vst.msk [vmem:[%s4 + $0xf0] sm:$0xff] %vm473, %v439
  %505 = vst.msk [vmem:[%s4 + $0xf8] sm:$0xff] %vm473, %v440
  %506 = vst.msk [vmem:[%s4 + $0x100] sm:$0xff] %vm473, %v441
  %507 = vst.msk [vmem:[%s4 + $0x108] sm:$0xff] %vm473, %v442
  %508 = vst.msk [vmem:[%s4 + $0x110] sm:$0xff] %vm473, %v443
  %509 = vst.msk [vmem:[%s4 + $0x118] sm:$0xff] %vm473, %v444
  %510 = vst.msk [vmem:[%s4 + $0x120] sm:$0xff] %vm473, %v445
  %511 = vst.msk [vmem:[%s4 + $0x128] sm:$0xff] %vm473, %v446
  %512 = vst.msk [vmem:[%s4 + $0x130] sm:$0xff] %vm473, %v447
  %513 = vst.msk [vmem:[%s4 + $0x138] sm:$0xff] %vm473, %v448
  %514 = vst.msk [vmem:[%s4 + $0x140] sm:$0xff] %vm473, %v449
  %515 = vst.msk [vmem:[%s4 + $0x148] sm:$0xff] %vm473, %v450
  %516 = vst.msk [vmem:[%s4 + $0x150] sm:$0xff] %vm473, %v451
  %517 = vst.msk [vmem:[%s4 + $0x158] sm:$0xff] %vm473, %v452
  %518 = vst.msk [vmem:[%s4 + $0x160] sm:$0xff] %vm473, %v453
  %519 = vst.msk [vmem:[%s4 + $0x168] sm:$0xff] %vm473, %v454
  %520 = vst.msk [vmem:[%s4 + $0x170] sm:$0xff] %vm473, %v455
  %521 = vst.msk [vmem:[%s4 + $0x178] sm:$0xff] %vm473, %v456
  %522 = vst.msk [vmem:[%s4 + $0x180] sm:$0xff] %vm473, %v457
  %523 = vst.msk [vmem:[%s4 + $0x188] sm:$0xff] %vm473, %v458
  %524 = vst.msk [vmem:[%s4 + $0x190] sm:$0xff] %vm473, %v459
  %525 = vst.msk [vmem:[%s4 + $0x198] sm:$0xff] %vm473, %v460
  %526 = vst.msk [vmem:[%s4 + $0x1a0] sm:$0xff] %vm473, %v461
  %527 = vst.msk [vmem:[%s4 + $0x1a8] sm:$0xff] %vm473, %v462
  %528 = vst.msk [vmem:[%s4 + $0x1b0] sm:$0xff] %vm473, %v463
  %529 = vst.msk [vmem:[%s4 + $0x1b8] sm:$0xff] %vm473, %v464
  %530 = vst.msk [vmem:[%s4 + $0x1c0] sm:$0xff] %vm473, %v465
  %531 = vst.msk [vmem:[%s4 + $0x1c8] sm:$0xff] %vm473, %v466
  %532 = vst.msk [vmem:[%s4 + $0x1d0] sm:$0xff] %vm473, %v467
  %533 = vst.msk [vmem:[%s4 + $0x1d8] sm:$0xff] %vm473, %v468
  %534 = vst.msk [vmem:[%s4 + $0x1e0] sm:$0xff] %vm473, %v469
  %535 = vst.msk [vmem:[%s4 + $0x1e8] sm:$0xff] %vm473, %v470
  %536 = vst.msk [vmem:[%s4 + $0x1f0] sm:$0xff] %vm473, %v471
  %537 = vst.msk [vmem:[%s4 + $0x1f8] sm:$0xff] %vm473, %v472
  // Predicated region
  $region18: #{resnet_block_forward.5} parent=0 // pred_check
    _
  $region19: #{resnet_block_forward.5} parent=0 // pred_check_branch
    %539 = sbr.rel (0) target = $region21
  $region20: #{resnet_block_forward.5} parent=0 // pred_region
    _
  $region21: #{resnet_block_forward.5} parent=0 // pred_fallthru
    _
  // Predicated region
  $region22: #{resnet_block_forward.5} parent=0 // pred_check
    _
  $region23: #{resnet_block_forward.5} parent=0 // pred_check_branch
    %541 = sbr.rel (0) target = $region25
  $region24: #{resnet_block_forward.5} parent=0 // pred_region
    _
  $region25: #{resnet_block_forward.5} parent=0 // pred_fallthru
    _

// kernel: resnet_block_forward.3
$region0: #{resnet_block_forward.3}
  #allocation0 [shape = 'u32[]', space=smem, size = 0x4, offset = 0x4, fixed_abs, tag = 'smem constant byte address 0x4 - core index']
  #allocation1 [shape = 'u32[72,128]{1,0:T(1,128)}', space=vmem, size = 0x9000, scoped, tag = 'internal scratch']
  %s0 = inlined_call_operand.vmem [shape: bf16[2,18,18,16], index: 0, kind: input, shape index: {}]
  %s1 = inlined_call_operand.vmem [shape: bf16[9,16,16], index: 1, kind: input, shape index: {}]
  %s2 = inlined_call_operand.vmem [shape: bf16[2,16,16,16], index: 2, kind: output, shape index: {0}]
  %s3 = inlined_call_operand.vmem [shape: f32[2,2,16], index: 3, kind: output, shape index: {1}]
  %4 = xla_tuple %s2, %s3
  %s5 = sld [smem:[#allocation0]]
  $region49: #{resnet_block_forward.3} parent=0
    _
  %s7 = ssub.s32 1, %s5
  %s8 = scalar_select 0, %s7, %s5
  loop: start=0, step=1, limit=4
  $region2: #{resnet_block_forward.3} parent=0 // loop_pre_header
    _
  $region3: #{resnet_block_forward.3} parent=0 // loop_header
    %s10 = sphi 0, %s14
    %p11 = scmp.ge.s32.totalorder %s10, 4
    %s17 = sphi 0, %s29
    %s18 = sphi 0, %s25
    %s19 = sphi 0, %s17
    %s20 = sphi 0, %s18
    %s21 = sphi 0, %s19
    %s22 = sphi 0, %s20
    %s34 = sphi 0, %s36
    %s37 = sphi 0, %s34
    %s38 = sphi 0, %s37
    %s54 = sphi 0, %s38
    %s58 = sphi 0, %s58
    %s60 = sphi 0, %s58
    %s61 = sphi 0, %s60
    %s75 = sphi 0, %s61
    %s83 = sphi 0, %s85
    %s86 = sphi 0, %s83
    %s87 = sphi 0, %s86
    %s103 = sphi 0, %s87
    %s111 = sphi 0, %s113
    %s114 = sphi 0, %s111
    %s115 = sphi 0, %s114
    %s131 = sphi 0, %s115
  $region4: #{resnet_block_forward.3} parent=0 // loop_header_branch
    %13 = sbr.rel (%p11) target = $region8
  $region5: #{resnet_block_forward.3} parent=0 // loop_body
    %s15 = ssub.s32 %s10, 1
    %s16 = ssub.s32 %s10, 2
    %s23 = sadd.s32 1, %s18
    %p24 = scmp.ge.s32.totalorder %s23, 1
    %s25 = scalar_select %p24, 0, %s23
    %s26 = sadd.s32 1, %s17
    %s27 = scalar_select %p24, %s26, %s17
    %p28 = scmp.ge.s32.totalorder %s27, 2
    %s29 = scalar_select %p28, 0, %s27
    %s30 = sadd.s32 %s17, %s18
    %s31 = sadd.s32 %s29, %s25
    %s32 = ssub.s32 %s30, %s31
    %p33 = scmp.eq.s32.totalorder %s32, 0
    %s35 = sadd.s32 %s34, 1
    %s36 = scalar_select %p33, %s34, %s35
    %p39 = pneg %p33
    %p40 = scmp.eq.s32.totalorder %s10, 1
    %p41 = por %p39, %p40
    %p42 = scmp.ne.s32.totalorder %s34, %s37
    %p43 = scmp.eq.s32.totalorder %s10, 0
    %p44 = por %p42, %p43
    %p45 = scmp.ne.s32.totalorder %s34, %s37
    %p46 = scmp.eq.s32.totalorder %s15, 1
    %p47 = por %p45, %p46
    %p48 = scmp.ne.s32.totalorder %s37, %s38
    %p49 = scmp.eq.s32.totalorder %s15, 0
    %p50 = por %p48, %p49
    %p51 = scmp.ne.s32.totalorder %s37, %s38
    %p52 = scmp.eq.s32.totalorder %s16, 1
    %p53 = por %p51, %p52
    %p55 = scmp.ne.s32.totalorder %s38, %s54
    %p56 = scmp.eq.s32.totalorder %s16, 0
    %p57 = por %p55, %p56
    %s59 = sadd.s32 %s58, 1
    %p62 = scmp.eq.s32.totalorder %s10, 1
    %p63 = scmp.ne.s32.totalorder %s58, %s60
    %p64 = scmp.eq.s32.totalorder %s10, 0
    %p65 = por %p63, %p64
    %p66 = scmp.ne.s32.totalorder %s58, %s60
    %p67 = scmp.eq.s32.totalorder %s15, 1
    %p68 = por %p66, %p67
    %p69 = scmp.ne.s32.totalorder %s60, %s61
    %p70 = scmp.eq.s32.totalorder %s15, 0
    %p71 = por %p69, %p70
    %p72 = scmp.ne.s32.totalorder %s60, %s61
    %p73 = scmp.eq.s32.totalorder %s16, 1
    %p74 = por %p72, %p73
    %p76 = scmp.ne.s32.totalorder %s61, %s75
    %p77 = scmp.eq.s32.totalorder %s16, 0
    %p78 = por %p76, %p77
    %s79 = ssub.s32 %s17, %s29
    %s80 = ssub.s32 %s18, %s25
    %s81 = sor.u32 %s79, %s80
    %p82 = scmp.eq.s32.totalorder %s81, 0
    %s84 = sadd.s32 %s83, 1
    %s85 = scalar_select %p82, %s83, %s84
    %p88 = pneg %p82
    %p89 = scmp.eq.s32.totalorder %s10, 1
    %p90 = por %p88, %p89
    %p91 = scmp.ne.s32.totalorder %s83, %s86
    %p92 = scmp.eq.s32.totalorder %s10, 0
    %p93 = por %p91, %p92
    %p94 = scmp.ne.s32.totalorder %s83, %s86
    %p95 = scmp.eq.s32.totalorder %s15, 1
    %p96 = por %p94, %p95
    %p97 = scmp.ne.s32.totalorder %s86, %s87
    %p98 = scmp.eq.s32.totalorder %s15, 0
    %p99 = por %p97, %p98
    %p100 = scmp.ne.s32.totalorder %s86, %s87
    %p101 = scmp.eq.s32.totalorder %s16, 1
    %p102 = por %p100, %p101
    %p104 = scmp.ne.s32.totalorder %s87, %s103
    %p105 = scmp.eq.s32.totalorder %s16, 0
    %p106 = por %p104, %p105
    %s107 = sadd.s32 %s17, %s18
    %s108 = sadd.s32 %s29, %s25
    %s109 = ssub.s32 %s107, %s108
    %p110 = scmp.eq.s32.totalorder %s109, 0
    %s112 = sadd.s32 %s111, 1
    %s113 = scalar_select %p110, %s111, %s112
    %p116 = pneg %p110
    %p117 = scmp.eq.s32.totalorder %s10, 1
    %p118 = por %p116, %p117
    %p119 = scmp.ne.s32.totalorder %s111, %s114
    %p120 = scmp.eq.s32.totalorder %s10, 0
    %p121 = por %p119, %p120
    %p122 = scmp.ne.s32.totalorder %s111, %s114
    %p123 = scmp.eq.s32.totalorder %s15, 1
    %p124 = por %p122, %p123
    %p125 = scmp.ne.s32.totalorder %s114, %s115
    %p126 = scmp.eq.s32.totalorder %s15, 0
    %p127 = por %p125, %p126
    %p128 = scmp.ne.s32.totalorder %s114, %s115
    %p129 = scmp.eq.s32.totalorder %s16, 1
    %p130 = por %p128, %p129
    %p132 = scmp.ne.s32.totalorder %s115, %s131
    %p133 = scmp.eq.s32.totalorder %s16, 0
    %p134 = por %p132, %p133
    %p135 = scmp.le.s32.totalorder 1, %s10
    %p136 = scmp.lt.s32.totalorder %s10, 3
    %p137 = pnand %p135, %p136
    %p138 = pneg %p137
    // Predicated region
    $region9: #{resnet_block_forward.3} parent=5 // pred_check
      _
    $region10: #{resnet_block_forward.3} parent=5 // pred_check_branch
      %140 = sbr.rel (%p137) target = $region12
    $region11: #{resnet_block_forward.3} parent=5 // pred_region
      %s141 = ssub.s32 %s10, 1
      // Predicated region
      $region13: #{resnet_block_forward.3} parent=11 // pred_check
        %p142 = pneg %p71
      $region14: #{resnet_block_forward.3} parent=11 // pred_check_branch
        %144 = sbr.rel (%p142) target = $region16
      $region15: #{resnet_block_forward.3} parent=11 // pred_region
        _
      $region16: #{resnet_block_forward.3} parent=11 // pred_fallthru
        _
    $region12: #{resnet_block_forward.3} parent=5 // pred_fallthru
      _
    %p145 = scmp.lt.s32.totalorder %s10, 2
    // Predicated region
    $region17: #{resnet_block_forward.3} parent=5 // pred_check
      %p146 = pneg %p145
    $region18: #{resnet_block_forward.3} parent=5 // pred_check_branch
      %148 = sbr.rel (%p146) target = $region20
    $region19: #{resnet_block_forward.3} parent=5 // pred_region
      // Predicated region
      $region21: #{resnet_block_forward.3} parent=19 // pred_check
        %p149 = pneg %p44
      $region22: #{resnet_block_forward.3} parent=19 // pred_check_branch
        %151 = sbr.rel (%p149) target = $region24
      $region23: #{resnet_block_forward.3} parent=19 // pred_region
        %s152 = sadd.s32 %s17, %s18
        %p153 = scmp.lt.s32.totalorder %s152, 1
        %s154 = scalar_select %p153, %s152, 1
        %s155 = smul.addr %s154, 54
        %s156 = smul.addr %s155, 4
        %s157 = scalar_lea.vmem %s0, %s156
        %s158 = sadd.s32 %s17, %s18
      $region24: #{resnet_block_forward.3} parent=19 // pred_fallthru
        _
    $region20: #{resnet_block_forward.3} parent=5 // pred_fallthru
      _
    %p159 = scmp.le.s32.totalorder 1, %s10
    %p160 = scmp.lt.s32.totalorder %s10, 3
    %p161 = pnand %p159, %p160
    %p162 = pneg %p161
    // Predicated region
    $region25: #{resnet_block_forward.3} parent=5 // pred_check
      _
    $region26: #{resnet_block_forward.3} parent=5 // pred_check_branch
      %164 = sbr.rel (%p161) target = $region28
    $region27: #{resnet_block_forward.3} parent=5 // pred_region
      %s165 = ssub.s32 %s10, 1
      %s166 = sadd.s32 %s19, %s20
      %p167 = scmp.lt.s32.totalorder %s166, 1
      %s168 = scalar_select %p167, %s166, 1
      %s169 = smul.addr %s168, 54
      %s170 = smul.addr %s169, 4
      %s171 = scalar_lea.vmem %s0, %s170
      %p172 = pneg %p50
      %p173 = pneg %p47
      %p174 = pneg %p71
      %p175 = pneg %p68
      %p176 = pneg %p99
      %p177 = pneg %p96
      %s178 = smul.u32 16, %s20
      %p179 = scmp.lt.s32.totalorder %s19, 1
      %s180 = scalar_select %p179, %s19, 1
      %p181 = scmp.lt.s32.totalorder %s178, 15
      %s182 = scalar_select %p181, %s178, 15
      %s183 = smul.addr %s182, 2
      %s184 = smul.addr %s180, 32
      %s185 = sadd.s32 %s183, %s184
      %s186 = smul.addr %s185, 4
      %s187 = scalar_lea.vmem %s2, %s186
      %p188 = pneg %p127
      %p189 = pneg %p124
      %s190 = sadd.s32 %s19, %s20
      %p191 = scmp.lt.s32.totalorder %s190, 1
      %s192 = scalar_select %p191, %s190, 1
      %s193 = smul.addr %s192, 2
      %s194 = scalar_lea.vmem %s3, %s193
      %s195 = sadd.s32 %s19, %s20
      %p196 = scmp.lt.s32.totalorder %s195, 1
      %s197 = scalar_select %p196, %s195, 1
      %s198 = smul.addr %s197, 54
      %s199 = smul.addr %s198, 4
      %s200 = scalar_lea.vmem %s0, %s199
      %s201 = sadd.s32 %s19, %s20
      %s202 = smul.u32 16, %s20
      %p203 = scmp.lt.s32.totalorder %s19, 1
      %s204 = scalar_select %p203, %s19, 1
      %p205 = scmp.lt.s32.totalorder %s202, 15
      %s206 = scalar_select %p205, %s202, 15
      %s207 = smul.addr %s206, 2
      %s208 = smul.addr %s204, 32
      %s209 = sadd.s32 %s207, %s208
      %s210 = smul.addr %s209, 4
      %s211 = scalar_lea.vmem %s2, %s210
      %s212 = smul.u32 16, %s20
      %s213 = sadd.s32 %s19, %s20
      %p214 = scmp.lt.s32.totalorder %s213, 1
      %s215 = scalar_select %p214, %s213, 1
      %s216 = smul.addr %s215, 2
      %s217 = scalar_lea.vmem %s3, %s216
      %s218 = sadd.s32 %s19, %s20
      %v220 = vld [vmem:[%s200] sm:$0xf]
      %v221 = vld [vmem:[%s200 + $0x4] sm:$0xf]
      %v222 = vld [vmem:[%s200 + $0xc] sm:$0xf]
      %v223 = vld [vmem:[%s200 + $0x10] sm:$0xf]
      %v224 = vld [vmem:[%s200 + $0x18] sm:$0xf]
      %v225 = vld [vmem:[%s200 + $0x1c] sm:$0xf]
      %v226 = vld [vmem:[%s200 + $0x24] sm:$0xf]
      %v227 = vld [vmem:[%s200 + $0x28] sm:$0xf]
      %v228 = vld [vmem:[%s200 + $0x30] sm:$0xf]
      %v229 = vld [vmem:[%s200 + $0x34] sm:$0xf]
      %v230 = vld [vmem:[%s200 + $0x3c] sm:$0xf]
      %v231 = vld [vmem:[%s200 + $0x40] sm:$0xf]
      %v232 = vld [vmem:[%s200 + $0x48] sm:$0xf]
      %v233 = vld [vmem:[%s200 + $0x4c] sm:$0xf]
      %v234 = vld [vmem:[%s200 + $0x54] sm:$0xf]
      %v235 = vld [vmem:[%s200 + $0x58] sm:$0xf]
      %v236 = vld [vmem:[%s200 + $0x60] sm:$0xf]
      %v237 = vld [vmem:[%s200 + $0x64] sm:$0xf]
      %v238 = vld [vmem:[%s200 + $0x6c] sm:$0xf]
      %v239 = vld [vmem:[%s200 + $0x70] sm:$0xf]
      %v240 = vld [vmem:[%s200 + $0x78] sm:$0xf]
      %v241 = vld [vmem:[%s200 + $0x7c] sm:$0xf]
      %v242 = vld [vmem:[%s200 + $0x84] sm:$0xf]
      %v243 = vld [vmem:[%s200 + $0x88] sm:$0xf]
      %v244 = vld [vmem:[%s200 + $0x90] sm:$0xf]
      %v245 = vld [vmem:[%s200 + $0x94] sm:$0xf]
      %v246 = vld [vmem:[%s200 + $0x9c] sm:$0xf]
      %v247 = vld [vmem:[%s200 + $0xa0] sm:$0xf]
      %v248 = vld [vmem:[%s200 + $0xa8] sm:$0xf]
      %v249 = vld [vmem:[%s200 + $0xac] sm:$0xf]
      %v250 = vld [vmem:[%s200 + $0xb4] sm:$0xf]
      %v251 = vld [vmem:[%s200 + $0xb8] sm:$0xf]
      %v252 = vld [vmem:[%s1] sm:$0xf]
      %v253 = vld [vmem:[%s1 + $0x4] sm:$0xf]
      %v254 = vld [vmem:[%s200 + $0x8] sm:$0x1]
      %v255 = vld [vmem:[%s200 + $0x14] sm:$0x1]
      %v256 = vld [vmem:[%s200 + $0x20] sm:$0x1]
      %v257 = vld [vmem:[%s200 + $0x2c] sm:$0x1]
      %v258 = vld [vmem:[%s200 + $0x38] sm:$0x1]
      %v259 = vld [vmem:[%s200 + $0x44] sm:$0x1]
      %v260 = vld [vmem:[%s200 + $0x50] sm:$0x1]
      %v261 = vld [vmem:[%s200 + $0x5c] sm:$0x1]
      %v262 = vld [vmem:[%s200 + $0x68] sm:$0x1]
      %v263 = vld [vmem:[%s200 + $0x74] sm:$0x1]
      %v264 = vld [vmem:[%s200 + $0x80] sm:$0x1]
      %v265 = vld [vmem:[%s200 + $0x8c] sm:$0x1]
      %v266 = vld [vmem:[%s200 + $0x98] sm:$0x1]
      %v267 = vld [vmem:[%s200 + $0xa4] sm:$0x1]
      %v268 = vld [vmem:[%s200 + $0xb0] sm:$0x1]
      %v269 = vld [vmem:[%s200 + $0xbc] sm:$0x1]
      %vm270 = vsmask.f32 3328
      %vm271 = vsmask.f32 7440
      %vm272 = vmor %vm270, %vm271
      %v274 = vshrl.u32 %v220, 16
      %v276 = vrot.slane %v274, 4
      %v277 = vshll.u32 %v220, 16
      %v279 = vrot.slane %v277, 5
      %v280 = vor.u32 %v276, %v279
      %v281 = vrot.slane %v280, 4
      %v283 = vshll.u32 %v221, 16
      %v285 = vrot.slane %v283, 5
      %v286 = vsel %vm272, %v281, %v285
      %v287 = vshrl.u32 %v221, 16
      %v289 = vrot.slane %v287, 4
      %v290 = vor.u32 %v289, %v285
      %v291 = vrot.slane %v290, 4
      %v293 = vshll.u32 %v254, 16
      %v295 = vrot.slane %v293, 5
      %v296 = vsel %vm272, %v291, %v295
      %v298 = vshrl.u32 %v222, 16
      %v300 = vrot.slane %v298, 4
      %v301 = vshll.u32 %v222, 16
      %v303 = vrot.slane %v301, 5
      %v304 = vor.u32 %v300, %v303
      %v305 = vrot.slane %v304, 4
      %v307 = vshll.u32 %v223, 16
      %v309 = vrot.slane %v307, 5
      %v310 = vsel %vm272, %v305, %v309
      %v311 = vshrl.u32 %v223, 16
      %v313 = vrot.slane %v311, 4
      %v314 = vor.u32 %v313, %v309
      %v315 = vrot.slane %v314, 4
      %v317 = vshll.u32 %v255, 16
      %v319 = vrot.slane %v317, 5
      %v320 = vsel %vm272, %v315, %v319
      %v322 = vshrl.u32 %v224, 16
      %v324 = vrot.slane %v322, 4
      %v325 = vshll.u32 %v224, 16
      %v327 = vrot.slane %v325, 5
      %v328 = vor.u32 %v324, %v327
      %v329 = vrot.slane %v328, 4
      %v331 = vshll.u32 %v225, 16
      %v333 = vrot.slane %v331, 5
      %v334 = vsel %vm272, %v329, %v333
      %v335 = vshrl.u32 %v225, 16
      %v337 = vrot.slane %v335, 4
      %v338 = vor.u32 %v337, %v333
      %v339 = vrot.slane %v338, 4
      %v341 = vshll.u32 %v256, 16
      %v343 = vrot.slane %v341, 5
      %v344 = vsel %vm272, %v339, %v343
      %v346 = vshrl.u32 %v226, 16
      %v348 = vrot.slane %v346, 4
      %v349 = vshll.u32 %v226, 16
      %v351 = vrot.slane %v349, 5
      %v352 = vor.u32 %v348, %v351
      %v353 = vrot.slane %v352, 4
      %v355 = vshll.u32 %v227, 16
      %v357 = vrot.slane %v355, 5
      %v358 = vsel %vm272, %v353, %v357
      %v359 = vshrl.u32 %v227, 16
      %v361 = vrot.slane %v359, 4
      %v362 = vor.u32 %v361, %v357
      %v363 = vrot.slane %v362, 4
      %v365 = vshll.u32 %v257, 16
      %v367 = vrot.slane %v365, 5
      %v368 = vsel %vm272, %v363, %v367
      %v370 = vshrl.u32 %v228, 16
      %v372 = vrot.slane %v370, 4
      %v373 = vshll.u32 %v228, 16
      %v375 = vrot.slane %v373, 5
      %v376 = vor.u32 %v372, %v375
      %v377 = vrot.slane %v376, 4
      %v379 = vshll.u32 %v229, 16
      %v381 = vrot.slane %v379, 5
      %v382 = vsel %vm272, %v377, %v381
      %v383 = vshrl.u32 %v229, 16
      %v385 = vrot.slane %v383, 4
      %v386 = vor.u32 %v385, %v381
      %v387 = vrot.slane %v386, 4
      %v389 = vshll.u32 %v258, 16
      %v391 = vrot.slane %v389, 5
      %v392 = vsel %vm272, %v387, %v391
      %v394 = vshrl.u32 %v230, 16
      %v396 = vrot.slane %v394, 4
      %v397 = vshll.u32 %v230, 16
      %v399 = vrot.slane %v397, 5
      %v400 = vor.u32 %v396, %v399
      %v401 = vrot.slane %v400, 4
      %v403 = vshll.u32 %v231, 16
      %v405 = vrot.slane %v403, 5
      %v406 = vsel %vm272, %v401, %v405
      %v407 = vshrl.u32 %v231, 16
      %v409 = vrot.slane %v407, 4
      %v410 = vor.u32 %v409, %v405
      %v411 = vrot.slane %v410, 4
      %v413 = vshll.u32 %v259, 16
      %v415 = vrot.slane %v413, 5
      %v416 = vsel %vm272, %v411, %v415
      %v418 = vshrl.u32 %v232, 16
      %v420 = vrot.slane %v418, 4
      %v421 = vshll.u32 %v232, 16
      %v423 = vrot.slane %v421, 5
      %v424 = vor.u32 %v420, %v423
      %v425 = vrot.slane %v424, 4
      %v427 = vshll.u32 %v233, 16
      %v429 = vrot.slane %v427, 5
      %v430 = vsel %vm272, %v425, %v429
      %v431 = vshrl.u32 %v233, 16
      %v433 = vrot.slane %v431, 4
      %v434 = vor.u32 %v433, %v429
      %v435 = vrot.slane %v434, 4
      %v437 = vshll.u32 %v260, 16
      %v439 = vrot.slane %v437, 5
      %v440 = vsel %vm272, %v435, %v439
      %v442 = vshrl.u32 %v234, 16
      %v444 = vrot.slane %v442, 4
      %v445 = vshll.u32 %v234, 16
      %v447 = vrot.slane %v445, 5
      %v448 = vor.u32 %v444, %v447
      %v449 = vrot.slane %v448, 4
      %v451 = vshll.u32 %v235, 16
      %v453 = vrot.slane %v451, 5
      %v454 = vsel %vm272, %v449, %v453
      %v455 = vshrl.u32 %v235, 16
      %v457 = vrot.slane %v455, 4
      %v458 = vor.u32 %v457, %v453
      %v459 = vrot.slane %v458, 4
      %v461 = vshll.u32 %v261, 16
      %v463 = vrot.slane %v461, 5
      %v464 = vsel %vm272, %v459, %v463
      %v466 = vshrl.u32 %v236, 16
      %v468 = vrot.slane %v466, 4
      %v469 = vshll.u32 %v236, 16
      %v471 = vrot.slane %v469, 5
      %v472 = vor.u32 %v468, %v471
      %v473 = vrot.slane %v472, 4
      %v475 = vshll.u32 %v237, 16
      %v477 = vrot.slane %v475, 5
      %v478 = vsel %vm272, %v473, %v477
      %v479 = vshrl.u32 %v237, 16
      %v481 = vrot.slane %v479, 4
      %v482 = vor.u32 %v481, %v477
      %v483 = vrot.slane %v482, 4
      %v485 = vshll.u32 %v262, 16
      %v487 = vrot.slane %v485, 5
      %v488 = vsel %vm272, %v483, %v487
      %v490 = vshrl.u32 %v238, 16
      %v492 = vrot.slane %v490, 4
      %v493 = vshll.u32 %v238, 16
      %v495 = vrot.slane %v493, 5
      %v496 = vor.u32 %v492, %v495
      %v497 = vrot.slane %v496, 4
      %v499 = vshll.u32 %v239, 16
      %v501 = vrot.slane %v499, 5
      %v502 = vsel %vm272, %v497, %v501
      %v503 = vshrl.u32 %v239, 16
      %v505 = vrot.slane %v503, 4
      %v506 = vor.u32 %v505, %v501
      %v507 = vrot.slane %v506, 4
      %v509 = vshll.u32 %v263, 16
      %v511 = vrot.slane %v509, 5
      %v512 = vsel %vm272, %v507, %v511
      %v514 = vshrl.u32 %v240, 16
      %v516 = vrot.slane %v514, 4
      %v517 = vshll.u32 %v240, 16
      %v519 = vrot.slane %v517, 5
      %v520 = vor.u32 %v516, %v519
      %v521 = vrot.slane %v520, 4
      %v523 = vshll.u32 %v241, 16
      %v525 = vrot.slane %v523, 5
      %v526 = vsel %vm272, %v521, %v525
      %v527 = vshrl.u32 %v241, 16
      %v529 = vrot.slane %v527, 4
      %v530 = vor.u32 %v529, %v525
      %v531 = vrot.slane %v530, 4
      %v533 = vshll.u32 %v264, 16
      %v535 = vrot.slane %v533, 5
      %v536 = vsel %vm272, %v531, %v535
      %v538 = vshrl.u32 %v242, 16
      %v540 = vrot.slane %v538, 4
      %v541 = vshll.u32 %v242, 16
      %v543 = vrot.slane %v541, 5
      %v544 = vor.u32 %v540, %v543
      %v545 = vrot.slane %v544, 4
      %v547 = vshll.u32 %v243, 16
      %v549 = vrot.slane %v547, 5
      %v550 = vsel %vm272, %v545, %v549
      %v551 = vshrl.u32 %v243, 16
      %v553 = vrot.slane %v551, 4
      %v554 = vor.u32 %v553, %v549
      %v555 = vrot.slane %v554, 4
      %v557 = vshll.u32 %v265, 16
      %v559 = vrot.slane %v557, 5
      %v560 = vsel %vm272, %v555, %v559
      %v562 = vshrl.u32 %v244, 16
      %v564 = vrot.slane %v562, 4
      %v565 = vshll.u32 %v244, 16
      %v567 = vrot.slane %v565, 5
      %v568 = vor.u32 %v564, %v567
      %v569 = vrot.slane %v568, 4
      %v571 = vshll.u32 %v245, 16
      %v573 = vrot.slane %v571, 5
      %v574 = vsel %vm272, %v569, %v573
      %v575 = vshrl.u32 %v245, 16
      %v577 = vrot.slane %v575, 4
      %v578 = vor.u32 %v577, %v573
      %v579 = vrot.slane %v578, 4
      %v581 = vshll.u32 %v266, 16
      %v583 = vrot.slane %v581, 5
      %v584 = vsel %vm272, %v579, %v583
      %v586 = vshrl.u32 %v246, 16
      %v588 = vrot.slane %v586, 4
      %v589 = vshll.u32 %v246, 16
      %v591 = vrot.slane %v589, 5
      %v592 = vor.u32 %v588, %v591
      %v593 = vrot.slane %v592, 4
      %v595 = vshll.u32 %v247, 16
      %v597 = vrot.slane %v595, 5
      %v598 = vsel %vm272, %v593, %v597
      %v599 = vshrl.u32 %v247, 16
      %v601 = vrot.slane %v599, 4
      %v602 = vor.u32 %v601, %v597
      %v603 = vrot.slane %v602, 4
      %v605 = vshll.u32 %v267, 16
      %v607 = vrot.slane %v605, 5
      %v608 = vsel %vm272, %v603, %v607
      %v610 = vshrl.u32 %v248, 16
      %v612 = vrot.slane %v610, 4
      %v613 = vshll.u32 %v248, 16
      %v615 = vrot.slane %v613, 5
      %v616 = vor.u32 %v612, %v615
      %v617 = vrot.slane %v616, 4
      %v619 = vshll.u32 %v249, 16
      %v621 = vrot.slane %v619, 5
      %v622 = vsel %vm272, %v617, %v621
      %v623 = vshrl.u32 %v249, 16
      %v625 = vrot.slane %v623, 4
      %v626 = vor.u32 %v625, %v621
      %v627 = vrot.slane %v626, 4
      %v629 = vshll.u32 %v268, 16
      %v631 = vrot.slane %v629, 5
      %v632 = vsel %vm272, %v627, %v631
      %v634 = vshrl.u32 %v250, 16
      %v636 = vrot.slane %v634, 4
      %v637 = vshll.u32 %v250, 16
      %v639 = vrot.slane %v637, 5
      %v640 = vor.u32 %v636, %v639
      %v641 = vrot.slane %v640, 4
      %v643 = vshll.u32 %v251, 16
      %v645 = vrot.slane %v643, 5
      %v646 = vsel %vm272, %v641, %v645
      %v647 = vshrl.u32 %v251, 16
      %v649 = vrot.slane %v647, 4
      %v650 = vor.u32 %v649, %v645
      %v651 = vrot.slane %v650, 4
      %v653 = vshll.u32 %v269, 16
      %v655 = vrot.slane %v653, 5
      %v656 = vsel %vm272, %v651, %v655
      %s657 = scalar_lea.vmem %s1, 8
      %v658 = vld [vmem:[%s657] sm:$0xf]
      %v659 = vld [vmem:[%s657 + $0x4] sm:$0xf]
      %v660 = vunpack.c.l.b16 %v286
      %v661 = vunpack.c.l.b16 %v296
      %v662 = vunpack.c.l.b16 %v310
      %v663 = vunpack.c.l.b16 %v320
      %v664 = vunpack.c.l.b16 %v334
      %v665 = vunpack.c.l.b16 %v344
      %v666 = vunpack.c.l.b16 %v358
      %v667 = vunpack.c.l.b16 %v368
      %v668 = vunpack.c.l.b16 %v382
      %v669 = vunpack.c.l.b16 %v392
      %v670 = vunpack.c.l.b16 %v406
      %v671 = vunpack.c.l.b16 %v416
      %v672 = vunpack.c.l.b16 %v430
      %v673 = vunpack.c.l.b16 %v440
      %v674 = vunpack.c.l.b16 %v454
      %v675 = vunpack.c.l.b16 %v464
      %v676 = vunpack.c.l.b16 %v478
      %v677 = vunpack.c.l.b16 %v488
      %v678 = vunpack.c.l.b16 %v502
      %v679 = vunpack.c.l.b16 %v512
      %v680 = vunpack.c.l.b16 %v526
      %v681 = vunpack.c.l.b16 %v536
      %v682 = vunpack.c.l.b16 %v550
      %v683 = vunpack.c.l.b16 %v560
      %v684 = vunpack.c.l.b16 %v574
      %v685 = vunpack.c.l.b16 %v584
      %v686 = vunpack.c.l.b16 %v598
      %v687 = vunpack.c.l.b16 %v608
      %v688 = vunpack.c.l.b16 %v622
      %v689 = vunpack.c.l.b16 %v632
      %v690 = vunpack.c.l.b16 %v646
      %v691 = vunpack.c.l.b16 %v656
      %v692 = vpack.c.b16 %v661, %v660
      %v693 = vpack.c.b16 %v663, %v662
      %v694 = vpack.c.b16 %v665, %v664
      %v695 = vpack.c.b16 %v667, %v666
      %v696 = vpack.c.b16 %v669, %v668
      %v697 = vpack.c.b16 %v671, %v670
      %v698 = vpack.c.b16 %v673, %v672
      %v699 = vpack.c.b16 %v675, %v674
      %v700 = vpack.c.b16 %v677, %v676
      %v701 = vpack.c.b16 %v679, %v678
      %v702 = vpack.c.b16 %v681, %v680
      %v703 = vpack.c.b16 %v683, %v682
      %v704 = vpack.c.b16 %v685, %v684
      %v705 = vpack.c.b16 %v687, %v686
      %v706 = vpack.c.b16 %v689, %v688
      %v707 = vpack.c.b16 %v691, %v690
      %v710 = vunpack.c.l.b16 %v658
      %v711 = vunpack.c.l.b16 %v659
      %v712 = vpack.c.b16 %v711, %v710
      %vm714 = vcmask 130048
      %v716 = vsel %vm714, %v692, 0
      %v719 = vsel %vm714, %v693, 0
      %v722 = vsel %vm714, %v694, 0
      %v725 = vsel %vm714, %v695, 0
      %v728 = vsel %vm714, %v696, 0
      %v731 = vsel %vm714, %v697, 0
      %v734 = vsel %vm714, %v698, 0
      %v737 = vsel %vm714, %v699, 0
      %v740 = vsel %vm714, %v700, 0
      %v743 = vsel %vm714, %v701, 0
      %v746 = vsel %vm714, %v702, 0
      %v749 = vsel %vm714, %v703, 0
      %v752 = vsel %vm714, %v704, 0
      %v755 = vsel %vm714, %v705, 0
      %v758 = vsel %vm714, %v706, 0
      %v761 = vsel %vm714, %v707, 0
      %763 = vmatpush.bf16.msra.mxu0 0
      %764 = vmatpush.bf16.msra.mxu0 0
      %765 = vmatpush.bf16.msra.mxu0 0
      %766 = vmatpush.bf16.msra.mxu0 0
      %767 = vmatpush.bf16.msra.mxu0 0
      %768 = vmatpush.bf16.msra.mxu0 0
      %769 = vmatpush.bf16.msra.mxu0 0
      %770 = vmatpush.bf16.msra.mxu0 %v712
      %771 = vmatmul.bf16.gmra.mxu0 %v716
      %v772 = vpop.f32.mrf.mxu0
      %v773 = vadd.f32 0.0, %v772
      %v774 = vpop.f32.mrf.mxu0
      %v775 = vadd.f32 0.0, %v774
      %776 = vmatmul.bf16.gmra.mxu0 %v719
      %v777 = vpop.f32.mrf.mxu0
      %v778 = vadd.f32 0.0, %v777
      %v779 = vpop.f32.mrf.mxu0
      %v780 = vadd.f32 0.0, %v779
      %781 = vmatmul.bf16.gmra.mxu0 %v722
      %v782 = vpop.f32.mrf.mxu0
      %v783 = vadd.f32 0.0, %v782
      %v784 = vpop.f32.mrf.mxu0
      %v785 = vadd.f32 0.0, %v784
      %786 = vmatmul.bf16.gmra.mxu0 %v725
      %v787 = vpop.f32.mrf.mxu0
      %v788 = vadd.f32 0.0, %v787
      %v789 = vpop.f32.mrf.mxu0
      %v790 = vadd.f32 0.0, %v789
      %791 = vmatmul.bf16.gmra.mxu0 %v728
      %v792 = vpop.f32.mrf.mxu0
      %v793 = vadd.f32 0.0, %v792
      %v794 = vpop.f32.mrf.mxu0
      %v795 = vadd.f32 0.0, %v794
      %796 = vmatmul.bf16.gmra.mxu0 %v731
      %v797 = vpop.f32.mrf.mxu0
      %v798 = vadd.f32 0.0, %v797
      %v799 = vpop.f32.mrf.mxu0
      %v800 = vadd.f32 0.0, %v799
      %801 = vmatmul.bf16.gmra.mxu0 %v734
      %v802 = vpop.f32.mrf.mxu0
      %v803 = vadd.f32 0.0, %v802
      %v804 = vpop.f32.mrf.mxu0
      %v805 = vadd.f32 0.0, %v804
      %806 = vmatmul.bf16.gmra.mxu0 %v737
      %v807 = vpop.f32.mrf.mxu0
      %v808 = vadd.f32 0.0, %v807
      %v809 = vpop.f32.mrf.mxu0
      %v810 = vadd.f32 0.0, %v809
      %811 = vmatmul.bf16.gmra.mxu0 %v740
      %v812 = vpop.f32.mrf.mxu0
      %v813 = vadd.f32 0.0, %v812
      %v814 = vpop.f32.mrf.mxu0
      %v815 = vadd.f32 0.0, %v814
      %816 = vmatmul.bf16.gmra.mxu0 %v743
      %v817 = vpop.f32.mrf.mxu0
      %v818 = vadd.f32 0.0, %v817
      %v819 = vpop.f32.mrf.mxu0
      %v820 = vadd.f32 0.0, %v819
      %821 = vmatmul.bf16.gmra.mxu0 %v746
      %v822 = vpop.f32.mrf.mxu0
      %v823 = vadd.f32 0.0, %v822
      %v824 = vpop.f32.mrf.mxu0
      %v825 = vadd.f32 0.0, %v824
      %826 = vmatmul.bf16.gmra.mxu0 %v749
      %v827 = vpop.f32.mrf.mxu0
      %v828 = vadd.f32 0.0, %v827
      %v829 = vpop.f32.mrf.mxu0
      %v830 = vadd.f32 0.0, %v829
      %831 = vmatmul.bf16.gmra.mxu0 %v752
      %v832 = vpop.f32.mrf.mxu0
      %v833 = vadd.f32 0.0, %v832
      %v834 = vpop.f32.mrf.mxu0
      %v835 = vadd.f32 0.0, %v834
      %836 = vmatmul.bf16.gmra.mxu0 %v755
      %v837 = vpop.f32.mrf.mxu0
      %v838 = vadd.f32 0.0, %v837
      %v839 = vpop.f32.mrf.mxu0
      %v840 = vadd.f32 0.0, %v839
      %841 = vmatmul.bf16.gmra.mxu0 %v758
      %v842 = vpop.f32.mrf.mxu0
      %v843 = vadd.f32 0.0, %v842
      %v844 = vpop.f32.mrf.mxu0
      %v845 = vadd.f32 0.0, %v844
      %846 = vmatmul.bf16.gmra.mxu0 %v761
      %v847 = vpop.f32.mrf.mxu0
      %v848 = vadd.f32 0.0, %v847
      %v849 = vpop.f32.mrf.mxu0
      %v850 = vadd.f32 0.0, %v849
      %851 = vdwg.mxu0
      %v884 = vunpack.c.l.b16 %v220
      %v885 = vunpack.c.l.b16 %v221
      %v886 = vunpack.c.l.b16 %v222
      %v887 = vunpack.c.l.b16 %v223
      %v888 = vunpack.c.l.b16 %v224
      %v889 = vunpack.c.l.b16 %v225
      %v890 = vunpack.c.l.b16 %v226
      %v891 = vunpack.c.l.b16 %v227
      %v892 = vunpack.c.l.b16 %v228
      %v893 = vunpack.c.l.b16 %v229
      %v894 = vunpack.c.l.b16 %v230
      %v895 = vunpack.c.l.b16 %v231
      %v896 = vunpack.c.l.b16 %v232
      %v897 = vunpack.c.l.b16 %v233
      %v898 = vunpack.c.l.b16 %v234
      %v899 = vunpack.c.l.b16 %v235
      %v900 = vunpack.c.l.b16 %v236
      %v901 = vunpack.c.l.b16 %v237
      %v902 = vunpack.c.l.b16 %v238
      %v903 = vunpack.c.l.b16 %v239
      %v904 = vunpack.c.l.b16 %v240
      %v905 = vunpack.c.l.b16 %v241
      %v906 = vunpack.c.l.b16 %v242
      %v907 = vunpack.c.l.b16 %v243
      %v908 = vunpack.c.l.b16 %v244
      %v909 = vunpack.c.l.b16 %v245
      %v910 = vunpack.c.l.b16 %v246
      %v911 = vunpack.c.l.b16 %v247
      %v912 = vunpack.c.l.b16 %v248
      %v913 = vunpack.c.l.b16 %v249
      %v914 = vunpack.c.l.b16 %v250
      %v915 = vunpack.c.l.b16 %v251
      %v916 = vpack.c.b16 %v885, %v884
      %v917 = vpack.c.b16 %v887, %v886
      %v918 = vpack.c.b16 %v889, %v888
      %v919 = vpack.c.b16 %v891, %v890
      %v920 = vpack.c.b16 %v893, %v892
      %v921 = vpack.c.b16 %v895, %v894
      %v922 = vpack.c.b16 %v897, %v896
      %v923 = vpack.c.b16 %v899, %v898
      %v924 = vpack.c.b16 %v901, %v900
      %v925 = vpack.c.b16 %v903, %v902
      %v926 = vpack.c.b16 %v905, %v904
      %v927 = vpack.c.b16 %v907, %v906
      %v928 = vpack.c.b16 %v909, %v908
      %v929 = vpack.c.b16 %v911, %v910
      %v930 = vpack.c.b16 %v913, %v912
      %v931 = vpack.c.b16 %v915, %v914
      %v934 = vunpack.c.l.b16 %v252
      %v935 = vunpack.c.l.b16 %v253
      %v936 = vpack.c.b16 %v935, %v934
      %v939 = vsel %vm714, %v916, 0
      %v942 = vsel %vm714, %v917, 0
      %v945 = vsel %vm714, %v918, 0
      %v948 = vsel %vm714, %v919, 0
      %v951 = vsel %vm714, %v920, 0
      %v954 = vsel %vm714, %v921, 0
      %v957 = vsel %vm714, %v922, 0
      %v960 = vsel %vm714, %v923, 0
      %v963 = vsel %vm714, %v924, 0
      %v966 = vsel %vm714, %v925, 0
      %v969 = vsel %vm714, %v926, 0
      %v972 = vsel %vm714, %v927, 0
      %v975 = vsel %vm714, %v928, 0
      %v978 = vsel %vm714, %v929, 0
      %v981 = vsel %vm714, %v930, 0
      %v984 = vsel %vm714, %v931, 0
      %986 = vmatpush.bf16.msra.mxu0 0
      %987 = vmatpush.bf16.msra.mxu0 0
      %988 = vmatpush.bf16.msra.mxu0 0
      %989 = vmatpush.bf16.msra.mxu0 0
      %990 = vmatpush.bf16.msra.mxu0 0
      %991 = vmatpush.bf16.msra.mxu0 0
      %992 = vmatpush.bf16.msra.mxu0 0
      %993 = vmatpush.bf16.msra.mxu0 %v936
      %994 = vmatmul.bf16.gmra.mxu0 %v939
      %v995 = vpop.f32.mrf.mxu0
      %v996 = vadd.f32 %v773, %v995
      %v997 = vpop.f32.mrf.mxu0
      %v998 = vadd.f32 %v775, %v997
      %999 = vmatmul.bf16.gmra.mxu0 %v942
      %v1000 = vpop.f32.mrf.mxu0
      %v1001 = vadd.f32 %v778, %v1000
      %v1002 = vpop.f32.mrf.mxu0
      %v1003 = vadd.f32 %v780, %v1002
      %1004 = vmatmul.bf16.gmra.mxu0 %v945
      %v1005 = vpop.f32.mrf.mxu0
      %v1006 = vadd.f32 %v783, %v1005
      %v1007 = vpop.f32.mrf.mxu0
      %v1008 = vadd.f32 %v785, %v1007
      %1009 = vmatmul.bf16.gmra.mxu0 %v948
      %v1010 = vpop.f32.mrf.mxu0
      %v1011 = vadd.f32 %v788, %v1010
      %v1012 = vpop.f32.mrf.mxu0
      %v1013 = vadd.f32 %v790, %v1012
      %1014 = vmatmul.bf16.gmra.mxu0 %v951
      %v1015 = vpop.f32.mrf.mxu0
      %v1016 = vadd.f32 %v793, %v1015
      %v1017 = vpop.f32.mrf.mxu0
      %v1018 = vadd.f32 %v795, %v1017
      %1019 = vmatmul.bf16.gmra.mxu0 %v954
      %v1020 = vpop.f32.mrf.mxu0
      %v1021 = vadd.f32 %v798, %v1020
      %v1022 = vpop.f32.mrf.mxu0
      %v1023 = vadd.f32 %v800, %v1022
      %1024 = vmatmul.bf16.gmra.mxu0 %v957
      %v1025 = vpop.f32.mrf.mxu0
      %v1026 = vadd.f32 %v803, %v1025
      %v1027 = vpop.f32.mrf.mxu0
      %v1028 = vadd.f32 %v805, %v1027
      %1029 = vmatmul.bf16.gmra.mxu0 %v960
      %v1030 = vpop.f32.mrf.mxu0
      %v1031 = vadd.f32 %v808, %v1030
      %v1032 = vpop.f32.mrf.mxu0
      %v1033 = vadd.f32 %v810, %v1032
      %1034 = vmatmul.bf16.gmra.mxu0 %v963
      %v1035 = vpop.f32.mrf.mxu0
      %v1036 = vadd.f32 %v813, %v1035
      %v1037 = vpop.f32.mrf.mxu0
      %v1038 = vadd.f32 %v815, %v1037
      %1039 = vmatmul.bf16.gmra.mxu0 %v966
      %v1040 = vpop.f32.mrf.mxu0
      %v1041 = vadd.f32 %v818, %v1040
      %v1042 = vpop.f32.mrf.mxu0
      %v1043 = vadd.f32 %v820, %v1042
      %1044 = vmatmul.bf16.gmra.mxu0 %v969
      %v1045 = vpop.f32.mrf.mxu0
      %v1046 = vadd.f32 %v823, %v1045
      %v1047 = vpop.f32.mrf.mxu0
      %v1048 = vadd.f32 %v825, %v1047
      %1049 = vmatmul.bf16.gmra.mxu0 %v972
      %v1050 = vpop.f32.mrf.mxu0
      %v1051 = vadd.f32 %v828, %v1050
      %v1052 = vpop.f32.mrf.mxu0
      %v1053 = vadd.f32 %v830, %v1052
      %1054 = vmatmul.bf16.gmra.mxu0 %v975
      %v1055 = vpop.f32.mrf.mxu0
      %v1056 = vadd.f32 %v833, %v1055
      %v1057 = vpop.f32.mrf.mxu0
      %v1058 = vadd.f32 %v835, %v1057
      %1059 = vmatmul.bf16.gmra.mxu0 %v978
      %v1060 = vpop.f32.mrf.mxu0
      %v1061 = vadd.f32 %v838, %v1060
      %v1062 = vpop.f32.mrf.mxu0
      %v1063 = vadd.f32 %v840, %v1062
      %1064 = vmatmul.bf16.gmra.mxu0 %v981
      %v1065 = vpop.f32.mrf.mxu0
      %v1066 = vadd.f32 %v843, %v1065
      %v1067 = vpop.f32.mrf.mxu0
      %v1068 = vadd.f32 %v845, %v1067
      %1069 = vmatmul.bf16.gmra.mxu0 %v984
      %v1070 = vpop.f32.mrf.mxu0
      %v1071 = vadd.f32 %v848, %v1070
      %v1072 = vpop.f32.mrf.mxu0
      %v1073 = vadd.f32 %v850, %v1072
      %1074 = vdwg.mxu0
      %v1075 = vld [vmem:[%s200] sm:$0xe]
      %v1076 = vld [vmem:[%s200 + $0xc] sm:$0xe]
      %v1077 = vld [vmem:[%s200 + $0x18] sm:$0xe]
      %v1078 = vld [vmem:[%s200 + $0x24] sm:$0xe]
      %v1079 = vld [vmem:[%s200 + $0x30] sm:$0xe]
      %v1080 = vld [vmem:[%s200 + $0x3c] sm:$0xe]
      %v1081 = vld [vmem:[%s200 + $0x48] sm:$0xe]
      %v1082 = vld [vmem:[%s200 + $0x54] sm:$0xe]
      %v1083 = vld [vmem:[%s200 + $0x60] sm:$0xe]
      %v1084 = vld [vmem:[%s200 + $0x6c] sm:$0xe]
      %v1085 = vld [vmem:[%s200 + $0x78] sm:$0xe]
      %v1086 = vld [vmem:[%s200 + $0x84] sm:$0xe]
      %v1087 = vld [vmem:[%s200 + $0x90] sm:$0xe]
      %v1088 = vld [vmem:[%s200 + $0x9c] sm:$0xe]
      %v1089 = vld [vmem:[%s200 + $0xa8] sm:$0xe]
      %v1090 = vld [vmem:[%s200 + $0xb4] sm:$0xe]
      %vm1123 = vcmask 1042432
      %vm1124 = vcmask 1046532
      %vm1125 = vmor %vm1123, %vm1124
      %v1126 = vrot.slane %v1075, 5
      %v1127 = vrot.slane %v1126, 4
      %v1128 = vrot.slane %v221, 5
      %v1129 = vsel %vm1125, %v1127, %v1128
      %v1130 = vrot.slane %v1128, 4
      %v1131 = vrot.slane %v254, 5
      %v1132 = vsel %vm1125, %v1130, %v1131
      %v1133 = vrot.slane %v1076, 5
      %v1134 = vrot.slane %v1133, 4
      %v1135 = vrot.slane %v223, 5
      %v1136 = vsel %vm1125, %v1134, %v1135
      %v1137 = vrot.slane %v1135, 4
      %v1138 = vrot.slane %v255, 5
      %v1139 = vsel %vm1125, %v1137, %v1138
      %v1140 = vrot.slane %v1077, 5
      %v1141 = vrot.slane %v1140, 4
      %v1142 = vrot.slane %v225, 5
      %v1143 = vsel %vm1125, %v1141, %v1142
      %v1144 = vrot.slane %v1142, 4
      %v1145 = vrot.slane %v256, 5
      %v1146 = vsel %vm1125, %v1144, %v1145
      %v1147 = vrot.slane %v1078, 5
      %v1148 = vrot.slane %v1147, 4
      %v1149 = vrot.slane %v227, 5
      %v1150 = vsel %vm1125, %v1148, %v1149
      %v1151 = vrot.slane %v1149, 4
      %v1152 = vrot.slane %v257, 5
      %v1153 = vsel %vm1125, %v1151, %v1152
      %v1154 = vrot.slane %v1079, 5
      %v1155 = vrot.slane %v1154, 4
      %v1156 = vrot.slane %v229, 5
      %v1157 = vsel %vm1125, %v1155, %v1156
      %v1158 = vrot.slane %v1156, 4
      %v1159 = vrot.slane %v258, 5
      %v1160 = vsel %vm1125, %v1158, %v1159
      %v1161 = vrot.slane %v1080, 5
      %v1162 = vrot.slane %v1161, 4
      %v1163 = vrot.slane %v231, 5
      %v1164 = vsel %vm1125, %v1162, %v1163
      %v1165 = vrot.slane %v1163, 4
      %v1166 = vrot.slane %v259, 5
      %v1167 = vsel %vm1125, %v1165, %v1166
      %v1168 = vrot.slane %v1081, 5
      %v1169 = vrot.slane %v1168, 4
      %v1170 = vrot.slane %v233, 5
      %v1171 = vsel %vm1125, %v1169, %v1170
      %v1172 = vrot.slane %v1170, 4
      %v1173 = vrot.slane %v260, 5
      %v1174 = vsel %vm1125, %v1172, %v1173
      %v1175 = vrot.slane %v1082, 5
      %v1176 = vrot.slane %v1175, 4
      %v1177 = vrot.slane %v235, 5
      %v1178 = vsel %vm1125, %v1176, %v1177
      %v1179 = vrot.slane %v1177, 4
      %v1180 = vrot.slane %v261, 5
      %v1181 = vsel %vm1125, %v1179, %v1180
      %v1182 = vrot.slane %v1083, 5
      %v1183 = vrot.slane %v1182, 4
      %v1184 = vrot.slane %v237, 5
      %v1185 = vsel %vm1125, %v1183, %v1184
      %v1186 = vrot.slane %v1184, 4
      %v1187 = vrot.slane %v262, 5
      %v1188 = vsel %vm1125, %v1186, %v1187
      %v1189 = vrot.slane %v1084, 5
      %v1190 = vrot.slane %v1189, 4
      %v1191 = vrot.slane %v239, 5
      %v1192 = vsel %vm1125, %v1190, %v1191
      %v1193 = vrot.slane %v1191, 4
      %v1194 = vrot.slane %v263, 5
      %v1195 = vsel %vm1125, %v1193, %v1194
      %v1196 = vrot.slane %v1085, 5
      %v1197 = vrot.slane %v1196, 4
      %v1198 = vrot.slane %v241, 5
      %v1199 = vsel %vm1125, %v1197, %v1198
      %v1200 = vrot.slane %v1198, 4
      %v1201 = vrot.slane %v264, 5
      %v1202 = vsel %vm1125, %v1200, %v1201
      %v1203 = vrot.slane %v1086, 5
      %v1204 = vrot.slane %v1203, 4
      %v1205 = vrot.slane %v243, 5
      %v1206 = vsel %vm1125, %v1204, %v1205
      %v1207 = vrot.slane %v1205, 4
      %v1208 = vrot.slane %v265, 5
      %v1209 = vsel %vm1125, %v1207, %v1208
      %v1210 = vrot.slane %v1087, 5
      %v1211 = vrot.slane %v1210, 4
      %v1212 = vrot.slane %v245, 5
      %v1213 = vsel %vm1125, %v1211, %v1212
      %v1214 = vrot.slane %v1212, 4
      %v1215 = vrot.slane %v266, 5
      %v1216 = vsel %vm1125, %v1214, %v1215
      %v1217 = vrot.slane %v1088, 5
      %v1218 = vrot.slane %v1217, 4
      %v1219 = vrot.slane %v247, 5
      %v1220 = vsel %vm1125, %v1218, %v1219
      %v1221 = vrot.slane %v1219, 4
      %v1222 = vrot.slane %v267, 5
      %v1223 = vsel %vm1125, %v1221, %v1222
      %v1224 = vrot.slane %v1089, 5
      %v1225 = vrot.slane %v1224, 4
      %v1226 = vrot.slane %v249, 5
      %v1227 = vsel %vm1125, %v1225, %v1226
      %v1228 = vrot.slane %v1226, 4
      %v1229 = vrot.slane %v268, 5
      %v1230 = vsel %vm1125, %v1228, %v1229
      %v1231 = vrot.slane %v1090, 5
      %v1232 = vrot.slane %v1231, 4
      %v1233 = vrot.slane %v251, 5
      %v1234 = vsel %vm1125, %v1232, %v1233
      %v1235 = vrot.slane %v1233, 4
      %v1236 = vrot.slane %v269, 5
      %v1237 = vsel %vm1125, %v1235, %v1236
      %s1238 = scalar_lea.vmem %s1, 16
      %v1239 = vld [vmem:[%s1238] sm:$0xf]
      %v1240 = vld [vmem:[%s1238 + $0x4] sm:$0xf]
      %v1241 = vunpack.c.l.b16 %v1129
      %v1242 = vunpack.c.l.b16 %v1132
      %v1243 = vunpack.c.l.b16 %v1136
      %v1244 = vunpack.c.l.b16 %v1139
      %v1245 = vunpack.c.l.b16 %v1143
      %v1246 = vunpack.c.l.b16 %v1146
      %v1247 = vunpack.c.l.b16 %v1150
      %v1248 = vunpack.c.l.b16 %v1153
      %v1249 = vunpack.c.l.b16 %v1157
      %v1250 = vunpack.c.l.b16 %v1160
      %v1251 = vunpack.c.l.b16 %v1164
      %v1252 = vunpack.c.l.b16 %v1167
      %v1253 = vunpack.c.l.b16 %v1171
      %v1254 = vunpack.c.l.b16 %v1174
      %v1255 = vunpack.c.l.b16 %v1178
      %v1256 = vunpack.c.l.b16 %v1181
      %v1257 = vunpack.c.l.b16 %v1185
      %v1258 = vunpack.c.l.b16 %v1188
      %v1259 = vunpack.c.l.b16 %v1192
      %v1260 = vunpack.c.l.b16 %v1195
      %v1261 = vunpack.c.l.b16 %v1199
      %v1262 = vunpack.c.l.b16 %v1202
      %v1263 = vunpack.c.l.b16 %v1206
      %v1264 = vunpack.c.l.b16 %v1209
      %v1265 = vunpack.c.l.b16 %v1213
      %v1266 = vunpack.c.l.b16 %v1216
      %v1267 = vunpack.c.l.b16 %v1220
      %v1268 = vunpack.c.l.b16 %v1223
      %v1269 = vunpack.c.l.b16 %v1227
      %v1270 = vunpack.c.l.b16 %v1230
      %v1271 = vunpack.c.l.b16 %v1234
      %v1272 = vunpack.c.l.b16 %v1237
      %v1273 = vpack.c.b16 %v1242, %v1241
      %v1274 = vpack.c.b16 %v1244, %v1243
      %v1275 = vpack.c.b16 %v1246, %v1245
      %v1276 = vpack.c.b16 %v1248, %v1247
      %v1277 = vpack.c.b16 %v1250, %v1249
      %v1278 = vpack.c.b16 %v1252, %v1251
      %v1279 = vpack.c.b16 %v1254, %v1253
      %v1280 = vpack.c.b16 %v1256, %v1255
      %v1281 = vpack.c.b16 %v1258, %v1257
      %v1282 = vpack.c.b16 %v1260, %v1259
      %v1283 = vpack.c.b16 %v1262, %v1261
      %v1284 = vpack.c.b16 %v1264, %v1263
      %v1285 = vpack.c.b16 %v1266, %v1265
      %v1286 = vpack.c.b16 %v1268, %v1267
      %v1287 = vpack.c.b16 %v1270, %v1269
      %v1288 = vpack.c.b16 %v1272, %v1271
      %v1291 = vunpack.c.l.b16 %v1239
      %v1292 = vunpack.c.l.b16 %v1240
      %v1293 = vpack.c.b16 %v1292, %v1291
      %v1296 = vsel %vm714, %v1273, 0
      %v1299 = vsel %vm714, %v1274, 0
      %v1302 = vsel %vm714, %v1275, 0
      %v1305 = vsel %vm714, %v1276, 0
      %v1308 = vsel %vm714, %v1277, 0
      %v1311 = vsel %vm714, %v1278, 0
      %v1314 = vsel %vm714, %v1279, 0
      %v1317 = vsel %vm714, %v1280, 0
      %v1320 = vsel %vm714, %v1281, 0
      %v1323 = vsel %vm714, %v1282, 0
      %v1326 = vsel %vm714, %v1283, 0
      %v1329 = vsel %vm714, %v1284, 0
      %v1332 = vsel %vm714, %v1285, 0
      %v1335 = vsel %vm714, %v1286, 0
      %v1338 = vsel %vm714, %v1287, 0
      %v1341 = vsel %vm714, %v1288, 0
      %1343 = vmatpush.bf16.msra.mxu0 0
      %1344 = vmatpush.bf16.msra.mxu0 0
      %1345 = vmatpush.bf16.msra.mxu0 0
      %1346 = vmatpush.bf16.msra.mxu0 0
      %1347 = vmatpush.bf16.msra.mxu0 0
      %1348 = vmatpush.bf16.msra.mxu0 0
      %1349 = vmatpush.bf16.msra.mxu0 0
      %1350 = vmatpush.bf16.msra.mxu0 %v1293
      %1351 = vmatmul.bf16.gmra.mxu0 %v1296
      %v1352 = vpop.f32.mrf.mxu0
      %v1353 = vadd.f32 0.0, %v1352
      %v1354 = vpop.f32.mrf.mxu0
      %v1355 = vadd.f32 0.0, %v1354
      %1356 = vmatmul.bf16.gmra.mxu0 %v1299
      %v1357 = vpop.f32.mrf.mxu0
      %v1358 = vadd.f32 0.0, %v1357
      %v1359 = vpop.f32.mrf.mxu0
      %v1360 = vadd.f32 0.0, %v1359
      %1361 = vmatmul.bf16.gmra.mxu0 %v1302
      %v1362 = vpop.f32.mrf.mxu0
      %v1363 = vadd.f32 0.0, %v1362
      %v1364 = vpop.f32.mrf.mxu0
      %v1365 = vadd.f32 0.0, %v1364
      %1366 = vmatmul.bf16.gmra.mxu0 %v1305
      %v1367 = vpop.f32.mrf.mxu0
      %v1368 = vadd.f32 0.0, %v1367
      %v1369 = vpop.f32.mrf.mxu0
      %v1370 = vadd.f32 0.0, %v1369
      %1371 = vmatmul.bf16.gmra.mxu0 %v1308
      %v1372 = vpop.f32.mrf.mxu0
      %v1373 = vadd.f32 0.0, %v1372
      %v1374 = vpop.f32.mrf.mxu0
      %v1375 = vadd.f32 0.0, %v1374
      %1376 = vmatmul.bf16.gmra.mxu0 %v1311
      %v1377 = vpop.f32.mrf.mxu0
      %v1378 = vadd.f32 0.0, %v1377
      %v1379 = vpop.f32.mrf.mxu0
      %v1380 = vadd.f32 0.0, %v1379
      %1381 = vmatmul.bf16.gmra.mxu0 %v1314
      %v1382 = vpop.f32.mrf.mxu0
      %v1383 = vadd.f32 0.0, %v1382
      %v1384 = vpop.f32.mrf.mxu0
      %v1385 = vadd.f32 0.0, %v1384
      %1386 = vmatmul.bf16.gmra.mxu0 %v1317
      %v1387 = vpop.f32.mrf.mxu0
      %v1388 = vadd.f32 0.0, %v1387
      %v1389 = vpop.f32.mrf.mxu0
      %v1390 = vadd.f32 0.0, %v1389
      %1391 = vmatmul.bf16.gmra.mxu0 %v1320
      %v1392 = vpop.f32.mrf.mxu0
      %v1393 = vadd.f32 0.0, %v1392
      %v1394 = vpop.f32.mrf.mxu0
      %v1395 = vadd.f32 0.0, %v1394
      %1396 = vmatmul.bf16.gmra.mxu0 %v1323
      %v1397 = vpop.f32.mrf.mxu0
      %v1398 = vadd.f32 0.0, %v1397
      %v1399 = vpop.f32.mrf.mxu0
      %v1400 = vadd.f32 0.0, %v1399
      %1401 = vmatmul.bf16.gmra.mxu0 %v1326
      %v1402 = vpop.f32.mrf.mxu0
      %v1403 = vadd.f32 0.0, %v1402
      %v1404 = vpop.f32.mrf.mxu0
      %v1405 = vadd.f32 0.0, %v1404
      %1406 = vmatmul.bf16.gmra.mxu0 %v1329
      %v1407 = vpop.f32.mrf.mxu0
      %v1408 = vadd.f32 0.0, %v1407
      %v1409 = vpop.f32.mrf.mxu0
      %v1410 = vadd.f32 0.0, %v1409
      %1411 = vmatmul.bf16.gmra.mxu0 %v1332
      %v1412 = vpop.f32.mrf.mxu0
      %v1413 = vadd.f32 0.0, %v1412
      %v1414 = vpop.f32.mrf.mxu0
      %v1415 = vadd.f32 0.0, %v1414
      %1416 = vmatmul.bf16.gmra.mxu0 %v1335
      %v1417 = vpop.f32.mrf.mxu0
      %v1418 = vadd.f32 0.0, %v1417
      %v1419 = vpop.f32.mrf.mxu0
      %v1420 = vadd.f32 0.0, %v1419
      %1421 = vmatmul.bf16.gmra.mxu0 %v1338
      %v1422 = vpop.f32.mrf.mxu0
      %v1423 = vadd.f32 0.0, %v1422
      %v1424 = vpop.f32.mrf.mxu0
      %v1425 = vadd.f32 0.0, %v1424
      %1426 = vmatmul.bf16.gmra.mxu0 %v1341
      %v1427 = vpop.f32.mrf.mxu0
      %v1428 = vadd.f32 0.0, %v1427
      %v1429 = vpop.f32.mrf.mxu0
      %v1430 = vadd.f32 0.0, %v1429
      %1431 = vdwg.mxu0
      %v1432 = vadd.f32 %v996, %v1353
      %v1433 = vadd.f32 %v998, %v1355
      %v1434 = vadd.f32 %v1001, %v1358
      %v1435 = vadd.f32 %v1003, %v1360
      %v1436 = vadd.f32 %v1006, %v1363
      %v1437 = vadd.f32 %v1008, %v1365
      %v1438 = vadd.f32 %v1011, %v1368
      %v1439 = vadd.f32 %v1013, %v1370
      %v1440 = vadd.f32 %v1016, %v1373
      %v1441 = vadd.f32 %v1018, %v1375
      %v1442 = vadd.f32 %v1021, %v1378
      %v1443 = vadd.f32 %v1023, %v1380
      %v1444 = vadd.f32 %v1026, %v1383
      %v1445 = vadd.f32 %v1028, %v1385
      %v1446 = vadd.f32 %v1031, %v1388
      %v1447 = vadd.f32 %v1033, %v1390
      %v1448 = vadd.f32 %v1036, %v1393
      %v1449 = vadd.f32 %v1038, %v1395
      %v1450 = vadd.f32 %v1041, %v1398
      %v1451 = vadd.f32 %v1043, %v1400
      %v1452 = vadd.f32 %v1046, %v1403
      %v1453 = vadd.f32 %v1048, %v1405
      %v1454 = vadd.f32 %v1051, %v1408
      %v1455 = vadd.f32 %v1053, %v1410
      %v1456 = vadd.f32 %v1056, %v1413
      %v1457 = vadd.f32 %v1058, %v1415
      %v1458 = vadd.f32 %v1061, %v1418
      %v1459 = vadd.f32 %v1063, %v1420
      %v1460 = vadd.f32 %v1066, %v1423
      %v1461 = vadd.f32 %v1068, %v1425
      %v1462 = vadd.f32 %v1071, %v1428
      %v1463 = vadd.f32 %v1073, %v1430
      %s1464 = scalar_lea.vmem %s200, 12
      %v1465 = vld [vmem:[%s1464] sm:$0xf]
      %v1466 = vld [vmem:[%s1464 + $0x4] sm:$0xf]
      %v1467 = vld [vmem:[%s1464 + $0xc] sm:$0xf]
      %v1468 = vld [vmem:[%s1464 + $0x10] sm:$0xf]
      %v1469 = vld [vmem:[%s1464 + $0x18] sm:$0xf]
      %v1470 = vld [vmem:[%s1464 + $0x1c] sm:$0xf]
      %v1471 = vld [vmem:[%s1464 + $0x24] sm:$0xf]
      %v1472 = vld [vmem:[%s1464 + $0x28] sm:$0xf]
      %v1473 = vld [vmem:[%s1464 + $0x30] sm:$0xf]
      %v1474 = vld [vmem:[%s1464 + $0x34] sm:$0xf]
      %v1475 = vld [vmem:[%s1464 + $0x3c] sm:$0xf]
      %v1476 = vld [vmem:[%s1464 + $0x40] sm:$0xf]
      %v1477 = vld [vmem:[%s1464 + $0x48] sm:$0xf]
      %v1478 = vld [vmem:[%s1464 + $0x4c] sm:$0xf]
      %v1479 = vld [vmem:[%s1464 + $0x54] sm:$0xf]
      %v1480 = vld [vmem:[%s1464 + $0x58] sm:$0xf]
      %v1481 = vld [vmem:[%s1464 + $0x60] sm:$0xf]
      %v1482 = vld [vmem:[%s1464 + $0x64] sm:$0xf]
      %v1483 = vld [vmem:[%s1464 + $0x6c] sm:$0xf]
      %v1484 = vld [vmem:[%s1464 + $0x70] sm:$0xf]
      %v1485 = vld [vmem:[%s1464 + $0x78] sm:$0xf]
      %v1486 = vld [vmem:[%s1464 + $0x7c] sm:$0xf]
      %v1487 = vld [vmem:[%s1464 + $0x84] sm:$0xf]
      %v1488 = vld [vmem:[%s1464 + $0x88] sm:$0xf]
      %v1489 = vld [vmem:[%s1464 + $0x90] sm:$0xf]
      %v1490 = vld [vmem:[%s1464 + $0x94] sm:$0xf]
      %v1491 = vld [vmem:[%s1464 + $0x9c] sm:$0xf]
      %v1492 = vld [vmem:[%s1464 + $0xa0] sm:$0xf]
      %v1493 = vld [vmem:[%s1464 + $0xa8] sm:$0xf]
      %v1494 = vld [vmem:[%s1464 + $0xac] sm:$0xf]
      %v1495 = vld [vmem:[%s1464 + $0xb4] sm:$0xf]
      %v1496 = vld [vmem:[%s1464 + $0xb8] sm:$0xf]
      %s1497 = scalar_lea.vmem %s1, 24
      %v1498 = vld [vmem:[%s1497] sm:$0xf]
      %v1499 = vld [vmem:[%s1497 + $0x4] sm:$0xf]
      %v1532 = vunpack.c.l.b16 %v1465
      %v1533 = vunpack.c.l.b16 %v1466
      %v1534 = vunpack.c.l.b16 %v1467
      %v1535 = vunpack.c.l.b16 %v1468
      %v1536 = vunpack.c.l.b16 %v1469
      %v1537 = vunpack.c.l.b16 %v1470
      %v1538 = vunpack.c.l.b16 %v1471
      %v1539 = vunpack.c.l.b16 %v1472
      %v1540 = vunpack.c.l.b16 %v1473
      %v1541 = vunpack.c.l.b16 %v1474
      %v1542 = vunpack.c.l.b16 %v1475
      %v1543 = vunpack.c.l.b16 %v1476
      %v1544 = vunpack.c.l.b16 %v1477
      %v1545 = vunpack.c.l.b16 %v1478
      %v1546 = vunpack.c.l.b16 %v1479
      %v1547 = vunpack.c.l.b16 %v1480
      %v1548 = vunpack.c.l.b16 %v1481
      %v1549 = vunpack.c.l.b16 %v1482
      %v1550 = vunpack.c.l.b16 %v1483
      %v1551 = vunpack.c.l.b16 %v1484
      %v1552 = vunpack.c.l.b16 %v1485
      %v1553 = vunpack.c.l.b16 %v1486
      %v1554 = vunpack.c.l.b16 %v1487
      %v1555 = vunpack.c.l.b16 %v1488
      %v1556 = vunpack.c.l.b16 %v1489
      %v1557 = vunpack.c.l.b16 %v1490
      %v1558 = vunpack.c.l.b16 %v1491
      %v1559 = vunpack.c.l.b16 %v1492
      %v1560 = vunpack.c.l.b16 %v1493
      %v1561 = vunpack.c.l.b16 %v1494
      %v1562 = vunpack.c.l.b16 %v1495
      %v1563 = vunpack.c.l.b16 %v1496
      %v1564 = vpack.c.b16 %v1533, %v1532
      %v1565 = vpack.c.b16 %v1535, %v1534
      %v1566 = vpack.c.b16 %v1537, %v1536
      %v1567 = vpack.c.b16 %v1539, %v1538
      %v1568 = vpack.c.b16 %v1541, %v1540
      %v1569 = vpack.c.b16 %v1543, %v1542
      %v1570 = vpack.c.b16 %v1545, %v1544
      %v1571 = vpack.c.b16 %v1547, %v1546
      %v1572 = vpack.c.b16 %v1549, %v1548
      %v1573 = vpack.c.b16 %v1551, %v1550
      %v1574 = vpack.c.b16 %v1553, %v1552
      %v1575 = vpack.c.b16 %v1555, %v1554
      %v1576 = vpack.c.b16 %v1557, %v1556
      %v1577 = vpack.c.b16 %v1559, %v1558
      %v1578 = vpack.c.b16 %v1561, %v1560
      %v1579 = vpack.c.b16 %v1563, %v1562
      %v1582 = vunpack.c.l.b16 %v1498
      %v1583 = vunpack.c.l.b16 %v1499
      %v1584 = vpack.c.b16 %v1583, %v1582
      %v1587 = vsel %vm714, %v1564, 0
      %v1590 = vsel %vm714, %v1565, 0
      %v1593 = vsel %vm714, %v1566, 0
      %v1596 = vsel %vm714, %v1567, 0
      %v1599 = vsel %vm714, %v1568, 0
      %v1602 = vsel %vm714, %v1569, 0
      %v1605 = vsel %vm714, %v1570, 0
      %v1608 = vsel %vm714, %v1571, 0
      %v1611 = vsel %vm714, %v1572, 0
      %v1614 = vsel %vm714, %v1573, 0
      %v1617 = vsel %vm714, %v1574, 0
      %v1620 = vsel %vm714, %v1575, 0
      %v1623 = vsel %vm714, %v1576, 0
      %v1626 = vsel %vm714, %v1577, 0
      %v1629 = vsel %vm714, %v1578, 0
      %v1632 = vsel %vm714, %v1579, 0
      %1634 = vmatpush.bf16.msra.mxu0 0
      %1635 = vmatpush.bf16.msra.mxu0 0
      %1636 = vmatpush.bf16.msra.mxu0 0
      %1637 = vmatpush.bf16.msra.mxu0 0
      %1638 = vmatpush.bf16.msra.mxu0 0
      %1639 = vmatpush.bf16.msra.mxu0 0
      %1640 = vmatpush.bf16.msra.mxu0 0
      %1641 = vmatpush.bf16.msra.mxu0 %v1584
      %1642 = vmatmul.bf16.gmra.mxu0 %v1587
      %v1643 = vpop.f32.mrf.mxu0
      %v1644 = vadd.f32 0.0, %v1643
      %v1645 = vpop.f32.mrf.mxu0
      %v1646 = vadd.f32 0.0, %v1645
      %1647 = vmatmul.bf16.gmra.mxu0 %v1590
      %v1648 = vpop.f32.mrf.mxu0
      %v1649 = vadd.f32 0.0, %v1648
      %v1650 = vpop.f32.mrf.mxu0
      %v1651 = vadd.f32 0.0, %v1650
      %1652 = vmatmul.bf16.gmra.mxu0 %v1593
      %v1653 = vpop.f32.mrf.mxu0
      %v1654 = vadd.f32 0.0, %v1653
      %v1655 = vpop.f32.mrf.mxu0
      %v1656 = vadd.f32 0.0, %v1655
      %1657 = vmatmul.bf16.gmra.mxu0 %v1596
      %v1658 = vpop.f32.mrf.mxu0
      %v1659 = vadd.f32 0.0, %v1658
      %v1660 = vpop.f32.mrf.mxu0
      %v1661 = vadd.f32 0.0, %v1660
      %1662 = vmatmul.bf16.gmra.mxu0 %v1599
      %v1663 = vpop.f32.mrf.mxu0
      %v1664 = vadd.f32 0.0, %v1663
      %v1665 = vpop.f32.mrf.mxu0
      %v1666 = vadd.f32 0.0, %v1665
      %1667 = vmatmul.bf16.gmra.mxu0 %v1602
      %v1668 = vpop.f32.mrf.mxu0
      %v1669 = vadd.f32 0.0, %v1668
      %v1670 = vpop.f32.mrf.mxu0
      %v1671 = vadd.f32 0.0, %v1670
      %1672 = vmatmul.bf16.gmra.mxu0 %v1605
      %v1673 = vpop.f32.mrf.mxu0
      %v1674 = vadd.f32 0.0, %v1673
      %v1675 = vpop.f32.mrf.mxu0
      %v1676 = vadd.f32 0.0, %v1675
      %1677 = vmatmul.bf16.gmra.mxu0 %v1608
      %v1678 = vpop.f32.mrf.mxu0
      %v1679 = vadd.f32 0.0, %v1678
      %v1680 = vpop.f32.mrf.mxu0
      %v1681 = vadd.f32 0.0, %v1680
      %1682 = vmatmul.bf16.gmra.mxu0 %v1611
      %v1683 = vpop.f32.mrf.mxu0
      %v1684 = vadd.f32 0.0, %v1683
      %v1685 = vpop.f32.mrf.mxu0
      %v1686 = vadd.f32 0.0, %v1685
      %1687 = vmatmul.bf16.gmra.mxu0 %v1614
      %v1688 = vpop.f32.mrf.mxu0
      %v1689 = vadd.f32 0.0, %v1688
      %v1690 = vpop.f32.mrf.mxu0
      %v1691 = vadd.f32 0.0, %v1690
      %1692 = vmatmul.bf16.gmra.mxu0 %v1617
      %v1693 = vpop.f32.mrf.mxu0
      %v1694 = vadd.f32 0.0, %v1693
      %v1695 = vpop.f32.mrf.mxu0
      %v1696 = vadd.f32 0.0, %v1695
      %1697 = vmatmul.bf16.gmra.mxu0 %v1620
      %v1698 = vpop.f32.mrf.mxu0
      %v1699 = vadd.f32 0.0, %v1698
      %v1700 = vpop.f32.mrf.mxu0
      %v1701 = vadd.f32 0.0, %v1700
      %1702 = vmatmul.bf16.gmra.mxu0 %v1623
      %v1703 = vpop.f32.mrf.mxu0
      %v1704 = vadd.f32 0.0, %v1703
      %v1705 = vpop.f32.mrf.mxu0
      %v1706 = vadd.f32 0.0, %v1705
      %1707 = vmatmul.bf16.gmra.mxu0 %v1626
      %v1708 = vpop.f32.mrf.mxu0
      %v1709 = vadd.f32 0.0, %v1708
      %v1710 = vpop.f32.mrf.mxu0
      %v1711 = vadd.f32 0.0, %v1710
      %1712 = vmatmul.bf16.gmra.mxu0 %v1629
      %v1713 = vpop.f32.mrf.mxu0
      %v1714 = vadd.f32 0.0, %v1713
      %v1715 = vpop.f32.mrf.mxu0
      %v1716 = vadd.f32 0.0, %v1715
      %1717 = vmatmul.bf16.gmra.mxu0 %v1632
      %v1718 = vpop.f32.mrf.mxu0
      %v1719 = vadd.f32 0.0, %v1718
      %v1720 = vpop.f32.mrf.mxu0
      %v1721 = vadd.f32 0.0, %v1720
      %1722 = vdwg.mxu0
      %v1723 = vadd.f32 %v1432, %v1644
      %v1724 = vadd.f32 %v1433, %v1646
      %v1725 = vadd.f32 %v1434, %v1649
      %v1726 = vadd.f32 %v1435, %v1651
      %v1727 = vadd.f32 %v1436, %v1654
      %v1728 = vadd.f32 %v1437, %v1656
      %v1729 = vadd.f32 %v1438, %v1659
      %v1730 = vadd.f32 %v1439, %v1661
      %v1731 = vadd.f32 %v1440, %v1664
      %v1732 = vadd.f32 %v1441, %v1666
      %v1733 = vadd.f32 %v1442, %v1669
      %v1734 = vadd.f32 %v1443, %v1671
      %v1735 = vadd.f32 %v1444, %v1674
      %v1736 = vadd.f32 %v1445, %v1676
      %v1737 = vadd.f32 %v1446, %v1679
      %v1738 = vadd.f32 %v1447, %v1681
      %v1739 = vadd.f32 %v1448, %v1684
      %v1740 = vadd.f32 %v1449, %v1686
      %v1741 = vadd.f32 %v1450, %v1689
      %v1742 = vadd.f32 %v1451, %v1691
      %v1743 = vadd.f32 %v1452, %v1694
      %v1744 = vadd.f32 %v1453, %v1696
      %v1745 = vadd.f32 %v1454, %v1699
      %v1746 = vadd.f32 %v1455, %v1701
      %v1747 = vadd.f32 %v1456, %v1704
      %v1748 = vadd.f32 %v1457, %v1706
      %v1749 = vadd.f32 %v1458, %v1709
      %v1750 = vadd.f32 %v1459, %v1711
      %v1751 = vadd.f32 %v1460, %v1714
      %v1752 = vadd.f32 %v1461, %v1716
      %v1753 = vadd.f32 %v1462, %v1719
      %v1754 = vadd.f32 %v1463, %v1721
      %v1755 = vld [vmem:[%s1464] sm:$0xf]
      %v1756 = vld [vmem:[%s1464 + $0x4] sm:$0xf]
      %v1757 = vld [vmem:[%s1464 + $0x8] sm:$0x1]
      %v1758 = vld [vmem:[%s1464 + $0xc] sm:$0xf]
      %v1759 = vld [vmem:[%s1464 + $0x10] sm:$0xf]
      %v1760 = vld [vmem:[%s1464 + $0x14] sm:$0x1]
      %v1761 = vld [vmem:[%s1464 + $0x18] sm:$0xf]
      %v1762 = vld [vmem:[%s1464 + $0x1c] sm:$0xf]
      %v1763 = vld [vmem:[%s1464 + $0x20] sm:$0x1]
      %v1764 = vld [vmem:[%s1464 + $0x24] sm:$0xf]
      %v1765 = vld [vmem:[%s1464 + $0x28] sm:$0xf]
      %v1766 = vld [vmem:[%s1464 + $0x2c] sm:$0x1]
      %v1767 = vld [vmem:[%s1464 + $0x30] sm:$0xf]
      %v1768 = vld [vmem:[%s1464 + $0x34] sm:$0xf]
      %v1769 = vld [vmem:[%s1464 + $0x38] sm:$0x1]
      %v1770 = vld [vmem:[%s1464 + $0x3c] sm:$0xf]
      %v1771 = vld [vmem:[%s1464 + $0x40] sm:$0xf]
      %v1772 = vld [vmem:[%s1464 + $0x44] sm:$0x1]
      %v1773 = vld [vmem:[%s1464 + $0x48] sm:$0xf]
      %v1774 = vld [vmem:[%s1464 + $0x4c] sm:$0xf]
      %v1775 = vld [vmem:[%s1464 + $0x50] sm:$0x1]
      %v1776 = vld [vmem:[%s1464 + $0x54] sm:$0xf]
      %v1777 = vld [vmem:[%s1464 + $0x58] sm:$0xf]
      %v1778 = vld [vmem:[%s1464 + $0x5c] sm:$0x1]
      %v1779 = vld [vmem:[%s1464 + $0x60] sm:$0xf]
      %v1780 = vld [vmem:[%s1464 + $0x64] sm:$0xf]
      %v1781 = vld [vmem:[%s1464 + $0x68] sm:$0x1]
      %v1782 = vld [vmem:[%s1464 + $0x6c] sm:$0xf]
      %v1783 = vld [vmem:[%s1464 + $0x70] sm:$0xf]
      %v1784 = vld [vmem:[%s1464 + $0x74] sm:$0x1]
      %v1785 = vld [vmem:[%s1464 + $0x78] sm:$0xf]
      %v1786 = vld [vmem:[%s1464 + $0x7c] sm:$0xf]
      %v1787 = vld [vmem:[%s1464 + $0x80] sm:$0x1]
      %v1788 = vld [vmem:[%s1464 + $0x84] sm:$0xf]
      %v1789 = vld [vmem:[%s1464 + $0x88] sm:$0xf]
      %v1790 = vld [vmem:[%s1464 + $0x8c] sm:$0x1]
      %v1791 = vld [vmem:[%s1464 + $0x90] sm:$0xf]
      %v1792 = vld [vmem:[%s1464 + $0x94] sm:$0xf]
      %v1793 = vld [vmem:[%s1464 + $0x98] sm:$0x1]
      %v1794 = vld [vmem:[%s1464 + $0x9c] sm:$0xf]
      %v1795 = vld [vmem:[%s1464 + $0xa0] sm:$0xf]
      %v1796 = vld [vmem:[%s1464 + $0xa4] sm:$0x1]
      %v1797 = vld [vmem:[%s1464 + $0xa8] sm:$0xf]
      %v1798 = vld [vmem:[%s1464 + $0xac] sm:$0xf]
      %v1799 = vld [vmem:[%s1464 + $0xb0] sm:$0x1]
      %v1800 = vld [vmem:[%s1464 + $0xb4] sm:$0xf]
      %v1801 = vld [vmem:[%s1464 + $0xb8] sm:$0xf]
      %v1802 = vld [vmem:[%s1464 + $0xbc] sm:$0x1]
      %v1804 = vshrl.u32 %v1755, 16
      %v1806 = vrot.slane %v1804, 4
      %v1807 = vshll.u32 %v1755, 16
      %v1809 = vrot.slane %v1807, 5
      %v1810 = vor.u32 %v1806, %v1809
      %v1811 = vrot.slane %v1810, 4
      %v1813 = vshll.u32 %v1756, 16
      %v1815 = vrot.slane %v1813, 5
      %v1816 = vsel %vm272, %v1811, %v1815
      %v1817 = vshrl.u32 %v1756, 16
      %v1819 = vrot.slane %v1817, 4
      %v1820 = vor.u32 %v1819, %v1815
      %v1821 = vrot.slane %v1820, 4
      %v1823 = vshll.u32 %v1757, 16
      %v1825 = vrot.slane %v1823, 5
      %v1826 = vsel %vm272, %v1821, %v1825
      %v1828 = vshrl.u32 %v1758, 16
      %v1830 = vrot.slane %v1828, 4
      %v1831 = vshll.u32 %v1758, 16
      %v1833 = vrot.slane %v1831, 5
      %v1834 = vor.u32 %v1830, %v1833
      %v1835 = vrot.slane %v1834, 4
      %v1837 = vshll.u32 %v1759, 16
      %v1839 = vrot.slane %v1837, 5
      %v1840 = vsel %vm272, %v1835, %v1839
      %v1841 = vshrl.u32 %v1759, 16
      %v1843 = vrot.slane %v1841, 4
      %v1844 = vor.u32 %v1843, %v1839
      %v1845 = vrot.slane %v1844, 4
      %v1847 = vshll.u32 %v1760, 16
      %v1849 = vrot.slane %v1847, 5
      %v1850 = vsel %vm272, %v1845, %v1849
      %v1852 = vshrl.u32 %v1761, 16
      %v1854 = vrot.slane %v1852, 4
      %v1855 = vshll.u32 %v1761, 16
      %v1857 = vrot.slane %v1855, 5
      %v1858 = vor.u32 %v1854, %v1857
      %v1859 = vrot.slane %v1858, 4
      %v1861 = vshll.u32 %v1762, 16
      %v1863 = vrot.slane %v1861, 5
      %v1864 = vsel %vm272, %v1859, %v1863
      %v1865 = vshrl.u32 %v1762, 16
      %v1867 = vrot.slane %v1865, 4
      %v1868 = vor.u32 %v1867, %v1863
      %v1869 = vrot.slane %v1868, 4
      %v1871 = vshll.u32 %v1763, 16
      %v1873 = vrot.slane %v1871, 5
      %v1874 = vsel %vm272, %v1869, %v1873
      %v1876 = vshrl.u32 %v1764, 16
      %v1878 = vrot.slane %v1876, 4
      %v1879 = vshll.u32 %v1764, 16
      %v1881 = vrot.slane %v1879, 5
      %v1882 = vor.u32 %v1878, %v1881
      %v1883 = vrot.slane %v1882, 4
      %v1885 = vshll.u32 %v1765, 16
      %v1887 = vrot.slane %v1885, 5
      %v1888 = vsel %vm272, %v1883, %v1887
      %v1889 = vshrl.u32 %v1765, 16
      %v1891 = vrot.slane %v1889, 4
      %v1892 = vor.u32 %v1891, %v1887
      %v1893 = vrot.slane %v1892, 4
      %v1895 = vshll.u32 %v1766, 16
      %v1897 = vrot.slane %v1895, 5
      %v1898 = vsel %vm272, %v1893, %v1897
      %v1900 = vshrl.u32 %v1767, 16
      %v1902 = vrot.slane %v1900, 4
      %v1903 = vshll.u32 %v1767, 16
      %v1905 = vrot.slane %v1903, 5
      %v1906 = vor.u32 %v1902, %v1905
      %v1907 = vrot.slane %v1906, 4
      %v1909 = vshll.u32 %v1768, 16
      %v1911 = vrot.slane %v1909, 5
      %v1912 = vsel %vm272, %v1907, %v1911
      %v1913 = vshrl.u32 %v1768, 16
      %v1915 = vrot.slane %v1913, 4
      %v1916 = vor.u32 %v1915, %v1911
      %v1917 = vrot.slane %v1916, 4
      %v1919 = vshll.u32 %v1769, 16
      %v1921 = vrot.slane %v1919, 5
      %v1922 = vsel %vm272, %v1917, %v1921
      %v1924 = vshrl.u32 %v1770, 16
      %v1926 = vrot.slane %v1924, 4
      %v1927 = vshll.u32 %v1770, 16
      %v1929 = vrot.slane %v1927, 5
      %v1930 = vor.u32 %v1926, %v1929
      %v1931 = vrot.slane %v1930, 4
      %v1933 = vshll.u32 %v1771, 16
      %v1935 = vrot.slane %v1933, 5
      %v1936 = vsel %vm272, %v1931, %v1935
      %v1937 = vshrl.u32 %v1771, 16
      %v1939 = vrot.slane %v1937, 4
      %v1940 = vor.u32 %v1939, %v1935
      %v1941 = vrot.slane %v1940, 4
      %v1943 = vshll.u32 %v1772, 16
      %v1945 = vrot.slane %v1943, 5
      %v1946 = vsel %vm272, %v1941, %v1945
      %v1948 = vshrl.u32 %v1773, 16
      %v1950 = vrot.slane %v1948, 4
      %v1951 = vshll.u32 %v1773, 16
      %v1953 = vrot.slane %v1951, 5
      %v1954 = vor.u32 %v1950, %v1953
      %v1955 = vrot.slane %v1954, 4
      %v1957 = vshll.u32 %v1774, 16
      %v1959 = vrot.slane %v1957, 5
      %v1960 = vsel %vm272, %v1955, %v1959
      %v1961 = vshrl.u32 %v1774, 16
      %v1963 = vrot.slane %v1961, 4
      %v1964 = vor.u32 %v1963, %v1959
      %v1965 = vrot.slane %v1964, 4
      %v1967 = vshll.u32 %v1775, 16
      %v1969 = vrot.slane %v1967, 5
      %v1970 = vsel %vm272, %v1965, %v1969
      %v1972 = vshrl.u32 %v1776, 16
      %v1974 = vrot.slane %v1972, 4
      %v1975 = vshll.u32 %v1776, 16
      %v1977 = vrot.slane %v1975, 5
      %v1978 = vor.u32 %v1974, %v1977
      %v1979 = vrot.slane %v1978, 4
      %v1981 = vshll.u32 %v1777, 16
      %v1983 = vrot.slane %v1981, 5
      %v1984 = vsel %vm272, %v1979, %v1983
      %v1985 = vshrl.u32 %v1777, 16
      %v1987 = vrot.slane %v1985, 4
      %v1988 = vor.u32 %v1987, %v1983
      %v1989 = vrot.slane %v1988, 4
      %v1991 = vshll.u32 %v1778, 16
      %v1993 = vrot.slane %v1991, 5
      %v1994 = vsel %vm272, %v1989, %v1993
      %v1996 = vshrl.u32 %v1779, 16
      %v1998 = vrot.slane %v1996, 4
      %v1999 = vshll.u32 %v1779, 16
      %v2001 = vrot.slane %v1999, 5
      %v2002 = vor.u32 %v1998, %v2001
      %v2003 = vrot.slane %v2002, 4
      %v2005 = vshll.u32 %v1780, 16
      %v2007 = vrot.slane %v2005, 5
      %v2008 = vsel %vm272, %v2003, %v2007
      %v2009 = vshrl.u32 %v1780, 16
      %v2011 = vrot.slane %v2009, 4
      %v2012 = vor.u32 %v2011, %v2007
      %v2013 = vrot.slane %v2012, 4
      %v2015 = vshll.u32 %v1781, 16
      %v2017 = vrot.slane %v2015, 5
      %v2018 = vsel %vm272, %v2013, %v2017
      %v2020 = vshrl.u32 %v1782, 16
      %v2022 = vrot.slane %v2020, 4
      %v2023 = vshll.u32 %v1782, 16
      %v2025 = vrot.slane %v2023, 5
      %v2026 = vor.u32 %v2022, %v2025
      %v2027 = vrot.slane %v2026, 4
      %v2029 = vshll.u32 %v1783, 16
      %v2031 = vrot.slane %v2029, 5
      %v2032 = vsel %vm272, %v2027, %v2031
      %v2033 = vshrl.u32 %v1783, 16
      %v2035 = vrot.slane %v2033, 4
      %v2036 = vor.u32 %v2035, %v2031
      %v2037 = vrot.slane %v2036, 4
      %v2039 = vshll.u32 %v1784, 16
      %v2041 = vrot.slane %v2039, 5
      %v2042 = vsel %vm272, %v2037, %v2041
      %v2044 = vshrl.u32 %v1785, 16
      %v2046 = vrot.slane %v2044, 4
      %v2047 = vshll.u32 %v1785, 16
      %v2049 = vrot.slane %v2047, 5
      %v2050 = vor.u32 %v2046, %v2049
      %v2051 = vrot.slane %v2050, 4
      %v2053 = vshll.u32 %v1786, 16
      %v2055 = vrot.slane %v2053, 5
      %v2056 = vsel %vm272, %v2051, %v2055
      %v2057 = vshrl.u32 %v1786, 16
      %v2059 = vrot.slane %v2057, 4
      %v2060 = vor.u32 %v2059, %v2055
      %v2061 = vrot.slane %v2060, 4
      %v2063 = vshll.u32 %v1787, 16
      %v2065 = vrot.slane %v2063, 5
      %v2066 = vsel %vm272, %v2061, %v2065
      %v2068 = vshrl.u32 %v1788, 16
      %v2070 = vrot.slane %v2068, 4
      %v2071 = vshll.u32 %v1788, 16
      %v2073 = vrot.slane %v2071, 5
      %v2074 = vor.u32 %v2070, %v2073
      %v2075 = vrot.slane %v2074, 4
      %v2077 = vshll.u32 %v1789, 16
      %v2079 = vrot.slane %v2077, 5
      %v2080 = vsel %vm272, %v2075, %v2079
      %v2081 = vshrl.u32 %v1789, 16
      %v2083 = vrot.slane %v2081, 4
      %v2084 = vor.u32 %v2083, %v2079
      %v2085 = vrot.slane %v2084, 4
      %v2087 = vshll.u32 %v1790, 16
      %v2089 = vrot.slane %v2087, 5
      %v2090 = vsel %vm272, %v2085, %v2089
      %v2092 = vshrl.u32 %v1791, 16
      %v2094 = vrot.slane %v2092, 4
      %v2095 = vshll.u32 %v1791, 16
      %v2097 = vrot.slane %v2095, 5
      %v2098 = vor.u32 %v2094, %v2097
      %v2099 = vrot.slane %v2098, 4
      %v2101 = vshll.u32 %v1792, 16
      %v2103 = vrot.slane %v2101, 5
      %v2104 = vsel %vm272, %v2099, %v2103
      %v2105 = vshrl.u32 %v1792, 16
      %v2107 = vrot.slane %v2105, 4
      %v2108 = vor.u32 %v2107, %v2103
      %v2109 = vrot.slane %v2108, 4
      %v2111 = vshll.u32 %v1793, 16
      %v2113 = vrot.slane %v2111, 5
      %v2114 = vsel %vm272, %v2109, %v2113
      %v2116 = vshrl.u32 %v1794, 16
      %v2118 = vrot.slane %v2116, 4
      %v2119 = vshll.u32 %v1794, 16
      %v2121 = vrot.slane %v2119, 5
      %v2122 = vor.u32 %v2118, %v2121
      %v2123 = vrot.slane %v2122, 4
      %v2125 = vshll.u32 %v1795, 16
      %v2127 = vrot.slane %v2125, 5
      %v2128 = vsel %vm272, %v2123, %v2127
      %v2129 = vshrl.u32 %v1795, 16
      %v2131 = vrot.slane %v2129, 4
      %v2132 = vor.u32 %v2131, %v2127
      %v2133 = vrot.slane %v2132, 4
      %v2135 = vshll.u32 %v1796, 16
      %v2137 = vrot.slane %v2135, 5
      %v2138 = vsel %vm272, %v2133, %v2137
      %v2140 = vshrl.u32 %v1797, 16
      %v2142 = vrot.slane %v2140, 4
      %v2143 = vshll.u32 %v1797, 16
      %v2145 = vrot.slane %v2143, 5
      %v2146 = vor.u32 %v2142, %v2145
      %v2147 = vrot.slane %v2146, 4
      %v2149 = vshll.u32 %v1798, 16
      %v2151 = vrot.slane %v2149, 5
      %v2152 = vsel %vm272, %v2147, %v2151
      %v2153 = vshrl.u32 %v1798, 16
      %v2155 = vrot.slane %v2153, 4
      %v2156 = vor.u32 %v2155, %v2151
      %v2157 = vrot.slane %v2156, 4
      %v2159 = vshll.u32 %v1799, 16
      %v2161 = vrot.slane %v2159, 5
      %v2162 = vsel %vm272, %v2157, %v2161
      %v2164 = vshrl.u32 %v1800, 16
      %v2166 = vrot.slane %v2164, 4
      %v2167 = vshll.u32 %v1800, 16
      %v2169 = vrot.slane %v2167, 5
      %v2170 = vor.u32 %v2166, %v2169
      %v2171 = vrot.slane %v2170, 4
      %v2173 = vshll.u32 %v1801, 16
      %v2175 = vrot.slane %v2173, 5
      %v2176 = vsel %vm272, %v2171, %v2175
      %v2177 = vshrl.u32 %v1801, 16
      %v2179 = vrot.slane %v2177, 4
      %v2180 = vor.u32 %v2179, %v2175
      %v2181 = vrot.slane %v2180, 4
      %v2183 = vshll.u32 %v1802, 16
      %v2185 = vrot.slane %v2183, 5
      %v2186 = vsel %vm272, %v2181, %v2185
      %s2187 = scalar_lea.vmem %s1, 32
      %v2188 = vld [vmem:[%s2187] sm:$0xf]
      %v2189 = vld [vmem:[%s2187 + $0x4] sm:$0xf]
      %v2190 = vunpack.c.l.b16 %v1816
      %v2191 = vunpack.c.l.b16 %v1826
      %v2192 = vunpack.c.l.b16 %v1840
      %v2193 = vunpack.c.l.b16 %v1850
      %v2194 = vunpack.c.l.b16 %v1864
      %v2195 = vunpack.c.l.b16 %v1874
      %v2196 = vunpack.c.l.b16 %v1888
      %v2197 = vunpack.c.l.b16 %v1898
      %v2198 = vunpack.c.l.b16 %v1912
      %v2199 = vunpack.c.l.b16 %v1922
      %v2200 = vunpack.c.l.b16 %v1936
      %v2201 = vunpack.c.l.b16 %v1946
      %v2202 = vunpack.c.l.b16 %v1960
      %v2203 = vunpack.c.l.b16 %v1970
      %v2204 = vunpack.c.l.b16 %v1984
      %v2205 = vunpack.c.l.b16 %v1994
      %v2206 = vunpack.c.l.b16 %v2008
      %v2207 = vunpack.c.l.b16 %v2018
      %v2208 = vunpack.c.l.b16 %v2032
      %v2209 = vunpack.c.l.b16 %v2042
      %v2210 = vunpack.c.l.b16 %v2056
      %v2211 = vunpack.c.l.b16 %v2066
      %v2212 = vunpack.c.l.b16 %v2080
      %v2213 = vunpack.c.l.b16 %v2090
      %v2214 = vunpack.c.l.b16 %v2104
      %v2215 = vunpack.c.l.b16 %v2114
      %v2216 = vunpack.c.l.b16 %v2128
      %v2217 = vunpack.c.l.b16 %v2138
      %v2218 = vunpack.c.l.b16 %v2152
      %v2219 = vunpack.c.l.b16 %v2162
      %v2220 = vunpack.c.l.b16 %v2176
      %v2221 = vunpack.c.l.b16 %v2186
      %v2222 = vpack.c.b16 %v2191, %v2190
      %v2223 = vpack.c.b16 %v2193, %v2192
      %v2224 = vpack.c.b16 %v2195, %v2194
      %v2225 = vpack.c.b16 %v2197, %v2196
      %v2226 = vpack.c.b16 %v2199, %v2198
      %v2227 = vpack.c.b16 %v2201, %v2200
      %v2228 = vpack.c.b16 %v2203, %v2202
      %v2229 = vpack.c.b16 %v2205, %v2204
      %v2230 = vpack.c.b16 %v2207, %v2206
      %v2231 = vpack.c.b16 %v2209, %v2208
      %v2232 = vpack.c.b16 %v2211, %v2210
      %v2233 = vpack.c.b16 %v2213, %v2212
      %v2234 = vpack.c.b16 %v2215, %v2214
      %v2235 = vpack.c.b16 %v2217, %v2216
      %v2236 = vpack.c.b16 %v2219, %v2218
      %v2237 = vpack.c.b16 %v2221, %v2220
      %v2240 = vunpack.c.l.b16 %v2188
      %v2241 = vunpack.c.l.b16 %v2189
      %v2242 = vpack.c.b16 %v2241, %v2240
      %v2245 = vsel %vm714, %v2222, 0
      %v2248 = vsel %vm714, %v2223, 0
      %v2251 = vsel %vm714, %v2224, 0
      %v2254 = vsel %vm714, %v2225, 0
      %v2257 = vsel %vm714, %v2226, 0
      %v2260 = vsel %vm714, %v2227, 0
      %v2263 = vsel %vm714, %v2228, 0
      %v2266 = vsel %vm714, %v2229, 0
      %v2269 = vsel %vm714, %v2230, 0
      %v2272 = vsel %vm714, %v2231, 0
      %v2275 = vsel %vm714, %v2232, 0
      %v2278 = vsel %vm714, %v2233, 0
      %v2281 = vsel %vm714, %v2234, 0
      %v2284 = vsel %vm714, %v2235, 0
      %v2287 = vsel %vm714, %v2236, 0
      %v2290 = vsel %vm714, %v2237, 0
      %2292 = vmatpush.bf16.msra.mxu0 0
      %2293 = vmatpush.bf16.msra.mxu0 0
      %2294 = vmatpush.bf16.msra.mxu0 0
      %2295 = vmatpush.bf16.msra.mxu0 0
      %2296 = vmatpush.bf16.msra.mxu0 0
      %2297 = vmatpush.bf16.msra.mxu0 0
      %2298 = vmatpush.bf16.msra.mxu0 0
      %2299 = vmatpush.bf16.msra.mxu0 %v2242
      %2300 = vmatmul.bf16.gmra.mxu0 %v2245
      %v2301 = vpop.f32.mrf.mxu0
      %v2302 = vadd.f32 0.0, %v2301
      %v2303 = vpop.f32.mrf.mxu0
      %v2304 = vadd.f32 0.0, %v2303
      %2305 = vmatmul.bf16.gmra.mxu0 %v2248
      %v2306 = vpop.f32.mrf.mxu0
      %v2307 = vadd.f32 0.0, %v2306
      %v2308 = vpop.f32.mrf.mxu0
      %v2309 = vadd.f32 0.0, %v2308
      %2310 = vmatmul.bf16.gmra.mxu0 %v2251
      %v2311 = vpop.f32.mrf.mxu0
      %v2312 = vadd.f32 0.0, %v2311
      %v2313 = vpop.f32.mrf.mxu0
      %v2314 = vadd.f32 0.0, %v2313
      %2315 = vmatmul.bf16.gmra.mxu0 %v2254
      %v2316 = vpop.f32.mrf.mxu0
      %v2317 = vadd.f32 0.0, %v2316
      %v2318 = vpop.f32.mrf.mxu0
      %v2319 = vadd.f32 0.0, %v2318
      %2320 = vmatmul.bf16.gmra.mxu0 %v2257
      %v2321 = vpop.f32.mrf.mxu0
      %v2322 = vadd.f32 0.0, %v2321
      %v2323 = vpop.f32.mrf.mxu0
      %v2324 = vadd.f32 0.0, %v2323
      %2325 = vmatmul.bf16.gmra.mxu0 %v2260
      %v2326 = vpop.f32.mrf.mxu0
      %v2327 = vadd.f32 0.0, %v2326
      %v2328 = vpop.f32.mrf.mxu0
      %v2329 = vadd.f32 0.0, %v2328
      %2330 = vmatmul.bf16.gmra.mxu0 %v2263
      %v2331 = vpop.f32.mrf.mxu0
      %v2332 = vadd.f32 0.0, %v2331
      %v2333 = vpop.f32.mrf.mxu0
      %v2334 = vadd.f32 0.0, %v2333
      %2335 = vmatmul.bf16.gmra.mxu0 %v2266
      %v2336 = vpop.f32.mrf.mxu0
      %v2337 = vadd.f32 0.0, %v2336
      %v2338 = vpop.f32.mrf.mxu0
      %v2339 = vadd.f32 0.0, %v2338
      %2340 = vmatmul.bf16.gmra.mxu0 %v2269
      %v2341 = vpop.f32.mrf.mxu0
      %v2342 = vadd.f32 0.0, %v2341
      %v2343 = vpop.f32.mrf.mxu0
      %v2344 = vadd.f32 0.0, %v2343
      %2345 = vmatmul.bf16.gmra.mxu0 %v2272
      %v2346 = vpop.f32.mrf.mxu0
      %v2347 = vadd.f32 0.0, %v2346
      %v2348 = vpop.f32.mrf.mxu0
      %v2349 = vadd.f32 0.0, %v2348
      %2350 = vmatmul.bf16.gmra.mxu0 %v2275
      %v2351 = vpop.f32.mrf.mxu0
      %v2352 = vadd.f32 0.0, %v2351
      %v2353 = vpop.f32.mrf.mxu0
      %v2354 = vadd.f32 0.0, %v2353
      %2355 = vmatmul.bf16.gmra.mxu0 %v2278
      %v2356 = vpop.f32.mrf.mxu0
      %v2357 = vadd.f32 0.0, %v2356
      %v2358 = vpop.f32.mrf.mxu0
      %v2359 = vadd.f32 0.0, %v2358
      %2360 = vmatmul.bf16.gmra.mxu0 %v2281
      %v2361 = vpop.f32.mrf.mxu0
      %v2362 = vadd.f32 0.0, %v2361
      %v2363 = vpop.f32.mrf.mxu0
      %v2364 = vadd.f32 0.0, %v2363
      %2365 = vmatmul.bf16.gmra.mxu0 %v2284
      %v2366 = vpop.f32.mrf.mxu0
      %v2367 = vadd.f32 0.0, %v2366
      %v2368 = vpop.f32.mrf.mxu0
      %v2369 = vadd.f32 0.0, %v2368
      %2370 = vmatmul.bf16.gmra.mxu0 %v2287
      %v2371 = vpop.f32.mrf.mxu0
      %v2372 = vadd.f32 0.0, %v2371
      %v2373 = vpop.f32.mrf.mxu0
      %v2374 = vadd.f32 0.0, %v2373
      %2375 = vmatmul.bf16.gmra.mxu0 %v2290
      %v2376 = vpop.f32.mrf.mxu0
      %v2377 = vadd.f32 0.0, %v2376
      %v2378 = vpop.f32.mrf.mxu0
      %v2379 = vadd.f32 0.0, %v2378
      %2380 = vdwg.mxu0
      %v2381 = vadd.f32 %v1723, %v2302
      %v2382 = vadd.f32 %v1724, %v2304
      %v2383 = vadd.f32 %v1725, %v2307
      %v2384 = vadd.f32 %v1726, %v2309
      %v2385 = vadd.f32 %v1727, %v2312
      %v2386 = vadd.f32 %v1728, %v2314
      %v2387 = vadd.f32 %v1729, %v2317
      %v2388 = vadd.f32 %v1730, %v2319
      %v2389 = vadd.f32 %v1731, %v2322
      %v2390 = vadd.f32 %v1732, %v2324
      %v2391 = vadd.f32 %v1733, %v2327
      %v2392 = vadd.f32 %v1734, %v2329
      %v2393 = vadd.f32 %v1735, %v2332
      %v2394 = vadd.f32 %v1736, %v2334
      %v2395 = vadd.f32 %v1737, %v2337
      %v2396 = vadd.f32 %v1738, %v2339
      %v2397 = vadd.f32 %v1739, %v2342
      %v2398 = vadd.f32 %v1740, %v2344
      %v2399 = vadd.f32 %v1741, %v2347
      %v2400 = vadd.f32 %v1742, %v2349
      %v2401 = vadd.f32 %v1743, %v2352
      %v2402 = vadd.f32 %v1744, %v2354
      %v2403 = vadd.f32 %v1745, %v2357
      %v2404 = vadd.f32 %v1746, %v2359
      %v2405 = vadd.f32 %v1747, %v2362
      %v2406 = vadd.f32 %v1748, %v2364
      %v2407 = vadd.f32 %v1749, %v2367
      %v2408 = vadd.f32 %v1750, %v2369
      %v2409 = vadd.f32 %v1751, %v2372
      %v2410 = vadd.f32 %v1752, %v2374
      %v2411 = vadd.f32 %v1753, %v2377
      %v2412 = vadd.f32 %v1754, %v2379
      %v2413 = vld [vmem:[%s1464] sm:$0xe]
      %v2414 = vld [vmem:[%s1464 + $0xc] sm:$0xe]
      %v2415 = vld [vmem:[%s1464 + $0x18] sm:$0xe]
      %v2416 = vld [vmem:[%s1464 + $0x24] sm:$0xe]
      %v2417 = vld [vmem:[%s1464 + $0x30] sm:$0xe]
      %v2418 = vld [vmem:[%s1464 + $0x3c] sm:$0xe]
      %v2419 = vld [vmem:[%s1464 + $0x48] sm:$0xe]
      %v2420 = vld [vmem:[%s1464 + $0x54] sm:$0xe]
      %v2421 = vld [vmem:[%s1464 + $0x60] sm:$0xe]
      %v2422 = vld [vmem:[%s1464 + $0x6c] sm:$0xe]
      %v2423 = vld [vmem:[%s1464 + $0x78] sm:$0xe]
      %v2424 = vld [vmem:[%s1464 + $0x84] sm:$0xe]
      %v2425 = vld [vmem:[%s1464 + $0x90] sm:$0xe]
      %v2426 = vld [vmem:[%s1464 + $0x9c] sm:$0xe]
      %v2427 = vld [vmem:[%s1464 + $0xa8] sm:$0xe]
      %v2428 = vld [vmem:[%s1464 + $0xb4] sm:$0xe]
      %v2477 = vrot.slane %v2413, 5
      %v2478 = vrot.slane %v2477, 4
      %v2479 = vrot.slane %v1756, 5
      %v2480 = vsel %vm1125, %v2478, %v2479
      %v2481 = vrot.slane %v2479, 4
      %v2482 = vrot.slane %v1757, 5
      %v2483 = vsel %vm1125, %v2481, %v2482
      %v2484 = vrot.slane %v2414, 5
      %v2485 = vrot.slane %v2484, 4
      %v2486 = vrot.slane %v1759, 5
      %v2487 = vsel %vm1125, %v2485, %v2486
      %v2488 = vrot.slane %v2486, 4
      %v2489 = vrot.slane %v1760, 5
      %v2490 = vsel %vm1125, %v2488, %v2489
      %v2491 = vrot.slane %v2415, 5
      %v2492 = vrot.slane %v2491, 4
      %v2493 = vrot.slane %v1762, 5
      %v2494 = vsel %vm1125, %v2492, %v2493
      %v2495 = vrot.slane %v2493, 4
      %v2496 = vrot.slane %v1763, 5
      %v2497 = vsel %vm1125, %v2495, %v2496
      %v2498 = vrot.slane %v2416, 5
      %v2499 = vrot.slane %v2498, 4
      %v2500 = vrot.slane %v1765, 5
      %v2501 = vsel %vm1125, %v2499, %v2500
      %v2502 = vrot.slane %v2500, 4
      %v2503 = vrot.slane %v1766, 5
      %v2504 = vsel %vm1125, %v2502, %v2503
      %v2505 = vrot.slane %v2417, 5
      %v2506 = vrot.slane %v2505, 4
      %v2507 = vrot.slane %v1768, 5
      %v2508 = vsel %vm1125, %v2506, %v2507
      %v2509 = vrot.slane %v2507, 4
      %v2510 = vrot.slane %v1769, 5
      %v2511 = vsel %vm1125, %v2509, %v2510
      %v2512 = vrot.slane %v2418, 5
      %v2513 = vrot.slane %v2512, 4
      %v2514 = vrot.slane %v1771, 5
      %v2515 = vsel %vm1125, %v2513, %v2514
      %v2516 = vrot.slane %v2514, 4
      %v2517 = vrot.slane %v1772, 5
      %v2518 = vsel %vm1125, %v2516, %v2517
      %v2519 = vrot.slane %v2419, 5
      %v2520 = vrot.slane %v2519, 4
      %v2521 = vrot.slane %v1774, 5
      %v2522 = vsel %vm1125, %v2520, %v2521
      %v2523 = vrot.slane %v2521, 4
      %v2524 = vrot.slane %v1775, 5
      %v2525 = vsel %vm1125, %v2523, %v2524
      %v2526 = vrot.slane %v2420, 5
      %v2527 = vrot.slane %v2526, 4
      %v2528 = vrot.slane %v1777, 5
      %v2529 = vsel %vm1125, %v2527, %v2528
      %v2530 = vrot.slane %v2528, 4
      %v2531 = vrot.slane %v1778, 5
      %v2532 = vsel %vm1125, %v2530, %v2531
      %v2533 = vrot.slane %v2421, 5
      %v2534 = vrot.slane %v2533, 4
      %v2535 = vrot.slane %v1780, 5
      %v2536 = vsel %vm1125, %v2534, %v2535
      %v2537 = vrot.slane %v2535, 4
      %v2538 = vrot.slane %v1781, 5
      %v2539 = vsel %vm1125, %v2537, %v2538
      %v2540 = vrot.slane %v2422, 5
      %v2541 = vrot.slane %v2540, 4
      %v2542 = vrot.slane %v1783, 5
      %v2543 = vsel %vm1125, %v2541, %v2542
      %v2544 = vrot.slane %v2542, 4
      %v2545 = vrot.slane %v1784, 5
      %v2546 = vsel %vm1125, %v2544, %v2545
      %v2547 = vrot.slane %v2423, 5
      %v2548 = vrot.slane %v2547, 4
      %v2549 = vrot.slane %v1786, 5
      %v2550 = vsel %vm1125, %v2548, %v2549
      %v2551 = vrot.slane %v2549, 4
      %v2552 = vrot.slane %v1787, 5
      %v2553 = vsel %vm1125, %v2551, %v2552
      %v2554 = vrot.slane %v2424, 5
      %v2555 = vrot.slane %v2554, 4
      %v2556 = vrot.slane %v1789, 5
      %v2557 = vsel %vm1125, %v2555, %v2556
      %v2558 = vrot.slane %v2556, 4
      %v2559 = vrot.slane %v1790, 5
      %v2560 = vsel %vm1125, %v2558, %v2559
      %v2561 = vrot.slane %v2425, 5
      %v2562 = vrot.slane %v2561, 4
      %v2563 = vrot.slane %v1792, 5
      %v2564 = vsel %vm1125, %v2562, %v2563
      %v2565 = vrot.slane %v2563, 4
      %v2566 = vrot.slane %v1793, 5
      %v2567 = vsel %vm1125, %v2565, %v2566
      %v2568 = vrot.slane %v2426, 5
      %v2569 = vrot.slane %v2568, 4
      %v2570 = vrot.slane %v1795, 5
      %v2571 = vsel %vm1125, %v2569, %v2570
      %v2572 = vrot.slane %v2570, 4
      %v2573 = vrot.slane %v1796, 5
      %v2574 = vsel %vm1125, %v2572, %v2573
      %v2575 = vrot.slane %v2427, 5
      %v2576 = vrot.slane %v2575, 4
      %v2577 = vrot.slane %v1798, 5
      %v2578 = vsel %vm1125, %v2576, %v2577
      %v2579 = vrot.slane %v2577, 4
      %v2580 = vrot.slane %v1799, 5
      %v2581 = vsel %vm1125, %v2579, %v2580
      %v2582 = vrot.slane %v2428, 5
      %v2583 = vrot.slane %v2582, 4
      %v2584 = vrot.slane %v1801, 5
      %v2585 = vsel %vm1125, %v2583, %v2584
      %v2586 = vrot.slane %v2584, 4
      %v2587 = vrot.slane %v1802, 5
      %v2588 = vsel %vm1125, %v2586, %v2587
      %s2589 = scalar_lea.vmem %s1, 40
      %v2590 = vld [vmem:[%s2589] sm:$0xf]
      %v2591 = vld [vmem:[%s2589 + $0x4] sm:$0xf]
      %v2592 = vunpack.c.l.b16 %v2480
      %v2593 = vunpack.c.l.b16 %v2483
      %v2594 = vunpack.c.l.b16 %v2487
      %v2595 = vunpack.c.l.b16 %v2490
      %v2596 = vunpack.c.l.b16 %v2494
      %v2597 = vunpack.c.l.b16 %v2497
      %v2598 = vunpack.c.l.b16 %v2501
      %v2599 = vunpack.c.l.b16 %v2504
      %v2600 = vunpack.c.l.b16 %v2508
      %v2601 = vunpack.c.l.b16 %v2511
      %v2602 = vunpack.c.l.b16 %v2515
      %v2603 = vunpack.c.l.b16 %v2518
      %v2604 = vunpack.c.l.b16 %v2522
      %v2605 = vunpack.c.l.b16 %v2525
      %v2606 = vunpack.c.l.b16 %v2529
      %v2607 = vunpack.c.l.b16 %v2532
      %v2608 = vunpack.c.l.b16 %v2536
      %v2609 = vunpack.c.l.b16 %v2539
      %v2610 = vunpack.c.l.b16 %v2543
      %v2611 = vunpack.c.l.b16 %v2546
      %v2612 = vunpack.c.l.b16 %v2550
      %v2613 = vunpack.c.l.b16 %v2553
      %v2614 = vunpack.c.l.b16 %v2557
      %v2615 = vunpack.c.l.b16 %v2560
      %v2616 = vunpack.c.l.b16 %v2564
      %v2617 = vunpack.c.l.b16 %v2567
      %v2618 = vunpack.c.l.b16 %v2571
      %v2619 = vunpack.c.l.b16 %v2574
      %v2620 = vunpack.c.l.b16 %v2578
      %v2621 = vunpack.c.l.b16 %v2581
      %v2622 = vunpack.c.l.b16 %v2585
      %v2623 = vunpack.c.l.b16 %v2588
      %v2624 = vpack.c.b16 %v2593, %v2592
      %v2625 = vpack.c.b16 %v2595, %v2594
      %v2626 = vpack.c.b16 %v2597, %v2596
      %v2627 = vpack.c.b16 %v2599, %v2598
      %v2628 = vpack.c.b16 %v2601, %v2600
      %v2629 = vpack.c.b16 %v2603, %v2602
      %v2630 = vpack.c.b16 %v2605, %v2604
      %v2631 = vpack.c.b16 %v2607, %v2606
      %v2632 = vpack.c.b16 %v2609, %v2608
      %v2633 = vpack.c.b16 %v2611, %v2610
      %v2634 = vpack.c.b16 %v2613, %v2612
      %v2635 = vpack.c.b16 %v2615, %v2614
      %v2636 = vpack.c.b16 %v2617, %v2616
      %v2637 = vpack.c.b16 %v2619, %v2618
      %v2638 = vpack.c.b16 %v2621, %v2620
      %v2639 = vpack.c.b16 %v2623, %v2622
      %v2642 = vunpack.c.l.b16 %v2590
      %v2643 = vunpack.c.l.b16 %v2591
      %v2644 = vpack.c.b16 %v2643, %v2642
      %v2647 = vsel %vm714, %v2624, 0
      %v2650 = vsel %vm714, %v2625, 0
      %v2653 = vsel %vm714, %v2626, 0
      %v2656 = vsel %vm714, %v2627, 0
      %v2659 = vsel %vm714, %v2628, 0
      %v2662 = vsel %vm714, %v2629, 0
      %v2665 = vsel %vm714, %v2630, 0
      %v2668 = vsel %vm714, %v2631, 0
      %v2671 = vsel %vm714, %v2632, 0
      %v2674 = vsel %vm714, %v2633, 0
      %v2677 = vsel %vm714, %v2634, 0
      %v2680 = vsel %vm714, %v2635, 0
      %v2683 = vsel %vm714, %v2636, 0
      %v2686 = vsel %vm714, %v2637, 0
      %v2689 = vsel %vm714, %v2638, 0
      %v2692 = vsel %vm714, %v2639, 0
      %2694 = vmatpush.bf16.msra.mxu0 0
      %2695 = vmatpush.bf16.msra.mxu0 0
      %2696 = vmatpush.bf16.msra.mxu0 0
      %2697 = vmatpush.bf16.msra.mxu0 0
      %2698 = vmatpush.bf16.msra.mxu0 0
      %2699 = vmatpush.bf16.msra.mxu0 0
      %2700 = vmatpush.bf16.msra.mxu0 0
      %2701 = vmatpush.bf16.msra.mxu0 %v2644
      %2702 = vmatmul.bf16.gmra.mxu0 %v2647
      %v2703 = vpop.f32.mrf.mxu0
      %v2704 = vadd.f32 0.0, %v2703
      %v2705 = vpop.f32.mrf.mxu0
      %v2706 = vadd.f32 0.0, %v2705
      %2707 = vmatmul.bf16.gmra.mxu0 %v2650
      %v2708 = vpop.f32.mrf.mxu0
      %v2709 = vadd.f32 0.0, %v2708
      %v2710 = vpop.f32.mrf.mxu0
      %v2711 = vadd.f32 0.0, %v2710
      %2712 = vmatmul.bf16.gmra.mxu0 %v2653
      %v2713 = vpop.f32.mrf.mxu0
      %v2714 = vadd.f32 0.0, %v2713
      %v2715 = vpop.f32.mrf.mxu0
      %v2716 = vadd.f32 0.0, %v2715
      %2717 = vmatmul.bf16.gmra.mxu0 %v2656
      %v2718 = vpop.f32.mrf.mxu0
      %v2719 = vadd.f32 0.0, %v2718
      %v2720 = vpop.f32.mrf.mxu0
      %v2721 = vadd.f32 0.0, %v2720
      %2722 = vmatmul.bf16.gmra.mxu0 %v2659
      %v2723 = vpop.f32.mrf.mxu0
      %v2724 = vadd.f32 0.0, %v2723
      %v2725 = vpop.f32.mrf.mxu0
      %v2726 = vadd.f32 0.0, %v2725
      %2727 = vmatmul.bf16.gmra.mxu0 %v2662
      %v2728 = vpop.f32.mrf.mxu0
      %v2729 = vadd.f32 0.0, %v2728
      %v2730 = vpop.f32.mrf.mxu0
      %v2731 = vadd.f32 0.0, %v2730
      %2732 = vmatmul.bf16.gmra.mxu0 %v2665
      %v2733 = vpop.f32.mrf.mxu0
      %v2734 = vadd.f32 0.0, %v2733
      %v2735 = vpop.f32.mrf.mxu0
      %v2736 = vadd.f32 0.0, %v2735
      %2737 = vmatmul.bf16.gmra.mxu0 %v2668
      %v2738 = vpop.f32.mrf.mxu0
      %v2739 = vadd.f32 0.0, %v2738
      %v2740 = vpop.f32.mrf.mxu0
      %v2741 = vadd.f32 0.0, %v2740
      %2742 = vmatmul.bf16.gmra.mxu0 %v2671
      %v2743 = vpop.f32.mrf.mxu0
      %v2744 = vadd.f32 0.0, %v2743
      %v2745 = vpop.f32.mrf.mxu0
      %v2746 = vadd.f32 0.0, %v2745
      %2747 = vmatmul.bf16.gmra.mxu0 %v2674
      %v2748 = vpop.f32.mrf.mxu0
      %v2749 = vadd.f32 0.0, %v2748
      %v2750 = vpop.f32.mrf.mxu0
      %v2751 = vadd.f32 0.0, %v2750
      %2752 = vmatmul.bf16.gmra.mxu0 %v2677
      %v2753 = vpop.f32.mrf.mxu0
      %v2754 = vadd.f32 0.0, %v2753
      %v2755 = vpop.f32.mrf.mxu0
      %v2756 = vadd.f32 0.0, %v2755
      %2757 = vmatmul.bf16.gmra.mxu0 %v2680
      %v2758 = vpop.f32.mrf.mxu0
      %v2759 = vadd.f32 0.0, %v2758
      %v2760 = vpop.f32.mrf.mxu0
      %v2761 = vadd.f32 0.0, %v2760
      %2762 = vmatmul.bf16.gmra.mxu0 %v2683
      %v2763 = vpop.f32.mrf.mxu0
      %v2764 = vadd.f32 0.0, %v2763
      %v2765 = vpop.f32.mrf.mxu0
      %v2766 = vadd.f32 0.0, %v2765
      %2767 = vmatmul.bf16.gmra.mxu0 %v2686
      %v2768 = vpop.f32.mrf.mxu0
      %v2769 = vadd.f32 0.0, %v2768
      %v2770 = vpop.f32.mrf.mxu0
      %v2771 = vadd.f32 0.0, %v2770
      %2772 = vmatmul.bf16.gmra.mxu0 %v2689
      %v2773 = vpop.f32.mrf.mxu0
      %v2774 = vadd.f32 0.0, %v2773
      %v2775 = vpop.f32.mrf.mxu0
      %v2776 = vadd.f32 0.0, %v2775
      %2777 = vmatmul.bf16.gmra.mxu0 %v2692
      %v2778 = vpop.f32.mrf.mxu0
      %v2779 = vadd.f32 0.0, %v2778
      %v2780 = vpop.f32.mrf.mxu0
      %v2781 = vadd.f32 0.0, %v2780
      %2782 = vdwg.mxu0
      %v2783 = vadd.f32 %v2381, %v2704
      %v2784 = vadd.f32 %v2382, %v2706
      %v2785 = vadd.f32 %v2383, %v2709
      %v2786 = vadd.f32 %v2384, %v2711
      %v2787 = vadd.f32 %v2385, %v2714
      %v2788 = vadd.f32 %v2386, %v2716
      %v2789 = vadd.f32 %v2387, %v2719
      %v2790 = vadd.f32 %v2388, %v2721
      %v2791 = vadd.f32 %v2389, %v2724
      %v2792 = vadd.f32 %v2390, %v2726
      %v2793 = vadd.f32 %v2391, %v2729
      %v2794 = vadd.f32 %v2392, %v2731
      %v2795 = vadd.f32 %v2393, %v2734
      %v2796 = vadd.f32 %v2394, %v2736
      %v2797 = vadd.f32 %v2395, %v2739
      %v2798 = vadd.f32 %v2396, %v2741
      %v2799 = vadd.f32 %v2397, %v2744
      %v2800 = vadd.f32 %v2398, %v2746
      %v2801 = vadd.f32 %v2399, %v2749
      %v2802 = vadd.f32 %v2400, %v2751
      %v2803 = vadd.f32 %v2401, %v2754
      %v2804 = vadd.f32 %v2402, %v2756
      %v2805 = vadd.f32 %v2403, %v2759
      %v2806 = vadd.f32 %v2404, %v2761
      %v2807 = vadd.f32 %v2405, %v2764
      %v2808 = vadd.f32 %v2406, %v2766
      %v2809 = vadd.f32 %v2407, %v2769
      %v2810 = vadd.f32 %v2408, %v2771
      %v2811 = vadd.f32 %v2409, %v2774
      %v2812 = vadd.f32 %v2410, %v2776
      %v2813 = vadd.f32 %v2411, %v2779
      %v2814 = vadd.f32 %v2412, %v2781
      %s2815 = scalar_lea.vmem %s200, 24
      %v2816 = vld [vmem:[%s2815] sm:$0xf]
      %v2817 = vld [vmem:[%s2815 + $0x4] sm:$0xf]
      %v2818 = vld [vmem:[%s2815 + $0xc] sm:$0xf]
      %v2819 = vld [vmem:[%s2815 + $0x10] sm:$0xf]
      %v2820 = vld [vmem:[%s2815 + $0x18] sm:$0xf]
      %v2821 = vld [vmem:[%s2815 + $0x1c] sm:$0xf]
      %v2822 = vld [vmem:[%s2815 + $0x24] sm:$0xf]
      %v2823 = vld [vmem:[%s2815 + $0x28] sm:$0xf]
      %v2824 = vld [vmem:[%s2815 + $0x30] sm:$0xf]
      %v2825 = vld [vmem:[%s2815 + $0x34] sm:$0xf]
      %v2826 = vld [vmem:[%s2815 + $0x3c] sm:$0xf]
      %v2827 = vld [vmem:[%s2815 + $0x40] sm:$0xf]
      %v2828 = vld [vmem:[%s2815 + $0x48] sm:$0xf]
      %v2829 = vld [vmem:[%s2815 + $0x4c] sm:$0xf]
      %v2830 = vld [vmem:[%s2815 + $0x54] sm:$0xf]
      %v2831 = vld [vmem:[%s2815 + $0x58] sm:$0xf]
      %v2832 = vld [vmem:[%s2815 + $0x60] sm:$0xf]
      %v2833 = vld [vmem:[%s2815 + $0x64] sm:$0xf]
      %v2834 = vld [vmem:[%s2815 + $0x6c] sm:$0xf]
      %v2835 = vld [vmem:[%s2815 + $0x70] sm:$0xf]
      %v2836 = vld [vmem:[%s2815 + $0x78] sm:$0xf]
      %v2837 = vld [vmem:[%s2815 + $0x7c] sm:$0xf]
      %v2838 = vld [vmem:[%s2815 + $0x84] sm:$0xf]
      %v2839 = vld [vmem:[%s2815 + $0x88] sm:$0xf]
      %v2840 = vld [vmem:[%s2815 + $0x90] sm:$0xf]
      %v2841 = vld [vmem:[%s2815 + $0x94] sm:$0xf]
      %v2842 = vld [vmem:[%s2815 + $0x9c] sm:$0xf]
      %v2843 = vld [vmem:[%s2815 + $0xa0] sm:$0xf]
      %v2844 = vld [vmem:[%s2815 + $0xa8] sm:$0xf]
      %v2845 = vld [vmem:[%s2815 + $0xac] sm:$0xf]
      %v2846 = vld [vmem:[%s2815 + $0xb4] sm:$0xf]
      %v2847 = vld [vmem:[%s2815 + $0xb8] sm:$0xf]
      %s2848 = scalar_lea.vmem %s1, 48
      %v2849 = vld [vmem:[%s2848] sm:$0xf]
      %v2850 = vld [vmem:[%s2848 + $0x4] sm:$0xf]
      %v2883 = vunpack.c.l.b16 %v2816
      %v2884 = vunpack.c.l.b16 %v2817
      %v2885 = vunpack.c.l.b16 %v2818
      %v2886 = vunpack.c.l.b16 %v2819
      %v2887 = vunpack.c.l.b16 %v2820
      %v2888 = vunpack.c.l.b16 %v2821
      %v2889 = vunpack.c.l.b16 %v2822
      %v2890 = vunpack.c.l.b16 %v2823
      %v2891 = vunpack.c.l.b16 %v2824
      %v2892 = vunpack.c.l.b16 %v2825
      %v2893 = vunpack.c.l.b16 %v2826
      %v2894 = vunpack.c.l.b16 %v2827
      %v2895 = vunpack.c.l.b16 %v2828
      %v2896 = vunpack.c.l.b16 %v2829
      %v2897 = vunpack.c.l.b16 %v2830
      %v2898 = vunpack.c.l.b16 %v2831
      %v2899 = vunpack.c.l.b16 %v2832
      %v2900 = vunpack.c.l.b16 %v2833
      %v2901 = vunpack.c.l.b16 %v2834
      %v2902 = vunpack.c.l.b16 %v2835
      %v2903 = vunpack.c.l.b16 %v2836
      %v2904 = vunpack.c.l.b16 %v2837
      %v2905 = vunpack.c.l.b16 %v2838
      %v2906 = vunpack.c.l.b16 %v2839
      %v2907 = vunpack.c.l.b16 %v2840
      %v2908 = vunpack.c.l.b16 %v2841
      %v2909 = vunpack.c.l.b16 %v2842
      %v2910 = vunpack.c.l.b16 %v2843
      %v2911 = vunpack.c.l.b16 %v2844
      %v2912 = vunpack.c.l.b16 %v2845
      %v2913 = vunpack.c.l.b16 %v2846
      %v2914 = vunpack.c.l.b16 %v2847
      %v2915 = vpack.c.b16 %v2884, %v2883
      %v2916 = vpack.c.b16 %v2886, %v2885
      %v2917 = vpack.c.b16 %v2888, %v2887
      %v2918 = vpack.c.b16 %v2890, %v2889
      %v2919 = vpack.c.b16 %v2892, %v2891
      %v2920 = vpack.c.b16 %v2894, %v2893
      %v2921 = vpack.c.b16 %v2896, %v2895
      %v2922 = vpack.c.b16 %v2898, %v2897
      %v2923 = vpack.c.b16 %v2900, %v2899
      %v2924 = vpack.c.b16 %v2902, %v2901
      %v2925 = vpack.c.b16 %v2904, %v2903
      %v2926 = vpack.c.b16 %v2906, %v2905
      %v2927 = vpack.c.b16 %v2908, %v2907
      %v2928 = vpack.c.b16 %v2910, %v2909
      %v2929 = vpack.c.b16 %v2912, %v2911
      %v2930 = vpack.c.b16 %v2914, %v2913
      %v2933 = vunpack.c.l.b16 %v2849
      %v2934 = vunpack.c.l.b16 %v2850
      %v2935 = vpack.c.b16 %v2934, %v2933
      %v2938 = vsel %vm714, %v2915, 0
      %v2941 = vsel %vm714, %v2916, 0
      %v2944 = vsel %vm714, %v2917, 0
      %v2947 = vsel %vm714, %v2918, 0
      %v2950 = vsel %vm714, %v2919, 0
      %v2953 = vsel %vm714, %v2920, 0
      %v2956 = vsel %vm714, %v2921, 0
      %v2959 = vsel %vm714, %v2922, 0
      %v2962 = vsel %vm714, %v2923, 0
      %v2965 = vsel %vm714, %v2924, 0
      %v2968 = vsel %vm714, %v2925, 0
      %v2971 = vsel %vm714, %v2926, 0
      %v2974 = vsel %vm714, %v2927, 0
      %v2977 = vsel %vm714, %v2928, 0
      %v2980 = vsel %vm714, %v2929, 0
      %v2983 = vsel %vm714, %v2930, 0
      %2985 = vmatpush.bf16.msra.mxu0 0
      %2986 = vmatpush.bf16.msra.mxu0 0
      %2987 = vmatpush.bf16.msra.mxu0 0
      %2988 = vmatpush.bf16.msra.mxu0 0
      %2989 = vmatpush.bf16.msra.mxu0 0
      %2990 = vmatpush.bf16.msra.mxu0 0
      %2991 = vmatpush.bf16.msra.mxu0 0
      %2992 = vmatpush.bf16.msra.mxu0 %v2935
      %2993 = vmatmul.bf16.gmra.mxu0 %v2938
      %v2994 = vpop.f32.mrf.mxu0
      %v2995 = vadd.f32 0.0, %v2994
      %v2996 = vpop.f32.mrf.mxu0
      %v2997 = vadd.f32 0.0, %v2996
      %2998 = vmatmul.bf16.gmra.mxu0 %v2941
      %v2999 = vpop.f32.mrf.mxu0
      %v3000 = vadd.f32 0.0, %v2999
      %v3001 = vpop.f32.mrf.mxu0
      %v3002 = vadd.f32 0.0, %v3001
      %3003 = vmatmul.bf16.gmra.mxu0 %v2944
      %v3004 = vpop.f32.mrf.mxu0
      %v3005 = vadd.f32 0.0, %v3004
      %v3006 = vpop.f32.mrf.mxu0
      %v3007 = vadd.f32 0.0, %v3006
      %3008 = vmatmul.bf16.gmra.mxu0 %v2947
      %v3009 = vpop.f32.mrf.mxu0
      %v3010 = vadd.f32 0.0, %v3009
      %v3011 = vpop.f32.mrf.mxu0
      %v3012 = vadd.f32 0.0, %v3011
      %3013 = vmatmul.bf16.gmra.mxu0 %v2950
      %v3014 = vpop.f32.mrf.mxu0
      %v3015 = vadd.f32 0.0, %v3014
      %v3016 = vpop.f32.mrf.mxu0
      %v3017 = vadd.f32 0.0, %v3016
      %3018 = vmatmul.bf16.gmra.mxu0 %v2953
      %v3019 = vpop.f32.mrf.mxu0
      %v3020 = vadd.f32 0.0, %v3019
      %v3021 = vpop.f32.mrf.mxu0
      %v3022 = vadd.f32 0.0, %v3021
      %3023 = vmatmul.bf16.gmra.mxu0 %v2956
      %v3024 = vpop.f32.mrf.mxu0
      %v3025 = vadd.f32 0.0, %v3024
      %v3026 = vpop.f32.mrf.mxu0
      %v3027 = vadd.f32 0.0, %v3026
      %3028 = vmatmul.bf16.gmra.mxu0 %v2959
      %v3029 = vpop.f32.mrf.mxu0
      %v3030 = vadd.f32 0.0, %v3029
      %v3031 = vpop.f32.mrf.mxu0
      %v3032 = vadd.f32 0.0, %v3031
      %3033 = vmatmul.bf16.gmra.mxu0 %v2962
      %v3034 = vpop.f32.mrf.mxu0
      %v3035 = vadd.f32 0.0, %v3034
      %v3036 = vpop.f32.mrf.mxu0
      %v3037 = vadd.f32 0.0, %v3036
      %3038 = vmatmul.bf16.gmra.mxu0 %v2965
      %v3039 = vpop.f32.mrf.mxu0
      %v3040 = vadd.f32 0.0, %v3039
      %v3041 = vpop.f32.mrf.mxu0
      %v3042 = vadd.f32 0.0, %v3041
      %3043 = vmatmul.bf16.gmra.mxu0 %v2968
      %v3044 = vpop.f32.mrf.mxu0
      %v3045 = vadd.f32 0.0, %v3044
      %v3046 = vpop.f32.mrf.mxu0
      %v3047 = vadd.f32 0.0, %v3046
      %3048 = vmatmul.bf16.gmra.mxu0 %v2971
      %v3049 = vpop.f32.mrf.mxu0
      %v3050 = vadd.f32 0.0, %v3049
      %v3051 = vpop.f32.mrf.mxu0
      %v3052 = vadd.f32 0.0, %v3051
      %3053 = vmatmul.bf16.gmra.mxu0 %v2974
      %v3054 = vpop.f32.mrf.mxu0
      %v3055 = vadd.f32 0.0, %v3054
      %v3056 = vpop.f32.mrf.mxu0
      %v3057 = vadd.f32 0.0, %v3056
      %3058 = vmatmul.bf16.gmra.mxu0 %v2977
      %v3059 = vpop.f32.mrf.mxu0
      %v3060 = vadd.f32 0.0, %v3059
      %v3061 = vpop.f32.mrf.mxu0
      %v3062 = vadd.f32 0.0, %v3061
      %3063 = vmatmul.bf16.gmra.mxu0 %v2980
      %v3064 = vpop.f32.mrf.mxu0
      %v3065 = vadd.f32 0.0, %v3064
      %v3066 = vpop.f32.mrf.mxu0
      %v3067 = vadd.f32 0.0, %v3066
      %3068 = vmatmul.bf16.gmra.mxu0 %v2983
      %v3069 = vpop.f32.mrf.mxu0
      %v3070 = vadd.f32 0.0, %v3069
      %v3071 = vpop.f32.mrf.mxu0
      %v3072 = vadd.f32 0.0, %v3071
      %3073 = vdwg.mxu0
      %v3074 = vadd.f32 %v2783, %v2995
      %v3075 = vadd.f32 %v2784, %v2997
      %v3076 = vadd.f32 %v2785, %v3000
      %v3077 = vadd.f32 %v2786, %v3002
      %v3078 = vadd.f32 %v2787, %v3005
      %v3079 = vadd.f32 %v2788, %v3007
      %v3080 = vadd.f32 %v2789, %v3010
      %v3081 = vadd.f32 %v2790, %v3012
      %v3082 = vadd.f32 %v2791, %v3015
      %v3083 = vadd.f32 %v2792, %v3017
      %v3084 = vadd.f32 %v2793, %v3020
      %v3085 = vadd.f32 %v2794, %v3022
      %v3086 = vadd.f32 %v2795, %v3025
      %v3087 = vadd.f32 %v2796, %v3027
      %v3088 = vadd.f32 %v2797, %v3030
      %v3089 = vadd.f32 %v2798, %v3032
      %v3090 = vadd.f32 %v2799, %v3035
      %v3091 = vadd.f32 %v2800, %v3037
      %v3092 = vadd.f32 %v2801, %v3040
      %v3093 = vadd.f32 %v2802, %v3042
      %v3094 = vadd.f32 %v2803, %v3045
      %v3095 = vadd.f32 %v2804, %v3047
      %v3096 = vadd.f32 %v2805, %v3050
      %v3097 = vadd.f32 %v2806, %v3052
      %v3098 = vadd.f32 %v2807, %v3055
      %v3099 = vadd.f32 %v2808, %v3057
      %v3100 = vadd.f32 %v2809, %v3060
      %v3101 = vadd.f32 %v2810, %v3062
      %v3102 = vadd.f32 %v2811, %v3065
      %v3103 = vadd.f32 %v2812, %v3067
      %v3104 = vadd.f32 %v2813, %v3070
      %v3105 = vadd.f32 %v2814, %v3072
      %v3106 = vld [vmem:[%s2815] sm:$0xf]
      %v3107 = vld [vmem:[%s2815 + $0x4] sm:$0xf]
      %v3108 = vld [vmem:[%s2815 + $0x8] sm:$0x1]
      %v3109 = vld [vmem:[%s2815 + $0xc] sm:$0xf]
      %v3110 = vld [vmem:[%s2815 + $0x10] sm:$0xf]
      %v3111 = vld [vmem:[%s2815 + $0x14] sm:$0x1]
      %v3112 = vld [vmem:[%s2815 + $0x18] sm:$0xf]
      %v3113 = vld [vmem:[%s2815 + $0x1c] sm:$0xf]
      %v3114 = vld [vmem:[%s2815 + $0x20] sm:$0x1]
      %v3115 = vld [vmem:[%s2815 + $0x24] sm:$0xf]
      %v3116 = vld [vmem:[%s2815 + $0x28] sm:$0xf]
      %v3117 = vld [vmem:[%s2815 + $0x2c] sm:$0x1]
      %v3118 = vld [vmem:[%s2815 + $0x30] sm:$0xf]
      %v3119 = vld [vmem:[%s2815 + $0x34] sm:$0xf]
      %v3120 = vld [vmem:[%s2815 + $0x38] sm:$0x1]
      %v3121 = vld [vmem:[%s2815 + $0x3c] sm:$0xf]
      %v3122 = vld [vmem:[%s2815 + $0x40] sm:$0xf]
      %v3123 = vld [vmem:[%s2815 + $0x44] sm:$0x1]
      %v3124 = vld [vmem:[%s2815 + $0x48] sm:$0xf]
      %v3125 = vld [vmem:[%s2815 + $0x4c] sm:$0xf]
      %v3126 = vld [vmem:[%s2815 + $0x50] sm:$0x1]
      %v3127 = vld [vmem:[%s2815 + $0x54] sm:$0xf]
      %v3128 = vld [vmem:[%s2815 + $0x58] sm:$0xf]
      %v3129 = vld [vmem:[%s2815 + $0x5c] sm:$0x1]
      %v3130 = vld [vmem:[%s2815 + $0x60] sm:$0xf]
      %v3131 = vld [vmem:[%s2815 + $0x64] sm:$0xf]
      %v3132 = vld [vmem:[%s2815 + $0x68] sm:$0x1]
      %v3133 = vld [vmem:[%s2815 + $0x6c] sm:$0xf]
      %v3134 = vld [vmem:[%s2815 + $0x70] sm:$0xf]
      %v3135 = vld [vmem:[%s2815 + $0x74] sm:$0x1]
      %v3136 = vld [vmem:[%s2815 + $0x78] sm:$0xf]
      %v3137 = vld [vmem:[%s2815 + $0x7c] sm:$0xf]
      %v3138 = vld [vmem:[%s2815 + $0x80] sm:$0x1]
      %v3139 = vld [vmem:[%s2815 + $0x84] sm:$0xf]
      %v3140 = vld [vmem:[%s2815 + $0x88] sm:$0xf]
      %v3141 = vld [vmem:[%s2815 + $0x8c] sm:$0x1]
      %v3142 = vld [vmem:[%s2815 + $0x90] sm:$0xf]
      %v3143 = vld [vmem:[%s2815 + $0x94] sm:$0xf]
      %v3144 = vld [vmem:[%s2815 + $0x98] sm:$0x1]
      %v3145 = vld [vmem:[%s2815 + $0x9c] sm:$0xf]
      %v3146 = vld [vmem:[%s2815 + $0xa0] sm:$0xf]
      %v3147 = vld [vmem:[%s2815 + $0xa4] sm:$0x1]
      %v3148 = vld [vmem:[%s2815 + $0xa8] sm:$0xf]
      %v3149 = vld [vmem:[%s2815 + $0xac] sm:$0xf]
      %v3150 = vld [vmem:[%s2815 + $0xb0] sm:$0x1]
      %v3151 = vld [vmem:[%s2815 + $0xb4] sm:$0xf]
      %v3152 = vld [vmem:[%s2815 + $0xb8] sm:$0xf]
      %v3153 = vld [vmem:[%s2815 + $0xbc] sm:$0x1]
      %v3155 = vshrl.u32 %v3106, 16
      %v3157 = vrot.slane %v3155, 4
      %v3158 = vshll.u32 %v3106, 16
      %v3160 = vrot.slane %v3158, 5
      %v3161 = vor.u32 %v3157, %v3160
      %v3162 = vrot.slane %v3161, 4
      %v3164 = vshll.u32 %v3107, 16
      %v3166 = vrot.slane %v3164, 5
      %v3167 = vsel %vm272, %v3162, %v3166
      %v3168 = vshrl.u32 %v3107, 16
      %v3170 = vrot.slane %v3168, 4
      %v3171 = vor.u32 %v3170, %v3166
      %v3172 = vrot.slane %v3171, 4
      %v3174 = vshll.u32 %v3108, 16
      %v3176 = vrot.slane %v3174, 5
      %v3177 = vsel %vm272, %v3172, %v3176
      %v3179 = vshrl.u32 %v3109, 16
      %v3181 = vrot.slane %v3179, 4
      %v3182 = vshll.u32 %v3109, 16
      %v3184 = vrot.slane %v3182, 5
      %v3185 = vor.u32 %v3181, %v3184
      %v3186 = vrot.slane %v3185, 4
      %v3188 = vshll.u32 %v3110, 16
      %v3190 = vrot.slane %v3188, 5
      %v3191 = vsel %vm272, %v3186, %v3190
      %v3192 = vshrl.u32 %v3110, 16
      %v3194 = vrot.slane %v3192, 4
      %v3195 = vor.u32 %v3194, %v3190
      %v3196 = vrot.slane %v3195, 4
      %v3198 = vshll.u32 %v3111, 16
      %v3200 = vrot.slane %v3198, 5
      %v3201 = vsel %vm272, %v3196, %v3200
      %v3203 = vshrl.u32 %v3112, 16
      %v3205 = vrot.slane %v3203, 4
      %v3206 = vshll.u32 %v3112, 16
      %v3208 = vrot.slane %v3206, 5
      %v3209 = vor.u32 %v3205, %v3208
      %v3210 = vrot.slane %v3209, 4
      %v3212 = vshll.u32 %v3113, 16
      %v3214 = vrot.slane %v3212, 5
      %v3215 = vsel %vm272, %v3210, %v3214
      %v3216 = vshrl.u32 %v3113, 16
      %v3218 = vrot.slane %v3216, 4
      %v3219 = vor.u32 %v3218, %v3214
      %v3220 = vrot.slane %v3219, 4
      %v3222 = vshll.u32 %v3114, 16
      %v3224 = vrot.slane %v3222, 5
      %v3225 = vsel %vm272, %v3220, %v3224
      %v3227 = vshrl.u32 %v3115, 16
      %v3229 = vrot.slane %v3227, 4
      %v3230 = vshll.u32 %v3115, 16
      %v3232 = vrot.slane %v3230, 5
      %v3233 = vor.u32 %v3229, %v3232
      %v3234 = vrot.slane %v3233, 4
      %v3236 = vshll.u32 %v3116, 16
      %v3238 = vrot.slane %v3236, 5
      %v3239 = vsel %vm272, %v3234, %v3238
      %v3240 = vshrl.u32 %v3116, 16
      %v3242 = vrot.slane %v3240, 4
      %v3243 = vor.u32 %v3242, %v3238
      %v3244 = vrot.slane %v3243, 4
      %v3246 = vshll.u32 %v3117, 16
      %v3248 = vrot.slane %v3246, 5
      %v3249 = vsel %vm272, %v3244, %v3248
      %v3251 = vshrl.u32 %v3118, 16
      %v3253 = vrot.slane %v3251, 4
      %v3254 = vshll.u32 %v3118, 16
      %v3256 = vrot.slane %v3254, 5
      %v3257 = vor.u32 %v3253, %v3256
      %v3258 = vrot.slane %v3257, 4
      %v3260 = vshll.u32 %v3119, 16
      %v3262 = vrot.slane %v3260, 5
      %v3263 = vsel %vm272, %v3258, %v3262
      %v3264 = vshrl.u32 %v3119, 16
      %v3266 = vrot.slane %v3264, 4
      %v3267 = vor.u32 %v3266, %v3262
      %v3268 = vrot.slane %v3267, 4
      %v3270 = vshll.u32 %v3120, 16
      %v3272 = vrot.slane %v3270, 5
      %v3273 = vsel %vm272, %v3268, %v3272
      %v3275 = vshrl.u32 %v3121, 16
      %v3277 = vrot.slane %v3275, 4
      %v3278 = vshll.u32 %v3121, 16
      %v3280 = vrot.slane %v3278, 5
      %v3281 = vor.u32 %v3277, %v3280
      %v3282 = vrot.slane %v3281, 4
      %v3284 = vshll.u32 %v3122, 16
      %v3286 = vrot.slane %v3284, 5
      %v3287 = vsel %vm272, %v3282, %v3286
      %v3288 = vshrl.u32 %v3122, 16
      %v3290 = vrot.slane %v3288, 4
      %v3291 = vor.u32 %v3290, %v3286
      %v3292 = vrot.slane %v3291, 4
      %v3294 = vshll.u32 %v3123, 16
      %v3296 = vrot.slane %v3294, 5
      %v3297 = vsel %vm272, %v3292, %v3296
      %v3299 = vshrl.u32 %v3124, 16
      %v3301 = vrot.slane %v3299, 4
      %v3302 = vshll.u32 %v3124, 16
      %v3304 = vrot.slane %v3302, 5
      %v3305 = vor.u32 %v3301, %v3304
      %v3306 = vrot.slane %v3305, 4
      %v3308 = vshll.u32 %v3125, 16
      %v3310 = vrot.slane %v3308, 5
      %v3311 = vsel %vm272, %v3306, %v3310
      %v3312 = vshrl.u32 %v3125, 16
      %v3314 = vrot.slane %v3312, 4
      %v3315 = vor.u32 %v3314, %v3310
      %v3316 = vrot.slane %v3315, 4
      %v3318 = vshll.u32 %v3126, 16
      %v3320 = vrot.slane %v3318, 5
      %v3321 = vsel %vm272, %v3316, %v3320
      %v3323 = vshrl.u32 %v3127, 16
      %v3325 = vrot.slane %v3323, 4
      %v3326 = vshll.u32 %v3127, 16
      %v3328 = vrot.slane %v3326, 5
      %v3329 = vor.u32 %v3325, %v3328
      %v3330 = vrot.slane %v3329, 4
      %v3332 = vshll.u32 %v3128, 16
      %v3334 = vrot.slane %v3332, 5
      %v3335 = vsel %vm272, %v3330, %v3334
      %v3336 = vshrl.u32 %v3128, 16
      %v3338 = vrot.slane %v3336, 4
      %v3339 = vor.u32 %v3338, %v3334
      %v3340 = vrot.slane %v3339, 4
      %v3342 = vshll.u32 %v3129, 16
      %v3344 = vrot.slane %v3342, 5
      %v3345 = vsel %vm272, %v3340, %v3344
      %v3347 = vshrl.u32 %v3130, 16
      %v3349 = vrot.slane %v3347, 4
      %v3350 = vshll.u32 %v3130, 16
      %v3352 = vrot.slane %v3350, 5
      %v3353 = vor.u32 %v3349, %v3352
      %v3354 = vrot.slane %v3353, 4
      %v3356 = vshll.u32 %v3131, 16
      %v3358 = vrot.slane %v3356, 5
      %v3359 = vsel %vm272, %v3354, %v3358
      %v3360 = vshrl.u32 %v3131, 16
      %v3362 = vrot.slane %v3360, 4
      %v3363 = vor.u32 %v3362, %v3358
      %v3364 = vrot.slane %v3363, 4
      %v3366 = vshll.u32 %v3132, 16
      %v3368 = vrot.slane %v3366, 5
      %v3369 = vsel %vm272, %v3364, %v3368
      %v3371 = vshrl.u32 %v3133, 16
      %v3373 = vrot.slane %v3371, 4
      %v3374 = vshll.u32 %v3133, 16
      %v3376 = vrot.slane %v3374, 5
      %v3377 = vor.u32 %v3373, %v3376
      %v3378 = vrot.slane %v3377, 4
      %v3380 = vshll.u32 %v3134, 16
      %v3382 = vrot.slane %v3380, 5
      %v3383 = vsel %vm272, %v3378, %v3382
      %v3384 = vshrl.u32 %v3134, 16
      %v3386 = vrot.slane %v3384, 4
      %v3387 = vor.u32 %v3386, %v3382
      %v3388 = vrot.slane %v3387, 4
      %v3390 = vshll.u32 %v3135, 16
      %v3392 = vrot.slane %v3390, 5
      %v3393 = vsel %vm272, %v3388, %v3392
      %v3395 = vshrl.u32 %v3136, 16
      %v3397 = vrot.slane %v3395, 4
      %v3398 = vshll.u32 %v3136, 16
      %v3400 = vrot.slane %v3398, 5
      %v3401 = vor.u32 %v3397, %v3400
      %v3402 = vrot.slane %v3401, 4
      %v3404 = vshll.u32 %v3137, 16
      %v3406 = vrot.slane %v3404, 5
      %v3407 = vsel %vm272, %v3402, %v3406
      %v3408 = vshrl.u32 %v3137, 16
      %v3410 = vrot.slane %v3408, 4
      %v3411 = vor.u32 %v3410, %v3406
      %v3412 = vrot.slane %v3411, 4
      %v3414 = vshll.u32 %v3138, 16
      %v3416 = vrot.slane %v3414, 5
      %v3417 = vsel %vm272, %v3412, %v3416
      %v3419 = vshrl.u32 %v3139, 16
      %v3421 = vrot.slane %v3419, 4
      %v3422 = vshll.u32 %v3139, 16
      %v3424 = vrot.slane %v3422, 5
      %v3425 = vor.u32 %v3421, %v3424
      %v3426 = vrot.slane %v3425, 4
      %v3428 = vshll.u32 %v3140, 16
      %v3430 = vrot.slane %v3428, 5
      %v3431 = vsel %vm272, %v3426, %v3430
      %v3432 = vshrl.u32 %v3140, 16
      %v3434 = vrot.slane %v3432, 4
      %v3435 = vor.u32 %v3434, %v3430
      %v3436 = vrot.slane %v3435, 4
      %v3438 = vshll.u32 %v3141, 16
      %v3440 = vrot.slane %v3438, 5
      %v3441 = vsel %vm272, %v3436, %v3440
      %v3443 = vshrl.u32 %v3142, 16
      %v3445 = vrot.slane %v3443, 4
      %v3446 = vshll.u32 %v3142, 16
      %v3448 = vrot.slane %v3446, 5
      %v3449 = vor.u32 %v3445, %v3448
      %v3450 = vrot.slane %v3449, 4
      %v3452 = vshll.u32 %v3143, 16
      %v3454 = vrot.slane %v3452, 5
      %v3455 = vsel %vm272, %v3450, %v3454
      %v3456 = vshrl.u32 %v3143, 16
      %v3458 = vrot.slane %v3456, 4
      %v3459 = vor.u32 %v3458, %v3454
      %v3460 = vrot.slane %v3459, 4
      %v3462 = vshll.u32 %v3144, 16
      %v3464 = vrot.slane %v3462, 5
      %v3465 = vsel %vm272, %v3460, %v3464
      %v3467 = vshrl.u32 %v3145, 16
      %v3469 = vrot.slane %v3467, 4
      %v3470 = vshll.u32 %v3145, 16
      %v3472 = vrot.slane %v3470, 5
      %v3473 = vor.u32 %v3469, %v3472
      %v3474 = vrot.slane %v3473, 4
      %v3476 = vshll.u32 %v3146, 16
      %v3478 = vrot.slane %v3476, 5
      %v3479 = vsel %vm272, %v3474, %v3478
      %v3480 = vshrl.u32 %v3146, 16
      %v3482 = vrot.slane %v3480, 4
      %v3483 = vor.u32 %v3482, %v3478
      %v3484 = vrot.slane %v3483, 4
      %v3486 = vshll.u32 %v3147, 16
      %v3488 = vrot.slane %v3486, 5
      %v3489 = vsel %vm272, %v3484, %v3488
      %v3491 = vshrl.u32 %v3148, 16
      %v3493 = vrot.slane %v3491, 4
      %v3494 = vshll.u32 %v3148, 16
      %v3496 = vrot.slane %v3494, 5
      %v3497 = vor.u32 %v3493, %v3496
      %v3498 = vrot.slane %v3497, 4
      %v3500 = vshll.u32 %v3149, 16
      %v3502 = vrot.slane %v3500, 5
      %v3503 = vsel %vm272, %v3498, %v3502
      %v3504 = vshrl.u32 %v3149, 16
      %v3506 = vrot.slane %v3504, 4
      %v3507 = vor.u32 %v3506, %v3502
      %v3508 = vrot.slane %v3507, 4
      %v3510 = vshll.u32 %v3150, 16
      %v3512 = vrot.slane %v3510, 5
      %v3513 = vsel %vm272, %v3508, %v3512
      %v3515 = vshrl.u32 %v3151, 16
      %v3517 = vrot.slane %v3515, 4
      %v3518 = vshll.u32 %v3151, 16
      %v3520 = vrot.slane %v3518, 5
      %v3521 = vor.u32 %v3517, %v3520
      %v3522 = vrot.slane %v3521, 4
      %v3524 = vshll.u32 %v3152, 16
      %v3526 = vrot.slane %v3524, 5
      %v3527 = vsel %vm272, %v3522, %v3526
      %v3528 = vshrl.u32 %v3152, 16
      %v3530 = vrot.slane %v3528, 4
      %v3531 = vor.u32 %v3530, %v3526
      %v3532 = vrot.slane %v3531, 4
      %v3534 = vshll.u32 %v3153, 16
      %v3536 = vrot.slane %v3534, 5
      %v3537 = vsel %vm272, %v3532, %v3536
      %s3538 = scalar_lea.vmem %s1, 56
      %v3539 = vld [vmem:[%s3538] sm:$0xf]
      %v3540 = vld [vmem:[%s3538 + $0x4] sm:$0xf]
      %v3541 = vunpack.c.l.b16 %v3167
      %v3542 = vunpack.c.l.b16 %v3177
      %v3543 = vunpack.c.l.b16 %v3191
      %v3544 = vunpack.c.l.b16 %v3201
      %v3545 = vunpack.c.l.b16 %v3215
      %v3546 = vunpack.c.l.b16 %v3225
      %v3547 = vunpack.c.l.b16 %v3239
      %v3548 = vunpack.c.l.b16 %v3249
      %v3549 = vunpack.c.l.b16 %v3263
      %v3550 = vunpack.c.l.b16 %v3273
      %v3551 = vunpack.c.l.b16 %v3287
      %v3552 = vunpack.c.l.b16 %v3297
      %v3553 = vunpack.c.l.b16 %v3311
      %v3554 = vunpack.c.l.b16 %v3321
      %v3555 = vunpack.c.l.b16 %v3335
      %v3556 = vunpack.c.l.b16 %v3345
      %v3557 = vunpack.c.l.b16 %v3359
      %v3558 = vunpack.c.l.b16 %v3369
      %v3559 = vunpack.c.l.b16 %v3383
      %v3560 = vunpack.c.l.b16 %v3393
      %v3561 = vunpack.c.l.b16 %v3407
      %v3562 = vunpack.c.l.b16 %v3417
      %v3563 = vunpack.c.l.b16 %v3431
      %v3564 = vunpack.c.l.b16 %v3441
      %v3565 = vunpack.c.l.b16 %v3455
      %v3566 = vunpack.c.l.b16 %v3465
      %v3567 = vunpack.c.l.b16 %v3479
      %v3568 = vunpack.c.l.b16 %v3489
      %v3569 = vunpack.c.l.b16 %v3503
      %v3570 = vunpack.c.l.b16 %v3513
      %v3571 = vunpack.c.l.b16 %v3527
      %v3572 = vunpack.c.l.b16 %v3537
      %v3573 = vpack.c.b16 %v3542, %v3541
      %v3574 = vpack.c.b16 %v3544, %v3543
      %v3575 = vpack.c.b16 %v3546, %v3545
      %v3576 = vpack.c.b16 %v3548, %v3547
      %v3577 = vpack.c.b16 %v3550, %v3549
      %v3578 = vpack.c.b16 %v3552, %v3551
      %v3579 = vpack.c.b16 %v3554, %v3553
      %v3580 = vpack.c.b16 %v3556, %v3555
      %v3581 = vpack.c.b16 %v3558, %v3557
      %v3582 = vpack.c.b16 %v3560, %v3559
      %v3583 = vpack.c.b16 %v3562, %v3561
      %v3584 = vpack.c.b16 %v3564, %v3563
      %v3585 = vpack.c.b16 %v3566, %v3565
      %v3586 = vpack.c.b16 %v3568, %v3567
      %v3587 = vpack.c.b16 %v3570, %v3569
      %v3588 = vpack.c.b16 %v3572, %v3571
      %v3591 = vunpack.c.l.b16 %v3539
      %v3592 = vunpack.c.l.b16 %v3540
      %v3593 = vpack.c.b16 %v3592, %v3591
      %v3596 = vsel %vm714, %v3573, 0
      %v3599 = vsel %vm714, %v3574, 0
      %v3602 = vsel %vm714, %v3575, 0
      %v3605 = vsel %vm714, %v3576, 0
      %v3608 = vsel %vm714, %v3577, 0
      %v3611 = vsel %vm714, %v3578, 0
      %v3614 = vsel %vm714, %v3579, 0
      %v3617 = vsel %vm714, %v3580, 0
      %v3620 = vsel %vm714, %v3581, 0
      %v3623 = vsel %vm714, %v3582, 0
      %v3626 = vsel %vm714, %v3583, 0
      %v3629 = vsel %vm714, %v3584, 0
      %v3632 = vsel %vm714, %v3585, 0
      %v3635 = vsel %vm714, %v3586, 0
      %v3638 = vsel %vm714, %v3587, 0
      %v3641 = vsel %vm714, %v3588, 0
      %3643 = vmatpush.bf16.msra.mxu0 0
      %3644 = vmatpush.bf16.msra.mxu0 0
      %3645 = vmatpush.bf16.msra.mxu0 0
      %3646 = vmatpush.bf16.msra.mxu0 0
      %3647 = vmatpush.bf16.msra.mxu0 0
      %3648 = vmatpush.bf16.msra.mxu0 0
      %3649 = vmatpush.bf16.msra.mxu0 0
      %3650 = vmatpush.bf16.msra.mxu0 %v3593
      %3651 = vmatmul.bf16.gmra.mxu0 %v3596
      %v3652 = vpop.f32.mrf.mxu0
      %v3653 = vadd.f32 0.0, %v3652
      %v3654 = vpop.f32.mrf.mxu0
      %v3655 = vadd.f32 0.0, %v3654
      %3656 = vmatmul.bf16.gmra.mxu0 %v3599
      %v3657 = vpop.f32.mrf.mxu0
      %v3658 = vadd.f32 0.0, %v3657
      %v3659 = vpop.f32.mrf.mxu0
      %v3660 = vadd.f32 0.0, %v3659
      %3661 = vmatmul.bf16.gmra.mxu0 %v3602
      %v3662 = vpop.f32.mrf.mxu0
      %v3663 = vadd.f32 0.0, %v3662
      %v3664 = vpop.f32.mrf.mxu0
      %v3665 = vadd.f32 0.0, %v3664
      %3666 = vmatmul.bf16.gmra.mxu0 %v3605
      %v3667 = vpop.f32.mrf.mxu0
      %v3668 = vadd.f32 0.0, %v3667
      %v3669 = vpop.f32.mrf.mxu0
      %v3670 = vadd.f32 0.0, %v3669
      %3671 = vmatmul.bf16.gmra.mxu0 %v3608
      %v3672 = vpop.f32.mrf.mxu0
      %v3673 = vadd.f32 0.0, %v3672
      %v3674 = vpop.f32.mrf.mxu0
      %v3675 = vadd.f32 0.0, %v3674
      %3676 = vmatmul.bf16.gmra.mxu0 %v3611
      %v3677 = vpop.f32.mrf.mxu0
      %v3678 = vadd.f32 0.0, %v3677
      %v3679 = vpop.f32.mrf.mxu0
      %v3680 = vadd.f32 0.0, %v3679
      %3681 = vmatmul.bf16.gmra.mxu0 %v3614
      %v3682 = vpop.f32.mrf.mxu0
      %v3683 = vadd.f32 0.0, %v3682
      %v3684 = vpop.f32.mrf.mxu0
      %v3685 = vadd.f32 0.0, %v3684
      %3686 = vmatmul.bf16.gmra.mxu0 %v3617
      %v3687 = vpop.f32.mrf.mxu0
      %v3688 = vadd.f32 0.0, %v3687
      %v3689 = vpop.f32.mrf.mxu0
      %v3690 = vadd.f32 0.0, %v3689
      %3691 = vmatmul.bf16.gmra.mxu0 %v3620
      %v3692 = vpop.f32.mrf.mxu0
      %v3693 = vadd.f32 0.0, %v3692
      %v3694 = vpop.f32.mrf.mxu0
      %v3695 = vadd.f32 0.0, %v3694
      %3696 = vmatmul.bf16.gmra.mxu0 %v3623
      %v3697 = vpop.f32.mrf.mxu0
      %v3698 = vadd.f32 0.0, %v3697
      %v3699 = vpop.f32.mrf.mxu0
      %v3700 = vadd.f32 0.0, %v3699
      %3701 = vmatmul.bf16.gmra.mxu0 %v3626
      %v3702 = vpop.f32.mrf.mxu0
      %v3703 = vadd.f32 0.0, %v3702
      %v3704 = vpop.f32.mrf.mxu0
      %v3705 = vadd.f32 0.0, %v3704
      %3706 = vmatmul.bf16.gmra.mxu0 %v3629
      %v3707 = vpop.f32.mrf.mxu0
      %v3708 = vadd.f32 0.0, %v3707
      %v3709 = vpop.f32.mrf.mxu0
      %v3710 = vadd.f32 0.0, %v3709
      %3711 = vmatmul.bf16.gmra.mxu0 %v3632
      %v3712 = vpop.f32.mrf.mxu0
      %v3713 = vadd.f32 0.0, %v3712
      %v3714 = vpop.f32.mrf.mxu0
      %v3715 = vadd.f32 0.0, %v3714
      %3716 = vmatmul.bf16.gmra.mxu0 %v3635
      %v3717 = vpop.f32.mrf.mxu0
      %v3718 = vadd.f32 0.0, %v3717
      %v3719 = vpop.f32.mrf.mxu0
      %v3720 = vadd.f32 0.0, %v3719
      %3721 = vmatmul.bf16.gmra.mxu0 %v3638
      %v3722 = vpop.f32.mrf.mxu0
      %v3723 = vadd.f32 0.0, %v3722
      %v3724 = vpop.f32.mrf.mxu0
      %v3725 = vadd.f32 0.0, %v3724
      %3726 = vmatmul.bf16.gmra.mxu0 %v3641
      %v3727 = vpop.f32.mrf.mxu0
      %v3728 = vadd.f32 0.0, %v3727
      %v3729 = vpop.f32.mrf.mxu0
      %v3730 = vadd.f32 0.0, %v3729
      %3731 = vdwg.mxu0
      %v3732 = vadd.f32 %v3074, %v3653
      %v3733 = vadd.f32 %v3075, %v3655
      %v3734 = vadd.f32 %v3076, %v3658
      %v3735 = vadd.f32 %v3077, %v3660
      %v3736 = vadd.f32 %v3078, %v3663
      %v3737 = vadd.f32 %v3079, %v3665
      %v3738 = vadd.f32 %v3080, %v3668
      %v3739 = vadd.f32 %v3081, %v3670
      %v3740 = vadd.f32 %v3082, %v3673
      %v3741 = vadd.f32 %v3083, %v3675
      %v3742 = vadd.f32 %v3084, %v3678
      %v3743 = vadd.f32 %v3085, %v3680
      %v3744 = vadd.f32 %v3086, %v3683
      %v3745 = vadd.f32 %v3087, %v3685
      %v3746 = vadd.f32 %v3088, %v3688
      %v3747 = vadd.f32 %v3089, %v3690
      %v3748 = vadd.f32 %v3090, %v3693
      %v3749 = vadd.f32 %v3091, %v3695
      %v3750 = vadd.f32 %v3092, %v3698
      %v3751 = vadd.f32 %v3093, %v3700
      %v3752 = vadd.f32 %v3094, %v3703
      %v3753 = vadd.f32 %v3095, %v3705
      %v3754 = vadd.f32 %v3096, %v3708
      %v3755 = vadd.f32 %v3097, %v3710
      %v3756 = vadd.f32 %v3098, %v3713
      %v3757 = vadd.f32 %v3099, %v3715
      %v3758 = vadd.f32 %v3100, %v3718
      %v3759 = vadd.f32 %v3101, %v3720
      %v3760 = vadd.f32 %v3102, %v3723
      %v3761 = vadd.f32 %v3103, %v3725
      %v3762 = vadd.f32 %v3104, %v3728
      %v3763 = vadd.f32 %v3105, %v3730
      %v3764 = vld [vmem:[%s2815] sm:$0xe]
      %v3765 = vld [vmem:[%s2815 + $0xc] sm:$0xe]
      %v3766 = vld [vmem:[%s2815 + $0x18] sm:$0xe]
      %v3767 = vld [vmem:[%s2815 + $0x24] sm:$0xe]
      %v3768 = vld [vmem:[%s2815 + $0x30] sm:$0xe]
      %v3769 = vld [vmem:[%s2815 + $0x3c] sm:$0xe]
      %v3770 = vld [vmem:[%s2815 + $0x48] sm:$0xe]
      %v3771 = vld [vmem:[%s2815 + $0x54] sm:$0xe]
      %v3772 = vld [vmem:[%s2815 + $0x60] sm:$0xe]
      %v3773 = vld [vmem:[%s2815 + $0x6c] sm:$0xe]
      %v3774 = vld [vmem:[%s2815 + $0x78] sm:$0xe]
      %v3775 = vld [vmem:[%s2815 + $0x84] sm:$0xe]
      %v3776 = vld [vmem:[%s2815 + $0x90] sm:$0xe]
      %v3777 = vld [vmem:[%s2815 + $0x9c] sm:$0xe]
      %v3778 = vld [vmem:[%s2815 + $0xa8] sm:$0xe]
      %v3779 = vld [vmem:[%s2815 + $0xb4] sm:$0xe]
      %v3828 = vrot.slane %v3764, 5
      %v3829 = vrot.slane %v3828, 4
      %v3830 = vrot.slane %v3107, 5
      %v3831 = vsel %vm1125, %v3829, %v3830
      %v3832 = vrot.slane %v3830, 4
      %v3833 = vrot.slane %v3108, 5
      %v3834 = vsel %vm1125, %v3832, %v3833
      %v3835 = vrot.slane %v3765, 5
      %v3836 = vrot.slane %v3835, 4
      %v3837 = vrot.slane %v3110, 5
      %v3838 = vsel %vm1125, %v3836, %v3837
      %v3839 = vrot.slane %v3837, 4
      %v3840 = vrot.slane %v3111, 5
      %v3841 = vsel %vm1125, %v3839, %v3840
      %v3842 = vrot.slane %v3766, 5
      %v3843 = vrot.slane %v3842, 4
      %v3844 = vrot.slane %v3113, 5
      %v3845 = vsel %vm1125, %v3843, %v3844
      %v3846 = vrot.slane %v3844, 4
      %v3847 = vrot.slane %v3114, 5
      %v3848 = vsel %vm1125, %v3846, %v3847
      %v3849 = vrot.slane %v3767, 5
      %v3850 = vrot.slane %v3849, 4
      %v3851 = vrot.slane %v3116, 5
      %v3852 = vsel %vm1125, %v3850, %v3851
      %v3853 = vrot.slane %v3851, 4
      %v3854 = vrot.slane %v3117, 5
      %v3855 = vsel %vm1125, %v3853, %v3854
      %v3856 = vrot.slane %v3768, 5
      %v3857 = vrot.slane %v3856, 4
      %v3858 = vrot.slane %v3119, 5
      %v3859 = vsel %vm1125, %v3857, %v3858
      %v3860 = vrot.slane %v3858, 4
      %v3861 = vrot.slane %v3120, 5
      %v3862 = vsel %vm1125, %v3860, %v3861
      %v3863 = vrot.slane %v3769, 5
      %v3864 = vrot.slane %v3863, 4
      %v3865 = vrot.slane %v3122, 5
      %v3866 = vsel %vm1125, %v3864, %v3865
      %v3867 = vrot.slane %v3865, 4
      %v3868 = vrot.slane %v3123, 5
      %v3869 = vsel %vm1125, %v3867, %v3868
      %v3870 = vrot.slane %v3770, 5
      %v3871 = vrot.slane %v3870, 4
      %v3872 = vrot.slane %v3125, 5
      %v3873 = vsel %vm1125, %v3871, %v3872
      %v3874 = vrot.slane %v3872, 4
      %v3875 = vrot.slane %v3126, 5
      %v3876 = vsel %vm1125, %v3874, %v3875
      %v3877 = vrot.slane %v3771, 5
      %v3878 = vrot.slane %v3877, 4
      %v3879 = vrot.slane %v3128, 5
      %v3880 = vsel %vm1125, %v3878, %v3879
      %v3881 = vrot.slane %v3879, 4
      %v3882 = vrot.slane %v3129, 5
      %v3883 = vsel %vm1125, %v3881, %v3882
      %v3884 = vrot.slane %v3772, 5
      %v3885 = vrot.slane %v3884, 4
      %v3886 = vrot.slane %v3131, 5
      %v3887 = vsel %vm1125, %v3885, %v3886
      %v3888 = vrot.slane %v3886, 4
      %v3889 = vrot.slane %v3132, 5
      %v3890 = vsel %vm1125, %v3888, %v3889
      %v3891 = vrot.slane %v3773, 5
      %v3892 = vrot.slane %v3891, 4
      %v3893 = vrot.slane %v3134, 5
      %v3894 = vsel %vm1125, %v3892, %v3893
      %v3895 = vrot.slane %v3893, 4
      %v3896 = vrot.slane %v3135, 5
      %v3897 = vsel %vm1125, %v3895, %v3896
      %v3898 = vrot.slane %v3774, 5
      %v3899 = vrot.slane %v3898, 4
      %v3900 = vrot.slane %v3137, 5
      %v3901 = vsel %vm1125, %v3899, %v3900
      %v3902 = vrot.slane %v3900, 4
      %v3903 = vrot.slane %v3138, 5
      %v3904 = vsel %vm1125, %v3902, %v3903
      %v3905 = vrot.slane %v3775, 5
      %v3906 = vrot.slane %v3905, 4
      %v3907 = vrot.slane %v3140, 5
      %v3908 = vsel %vm1125, %v3906, %v3907
      %v3909 = vrot.slane %v3907, 4
      %v3910 = vrot.slane %v3141, 5
      %v3911 = vsel %vm1125, %v3909, %v3910
      %v3912 = vrot.slane %v3776, 5
      %v3913 = vrot.slane %v3912, 4
      %v3914 = vrot.slane %v3143, 5
      %v3915 = vsel %vm1125, %v3913, %v3914
      %v3916 = vrot.slane %v3914, 4
      %v3917 = vrot.slane %v3144, 5
      %v3918 = vsel %vm1125, %v3916, %v3917
      %v3919 = vrot.slane %v3777, 5
      %v3920 = vrot.slane %v3919, 4
      %v3921 = vrot.slane %v3146, 5
      %v3922 = vsel %vm1125, %v3920, %v3921
      %v3923 = vrot.slane %v3921, 4
      %v3924 = vrot.slane %v3147, 5
      %v3925 = vsel %vm1125, %v3923, %v3924
      %v3926 = vrot.slane %v3778, 5
      %v3927 = vrot.slane %v3926, 4
      %v3928 = vrot.slane %v3149, 5
      %v3929 = vsel %vm1125, %v3927, %v3928
      %v3930 = vrot.slane %v3928, 4
      %v3931 = vrot.slane %v3150, 5
      %v3932 = vsel %vm1125, %v3930, %v3931
      %v3933 = vrot.slane %v3779, 5
      %v3934 = vrot.slane %v3933, 4
      %v3935 = vrot.slane %v3152, 5
      %v3936 = vsel %vm1125, %v3934, %v3935
      %v3937 = vrot.slane %v3935, 4
      %v3938 = vrot.slane %v3153, 5
      %v3939 = vsel %vm1125, %v3937, %v3938
      %s3940 = scalar_lea.vmem %s1, 64
      %v3941 = vld [vmem:[%s3940] sm:$0xf]
      %v3942 = vld [vmem:[%s3940 + $0x4] sm:$0xf]
      %v3943 = vunpack.c.l.b16 %v3831
      %v3944 = vunpack.c.l.b16 %v3834
      %v3945 = vunpack.c.l.b16 %v3838
      %v3946 = vunpack.c.l.b16 %v3841
      %v3947 = vunpack.c.l.b16 %v3845
      %v3948 = vunpack.c.l.b16 %v3848
      %v3949 = vunpack.c.l.b16 %v3852
      %v3950 = vunpack.c.l.b16 %v3855
      %v3951 = vunpack.c.l.b16 %v3859
      %v3952 = vunpack.c.l.b16 %v3862
      %v3953 = vunpack.c.l.b16 %v3866
      %v3954 = vunpack.c.l.b16 %v3869
      %v3955 = vunpack.c.l.b16 %v3873
      %v3956 = vunpack.c.l.b16 %v3876
      %v3957 = vunpack.c.l.b16 %v3880
      %v3958 = vunpack.c.l.b16 %v3883
      %v3959 = vunpack.c.l.b16 %v3887
      %v3960 = vunpack.c.l.b16 %v3890
      %v3961 = vunpack.c.l.b16 %v3894
      %v3962 = vunpack.c.l.b16 %v3897
      %v3963 = vunpack.c.l.b16 %v3901
      %v3964 = vunpack.c.l.b16 %v3904
      %v3965 = vunpack.c.l.b16 %v3908
      %v3966 = vunpack.c.l.b16 %v3911
      %v3967 = vunpack.c.l.b16 %v3915
      %v3968 = vunpack.c.l.b16 %v3918
      %v3969 = vunpack.c.l.b16 %v3922
      %v3970 = vunpack.c.l.b16 %v3925
      %v3971 = vunpack.c.l.b16 %v3929
      %v3972 = vunpack.c.l.b16 %v3932
      %v3973 = vunpack.c.l.b16 %v3936
      %v3974 = vunpack.c.l.b16 %v3939
      %v3975 = vpack.c.b16 %v3944, %v3943
      %v3976 = vpack.c.b16 %v3946, %v3945
      %v3977 = vpack.c.b16 %v3948, %v3947
      %v3978 = vpack.c.b16 %v3950, %v3949
      %v3979 = vpack.c.b16 %v3952, %v3951
      %v3980 = vpack.c.b16 %v3954, %v3953
      %v3981 = vpack.c.b16 %v3956, %v3955
      %v3982 = vpack.c.b16 %v3958, %v3957
      %v3983 = vpack.c.b16 %v3960, %v3959
      %v3984 = vpack.c.b16 %v3962, %v3961
      %v3985 = vpack.c.b16 %v3964, %v3963
      %v3986 = vpack.c.b16 %v3966, %v3965
      %v3987 = vpack.c.b16 %v3968, %v3967
      %v3988 = vpack.c.b16 %v3970, %v3969
      %v3989 = vpack.c.b16 %v3972, %v3971
      %v3990 = vpack.c.b16 %v3974, %v3973
      %v3993 = vunpack.c.l.b16 %v3941
      %v3994 = vunpack.c.l.b16 %v3942
      %v3995 = vpack.c.b16 %v3994, %v3993
      %v3998 = vsel %vm714, %v3975, 0
      %v4001 = vsel %vm714, %v3976, 0
      %v4004 = vsel %vm714, %v3977, 0
      %v4007 = vsel %vm714, %v3978, 0
      %v4010 = vsel %vm714, %v3979, 0
      %v4013 = vsel %vm714, %v3980, 0
      %v4016 = vsel %vm714, %v3981, 0
      %v4019 = vsel %vm714, %v3982, 0
      %v4022 = vsel %vm714, %v3983, 0
      %v4025 = vsel %vm714, %v3984, 0
      %v4028 = vsel %vm714, %v3985, 0
      %v4031 = vsel %vm714, %v3986, 0
      %v4034 = vsel %vm714, %v3987, 0
      %v4037 = vsel %vm714, %v3988, 0
      %v4040 = vsel %vm714, %v3989, 0
      %v4043 = vsel %vm714, %v3990, 0
      %4045 = vmatpush.bf16.msra.mxu0 0
      %4046 = vmatpush.bf16.msra.mxu0 0
      %4047 = vmatpush.bf16.msra.mxu0 0
      %4048 = vmatpush.bf16.msra.mxu0 0
      %4049 = vmatpush.bf16.msra.mxu0 0
      %4050 = vmatpush.bf16.msra.mxu0 0
      %4051 = vmatpush.bf16.msra.mxu0 0
      %4052 = vmatpush.bf16.msra.mxu0 %v3995
      %4053 = vmatmul.bf16.gmra.mxu0 %v3998
      %v4054 = vpop.f32.mrf.mxu0
      %v4055 = vadd.f32 0.0, %v4054
      %v4056 = vpop.f32.mrf.mxu0
      %v4057 = vadd.f32 0.0, %v4056
      %4058 = vmatmul.bf16.gmra.mxu0 %v4001
      %v4059 = vpop.f32.mrf.mxu0
      %v4060 = vadd.f32 0.0, %v4059
      %v4061 = vpop.f32.mrf.mxu0
      %v4062 = vadd.f32 0.0, %v4061
      %4063 = vmatmul.bf16.gmra.mxu0 %v4004
      %v4064 = vpop.f32.mrf.mxu0
      %v4065 = vadd.f32 0.0, %v4064
      %v4066 = vpop.f32.mrf.mxu0
      %v4067 = vadd.f32 0.0, %v4066
      %4068 = vmatmul.bf16.gmra.mxu0 %v4007
      %v4069 = vpop.f32.mrf.mxu0
      %v4070 = vadd.f32 0.0, %v4069
      %v4071 = vpop.f32.mrf.mxu0
      %v4072 = vadd.f32 0.0, %v4071
      %4073 = vmatmul.bf16.gmra.mxu0 %v4010
      %v4074 = vpop.f32.mrf.mxu0
      %v4075 = vadd.f32 0.0, %v4074
      %v4076 = vpop.f32.mrf.mxu0
      %v4077 = vadd.f32 0.0, %v4076
      %4078 = vmatmul.bf16.gmra.mxu0 %v4013
      %v4079 = vpop.f32.mrf.mxu0
      %v4080 = vadd.f32 0.0, %v4079
      %v4081 = vpop.f32.mrf.mxu0
      %v4082 = vadd.f32 0.0, %v4081
      %4083 = vmatmul.bf16.gmra.mxu0 %v4016
      %v4084 = vpop.f32.mrf.mxu0
      %v4085 = vadd.f32 0.0, %v4084
      %v4086 = vpop.f32.mrf.mxu0
      %v4087 = vadd.f32 0.0, %v4086
      %4088 = vmatmul.bf16.gmra.mxu0 %v4019
      %v4089 = vpop.f32.mrf.mxu0
      %v4090 = vadd.f32 0.0, %v4089
      %v4091 = vpop.f32.mrf.mxu0
      %v4092 = vadd.f32 0.0, %v4091
      %4093 = vmatmul.bf16.gmra.mxu0 %v4022
      %v4094 = vpop.f32.mrf.mxu0
      %v4095 = vadd.f32 0.0, %v4094
      %v4096 = vpop.f32.mrf.mxu0
      %v4097 = vadd.f32 0.0, %v4096
      %4098 = vmatmul.bf16.gmra.mxu0 %v4025
      %v4099 = vpop.f32.mrf.mxu0
      %v4100 = vadd.f32 0.0, %v4099
      %v4101 = vpop.f32.mrf.mxu0
      %v4102 = vadd.f32 0.0, %v4101
      %4103 = vmatmul.bf16.gmra.mxu0 %v4028
      %v4104 = vpop.f32.mrf.mxu0
      %v4105 = vadd.f32 0.0, %v4104
      %v4106 = vpop.f32.mrf.mxu0
      %v4107 = vadd.f32 0.0, %v4106
      %4108 = vmatmul.bf16.gmra.mxu0 %v4031
      %v4109 = vpop.f32.mrf.mxu0
      %v4110 = vadd.f32 0.0, %v4109
      %v4111 = vpop.f32.mrf.mxu0
      %v4112 = vadd.f32 0.0, %v4111
      %4113 = vmatmul.bf16.gmra.mxu0 %v4034
      %v4114 = vpop.f32.mrf.mxu0
      %v4115 = vadd.f32 0.0, %v4114
      %v4116 = vpop.f32.mrf.mxu0
      %v4117 = vadd.f32 0.0, %v4116
      %4118 = vmatmul.bf16.gmra.mxu0 %v4037
      %v4119 = vpop.f32.mrf.mxu0
      %v4120 = vadd.f32 0.0, %v4119
      %v4121 = vpop.f32.mrf.mxu0
      %v4122 = vadd.f32 0.0, %v4121
      %4123 = vmatmul.bf16.gmra.mxu0 %v4040
      %v4124 = vpop.f32.mrf.mxu0
      %v4125 = vadd.f32 0.0, %v4124
      %v4126 = vpop.f32.mrf.mxu0
      %v4127 = vadd.f32 0.0, %v4126
      %4128 = vmatmul.bf16.gmra.mxu0 %v4043
      %v4129 = vpop.f32.mrf.mxu0
      %v4130 = vadd.f32 0.0, %v4129
      %v4131 = vpop.f32.mrf.mxu0
      %v4132 = vadd.f32 0.0, %v4131
      %4133 = vdwg.mxu0
      %v4134 = vadd.f32 %v3732, %v4055
      %v4135 = vadd.f32 %v3733, %v4057
      %v4136 = vadd.f32 %v3734, %v4060
      %v4137 = vadd.f32 %v3735, %v4062
      %v4138 = vadd.f32 %v3736, %v4065
      %v4139 = vadd.f32 %v3737, %v4067
      %v4140 = vadd.f32 %v3738, %v4070
      %v4141 = vadd.f32 %v3739, %v4072
      %v4142 = vadd.f32 %v3740, %v4075
      %v4143 = vadd.f32 %v3741, %v4077
      %v4144 = vadd.f32 %v3742, %v4080
      %v4145 = vadd.f32 %v3743, %v4082
      %v4146 = vadd.f32 %v3744, %v4085
      %v4147 = vadd.f32 %v3745, %v4087
      %v4148 = vadd.f32 %v3746, %v4090
      %v4149 = vadd.f32 %v3747, %v4092
      %v4150 = vadd.f32 %v3748, %v4095
      %v4151 = vadd.f32 %v3749, %v4097
      %v4152 = vadd.f32 %v3750, %v4100
      %v4153 = vadd.f32 %v3751, %v4102
      %v4154 = vadd.f32 %v3752, %v4105
      %v4155 = vadd.f32 %v3753, %v4107
      %v4156 = vadd.f32 %v3754, %v4110
      %v4157 = vadd.f32 %v3755, %v4112
      %v4158 = vadd.f32 %v3756, %v4115
      %v4159 = vadd.f32 %v3757, %v4117
      %v4160 = vadd.f32 %v3758, %v4120
      %v4161 = vadd.f32 %v3759, %v4122
      %v4162 = vadd.f32 %v3760, %v4125
      %v4163 = vadd.f32 %v3761, %v4127
      %v4164 = vadd.f32 %v3762, %v4130
      %v4165 = vadd.f32 %v3763, %v4132
      %v4166 = vpack.c.bf16 %v4134, %v4134
      %v4167 = vpack.c.bf16 %v4135, %v4135
      %v4168 = vpack.c.bf16 %v4136, %v4136
      %v4169 = vpack.c.bf16 %v4137, %v4137
      %v4170 = vpack.c.bf16 %v4138, %v4138
      %v4171 = vpack.c.bf16 %v4139, %v4139
      %v4172 = vpack.c.bf16 %v4140, %v4140
      %v4173 = vpack.c.bf16 %v4141, %v4141
      %v4174 = vpack.c.bf16 %v4142, %v4142
      %v4175 = vpack.c.bf16 %v4143, %v4143
      %v4176 = vpack.c.bf16 %v4144, %v4144
      %v4177 = vpack.c.bf16 %v4145, %v4145
      %v4178 = vpack.c.bf16 %v4146, %v4146
      %v4179 = vpack.c.bf16 %v4147, %v4147
      %v4180 = vpack.c.bf16 %v4148, %v4148
      %v4181 = vpack.c.bf16 %v4149, %v4149
      %v4182 = vpack.c.bf16 %v4150, %v4150
      %v4183 = vpack.c.bf16 %v4151, %v4151
      %v4184 = vpack.c.bf16 %v4152, %v4152
      %v4185 = vpack.c.bf16 %v4153, %v4153
      %v4186 = vpack.c.bf16 %v4154, %v4154
      %v4187 = vpack.c.bf16 %v4155, %v4155
      %v4188 = vpack.c.bf16 %v4156, %v4156
      %v4189 = vpack.c.bf16 %v4157, %v4157
      %v4190 = vpack.c.bf16 %v4158, %v4158
      %v4191 = vpack.c.bf16 %v4159, %v4159
      %v4192 = vpack.c.bf16 %v4160, %v4160
      %v4193 = vpack.c.bf16 %v4161, %v4161
      %v4194 = vpack.c.bf16 %v4162, %v4162
      %v4195 = vpack.c.bf16 %v4163, %v4163
      %v4196 = vpack.c.bf16 %v4164, %v4164
      %v4197 = vpack.c.bf16 %v4165, %v4165
      %vm4198 = vcmask 125952
      %4199 = vst.msk [vmem:[%s211] sm:$0xf] %vm4198, %v4166
      %4200 = vst.msk [vmem:[%s211 + $0x4] sm:$0xf] %vm4198, %v4167
      %4201 = vst.msk [vmem:[%s211 + $0x8] sm:$0xf] %vm4198, %v4168
      %4202 = vst.msk [vmem:[%s211 + $0xc] sm:$0xf] %vm4198, %v4169
      %4203 = vst.msk [vmem:[%s211 + $0x10] sm:$0xf] %vm4198, %v4170
      %4204 = vst.msk [vmem:[%s211 + $0x14] sm:$0xf] %vm4198, %v4171
      %4205 = vst.msk [vmem:[%s211 + $0x18] sm:$0xf] %vm4198, %v4172
      %4206 = vst.msk [vmem:[%s211 + $0x1c] sm:$0xf] %vm4198, %v4173
      %4207 = vst.msk [vmem:[%s211 + $0x20] sm:$0xf] %vm4198, %v4174
      %4208 = vst.msk [vmem:[%s211 + $0x24] sm:$0xf] %vm4198, %v4175
      %4209 = vst.msk [vmem:[%s211 + $0x28] sm:$0xf] %vm4198, %v4176
      %4210 = vst.msk [vmem:[%s211 + $0x2c] sm:$0xf] %vm4198, %v4177
      %4211 = vst.msk [vmem:[%s211 + $0x30] sm:$0xf] %vm4198, %v4178
      %4212 = vst.msk [vmem:[%s211 + $0x34] sm:$0xf] %vm4198, %v4179
      %4213 = vst.msk [vmem:[%s211 + $0x38] sm:$0xf] %vm4198, %v4180
      %4214 = vst.msk [vmem:[%s211 + $0x3c] sm:$0xf] %vm4198, %v4181
      %4215 = vst.msk [vmem:[%s211 + $0x40] sm:$0xf] %vm4198, %v4182
      %4216 = vst.msk [vmem:[%s211 + $0x44] sm:$0xf] %vm4198, %v4183
      %4217 = vst.msk [vmem:[%s211 + $0x48] sm:$0xf] %vm4198, %v4184
      %4218 = vst.msk [vmem:[%s211 + $0x4c] sm:$0xf] %vm4198, %v4185
      %4219 = vst.msk [vmem:[%s211 + $0x50] sm:$0xf] %vm4198, %v4186
      %4220 = vst.msk [vmem:[%s211 + $0x54] sm:$0xf] %vm4198, %v4187
      %4221 = vst.msk [vmem:[%s211 + $0x58] sm:$0xf] %vm4198, %v4188
      %4222 = vst.msk [vmem:[%s211 + $0x5c] sm:$0xf] %vm4198, %v4189
      %4223 = vst.msk [vmem:[%s211 + $0x60] sm:$0xf] %vm4198, %v4190
      %4224 = vst.msk [vmem:[%s211 + $0x64] sm:$0xf] %vm4198, %v4191
      %4225 = vst.msk [vmem:[%s211 + $0x68] sm:$0xf] %vm4198, %v4192
      %4226 = vst.msk [vmem:[%s211 + $0x6c] sm:$0xf] %vm4198, %v4193
      %4227 = vst.msk [vmem:[%s211 + $0x70] sm:$0xf] %vm4198, %v4194
      %4228 = vst.msk [vmem:[%s211 + $0x74] sm:$0xf] %vm4198, %v4195
      %4229 = vst.msk [vmem:[%s211 + $0x78] sm:$0xf] %vm4198, %v4196
      %4230 = vst.msk [vmem:[%s211 + $0x7c] sm:$0xf] %vm4198, %v4197
      %v4231 = vsel %vm714, %v4134, 0.0
      %v4232 = vsel %vm714, %v4135, 0.0
      %v4233 = vadd.f32 %v4231, %v4232
      %v4234 = vsel %vm714, %v4136, 0.0
      %v4235 = vadd.f32 %v4233, %v4234
      %v4236 = vsel %vm714, %v4137, 0.0
      %v4237 = vadd.f32 %v4235, %v4236
      %v4238 = vsel %vm714, %v4138, 0.0
      %v4239 = vadd.f32 %v4237, %v4238
      %v4240 = vsel %vm714, %v4139, 0.0
      %v4241 = vadd.f32 %v4239, %v4240
      %v4242 = vsel %vm714, %v4140, 0.0
      %v4243 = vadd.f32 %v4241, %v4242
      %v4244 = vsel %vm714, %v4141, 0.0
      %v4245 = vadd.f32 %v4243, %v4244
      %v4246 = vsel %vm714, %v4142, 0.0
      %v4247 = vadd.f32 %v4245, %v4246
      %v4248 = vsel %vm714, %v4143, 0.0
      %v4249 = vadd.f32 %v4247, %v4248
      %v4250 = vsel %vm714, %v4144, 0.0
      %v4251 = vadd.f32 %v4249, %v4250
      %v4252 = vsel %vm714, %v4145, 0.0
      %v4253 = vadd.f32 %v4251, %v4252
      %v4254 = vsel %vm714, %v4146, 0.0
      %v4255 = vadd.f32 %v4253, %v4254
      %v4256 = vsel %vm714, %v4147, 0.0
      %v4257 = vadd.f32 %v4255, %v4256
      %v4258 = vsel %vm714, %v4148, 0.0
      %v4259 = vadd.f32 %v4257, %v4258
      %v4260 = vsel %vm714, %v4149, 0.0
      %v4261 = vadd.f32 %v4259, %v4260
      %v4262 = vsel %vm714, %v4150, 0.0
      %v4263 = vadd.f32 %v4261, %v4262
      %v4264 = vsel %vm714, %v4151, 0.0
      %v4265 = vadd.f32 %v4263, %v4264
      %v4266 = vsel %vm714, %v4152, 0.0
      %v4267 = vadd.f32 %v4265, %v4266
      %v4268 = vsel %vm714, %v4153, 0.0
      %v4269 = vadd.f32 %v4267, %v4268
      %v4270 = vsel %vm714, %v4154, 0.0
      %v4271 = vadd.f32 %v4269, %v4270
      %v4272 = vsel %vm714, %v4155, 0.0
      %v4273 = vadd.f32 %v4271, %v4272
      %v4274 = vsel %vm714, %v4156, 0.0
      %v4275 = vadd.f32 %v4273, %v4274
      %v4276 = vsel %vm714, %v4157, 0.0
      %v4277 = vadd.f32 %v4275, %v4276
      %v4278 = vsel %vm714, %v4158, 0.0
      %v4279 = vadd.f32 %v4277, %v4278
      %v4280 = vsel %vm714, %v4159, 0.0
      %v4281 = vadd.f32 %v4279, %v4280
      %v4282 = vsel %vm714, %v4160, 0.0
      %v4283 = vadd.f32 %v4281, %v4282
      %v4284 = vsel %vm714, %v4161, 0.0
      %v4285 = vadd.f32 %v4283, %v4284
      %v4286 = vsel %vm714, %v4162, 0.0
      %v4287 = vadd.f32 %v4285, %v4286
      %v4288 = vsel %vm714, %v4163, 0.0
      %v4289 = vadd.f32 %v4287, %v4288
      %v4290 = vsel %vm714, %v4164, 0.0
      %v4291 = vadd.f32 %v4289, %v4290
      %v4292 = vsel %vm714, %v4165, 0.0
      %v4293 = vadd.f32 %v4291, %v4292
      %v4294 = vrot.slane %v4293, 4
      %v4295 = vadd.f32 %v4293, %v4294
      %v4296 = vrot.slane %v4295, 2
      %v4297 = vadd.f32 %v4295, %v4296
      %v4298 = vrot.slane %v4297, 1
      %v4299 = vadd.f32 %v4297, %v4298
      %v4300 = vadd.f32 %v4299, 0.0
      %v4301 = vmul.f32 %v4134, %v4134
      %v4302 = vmul.f32 %v4135, %v4135
      %v4303 = vmul.f32 %v4136, %v4136
      %v4304 = vmul.f32 %v4137, %v4137
      %v4305 = vmul.f32 %v4138, %v4138
      %v4306 = vmul.f32 %v4139, %v4139
      %v4307 = vmul.f32 %v4140, %v4140
      %v4308 = vmul.f32 %v4141, %v4141
      %v4309 = vmul.f32 %v4142, %v4142
      %v4310 = vmul.f32 %v4143, %v4143
      %v4311 = vmul.f32 %v4144, %v4144
      %v4312 = vmul.f32 %v4145, %v4145
      %v4313 = vmul.f32 %v4146, %v4146
      %v4314 = vmul.f32 %v4147, %v4147
      %v4315 = vmul.f32 %v4148, %v4148
      %v4316 = vmul.f32 %v4149, %v4149
      %v4317 = vmul.f32 %v4150, %v4150
      %v4318 = vmul.f32 %v4151, %v4151
      %v4319 = vmul.f32 %v4152, %v4152
      %v4320 = vmul.f32 %v4153, %v4153
      %v4321 = vmul.f32 %v4154, %v4154
      %v4322 = vmul.f32 %v4155, %v4155
      %v4323 = vmul.f32 %v4156, %v4156
      %v4324 = vmul.f32 %v4157, %v4157
      %v4325 = vmul.f32 %v4158, %v4158
      %v4326 = vmul.f32 %v4159, %v4159
      %v4327 = vmul.f32 %v4160, %v4160
      %v4328 = vmul.f32 %v4161, %v4161
      %v4329 = vmul.f32 %v4162, %v4162
      %v4330 = vmul.f32 %v4163, %v4163
      %v4331 = vmul.f32 %v4164, %v4164
      %v4332 = vmul.f32 %v4165, %v4165
      %v4333 = vsel %vm714, %v4301, 0.0
      %v4334 = vsel %vm714, %v4302, 0.0
      %v4335 = vadd.f32 %v4333, %v4334
      %v4336 = vsel %vm714, %v4303, 0.0
      %v4337 = vadd.f32 %v4335, %v4336
      %v4338 = vsel %vm714, %v4304, 0.0
      %v4339 = vadd.f32 %v4337, %v4338
      %v4340 = vsel %vm714, %v4305, 0.0
      %v4341 = vadd.f32 %v4339, %v4340
      %v4342 = vsel %vm714, %v4306, 0.0
      %v4343 = vadd.f32 %v4341, %v4342
      %v4344 = vsel %vm714, %v4307, 0.0
      %v4345 = vadd.f32 %v4343, %v4344
      %v4346 = vsel %vm714, %v4308, 0.0
      %v4347 = vadd.f32 %v4345, %v4346
      %v4348 = vsel %vm714, %v4309, 0.0
      %v4349 = vadd.f32 %v4347, %v4348
      %v4350 = vsel %vm714, %v4310, 0.0
      %v4351 = vadd.f32 %v4349, %v4350
      %v4352 = vsel %vm714, %v4311, 0.0
      %v4353 = vadd.f32 %v4351, %v4352
      %v4354 = vsel %vm714, %v4312, 0.0
      %v4355 = vadd.f32 %v4353, %v4354
      %v4356 = vsel %vm714, %v4313, 0.0
      %v4357 = vadd.f32 %v4355, %v4356
      %v4358 = vsel %vm714, %v4314, 0.0
      %v4359 = vadd.f32 %v4357, %v4358
      %v4360 = vsel %vm714, %v4315, 0.0
      %v4361 = vadd.f32 %v4359, %v4360
      %v4362 = vsel %vm714, %v4316, 0.0
      %v4363 = vadd.f32 %v4361, %v4362
      %v4364 = vsel %vm714, %v4317, 0.0
      %v4365 = vadd.f32 %v4363, %v4364
      %v4366 = vsel %vm714, %v4318, 0.0
      %v4367 = vadd.f32 %v4365, %v4366
      %v4368 = vsel %vm714, %v4319, 0.0
      %v4369 = vadd.f32 %v4367, %v4368
      %v4370 = vsel %vm714, %v4320, 0.0
      %v4371 = vadd.f32 %v4369, %v4370
      %v4372 = vsel %vm714, %v4321, 0.0
      %v4373 = vadd.f32 %v4371, %v4372
      %v4374 = vsel %vm714, %v4322, 0.0
      %v4375 = vadd.f32 %v4373, %v4374
      %v4376 = vsel %vm714, %v4323, 0.0
      %v4377 = vadd.f32 %v4375, %v4376
      %v4378 = vsel %vm714, %v4324, 0.0
      %v4379 = vadd.f32 %v4377, %v4378
      %v4380 = vsel %vm714, %v4325, 0.0
      %v4381 = vadd.f32 %v4379, %v4380
      %v4382 = vsel %vm714, %v4326, 0.0
      %v4383 = vadd.f32 %v4381, %v4382
      %v4384 = vsel %vm714, %v4327, 0.0
      %v4385 = vadd.f32 %v4383, %v4384
      %v4386 = vsel %vm714, %v4328, 0.0
      %v4387 = vadd.f32 %v4385, %v4386
      %v4388 = vsel %vm714, %v4329, 0.0
      %v4389 = vadd.f32 %v4387, %v4388
      %v4390 = vsel %vm714, %v4330, 0.0
      %v4391 = vadd.f32 %v4389, %v4390
      %v4392 = vsel %vm714, %v4331, 0.0
      %v4393 = vadd.f32 %v4391, %v4392
      %v4394 = vsel %vm714, %v4332, 0.0
      %v4395 = vadd.f32 %v4393, %v4394
      %v4396 = vrot.slane %v4395, 4
      %v4397 = vadd.f32 %v4395, %v4396
      %v4398 = vrot.slane %v4397, 2
      %v4399 = vadd.f32 %v4397, %v4398
      %v4400 = vrot.slane %v4399, 1
      %v4401 = vadd.f32 %v4399, %v4400
      %v4402 = vadd.f32 %v4401, 0.0
      %vm4403 = vcmask 1040384
      %v4404 = vsel %vm4403, %v4300, %v4402
      %vm4405 = vcmask 123904
      %4406 = vst.msk [vmem:[%s217] sm:$0x3] %vm4405, %v4404
      %s4407 = smul.u32 16, %s20
      %p4408 = scmp.lt.s32.totalorder %s19, 1
      %s4409 = scalar_select %p4408, %s19, 1
      %p4410 = scmp.lt.s32.totalorder %s4407, 15
      %s4411 = scalar_select %p4410, %s4407, 15
      %s4412 = smul.addr %s4411, 2
      %s4413 = smul.addr %s4409, 32
      %s4414 = sadd.s32 %s4412, %s4413
      %s4415 = smul.addr %s4414, 4
      %s4416 = scalar_lea.vmem %s2, %s4415
      %s4417 = sadd.s32 %s19, %s20
      %p4418 = scmp.lt.s32.totalorder %s4417, 1
      %s4419 = scalar_select %p4418, %s4417, 1
      %s4420 = smul.addr %s4419, 2
      %s4421 = scalar_lea.vmem %s3, %s4420
      // Predicated region
      $region29: #{resnet_block_forward.3} parent=27 // pred_check
        %p4422 = pneg %p96
      $region30: #{resnet_block_forward.3} parent=27 // pred_check_branch
        %4424 = sbr.rel (%p4422) target = $region32
      $region31: #{resnet_block_forward.3} parent=27 // pred_region
        %s4425 = smul.u32 16, %s20
      $region32: #{resnet_block_forward.3} parent=27 // pred_fallthru
        _
      // Predicated region
      $region33: #{resnet_block_forward.3} parent=27 // pred_check
        %p4426 = pneg %p124
      $region34: #{resnet_block_forward.3} parent=27 // pred_check_branch
        %4428 = sbr.rel (%p4426) target = $region36
      $region35: #{resnet_block_forward.3} parent=27 // pred_region
        %s4429 = sadd.s32 %s19, %s20
      $region36: #{resnet_block_forward.3} parent=27 // pred_fallthru
        _
    $region28: #{resnet_block_forward.3} parent=5 // pred_fallthru
      _
    %p4430 = scmp.le.s32.totalorder 2, %s10
    // Predicated region
    $region37: #{resnet_block_forward.3} parent=5 // pred_check
      %p4431 = pneg %p4430
    $region38: #{resnet_block_forward.3} parent=5 // pred_check_branch
      %4433 = sbr.rel (%p4431) target = $region40
    $region39: #{resnet_block_forward.3} parent=5 // pred_region
      %s4434 = ssub.s32 %s10, 2
      // Predicated region
      $region41: #{resnet_block_forward.3} parent=39 // pred_check
        %p4435 = pneg %p102
      $region42: #{resnet_block_forward.3} parent=39 // pred_check_branch
        %4437 = sbr.rel (%p4435) target = $region44
      $region43: #{resnet_block_forward.3} parent=39 // pred_region
        %s4438 = smul.u32 16, %s22
        %p4439 = scmp.lt.s32.totalorder %s21, 1
        %s4440 = scalar_select %p4439, %s21, 1
        %p4441 = scmp.lt.s32.totalorder %s4438, 15
        %s4442 = scalar_select %p4441, %s4438, 15
        %s4443 = smul.addr %s4442, 2
        %s4444 = smul.addr %s4440, 32
        %s4445 = sadd.s32 %s4443, %s4444
        %s4446 = smul.addr %s4445, 4
        %s4447 = scalar_lea.vmem %s2, %s4446
      $region44: #{resnet_block_forward.3} parent=39 // pred_fallthru
        _
      // Predicated region
      $region45: #{resnet_block_forward.3} parent=39 // pred_check
        %p4448 = pneg %p130
      $region46: #{resnet_block_forward.3} parent=39 // pred_check_branch
        %4450 = sbr.rel (%p4448) target = $region48
      $region47: #{resnet_block_forward.3} parent=39 // pred_region
        %s4451 = sadd.s32 %s21, %s22
        %p4452 = scmp.lt.s32.totalorder %s4451, 1
        %s4453 = scalar_select %p4452, %s4451, 1
        %s4454 = smul.addr %s4453, 2
        %s4455 = scalar_lea.vmem %s3, %s4454
      $region48: #{resnet_block_forward.3} parent=39 // pred_fallthru
        _
    $region40: #{resnet_block_forward.3} parent=5 // pred_fallthru
      _
  $region6: #{resnet_block_forward.3} parent=0 // loop_footer
    %s14 = sadd.s32 1, %s10
  $region7: #{resnet_block_forward.3} parent=0 // loop_footer_branch
    %9 = sbr.rel target = $region3
  $region8: #{resnet_block_forward.3} parent=0 // loop_exit
    _

// kernel: resnet_block_forward.4
$region0: #{resnet_block_forward.4}
  #allocation0 [shape = 'u32[]', space=smem, size = 0x4, offset = 0x4, fixed_abs, tag = 'smem constant byte address 0x4 - core index']
  #allocation1 [shape = 'u32[72,128]{1,0:T(1,128)}', space=vmem, size = 0x9000, scoped, tag = 'internal scratch']
  %s0 = inlined_call_operand.vmem [shape: bf16[2,18,18,16], index: 0, kind: input, shape index: {}]
  %s1 = inlined_call_operand.vmem [shape: f32[1,18,18,16], index: 1, kind: input, shape index: {}]
  %s2 = inlined_call_operand.vmem [shape: f32[1,16], index: 2, kind: input, shape index: {}]
  %s3 = inlined_call_operand.vmem [shape: f32[1,16], index: 3, kind: input, shape index: {}]
  %s4 = inlined_call_operand.vmem [shape: bf16[9,16,16], index: 4, kind: input, shape index: {}]
  %s5 = inlined_call_operand.vmem [shape: bf16[2,16,16,16], index: 5, kind: output, shape index: {0}]
  %s6 = inlined_call_operand.vmem [shape: f32[2,2,16], index: 6, kind: output, shape index: {1}]
  %7 = xla_tuple %s5, %s6
  %s8 = sld [smem:[#allocation0]]
  $region61: #{resnet_block_forward.4} parent=0
    _
  %s10 = ssub.s32 1, %s8
  %s11 = scalar_select 0, %s10, %s8
  loop: start=0, step=1, limit=4
  $region2: #{resnet_block_forward.4} parent=0 // loop_pre_header
    _
  $region3: #{resnet_block_forward.4} parent=0 // loop_header
    %s13 = sphi 0, %s17
    %p14 = scmp.ge.s32.totalorder %s13, 4
    %s20 = sphi 0, %s32
    %s21 = sphi 0, %s28
    %s22 = sphi 0, %s20
    %s23 = sphi 0, %s21
    %s24 = sphi 0, %s22
    %s25 = sphi 0, %s23
    %s37 = sphi 0, %s39
    %s40 = sphi 0, %s37
    %s41 = sphi 0, %s40
    %s57 = sphi 0, %s41
    %s63 = sphi 0, %s65
    %s66 = sphi 0, %s63
    %s67 = sphi 0, %s66
    %s83 = sphi 0, %s67
    %s87 = sphi 0, %s87
    %s89 = sphi 0, %s87
    %s90 = sphi 0, %s89
    %s104 = sphi 0, %s90
    %s108 = sphi 0, %s108
    %s110 = sphi 0, %s108
    %s111 = sphi 0, %s110
    %s125 = sphi 0, %s111
    %s129 = sphi 0, %s129
    %s131 = sphi 0, %s129
    %s132 = sphi 0, %s131
    %s146 = sphi 0, %s132
    %s154 = sphi 0, %s156
    %s157 = sphi 0, %s154
    %s158 = sphi 0, %s157
    %s174 = sphi 0, %s158
    %s182 = sphi 0, %s184
    %s185 = sphi 0, %s182
    %s186 = sphi 0, %s185
    %s202 = sphi 0, %s186
  $region4: #{resnet_block_forward.4} parent=0 // loop_header_branch
    %16 = sbr.rel (%p14) target = $region8
  $region5: #{resnet_block_forward.4} parent=0 // loop_body
    %s18 = ssub.s32 %s13, 1
    %s19 = ssub.s32 %s13, 2
    %s26 = sadd.s32 1, %s21
    %p27 = scmp.ge.s32.totalorder %s26, 1
    %s28 = scalar_select %p27, 0, %s26
    %s29 = sadd.s32 1, %s20
    %s30 = scalar_select %p27, %s29, %s20
    %p31 = scmp.ge.s32.totalorder %s30, 2
    %s32 = scalar_select %p31, 0, %s30
    %s33 = sadd.s32 %s20, %s21
    %s34 = sadd.s32 %s32, %s28
    %s35 = ssub.s32 %s33, %s34
    %p36 = scmp.eq.s32.totalorder %s35, 0
    %s38 = sadd.s32 %s37, 1
    %s39 = scalar_select %p36, %s37, %s38
    %p42 = pneg %p36
    %p43 = scmp.eq.s32.totalorder %s13, 1
    %p44 = por %p42, %p43
    %p45 = scmp.ne.s32.totalorder %s37, %s40
    %p46 = scmp.eq.s32.totalorder %s13, 0
    %p47 = por %p45, %p46
    %p48 = scmp.ne.s32.totalorder %s37, %s40
    %p49 = scmp.eq.s32.totalorder %s18, 1
    %p50 = por %p48, %p49
    %p51 = scmp.ne.s32.totalorder %s40, %s41
    %p52 = scmp.eq.s32.totalorder %s18, 0
    %p53 = por %p51, %p52
    %p54 = scmp.ne.s32.totalorder %s40, %s41
    %p55 = scmp.eq.s32.totalorder %s19, 1
    %p56 = por %p54, %p55
    %p58 = scmp.ne.s32.totalorder %s41, %s57
    %p59 = scmp.eq.s32.totalorder %s19, 0
    %p60 = por %p58, %p59
    %s61 = ssub.s32 %s21, %s28
    %p62 = scmp.eq.s32.totalorder %s61, 0
    %s64 = sadd.s32 %s63, 1
    %s65 = scalar_select %p62, %s63, %s64
    %p68 = pneg %p62
    %p69 = scmp.eq.s32.totalorder %s13, 1
    %p70 = por %p68, %p69
    %p71 = scmp.ne.s32.totalorder %s63, %s66
    %p72 = scmp.eq.s32.totalorder %s13, 0
    %p73 = por %p71, %p72
    %p74 = scmp.ne.s32.totalorder %s63, %s66
    %p75 = scmp.eq.s32.totalorder %s18, 1
    %p76 = por %p74, %p75
    %p77 = scmp.ne.s32.totalorder %s66, %s67
    %p78 = scmp.eq.s32.totalorder %s18, 0
    %p79 = por %p77, %p78
    %p80 = scmp.ne.s32.totalorder %s66, %s67
    %p81 = scmp.eq.s32.totalorder %s19, 1
    %p82 = por %p80, %p81
    %p84 = scmp.ne.s32.totalorder %s67, %s83
    %p85 = scmp.eq.s32.totalorder %s19, 0
    %p86 = por %p84, %p85
    %s88 = sadd.s32 %s87, 1
    %p91 = scmp.eq.s32.totalorder %s13, 1
    %p92 = scmp.ne.s32.totalorder %s87, %s89
    %p93 = scmp.eq.s32.totalorder %s13, 0
    %p94 = por %p92, %p93
    %p95 = scmp.ne.s32.totalorder %s87, %s89
    %p96 = scmp.eq.s32.totalorder %s18, 1
    %p97 = por %p95, %p96
    %p98 = scmp.ne.s32.totalorder %s89, %s90
    %p99 = scmp.eq.s32.totalorder %s18, 0
    %p100 = por %p98, %p99
    %p101 = scmp.ne.s32.totalorder %s89, %s90
    %p102 = scmp.eq.s32.totalorder %s19, 1
    %p103 = por %p101, %p102
    %p105 = scmp.ne.s32.totalorder %s90, %s104
    %p106 = scmp.eq.s32.totalorder %s19, 0
    %p107 = por %p105, %p106
    %s109 = sadd.s32 %s108, 1
    %p112 = scmp.eq.s32.totalorder %s13, 1
    %p113 = scmp.ne.s32.totalorder %s108, %s110
    %p114 = scmp.eq.s32.totalorder %s13, 0
    %p115 = por %p113, %p114
    %p116 = scmp.ne.s32.totalorder %s108, %s110
    %p117 = scmp.eq.s32.totalorder %s18, 1
    %p118 = por %p116, %p117
    %p119 = scmp.ne.s32.totalorder %s110, %s111
    %p120 = scmp.eq.s32.totalorder %s18, 0
    %p121 = por %p119, %p120
    %p122 = scmp.ne.s32.totalorder %s110, %s111
    %p123 = scmp.eq.s32.totalorder %s19, 1
    %p124 = por %p122, %p123
    %p126 = scmp.ne.s32.totalorder %s111, %s125
    %p127 = scmp.eq.s32.totalorder %s19, 0
    %p128 = por %p126, %p127
    %s130 = sadd.s32 %s129, 1
    %p133 = scmp.eq.s32.totalorder %s13, 1
    %p134 = scmp.ne.s32.totalorder %s129, %s131
    %p135 = scmp.eq.s32.totalorder %s13, 0
    %p136 = por %p134, %p135
    %p137 = scmp.ne.s32.totalorder %s129, %s131
    %p138 = scmp.eq.s32.totalorder %s18, 1
    %p139 = por %p137, %p138
    %p140 = scmp.ne.s32.totalorder %s131, %s132
    %p141 = scmp.eq.s32.totalorder %s18, 0
    %p142 = por %p140, %p141
    %p143 = scmp.ne.s32.totalorder %s131, %s132
    %p144 = scmp.eq.s32.totalorder %s19, 1
    %p145 = por %p143, %p144
    %p147 = scmp.ne.s32.totalorder %s132, %s146
    %p148 = scmp.eq.s32.totalorder %s19, 0
    %p149 = por %p147, %p148
    %s150 = ssub.s32 %s20, %s32
    %s151 = ssub.s32 %s21, %s28
    %s152 = sor.u32 %s150, %s151
    %p153 = scmp.eq.s32.totalorder %s152, 0
    %s155 = sadd.s32 %s154, 1
    %s156 = scalar_select %p153, %s154, %s155
    %p159 = pneg %p153
    %p160 = scmp.eq.s32.totalorder %s13, 1
    %p161 = por %p159, %p160
    %p162 = scmp.ne.s32.totalorder %s154, %s157
    %p163 = scmp.eq.s32.totalorder %s13, 0
    %p164 = por %p162, %p163
    %p165 = scmp.ne.s32.totalorder %s154, %s157
    %p166 = scmp.eq.s32.totalorder %s18, 1
    %p167 = por %p165, %p166
    %p168 = scmp.ne.s32.totalorder %s157, %s158
    %p169 = scmp.eq.s32.totalorder %s18, 0
    %p170 = por %p168, %p169
    %p171 = scmp.ne.s32.totalorder %s157, %s158
    %p172 = scmp.eq.s32.totalorder %s19, 1
    %p173 = por %p171, %p172
    %p175 = scmp.ne.s32.totalorder %s158, %s174
    %p176 = scmp.eq.s32.totalorder %s19, 0
    %p177 = por %p175, %p176
    %s178 = sadd.s32 %s20, %s21
    %s179 = sadd.s32 %s32, %s28
    %s180 = ssub.s32 %s178, %s179
    %p181 = scmp.eq.s32.totalorder %s180, 0
    %s183 = sadd.s32 %s182, 1
    %s184 = scalar_select %p181, %s182, %s183
    %p187 = pneg %p181
    %p188 = scmp.eq.s32.totalorder %s13, 1
    %p189 = por %p187, %p188
    %p190 = scmp.ne.s32.totalorder %s182, %s185
    %p191 = scmp.eq.s32.totalorder %s13, 0
    %p192 = por %p190, %p191
    %p193 = scmp.ne.s32.totalorder %s182, %s185
    %p194 = scmp.eq.s32.totalorder %s18, 1
    %p195 = por %p193, %p194
    %p196 = scmp.ne.s32.totalorder %s185, %s186
    %p197 = scmp.eq.s32.totalorder %s18, 0
    %p198 = por %p196, %p197
    %p199 = scmp.ne.s32.totalorder %s185, %s186
    %p200 = scmp.eq.s32.totalorder %s19, 1
    %p201 = por %p199, %p200
    %p203 = scmp.ne.s32.totalorder %s186, %s202
    %p204 = scmp.eq.s32.totalorder %s19, 0
    %p205 = por %p203, %p204
    %p206 = scmp.le.s32.totalorder 1, %s13
    %p207 = scmp.lt.s32.totalorder %s13, 3
    %p208 = pnand %p206, %p207
    %p209 = pneg %p208
    // Predicated region
    $region9: #{resnet_block_forward.4} parent=5 // pred_check
      _
    $region10: #{resnet_block_forward.4} parent=5 // pred_check_branch
      %211 = sbr.rel (%p208) target = $region12
    $region11: #{resnet_block_forward.4} parent=5 // pred_region
      %s212 = ssub.s32 %s13, 1
      // Predicated region
      $region13: #{resnet_block_forward.4} parent=11 // pred_check
        %p213 = pneg %p79
      $region14: #{resnet_block_forward.4} parent=11 // pred_check_branch
        %215 = sbr.rel (%p213) target = $region16
      $region15: #{resnet_block_forward.4} parent=11 // pred_region
        %p216 = scmp.lt.s32.totalorder %s23, 0
        %s217 = scalar_select %p216, %s23, 0
        %s218 = smul.addr %s217, 54
        %s219 = smul.addr %s218, 8
        %s220 = scalar_lea.vmem %s1, %s219
      $region16: #{resnet_block_forward.4} parent=11 // pred_fallthru
        _
      // Predicated region
      $region17: #{resnet_block_forward.4} parent=11 // pred_check
        %p221 = pneg %p100
      $region18: #{resnet_block_forward.4} parent=11 // pred_check_branch
        %223 = sbr.rel (%p221) target = $region20
      $region19: #{resnet_block_forward.4} parent=11 // pred_region
        _
      $region20: #{resnet_block_forward.4} parent=11 // pred_fallthru
        _
      // Predicated region
      $region21: #{resnet_block_forward.4} parent=11 // pred_check
        %p224 = pneg %p121
      $region22: #{resnet_block_forward.4} parent=11 // pred_check_branch
        %226 = sbr.rel (%p224) target = $region24
      $region23: #{resnet_block_forward.4} parent=11 // pred_region
        _
      $region24: #{resnet_block_forward.4} parent=11 // pred_fallthru
        _
      // Predicated region
      $region25: #{resnet_block_forward.4} parent=11 // pred_check
        %p227 = pneg %p142
      $region26: #{resnet_block_forward.4} parent=11 // pred_check_branch
        %229 = sbr.rel (%p227) target = $region28
      $region27: #{resnet_block_forward.4} parent=11 // pred_region
        _
      $region28: #{resnet_block_forward.4} parent=11 // pred_fallthru
        _
    $region12: #{resnet_block_forward.4} parent=5 // pred_fallthru
      _
    %p230 = scmp.lt.s32.totalorder %s13, 2
    // Predicated region
    $region29: #{resnet_block_forward.4} parent=5 // pred_check
      %p231 = pneg %p230
    $region30: #{resnet_block_forward.4} parent=5 // pred_check_branch
      %233 = sbr.rel (%p231) target = $region32
    $region31: #{resnet_block_forward.4} parent=5 // pred_region
      // Predicated region
      $region33: #{resnet_block_forward.4} parent=31 // pred_check
        %p234 = pneg %p47
      $region34: #{resnet_block_forward.4} parent=31 // pred_check_branch
        %236 = sbr.rel (%p234) target = $region36
      $region35: #{resnet_block_forward.4} parent=31 // pred_region
        %s237 = sadd.s32 %s20, %s21
        %p238 = scmp.lt.s32.totalorder %s237, 1
        %s239 = scalar_select %p238, %s237, 1
        %s240 = smul.addr %s239, 54
        %s241 = smul.addr %s240, 4
        %s242 = scalar_lea.vmem %s0, %s241
        %s243 = sadd.s32 %s20, %s21
      $region36: #{resnet_block_forward.4} parent=31 // pred_fallthru
        _
    $region32: #{resnet_block_forward.4} parent=5 // pred_fallthru
      _
    %p244 = scmp.le.s32.totalorder 1, %s13
    %p245 = scmp.lt.s32.totalorder %s13, 3
    %p246 = pnand %p244, %p245
    %p247 = pneg %p246
    // Predicated region
    $region37: #{resnet_block_forward.4} parent=5 // pred_check
      _
    $region38: #{resnet_block_forward.4} parent=5 // pred_check_branch
      %249 = sbr.rel (%p246) target = $region40
    $region39: #{resnet_block_forward.4} parent=5 // pred_region
      %s250 = ssub.s32 %s13, 1
      %s251 = sadd.s32 %s22, %s23
      %p252 = scmp.lt.s32.totalorder %s251, 1
      %s253 = scalar_select %p252, %s251, 1
      %s254 = smul.addr %s253, 54
      %s255 = smul.addr %s254, 4
      %s256 = scalar_lea.vmem %s0, %s255
      %p257 = pneg %p53
      %p258 = pneg %p50
      %p259 = scmp.lt.s32.totalorder %s23, 0
      %s260 = scalar_select %p259, %s23, 0
      %s261 = smul.addr %s260, 54
      %s262 = smul.addr %s261, 8
      %s263 = scalar_lea.vmem %s1, %s262
      %p264 = pneg %p79
      %p265 = pneg %p76
      %p266 = pneg %p100
      %p267 = pneg %p97
      %p268 = pneg %p121
      %p269 = pneg %p118
      %p270 = pneg %p142
      %p271 = pneg %p139
      %p272 = pneg %p170
      %p273 = pneg %p167
      %s274 = smul.u32 16, %s23
      %p275 = scmp.lt.s32.totalorder %s22, 1
      %s276 = scalar_select %p275, %s22, 1
      %p277 = scmp.lt.s32.totalorder %s274, 15
      %s278 = scalar_select %p277, %s274, 15
      %s279 = smul.addr %s278, 2
      %s280 = smul.addr %s276, 32
      %s281 = sadd.s32 %s279, %s280
      %s282 = smul.addr %s281, 4
      %s283 = scalar_lea.vmem %s5, %s282
      %p284 = pneg %p198
      %p285 = pneg %p195
      %s286 = sadd.s32 %s22, %s23
      %p287 = scmp.lt.s32.totalorder %s286, 1
      %s288 = scalar_select %p287, %s286, 1
      %s289 = smul.addr %s288, 2
      %s290 = scalar_lea.vmem %s6, %s289
      %s291 = sadd.s32 %s22, %s23
      %p292 = scmp.lt.s32.totalorder %s291, 1
      %s293 = scalar_select %p292, %s291, 1
      %s294 = smul.addr %s293, 54
      %s295 = smul.addr %s294, 4
      %s296 = scalar_lea.vmem %s0, %s295
      %s297 = sadd.s32 %s22, %s23
      %p298 = scmp.lt.s32.totalorder %s23, 0
      %s299 = scalar_select %p298, %s23, 0
      %s300 = smul.addr %s299, 54
      %s301 = smul.addr %s300, 8
      %s302 = scalar_lea.vmem %s1, %s301
      %s303 = smul.u32 16, %s23
      %p304 = scmp.lt.s32.totalorder %s22, 1
      %s305 = scalar_select %p304, %s22, 1
      %p306 = scmp.lt.s32.totalorder %s303, 15
      %s307 = scalar_select %p306, %s303, 15
      %s308 = smul.addr %s307, 2
      %s309 = smul.addr %s305, 32
      %s310 = sadd.s32 %s308, %s309
      %s311 = smul.addr %s310, 4
      %s312 = scalar_lea.vmem %s5, %s311
      %s313 = smul.u32 16, %s23
      %s314 = sadd.s32 %s22, %s23
      %p315 = scmp.lt.s32.totalorder %s314, 1
      %s316 = scalar_select %p315, %s314, 1
      %s317 = smul.addr %s316, 2
      %s318 = scalar_lea.vmem %s6, %s317
      %s319 = sadd.s32 %s22, %s23
      %v321 = vld [vmem:[%s2] sm:$0x1]
      %v322 = vld [vmem:[%s3] sm:$0x1]
      %v323 = vld [vmem:[%s296] sm:$0xf]
      %v324 = vld [vmem:[%s296 + $0x4] sm:$0xf]
      %v325 = vld [vmem:[%s296 + $0xc] sm:$0xf]
      %v326 = vld [vmem:[%s296 + $0x10] sm:$0xf]
      %v327 = vld [vmem:[%s296 + $0x18] sm:$0xf]
      %v328 = vld [vmem:[%s296 + $0x1c] sm:$0xf]
      %v329 = vld [vmem:[%s296 + $0x24] sm:$0xf]
      %v330 = vld [vmem:[%s296 + $0x28] sm:$0xf]
      %v331 = vld [vmem:[%s296 + $0x30] sm:$0xf]
      %v332 = vld [vmem:[%s296 + $0x34] sm:$0xf]
      %v333 = vld [vmem:[%s296 + $0x3c] sm:$0xf]
      %v334 = vld [vmem:[%s296 + $0x40] sm:$0xf]
      %v335 = vld [vmem:[%s296 + $0x48] sm:$0xf]
      %v336 = vld [vmem:[%s296 + $0x4c] sm:$0xf]
      %v337 = vld [vmem:[%s296 + $0x54] sm:$0xf]
      %v338 = vld [vmem:[%s296 + $0x58] sm:$0xf]
      %v339 = vld [vmem:[%s296 + $0x60] sm:$0xf]
      %v340 = vld [vmem:[%s296 + $0x64] sm:$0xf]
      %v341 = vld [vmem:[%s296 + $0x6c] sm:$0xf]
      %v342 = vld [vmem:[%s296 + $0x70] sm:$0xf]
      %v343 = vld [vmem:[%s296 + $0x78] sm:$0xf]
      %v344 = vld [vmem:[%s296 + $0x7c] sm:$0xf]
      %v345 = vld [vmem:[%s296 + $0x84] sm:$0xf]
      %v346 = vld [vmem:[%s296 + $0x88] sm:$0xf]
      %v347 = vld [vmem:[%s296 + $0x90] sm:$0xf]
      %v348 = vld [vmem:[%s296 + $0x94] sm:$0xf]
      %v349 = vld [vmem:[%s296 + $0x9c] sm:$0xf]
      %v350 = vld [vmem:[%s296 + $0xa0] sm:$0xf]
      %v351 = vld [vmem:[%s296 + $0xa8] sm:$0xf]
      %v352 = vld [vmem:[%s296 + $0xac] sm:$0xf]
      %v353 = vld [vmem:[%s296 + $0xb4] sm:$0xf]
      %v354 = vld [vmem:[%s296 + $0xb8] sm:$0xf]
      %v355 = vunpack.c.l.bf16 %v323
      %v356 = vunpack.c.l.bf16 %v324
      %v357 = vunpack.c.l.bf16 %v325
      %v358 = vunpack.c.l.bf16 %v326
      %v359 = vunpack.c.l.bf16 %v327
      %v360 = vunpack.c.l.bf16 %v328
      %v361 = vunpack.c.l.bf16 %v329
      %v362 = vunpack.c.l.bf16 %v330
      %v363 = vunpack.c.l.bf16 %v331
      %v364 = vunpack.c.l.bf16 %v332
      %v365 = vunpack.c.l.bf16 %v333
      %v366 = vunpack.c.l.bf16 %v334
      %v367 = vunpack.c.l.bf16 %v335
      %v368 = vunpack.c.l.bf16 %v336
      %v369 = vunpack.c.l.bf16 %v337
      %v370 = vunpack.c.l.bf16 %v338
      %v371 = vunpack.c.l.bf16 %v339
      %v372 = vunpack.c.l.bf16 %v340
      %v373 = vunpack.c.l.bf16 %v341
      %v374 = vunpack.c.l.bf16 %v342
      %v375 = vunpack.c.l.bf16 %v343
      %v376 = vunpack.c.l.bf16 %v344
      %v377 = vunpack.c.l.bf16 %v345
      %v378 = vunpack.c.l.bf16 %v346
      %v379 = vunpack.c.l.bf16 %v347
      %v380 = vunpack.c.l.bf16 %v348
      %v381 = vunpack.c.l.bf16 %v349
      %v382 = vunpack.c.l.bf16 %v350
      %v383 = vunpack.c.l.bf16 %v351
      %v384 = vunpack.c.l.bf16 %v352
      %v385 = vunpack.c.l.bf16 %v353
      %v386 = vunpack.c.l.bf16 %v354
      %v388 = vperm.slane %v321, 0
      %v390 = vmul.f32 %v355, %v388
      %v391 = vmul.f32 %v356, %v388
      %v392 = vmul.f32 %v357, %v388
      %v393 = vmul.f32 %v358, %v388
      %v394 = vmul.f32 %v359, %v388
      %v395 = vmul.f32 %v360, %v388
      %v396 = vmul.f32 %v361, %v388
      %v397 = vmul.f32 %v362, %v388
      %v398 = vmul.f32 %v363, %v388
      %v399 = vmul.f32 %v364, %v388
      %v400 = vmul.f32 %v365, %v388
      %v401 = vmul.f32 %v366, %v388
      %v402 = vmul.f32 %v367, %v388
      %v403 = vmul.f32 %v368, %v388
      %v404 = vmul.f32 %v369, %v388
      %v405 = vmul.f32 %v370, %v388
      %v406 = vmul.f32 %v371, %v388
      %v407 = vmul.f32 %v372, %v388
      %v408 = vmul.f32 %v373, %v388
      %v409 = vmul.f32 %v374, %v388
      %v410 = vmul.f32 %v375, %v388
      %v411 = vmul.f32 %v376, %v388
      %v412 = vmul.f32 %v377, %v388
      %v413 = vmul.f32 %v378, %v388
      %v414 = vmul.f32 %v379, %v388
      %v415 = vmul.f32 %v380, %v388
      %v416 = vmul.f32 %v381, %v388
      %v417 = vmul.f32 %v382, %v388
      %v418 = vmul.f32 %v383, %v388
      %v419 = vmul.f32 %v384, %v388
      %v420 = vmul.f32 %v385, %v388
      %v421 = vmul.f32 %v386, %v388
      %v423 = vperm.slane %v322, 0
      %v425 = vadd.f32 %v390, %v423
      %v426 = vadd.f32 %v391, %v423
      %v427 = vadd.f32 %v392, %v423
      %v428 = vadd.f32 %v393, %v423
      %v429 = vadd.f32 %v394, %v423
      %v430 = vadd.f32 %v395, %v423
      %v431 = vadd.f32 %v396, %v423
      %v432 = vadd.f32 %v397, %v423
      %v433 = vadd.f32 %v398, %v423
      %v434 = vadd.f32 %v399, %v423
      %v435 = vadd.f32 %v400, %v423
      %v436 = vadd.f32 %v401, %v423
      %v437 = vadd.f32 %v402, %v423
      %v438 = vadd.f32 %v403, %v423
      %v439 = vadd.f32 %v404, %v423
      %v440 = vadd.f32 %v405, %v423
      %v441 = vadd.f32 %v406, %v423
      %v442 = vadd.f32 %v407, %v423
      %v443 = vadd.f32 %v408, %v423
      %v444 = vadd.f32 %v409, %v423
      %v445 = vadd.f32 %v410, %v423
      %v446 = vadd.f32 %v411, %v423
      %v447 = vadd.f32 %v412, %v423
      %v448 = vadd.f32 %v413, %v423
      %v449 = vadd.f32 %v414, %v423
      %v450 = vadd.f32 %v415, %v423
      %v451 = vadd.f32 %v416, %v423
      %v452 = vadd.f32 %v417, %v423
      %v453 = vadd.f32 %v418, %v423
      %v454 = vadd.f32 %v419, %v423
      %v455 = vadd.f32 %v420, %v423
      %v456 = vadd.f32 %v421, %v423
      %v457 = vmax.f32 %v425, 0.0
      %v458 = vmax.f32 %v426, 0.0
      %v459 = vmax.f32 %v427, 0.0
      %v460 = vmax.f32 %v428, 0.0
      %v461 = vmax.f32 %v429, 0.0
      %v462 = vmax.f32 %v430, 0.0
      %v463 = vmax.f32 %v431, 0.0
      %v464 = vmax.f32 %v432, 0.0
      %v465 = vmax.f32 %v433, 0.0
      %v466 = vmax.f32 %v434, 0.0
      %v467 = vmax.f32 %v435, 0.0
      %v468 = vmax.f32 %v436, 0.0
      %v469 = vmax.f32 %v437, 0.0
      %v470 = vmax.f32 %v438, 0.0
      %v471 = vmax.f32 %v439, 0.0
      %v472 = vmax.f32 %v440, 0.0
      %v473 = vmax.f32 %v441, 0.0
      %v474 = vmax.f32 %v442, 0.0
      %v475 = vmax.f32 %v443, 0.0
      %v476 = vmax.f32 %v444, 0.0
      %v477 = vmax.f32 %v445, 0.0
      %v478 = vmax.f32 %v446, 0.0
      %v479 = vmax.f32 %v447, 0.0
      %v480 = vmax.f32 %v448, 0.0
      %v481 = vmax.f32 %v449, 0.0
      %v482 = vmax.f32 %v450, 0.0
      %v483 = vmax.f32 %v451, 0.0
      %v484 = vmax.f32 %v452, 0.0
      %v485 = vmax.f32 %v453, 0.0
      %v486 = vmax.f32 %v454, 0.0
      %v487 = vmax.f32 %v455, 0.0
      %v488 = vmax.f32 %v456, 0.0
      %v489 = vld [vmem:[%s302] sm:$0xff]
      %v490 = vld [vmem:[%s302 + $0x8] sm:$0xff]
      %v491 = vld [vmem:[%s302 + $0x18] sm:$0xff]
      %v492 = vld [vmem:[%s302 + $0x20] sm:$0xff]
      %v493 = vld [vmem:[%s302 + $0x30] sm:$0xff]
      %v494 = vld [vmem:[%s302 + $0x38] sm:$0xff]
      %v495 = vld [vmem:[%s302 + $0x48] sm:$0xff]
      %v496 = vld [vmem:[%s302 + $0x50] sm:$0xff]
      %v497 = vld [vmem:[%s302 + $0x60] sm:$0xff]
      %v498 = vld [vmem:[%s302 + $0x68] sm:$0xff]
      %v499 = vld [vmem:[%s302 + $0x78] sm:$0xff]
      %v500 = vld [vmem:[%s302 + $0x80] sm:$0xff]
      %v501 = vld [vmem:[%s302 + $0x90] sm:$0xff]
      %v502 = vld [vmem:[%s302 + $0x98] sm:$0xff]
      %v503 = vld [vmem:[%s302 + $0xa8] sm:$0xff]
      %v504 = vld [vmem:[%s302 + $0xb0] sm:$0xff]
      %v505 = vld [vmem:[%s302 + $0xc0] sm:$0xff]
      %v506 = vld [vmem:[%s302 + $0xc8] sm:$0xff]
      %v507 = vld [vmem:[%s302 + $0xd8] sm:$0xff]
      %v508 = vld [vmem:[%s302 + $0xe0] sm:$0xff]
      %v509 = vld [vmem:[%s302 + $0xf0] sm:$0xff]
      %v510 = vld [vmem:[%s302 + $0xf8] sm:$0xff]
      %v511 = vld [vmem:[%s302 + $0x108] sm:$0xff]
      %v512 = vld [vmem:[%s302 + $0x110] sm:$0xff]
      %v513 = vld [vmem:[%s302 + $0x120] sm:$0xff]
      %v514 = vld [vmem:[%s302 + $0x128] sm:$0xff]
      %v515 = vld [vmem:[%s302 + $0x138] sm:$0xff]
      %v516 = vld [vmem:[%s302 + $0x140] sm:$0xff]
      %v517 = vld [vmem:[%s302 + $0x150] sm:$0xff]
      %v518 = vld [vmem:[%s302 + $0x158] sm:$0xff]
      %v519 = vld [vmem:[%s302 + $0x168] sm:$0xff]
      %v520 = vld [vmem:[%s302 + $0x170] sm:$0xff]
      %v521 = vmul.f32 %v457, %v489
      %v522 = vmul.f32 %v458, %v490
      %v523 = vmul.f32 %v459, %v491
      %v524 = vmul.f32 %v460, %v492
      %v525 = vmul.f32 %v461, %v493
      %v526 = vmul.f32 %v462, %v494
      %v527 = vmul.f32 %v463, %v495
      %v528 = vmul.f32 %v464, %v496
      %v529 = vmul.f32 %v465, %v497
      %v530 = vmul.f32 %v466, %v498
      %v531 = vmul.f32 %v467, %v499
      %v532 = vmul.f32 %v468, %v500
      %v533 = vmul.f32 %v469, %v501
      %v534 = vmul.f32 %v470, %v502
      %v535 = vmul.f32 %v471, %v503
      %v536 = vmul.f32 %v472, %v504
      %v537 = vmul.f32 %v473, %v505
      %v538 = vmul.f32 %v474, %v506
      %v539 = vmul.f32 %v475, %v507
      %v540 = vmul.f32 %v476, %v508
      %v541 = vmul.f32 %v477, %v509
      %v542 = vmul.f32 %v478, %v510
      %v543 = vmul.f32 %v479, %v511
      %v544 = vmul.f32 %v480, %v512
      %v545 = vmul.f32 %v481, %v513
      %v546 = vmul.f32 %v482, %v514
      %v547 = vmul.f32 %v483, %v515
      %v548 = vmul.f32 %v484, %v516
      %v549 = vmul.f32 %v485, %v517
      %v550 = vmul.f32 %v486, %v518
      %v551 = vmul.f32 %v487, %v519
      %v552 = vmul.f32 %v488, %v520
      %v553 = vpack.c.bf16 %v521, %v521
      %v554 = vpack.c.bf16 %v522, %v522
      %v555 = vpack.c.bf16 %v523, %v523
      %v556 = vpack.c.bf16 %v524, %v524
      %v557 = vpack.c.bf16 %v525, %v525
      %v558 = vpack.c.bf16 %v526, %v526
      %v559 = vpack.c.bf16 %v527, %v527
      %v560 = vpack.c.bf16 %v528, %v528
      %v561 = vpack.c.bf16 %v529, %v529
      %v562 = vpack.c.bf16 %v530, %v530
      %v563 = vpack.c.bf16 %v531, %v531
      %v564 = vpack.c.bf16 %v532, %v532
      %v565 = vpack.c.bf16 %v533, %v533
      %v566 = vpack.c.bf16 %v534, %v534
      %v567 = vpack.c.bf16 %v535, %v535
      %v568 = vpack.c.bf16 %v536, %v536
      %v569 = vpack.c.bf16 %v537, %v537
      %v570 = vpack.c.bf16 %v538, %v538
      %v571 = vpack.c.bf16 %v539, %v539
      %v572 = vpack.c.bf16 %v540, %v540
      %v573 = vpack.c.bf16 %v541, %v541
      %v574 = vpack.c.bf16 %v542, %v542
      %v575 = vpack.c.bf16 %v543, %v543
      %v576 = vpack.c.bf16 %v544, %v544
      %v577 = vpack.c.bf16 %v545, %v545
      %v578 = vpack.c.bf16 %v546, %v546
      %v579 = vpack.c.bf16 %v547, %v547
      %v580 = vpack.c.bf16 %v548, %v548
      %v581 = vpack.c.bf16 %v549, %v549
      %v582 = vpack.c.bf16 %v550, %v550
      %v583 = vpack.c.bf16 %v551, %v551
      %v584 = vpack.c.bf16 %v552, %v552
      %v585 = vld [vmem:[%s4] sm:$0xf]
      %v586 = vld [vmem:[%s4 + $0x4] sm:$0xf]
      %v587 = vld [vmem:[%s296 + $0x8] sm:$0x1]
      %v588 = vld [vmem:[%s296 + $0x14] sm:$0x1]
      %v589 = vld [vmem:[%s296 + $0x20] sm:$0x1]
      %v590 = vld [vmem:[%s296 + $0x2c] sm:$0x1]
      %v591 = vld [vmem:[%s296 + $0x38] sm:$0x1]
      %v592 = vld [vmem:[%s296 + $0x44] sm:$0x1]
      %v593 = vld [vmem:[%s296 + $0x50] sm:$0x1]
      %v594 = vld [vmem:[%s296 + $0x5c] sm:$0x1]
      %v595 = vld [vmem:[%s296 + $0x68] sm:$0x1]
      %v596 = vld [vmem:[%s296 + $0x74] sm:$0x1]
      %v597 = vld [vmem:[%s296 + $0x80] sm:$0x1]
      %v598 = vld [vmem:[%s296 + $0x8c] sm:$0x1]
      %v599 = vld [vmem:[%s296 + $0x98] sm:$0x1]
      %v600 = vld [vmem:[%s296 + $0xa4] sm:$0x1]
      %v601 = vld [vmem:[%s296 + $0xb0] sm:$0x1]
      %v602 = vld [vmem:[%s296 + $0xbc] sm:$0x1]
      %v603 = vunpack.c.l.bf16 %v587
      %v604 = vunpack.c.l.bf16 %v588
      %v605 = vunpack.c.l.bf16 %v589
      %v606 = vunpack.c.l.bf16 %v590
      %v607 = vunpack.c.l.bf16 %v591
      %v608 = vunpack.c.l.bf16 %v592
      %v609 = vunpack.c.l.bf16 %v593
      %v610 = vunpack.c.l.bf16 %v594
      %v611 = vunpack.c.l.bf16 %v595
      %v612 = vunpack.c.l.bf16 %v596
      %v613 = vunpack.c.l.bf16 %v597
      %v614 = vunpack.c.l.bf16 %v598
      %v615 = vunpack.c.l.bf16 %v599
      %v616 = vunpack.c.l.bf16 %v600
      %v617 = vunpack.c.l.bf16 %v601
      %v618 = vunpack.c.l.bf16 %v602
      %v619 = vmul.f32 %v603, %v388
      %v620 = vmul.f32 %v604, %v388
      %v621 = vmul.f32 %v605, %v388
      %v622 = vmul.f32 %v606, %v388
      %v623 = vmul.f32 %v607, %v388
      %v624 = vmul.f32 %v608, %v388
      %v625 = vmul.f32 %v609, %v388
      %v626 = vmul.f32 %v610, %v388
      %v627 = vmul.f32 %v611, %v388
      %v628 = vmul.f32 %v612, %v388
      %v629 = vmul.f32 %v613, %v388
      %v630 = vmul.f32 %v614, %v388
      %v631 = vmul.f32 %v615, %v388
      %v632 = vmul.f32 %v616, %v388
      %v633 = vmul.f32 %v617, %v388
      %v634 = vmul.f32 %v618, %v388
      %v635 = vadd.f32 %v619, %v423
      %v636 = vadd.f32 %v620, %v423
      %v637 = vadd.f32 %v621, %v423
      %v638 = vadd.f32 %v622, %v423
      %v639 = vadd.f32 %v623, %v423
      %v640 = vadd.f32 %v624, %v423
      %v641 = vadd.f32 %v625, %v423
      %v642 = vadd.f32 %v626, %v423
      %v643 = vadd.f32 %v627, %v423
      %v644 = vadd.f32 %v628, %v423
      %v645 = vadd.f32 %v629, %v423
      %v646 = vadd.f32 %v630, %v423
      %v647 = vadd.f32 %v631, %v423
      %v648 = vadd.f32 %v632, %v423
      %v649 = vadd.f32 %v633, %v423
      %v650 = vadd.f32 %v634, %v423
      %v651 = vmax.f32 %v635, 0.0
      %v652 = vmax.f32 %v636, 0.0
      %v653 = vmax.f32 %v637, 0.0
      %v654 = vmax.f32 %v638, 0.0
      %v655 = vmax.f32 %v639, 0.0
      %v656 = vmax.f32 %v640, 0.0
      %v657 = vmax.f32 %v641, 0.0
      %v658 = vmax.f32 %v642, 0.0
      %v659 = vmax.f32 %v643, 0.0
      %v660 = vmax.f32 %v644, 0.0
      %v661 = vmax.f32 %v645, 0.0
      %v662 = vmax.f32 %v646, 0.0
      %v663 = vmax.f32 %v647, 0.0
      %v664 = vmax.f32 %v648, 0.0
      %v665 = vmax.f32 %v649, 0.0
      %v666 = vmax.f32 %v650, 0.0
      %v667 = vld [vmem:[%s302 + $0x1] sm:$0xff]
      %v668 = vld [vmem:[%s302 + $0x9] sm:$0xff]
      %v669 = vld [vmem:[%s302 + $0x19] sm:$0xff]
      %v670 = vld [vmem:[%s302 + $0x21] sm:$0xff]
      %v671 = vld [vmem:[%s302 + $0x31] sm:$0xff]
      %v672 = vld [vmem:[%s302 + $0x39] sm:$0xff]
      %v673 = vld [vmem:[%s302 + $0x49] sm:$0xff]
      %v674 = vld [vmem:[%s302 + $0x51] sm:$0xff]
      %v675 = vld [vmem:[%s302 + $0x61] sm:$0xff]
      %v676 = vld [vmem:[%s302 + $0x69] sm:$0xff]
      %v677 = vld [vmem:[%s302 + $0x79] sm:$0xff]
      %v678 = vld [vmem:[%s302 + $0x81] sm:$0xff]
      %v679 = vld [vmem:[%s302 + $0x91] sm:$0xff]
      %v680 = vld [vmem:[%s302 + $0x99] sm:$0xff]
      %v681 = vld [vmem:[%s302 + $0xa9] sm:$0xff]
      %v682 = vld [vmem:[%s302 + $0xb1] sm:$0xff]
      %v683 = vld [vmem:[%s302 + $0xc1] sm:$0xff]
      %v684 = vld [vmem:[%s302 + $0xc9] sm:$0xff]
      %v685 = vld [vmem:[%s302 + $0xd9] sm:$0xff]
      %v686 = vld [vmem:[%s302 + $0xe1] sm:$0xff]
      %v687 = vld [vmem:[%s302 + $0xf1] sm:$0xff]
      %v688 = vld [vmem:[%s302 + $0xf9] sm:$0xff]
      %v689 = vld [vmem:[%s302 + $0x109] sm:$0xff]
      %v690 = vld [vmem:[%s302 + $0x111] sm:$0xff]
      %v691 = vld [vmem:[%s302 + $0x121] sm:$0xff]
      %v692 = vld [vmem:[%s302 + $0x129] sm:$0xff]
      %v693 = vld [vmem:[%s302 + $0x139] sm:$0xff]
      %v694 = vld [vmem:[%s302 + $0x141] sm:$0xff]
      %v695 = vld [vmem:[%s302 + $0x151] sm:$0xff]
      %v696 = vld [vmem:[%s302 + $0x159] sm:$0xff]
      %v697 = vld [vmem:[%s302 + $0x169] sm:$0xff]
      %v698 = vld [vmem:[%s302 + $0x171] sm:$0xff]
      %vm731 = vcmask 1040384
      %v732 = vrot.slane %v667, 7
      %v733 = vrot.slane %v668, 7
      %v734 = vsel %vm731, %v732, %v733
      %v735 = vrot.slane %v669, 7
      %v736 = vrot.slane %v670, 7
      %v737 = vsel %vm731, %v735, %v736
      %v738 = vrot.slane %v671, 7
      %v739 = vrot.slane %v672, 7
      %v740 = vsel %vm731, %v738, %v739
      %v741 = vrot.slane %v673, 7
      %v742 = vrot.slane %v674, 7
      %v743 = vsel %vm731, %v741, %v742
      %v744 = vrot.slane %v675, 7
      %v745 = vrot.slane %v676, 7
      %v746 = vsel %vm731, %v744, %v745
      %v747 = vrot.slane %v677, 7
      %v748 = vrot.slane %v678, 7
      %v749 = vsel %vm731, %v747, %v748
      %v750 = vrot.slane %v679, 7
      %v751 = vrot.slane %v680, 7
      %v752 = vsel %vm731, %v750, %v751
      %v753 = vrot.slane %v681, 7
      %v754 = vrot.slane %v682, 7
      %v755 = vsel %vm731, %v753, %v754
      %v756 = vrot.slane %v683, 7
      %v757 = vrot.slane %v684, 7
      %v758 = vsel %vm731, %v756, %v757
      %v759 = vrot.slane %v685, 7
      %v760 = vrot.slane %v686, 7
      %v761 = vsel %vm731, %v759, %v760
      %v762 = vrot.slane %v687, 7
      %v763 = vrot.slane %v688, 7
      %v764 = vsel %vm731, %v762, %v763
      %v765 = vrot.slane %v689, 7
      %v766 = vrot.slane %v690, 7
      %v767 = vsel %vm731, %v765, %v766
      %v768 = vrot.slane %v691, 7
      %v769 = vrot.slane %v692, 7
      %v770 = vsel %vm731, %v768, %v769
      %v771 = vrot.slane %v693, 7
      %v772 = vrot.slane %v694, 7
      %v773 = vsel %vm731, %v771, %v772
      %v774 = vrot.slane %v695, 7
      %v775 = vrot.slane %v696, 7
      %v776 = vsel %vm731, %v774, %v775
      %v777 = vrot.slane %v697, 7
      %v778 = vrot.slane %v698, 7
      %v779 = vsel %vm731, %v777, %v778
      %v828 = vmul.f32 %v457, %v732
      %v829 = vmul.f32 %v458, %v734
      %v830 = vmul.f32 %v651, %v733
      %v831 = vmul.f32 %v459, %v735
      %v832 = vmul.f32 %v460, %v737
      %v833 = vmul.f32 %v652, %v736
      %v834 = vmul.f32 %v461, %v738
      %v835 = vmul.f32 %v462, %v740
      %v836 = vmul.f32 %v653, %v739
      %v837 = vmul.f32 %v463, %v741
      %v838 = vmul.f32 %v464, %v743
      %v839 = vmul.f32 %v654, %v742
      %v840 = vmul.f32 %v465, %v744
      %v841 = vmul.f32 %v466, %v746
      %v842 = vmul.f32 %v655, %v745
      %v843 = vmul.f32 %v467, %v747
      %v844 = vmul.f32 %v468, %v749
      %v845 = vmul.f32 %v656, %v748
      %v846 = vmul.f32 %v469, %v750
      %v847 = vmul.f32 %v470, %v752
      %v848 = vmul.f32 %v657, %v751
      %v849 = vmul.f32 %v471, %v753
      %v850 = vmul.f32 %v472, %v755
      %v851 = vmul.f32 %v658, %v754
      %v852 = vmul.f32 %v473, %v756
      %v853 = vmul.f32 %v474, %v758
      %v854 = vmul.f32 %v659, %v757
      %v855 = vmul.f32 %v475, %v759
      %v856 = vmul.f32 %v476, %v761
      %v857 = vmul.f32 %v660, %v760
      %v858 = vmul.f32 %v477, %v762
      %v859 = vmul.f32 %v478, %v764
      %v860 = vmul.f32 %v661, %v763
      %v861 = vmul.f32 %v479, %v765
      %v862 = vmul.f32 %v480, %v767
      %v863 = vmul.f32 %v662, %v766
      %v864 = vmul.f32 %v481, %v768
      %v865 = vmul.f32 %v482, %v770
      %v866 = vmul.f32 %v663, %v769
      %v867 = vmul.f32 %v483, %v771
      %v868 = vmul.f32 %v484, %v773
      %v869 = vmul.f32 %v664, %v772
      %v870 = vmul.f32 %v485, %v774
      %v871 = vmul.f32 %v486, %v776
      %v872 = vmul.f32 %v665, %v775
      %v873 = vmul.f32 %v487, %v777
      %v874 = vmul.f32 %v488, %v779
      %v875 = vmul.f32 %v666, %v778
      %v876 = vpack.c.bf16 %v828, %v828
      %v877 = vpack.c.bf16 %v829, %v829
      %v878 = vpack.c.bf16 %v830, %v830
      %v879 = vpack.c.bf16 %v831, %v831
      %v880 = vpack.c.bf16 %v832, %v832
      %v881 = vpack.c.bf16 %v833, %v833
      %v882 = vpack.c.bf16 %v834, %v834
      %v883 = vpack.c.bf16 %v835, %v835
      %v884 = vpack.c.bf16 %v836, %v836
      %v885 = vpack.c.bf16 %v837, %v837
      %v886 = vpack.c.bf16 %v838, %v838
      %v887 = vpack.c.bf16 %v839, %v839
      %v888 = vpack.c.bf16 %v840, %v840
      %v889 = vpack.c.bf16 %v841, %v841
      %v890 = vpack.c.bf16 %v842, %v842
      %v891 = vpack.c.bf16 %v843, %v843
      %v892 = vpack.c.bf16 %v844, %v844
      %v893 = vpack.c.bf16 %v845, %v845
      %v894 = vpack.c.bf16 %v846, %v846
      %v895 = vpack.c.bf16 %v847, %v847
      %v896 = vpack.c.bf16 %v848, %v848
      %v897 = vpack.c.bf16 %v849, %v849
      %v898 = vpack.c.bf16 %v850, %v850
      %v899 = vpack.c.bf16 %v851, %v851
      %v900 = vpack.c.bf16 %v852, %v852
      %v901 = vpack.c.bf16 %v853, %v853
      %v902 = vpack.c.bf16 %v854, %v854
      %v903 = vpack.c.bf16 %v855, %v855
      %v904 = vpack.c.bf16 %v856, %v856
      %v905 = vpack.c.bf16 %v857, %v857
      %v906 = vpack.c.bf16 %v858, %v858
      %v907 = vpack.c.bf16 %v859, %v859
      %v908 = vpack.c.bf16 %v860, %v860
      %v909 = vpack.c.bf16 %v861, %v861
      %v910 = vpack.c.bf16 %v862, %v862
      %v911 = vpack.c.bf16 %v863, %v863
      %v912 = vpack.c.bf16 %v864, %v864
      %v913 = vpack.c.bf16 %v865, %v865
      %v914 = vpack.c.bf16 %v866, %v866
      %v915 = vpack.c.bf16 %v867, %v867
      %v916 = vpack.c.bf16 %v868, %v868
      %v917 = vpack.c.bf16 %v869, %v869
      %v918 = vpack.c.bf16 %v870, %v870
      %v919 = vpack.c.bf16 %v871, %v871
      %v920 = vpack.c.bf16 %v872, %v872
      %v921 = vpack.c.bf16 %v873, %v873
      %v922 = vpack.c.bf16 %v874, %v874
      %v923 = vpack.c.bf16 %v875, %v875
      %vm924 = vsmask.f32 3328
      %vm925 = vsmask.f32 7440
      %vm926 = vmor %vm924, %vm925
      %v928 = vshrl.u32 %v876, 16
      %v930 = vrot.slane %v928, 4
      %v931 = vshll.u32 %v876, 16
      %v933 = vrot.slane %v931, 5
      %v934 = vor.u32 %v930, %v933
      %v935 = vrot.slane %v934, 4
      %v937 = vshll.u32 %v877, 16
      %v939 = vrot.slane %v937, 5
      %v940 = vsel %vm926, %v935, %v939
      %v941 = vshrl.u32 %v877, 16
      %v943 = vrot.slane %v941, 4
      %v944 = vor.u32 %v943, %v939
      %v945 = vrot.slane %v944, 4
      %v947 = vshll.u32 %v878, 16
      %v949 = vrot.slane %v947, 5
      %v950 = vsel %vm926, %v945, %v949
      %v952 = vshrl.u32 %v879, 16
      %v954 = vrot.slane %v952, 4
      %v955 = vshll.u32 %v879, 16
      %v957 = vrot.slane %v955, 5
      %v958 = vor.u32 %v954, %v957
      %v959 = vrot.slane %v958, 4
      %v961 = vshll.u32 %v880, 16
      %v963 = vrot.slane %v961, 5
      %v964 = vsel %vm926, %v959, %v963
      %v965 = vshrl.u32 %v880, 16
      %v967 = vrot.slane %v965, 4
      %v968 = vor.u32 %v967, %v963
      %v969 = vrot.slane %v968, 4
      %v971 = vshll.u32 %v881, 16
      %v973 = vrot.slane %v971, 5
      %v974 = vsel %vm926, %v969, %v973
      %v976 = vshrl.u32 %v882, 16
      %v978 = vrot.slane %v976, 4
      %v979 = vshll.u32 %v882, 16
      %v981 = vrot.slane %v979, 5
      %v982 = vor.u32 %v978, %v981
      %v983 = vrot.slane %v982, 4
      %v985 = vshll.u32 %v883, 16
      %v987 = vrot.slane %v985, 5
      %v988 = vsel %vm926, %v983, %v987
      %v989 = vshrl.u32 %v883, 16
      %v991 = vrot.slane %v989, 4
      %v992 = vor.u32 %v991, %v987
      %v993 = vrot.slane %v992, 4
      %v995 = vshll.u32 %v884, 16
      %v997 = vrot.slane %v995, 5
      %v998 = vsel %vm926, %v993, %v997
      %v1000 = vshrl.u32 %v885, 16
      %v1002 = vrot.slane %v1000, 4
      %v1003 = vshll.u32 %v885, 16
      %v1005 = vrot.slane %v1003, 5
      %v1006 = vor.u32 %v1002, %v1005
      %v1007 = vrot.slane %v1006, 4
      %v1009 = vshll.u32 %v886, 16
      %v1011 = vrot.slane %v1009, 5
      %v1012 = vsel %vm926, %v1007, %v1011
      %v1013 = vshrl.u32 %v886, 16
      %v1015 = vrot.slane %v1013, 4
      %v1016 = vor.u32 %v1015, %v1011
      %v1017 = vrot.slane %v1016, 4
      %v1019 = vshll.u32 %v887, 16
      %v1021 = vrot.slane %v1019, 5
      %v1022 = vsel %vm926, %v1017, %v1021
      %v1024 = vshrl.u32 %v888, 16
      %v1026 = vrot.slane %v1024, 4
      %v1027 = vshll.u32 %v888, 16
      %v1029 = vrot.slane %v1027, 5
      %v1030 = vor.u32 %v1026, %v1029
      %v1031 = vrot.slane %v1030, 4
      %v1033 = vshll.u32 %v889, 16
      %v1035 = vrot.slane %v1033, 5
      %v1036 = vsel %vm926, %v1031, %v1035
      %v1037 = vshrl.u32 %v889, 16
      %v1039 = vrot.slane %v1037, 4
      %v1040 = vor.u32 %v1039, %v1035
      %v1041 = vrot.slane %v1040, 4
      %v1043 = vshll.u32 %v890, 16
      %v1045 = vrot.slane %v1043, 5
      %v1046 = vsel %vm926, %v1041, %v1045
      %v1048 = vshrl.u32 %v891, 16
      %v1050 = vrot.slane %v1048, 4
      %v1051 = vshll.u32 %v891, 16
      %v1053 = vrot.slane %v1051, 5
      %v1054 = vor.u32 %v1050, %v1053
      %v1055 = vrot.slane %v1054, 4
      %v1057 = vshll.u32 %v892, 16
      %v1059 = vrot.slane %v1057, 5
      %v1060 = vsel %vm926, %v1055, %v1059
      %v1061 = vshrl.u32 %v892, 16
      %v1063 = vrot.slane %v1061, 4
      %v1064 = vor.u32 %v1063, %v1059
      %v1065 = vrot.slane %v1064, 4
      %v1067 = vshll.u32 %v893, 16
      %v1069 = vrot.slane %v1067, 5
      %v1070 = vsel %vm926, %v1065, %v1069
      %v1072 = vshrl.u32 %v894, 16
      %v1074 = vrot.slane %v1072, 4
      %v1075 = vshll.u32 %v894, 16
      %v1077 = vrot.slane %v1075, 5
      %v1078 = vor.u32 %v1074, %v1077
      %v1079 = vrot.slane %v1078, 4
      %v1081 = vshll.u32 %v895, 16
      %v1083 = vrot.slane %v1081, 5
      %v1084 = vsel %vm926, %v1079, %v1083
      %v1085 = vshrl.u32 %v895, 16
      %v1087 = vrot.slane %v1085, 4
      %v1088 = vor.u32 %v1087, %v1083
      %v1089 = vrot.slane %v1088, 4
      %v1091 = vshll.u32 %v896, 16
      %v1093 = vrot.slane %v1091, 5
      %v1094 = vsel %vm926, %v1089, %v1093
      %v1096 = vshrl.u32 %v897, 16
      %v1098 = vrot.slane %v1096, 4
      %v1099 = vshll.u32 %v897, 16
      %v1101 = vrot.slane %v1099, 5
      %v1102 = vor.u32 %v1098, %v1101
      %v1103 = vrot.slane %v1102, 4
      %v1105 = vshll.u32 %v898, 16
      %v1107 = vrot.slane %v1105, 5
      %v1108 = vsel %vm926, %v1103, %v1107
      %v1109 = vshrl.u32 %v898, 16
      %v1111 = vrot.slane %v1109, 4
      %v1112 = vor.u32 %v1111, %v1107
      %v1113 = vrot.slane %v1112, 4
      %v1115 = vshll.u32 %v899, 16
      %v1117 = vrot.slane %v1115, 5
      %v1118 = vsel %vm926, %v1113, %v1117
      %v1120 = vshrl.u32 %v900, 16
      %v1122 = vrot.slane %v1120, 4
      %v1123 = vshll.u32 %v900, 16
      %v1125 = vrot.slane %v1123, 5
      %v1126 = vor.u32 %v1122, %v1125
      %v1127 = vrot.slane %v1126, 4
      %v1129 = vshll.u32 %v901, 16
      %v1131 = vrot.slane %v1129, 5
      %v1132 = vsel %vm926, %v1127, %v1131
      %v1133 = vshrl.u32 %v901, 16
      %v1135 = vrot.slane %v1133, 4
      %v1136 = vor.u32 %v1135, %v1131
      %v1137 = vrot.slane %v1136, 4
      %v1139 = vshll.u32 %v902, 16
      %v1141 = vrot.slane %v1139, 5
      %v1142 = vsel %vm926, %v1137, %v1141
      %v1144 = vshrl.u32 %v903, 16
      %v1146 = vrot.slane %v1144, 4
      %v1147 = vshll.u32 %v903, 16
      %v1149 = vrot.slane %v1147, 5
      %v1150 = vor.u32 %v1146, %v1149
      %v1151 = vrot.slane %v1150, 4
      %v1153 = vshll.u32 %v904, 16
      %v1155 = vrot.slane %v1153, 5
      %v1156 = vsel %vm926, %v1151, %v1155
      %v1157 = vshrl.u32 %v904, 16
      %v1159 = vrot.slane %v1157, 4
      %v1160 = vor.u32 %v1159, %v1155
      %v1161 = vrot.slane %v1160, 4
      %v1163 = vshll.u32 %v905, 16
      %v1165 = vrot.slane %v1163, 5
      %v1166 = vsel %vm926, %v1161, %v1165
      %v1168 = vshrl.u32 %v906, 16
      %v1170 = vrot.slane %v1168, 4
      %v1171 = vshll.u32 %v906, 16
      %v1173 = vrot.slane %v1171, 5
      %v1174 = vor.u32 %v1170, %v1173
      %v1175 = vrot.slane %v1174, 4
      %v1177 = vshll.u32 %v907, 16
      %v1179 = vrot.slane %v1177, 5
      %v1180 = vsel %vm926, %v1175, %v1179
      %v1181 = vshrl.u32 %v907, 16
      %v1183 = vrot.slane %v1181, 4
      %v1184 = vor.u32 %v1183, %v1179
      %v1185 = vrot.slane %v1184, 4
      %v1187 = vshll.u32 %v908, 16
      %v1189 = vrot.slane %v1187, 5
      %v1190 = vsel %vm926, %v1185, %v1189
      %v1192 = vshrl.u32 %v909, 16
      %v1194 = vrot.slane %v1192, 4
      %v1195 = vshll.u32 %v909, 16
      %v1197 = vrot.slane %v1195, 5
      %v1198 = vor.u32 %v1194, %v1197
      %v1199 = vrot.slane %v1198, 4
      %v1201 = vshll.u32 %v910, 16
      %v1203 = vrot.slane %v1201, 5
      %v1204 = vsel %vm926, %v1199, %v1203
      %v1205 = vshrl.u32 %v910, 16
      %v1207 = vrot.slane %v1205, 4
      %v1208 = vor.u32 %v1207, %v1203
      %v1209 = vrot.slane %v1208, 4
      %v1211 = vshll.u32 %v911, 16
      %v1213 = vrot.slane %v1211, 5
      %v1214 = vsel %vm926, %v1209, %v1213
      %v1216 = vshrl.u32 %v912, 16
      %v1218 = vrot.slane %v1216, 4
      %v1219 = vshll.u32 %v912, 16
      %v1221 = vrot.slane %v1219, 5
      %v1222 = vor.u32 %v1218, %v1221
      %v1223 = vrot.slane %v1222, 4
      %v1225 = vshll.u32 %v913, 16
      %v1227 = vrot.slane %v1225, 5
      %v1228 = vsel %vm926, %v1223, %v1227
      %v1229 = vshrl.u32 %v913, 16
      %v1231 = vrot.slane %v1229, 4
      %v1232 = vor.u32 %v1231, %v1227
      %v1233 = vrot.slane %v1232, 4
      %v1235 = vshll.u32 %v914, 16
      %v1237 = vrot.slane %v1235, 5
      %v1238 = vsel %vm926, %v1233, %v1237
      %v1240 = vshrl.u32 %v915, 16
      %v1242 = vrot.slane %v1240, 4
      %v1243 = vshll.u32 %v915, 16
      %v1245 = vrot.slane %v1243, 5
      %v1246 = vor.u32 %v1242, %v1245
      %v1247 = vrot.slane %v1246, 4
      %v1249 = vshll.u32 %v916, 16
      %v1251 = vrot.slane %v1249, 5
      %v1252 = vsel %vm926, %v1247, %v1251
      %v1253 = vshrl.u32 %v916, 16
      %v1255 = vrot.slane %v1253, 4
      %v1256 = vor.u32 %v1255, %v1251
      %v1257 = vrot.slane %v1256, 4
      %v1259 = vshll.u32 %v917, 16
      %v1261 = vrot.slane %v1259, 5
      %v1262 = vsel %vm926, %v1257, %v1261
      %v1264 = vshrl.u32 %v918, 16
      %v1266 = vrot.slane %v1264, 4
      %v1267 = vshll.u32 %v918, 16
      %v1269 = vrot.slane %v1267, 5
      %v1270 = vor.u32 %v1266, %v1269
      %v1271 = vrot.slane %v1270, 4
      %v1273 = vshll.u32 %v919, 16
      %v1275 = vrot.slane %v1273, 5
      %v1276 = vsel %vm926, %v1271, %v1275
      %v1277 = vshrl.u32 %v919, 16
      %v1279 = vrot.slane %v1277, 4
      %v1280 = vor.u32 %v1279, %v1275
      %v1281 = vrot.slane %v1280, 4
      %v1283 = vshll.u32 %v920, 16
      %v1285 = vrot.slane %v1283, 5
      %v1286 = vsel %vm926, %v1281, %v1285
      %v1288 = vshrl.u32 %v921, 16
      %v1290 = vrot.slane %v1288, 4
      %v1291 = vshll.u32 %v921, 16
      %v1293 = vrot.slane %v1291, 5
      %v1294 = vor.u32 %v1290, %v1293
      %v1295 = vrot.slane %v1294, 4
      %v1297 = vshll.u32 %v922, 16
      %v1299 = vrot.slane %v1297, 5
      %v1300 = vsel %vm926, %v1295, %v1299
      %v1301 = vshrl.u32 %v922, 16
      %v1303 = vrot.slane %v1301, 4
      %v1304 = vor.u32 %v1303, %v1299
      %v1305 = vrot.slane %v1304, 4
      %v1307 = vshll.u32 %v923, 16
      %v1309 = vrot.slane %v1307, 5
      %v1310 = vsel %vm926, %v1305, %v1309
      %s1311 = scalar_lea.vmem %s4, 8
      %v1312 = vld [vmem:[%s1311] sm:$0xf]
      %v1313 = vld [vmem:[%s1311 + $0x4] sm:$0xf]
      %v1314 = vunpack.c.l.b16 %v940
      %v1315 = vunpack.c.l.b16 %v950
      %v1316 = vunpack.c.l.b16 %v964
      %v1317 = vunpack.c.l.b16 %v974
      %v1318 = vunpack.c.l.b16 %v988
      %v1319 = vunpack.c.l.b16 %v998
      %v1320 = vunpack.c.l.b16 %v1012
      %v1321 = vunpack.c.l.b16 %v1022
      %v1322 = vunpack.c.l.b16 %v1036
      %v1323 = vunpack.c.l.b16 %v1046
      %v1324 = vunpack.c.l.b16 %v1060
      %v1325 = vunpack.c.l.b16 %v1070
      %v1326 = vunpack.c.l.b16 %v1084
      %v1327 = vunpack.c.l.b16 %v1094
      %v1328 = vunpack.c.l.b16 %v1108
      %v1329 = vunpack.c.l.b16 %v1118
      %v1330 = vunpack.c.l.b16 %v1132
      %v1331 = vunpack.c.l.b16 %v1142
      %v1332 = vunpack.c.l.b16 %v1156
      %v1333 = vunpack.c.l.b16 %v1166
      %v1334 = vunpack.c.l.b16 %v1180
      %v1335 = vunpack.c.l.b16 %v1190
      %v1336 = vunpack.c.l.b16 %v1204
      %v1337 = vunpack.c.l.b16 %v1214
      %v1338 = vunpack.c.l.b16 %v1228
      %v1339 = vunpack.c.l.b16 %v1238
      %v1340 = vunpack.c.l.b16 %v1252
      %v1341 = vunpack.c.l.b16 %v1262
      %v1342 = vunpack.c.l.b16 %v1276
      %v1343 = vunpack.c.l.b16 %v1286
      %v1344 = vunpack.c.l.b16 %v1300
      %v1345 = vunpack.c.l.b16 %v1310
      %v1346 = vpack.c.b16 %v1315, %v1314
      %v1347 = vpack.c.b16 %v1317, %v1316
      %v1348 = vpack.c.b16 %v1319, %v1318
      %v1349 = vpack.c.b16 %v1321, %v1320
      %v1350 = vpack.c.b16 %v1323, %v1322
      %v1351 = vpack.c.b16 %v1325, %v1324
      %v1352 = vpack.c.b16 %v1327, %v1326
      %v1353 = vpack.c.b16 %v1329, %v1328
      %v1354 = vpack.c.b16 %v1331, %v1330
      %v1355 = vpack.c.b16 %v1333, %v1332
      %v1356 = vpack.c.b16 %v1335, %v1334
      %v1357 = vpack.c.b16 %v1337, %v1336
      %v1358 = vpack.c.b16 %v1339, %v1338
      %v1359 = vpack.c.b16 %v1341, %v1340
      %v1360 = vpack.c.b16 %v1343, %v1342
      %v1361 = vpack.c.b16 %v1345, %v1344
      %v1364 = vunpack.c.l.b16 %v1312
      %v1365 = vunpack.c.l.b16 %v1313
      %v1366 = vpack.c.b16 %v1365, %v1364
      %vm1368 = vcmask 130048
      %v1370 = vsel %vm1368, %v1346, 0
      %v1373 = vsel %vm1368, %v1347, 0
      %v1376 = vsel %vm1368, %v1348, 0
      %v1379 = vsel %vm1368, %v1349, 0
      %v1382 = vsel %vm1368, %v1350, 0
      %v1385 = vsel %vm1368, %v1351, 0
      %v1388 = vsel %vm1368, %v1352, 0
      %v1391 = vsel %vm1368, %v1353, 0
      %v1394 = vsel %vm1368, %v1354, 0
      %v1397 = vsel %vm1368, %v1355, 0
      %v1400 = vsel %vm1368, %v1356, 0
      %v1403 = vsel %vm1368, %v1357, 0
      %v1406 = vsel %vm1368, %v1358, 0
      %v1409 = vsel %vm1368, %v1359, 0
      %v1412 = vsel %vm1368, %v1360, 0
      %v1415 = vsel %vm1368, %v1361, 0
      %1417 = vmatpush.bf16.msra.mxu0 0
      %1418 = vmatpush.bf16.msra.mxu0 0
      %1419 = vmatpush.bf16.msra.mxu0 0
      %1420 = vmatpush.bf16.msra.mxu0 0
      %1421 = vmatpush.bf16.msra.mxu0 0
      %1422 = vmatpush.bf16.msra.mxu0 0
      %1423 = vmatpush.bf16.msra.mxu0 0
      %1424 = vmatpush.bf16.msra.mxu0 %v1366
      %1425 = vmatmul.bf16.gmra.mxu0 %v1370
      %v1426 = vpop.f32.mrf.mxu0
      %v1427 = vadd.f32 0.0, %v1426
      %v1428 = vpop.f32.mrf.mxu0
      %v1429 = vadd.f32 0.0, %v1428
      %1430 = vmatmul.bf16.gmra.mxu0 %v1373
      %v1431 = vpop.f32.mrf.mxu0
      %v1432 = vadd.f32 0.0, %v1431
      %v1433 = vpop.f32.mrf.mxu0
      %v1434 = vadd.f32 0.0, %v1433
      %1435 = vmatmul.bf16.gmra.mxu0 %v1376
      %v1436 = vpop.f32.mrf.mxu0
      %v1437 = vadd.f32 0.0, %v1436
      %v1438 = vpop.f32.mrf.mxu0
      %v1439 = vadd.f32 0.0, %v1438
      %1440 = vmatmul.bf16.gmra.mxu0 %v1379
      %v1441 = vpop.f32.mrf.mxu0
      %v1442 = vadd.f32 0.0, %v1441
      %v1443 = vpop.f32.mrf.mxu0
      %v1444 = vadd.f32 0.0, %v1443
      %1445 = vmatmul.bf16.gmra.mxu0 %v1382
      %v1446 = vpop.f32.mrf.mxu0
      %v1447 = vadd.f32 0.0, %v1446
      %v1448 = vpop.f32.mrf.mxu0
      %v1449 = vadd.f32 0.0, %v1448
      %1450 = vmatmul.bf16.gmra.mxu0 %v1385
      %v1451 = vpop.f32.mrf.mxu0
      %v1452 = vadd.f32 0.0, %v1451
      %v1453 = vpop.f32.mrf.mxu0
      %v1454 = vadd.f32 0.0, %v1453
      %1455 = vmatmul.bf16.gmra.mxu0 %v1388
      %v1456 = vpop.f32.mrf.mxu0
      %v1457 = vadd.f32 0.0, %v1456
      %v1458 = vpop.f32.mrf.mxu0
      %v1459 = vadd.f32 0.0, %v1458
      %1460 = vmatmul.bf16.gmra.mxu0 %v1391
      %v1461 = vpop.f32.mrf.mxu0
      %v1462 = vadd.f32 0.0, %v1461
      %v1463 = vpop.f32.mrf.mxu0
      %v1464 = vadd.f32 0.0, %v1463
      %1465 = vmatmul.bf16.gmra.mxu0 %v1394
      %v1466 = vpop.f32.mrf.mxu0
      %v1467 = vadd.f32 0.0, %v1466
      %v1468 = vpop.f32.mrf.mxu0
      %v1469 = vadd.f32 0.0, %v1468
      %1470 = vmatmul.bf16.gmra.mxu0 %v1397
      %v1471 = vpop.f32.mrf.mxu0
      %v1472 = vadd.f32 0.0, %v1471
      %v1473 = vpop.f32.mrf.mxu0
      %v1474 = vadd.f32 0.0, %v1473
      %1475 = vmatmul.bf16.gmra.mxu0 %v1400
      %v1476 = vpop.f32.mrf.mxu0
      %v1477 = vadd.f32 0.0, %v1476
      %v1478 = vpop.f32.mrf.mxu0
      %v1479 = vadd.f32 0.0, %v1478
      %1480 = vmatmul.bf16.gmra.mxu0 %v1403
      %v1481 = vpop.f32.mrf.mxu0
      %v1482 = vadd.f32 0.0, %v1481
      %v1483 = vpop.f32.mrf.mxu0
      %v1484 = vadd.f32 0.0, %v1483
      %1485 = vmatmul.bf16.gmra.mxu0 %v1406
      %v1486 = vpop.f32.mrf.mxu0
      %v1487 = vadd.f32 0.0, %v1486
      %v1488 = vpop.f32.mrf.mxu0
      %v1489 = vadd.f32 0.0, %v1488
      %1490 = vmatmul.bf16.gmra.mxu0 %v1409
      %v1491 = vpop.f32.mrf.mxu0
      %v1492 = vadd.f32 0.0, %v1491
      %v1493 = vpop.f32.mrf.mxu0
      %v1494 = vadd.f32 0.0, %v1493
      %1495 = vmatmul.bf16.gmra.mxu0 %v1412
      %v1496 = vpop.f32.mrf.mxu0
      %v1497 = vadd.f32 0.0, %v1496
      %v1498 = vpop.f32.mrf.mxu0
      %v1499 = vadd.f32 0.0, %v1498
      %1500 = vmatmul.bf16.gmra.mxu0 %v1415
      %v1501 = vpop.f32.mrf.mxu0
      %v1502 = vadd.f32 0.0, %v1501
      %v1503 = vpop.f32.mrf.mxu0
      %v1504 = vadd.f32 0.0, %v1503
      %1505 = vdwg.mxu0
      %v1538 = vunpack.c.l.b16 %v553
      %v1539 = vunpack.c.l.b16 %v554
      %v1540 = vunpack.c.l.b16 %v555
      %v1541 = vunpack.c.l.b16 %v556
      %v1542 = vunpack.c.l.b16 %v557
      %v1543 = vunpack.c.l.b16 %v558
      %v1544 = vunpack.c.l.b16 %v559
      %v1545 = vunpack.c.l.b16 %v560
      %v1546 = vunpack.c.l.b16 %v561
      %v1547 = vunpack.c.l.b16 %v562
      %v1548 = vunpack.c.l.b16 %v563
      %v1549 = vunpack.c.l.b16 %v564
      %v1550 = vunpack.c.l.b16 %v565
      %v1551 = vunpack.c.l.b16 %v566
      %v1552 = vunpack.c.l.b16 %v567
      %v1553 = vunpack.c.l.b16 %v568
      %v1554 = vunpack.c.l.b16 %v569
      %v1555 = vunpack.c.l.b16 %v570
      %v1556 = vunpack.c.l.b16 %v571
      %v1557 = vunpack.c.l.b16 %v572
      %v1558 = vunpack.c.l.b16 %v573
      %v1559 = vunpack.c.l.b16 %v574
      %v1560 = vunpack.c.l.b16 %v575
      %v1561 = vunpack.c.l.b16 %v576
      %v1562 = vunpack.c.l.b16 %v577
      %v1563 = vunpack.c.l.b16 %v578
      %v1564 = vunpack.c.l.b16 %v579
      %v1565 = vunpack.c.l.b16 %v580
      %v1566 = vunpack.c.l.b16 %v581
      %v1567 = vunpack.c.l.b16 %v582
      %v1568 = vunpack.c.l.b16 %v583
      %v1569 = vunpack.c.l.b16 %v584
      %v1570 = vpack.c.b16 %v1539, %v1538
      %v1571 = vpack.c.b16 %v1541, %v1540
      %v1572 = vpack.c.b16 %v1543, %v1542
      %v1573 = vpack.c.b16 %v1545, %v1544
      %v1574 = vpack.c.b16 %v1547, %v1546
      %v1575 = vpack.c.b16 %v1549, %v1548
      %v1576 = vpack.c.b16 %v1551, %v1550
      %v1577 = vpack.c.b16 %v1553, %v1552
      %v1578 = vpack.c.b16 %v1555, %v1554
      %v1579 = vpack.c.b16 %v1557, %v1556
      %v1580 = vpack.c.b16 %v1559, %v1558
      %v1581 = vpack.c.b16 %v1561, %v1560
      %v1582 = vpack.c.b16 %v1563, %v1562
      %v1583 = vpack.c.b16 %v1565, %v1564
      %v1584 = vpack.c.b16 %v1567, %v1566
      %v1585 = vpack.c.b16 %v1569, %v1568
      %v1588 = vunpack.c.l.b16 %v585
      %v1589 = vunpack.c.l.b16 %v586
      %v1590 = vpack.c.b16 %v1589, %v1588
      %v1593 = vsel %vm1368, %v1570, 0
      %v1596 = vsel %vm1368, %v1571, 0
      %v1599 = vsel %vm1368, %v1572, 0
      %v1602 = vsel %vm1368, %v1573, 0
      %v1605 = vsel %vm1368, %v1574, 0
      %v1608 = vsel %vm1368, %v1575, 0
      %v1611 = vsel %vm1368, %v1576, 0
      %v1614 = vsel %vm1368, %v1577, 0
      %v1617 = vsel %vm1368, %v1578, 0
      %v1620 = vsel %vm1368, %v1579, 0
      %v1623 = vsel %vm1368, %v1580, 0
      %v1626 = vsel %vm1368, %v1581, 0
      %v1629 = vsel %vm1368, %v1582, 0
      %v1632 = vsel %vm1368, %v1583, 0
      %v1635 = vsel %vm1368, %v1584, 0
      %v1638 = vsel %vm1368, %v1585, 0
      %1640 = vmatpush.bf16.msra.mxu0 0
      %1641 = vmatpush.bf16.msra.mxu0 0
      %1642 = vmatpush.bf16.msra.mxu0 0
      %1643 = vmatpush.bf16.msra.mxu0 0
      %1644 = vmatpush.bf16.msra.mxu0 0
      %1645 = vmatpush.bf16.msra.mxu0 0
      %1646 = vmatpush.bf16.msra.mxu0 0
      %1647 = vmatpush.bf16.msra.mxu0 %v1590
      %1648 = vmatmul.bf16.gmra.mxu0 %v1593
      %v1649 = vpop.f32.mrf.mxu0
      %v1650 = vadd.f32 %v1427, %v1649
      %v1651 = vpop.f32.mrf.mxu0
      %v1652 = vadd.f32 %v1429, %v1651
      %1653 = vmatmul.bf16.gmra.mxu0 %v1596
      %v1654 = vpop.f32.mrf.mxu0
      %v1655 = vadd.f32 %v1432, %v1654
      %v1656 = vpop.f32.mrf.mxu0
      %v1657 = vadd.f32 %v1434, %v1656
      %1658 = vmatmul.bf16.gmra.mxu0 %v1599
      %v1659 = vpop.f32.mrf.mxu0
      %v1660 = vadd.f32 %v1437, %v1659
      %v1661 = vpop.f32.mrf.mxu0
      %v1662 = vadd.f32 %v1439, %v1661
      %1663 = vmatmul.bf16.gmra.mxu0 %v1602
      %v1664 = vpop.f32.mrf.mxu0
      %v1665 = vadd.f32 %v1442, %v1664
      %v1666 = vpop.f32.mrf.mxu0
      %v1667 = vadd.f32 %v1444, %v1666
      %1668 = vmatmul.bf16.gmra.mxu0 %v1605
      %v1669 = vpop.f32.mrf.mxu0
      %v1670 = vadd.f32 %v1447, %v1669
      %v1671 = vpop.f32.mrf.mxu0
      %v1672 = vadd.f32 %v1449, %v1671
      %1673 = vmatmul.bf16.gmra.mxu0 %v1608
      %v1674 = vpop.f32.mrf.mxu0
      %v1675 = vadd.f32 %v1452, %v1674
      %v1676 = vpop.f32.mrf.mxu0
      %v1677 = vadd.f32 %v1454, %v1676
      %1678 = vmatmul.bf16.gmra.mxu0 %v1611
      %v1679 = vpop.f32.mrf.mxu0
      %v1680 = vadd.f32 %v1457, %v1679
      %v1681 = vpop.f32.mrf.mxu0
      %v1682 = vadd.f32 %v1459, %v1681
      %1683 = vmatmul.bf16.gmra.mxu0 %v1614
      %v1684 = vpop.f32.mrf.mxu0
      %v1685 = vadd.f32 %v1462, %v1684
      %v1686 = vpop.f32.mrf.mxu0
      %v1687 = vadd.f32 %v1464, %v1686
      %1688 = vmatmul.bf16.gmra.mxu0 %v1617
      %v1689 = vpop.f32.mrf.mxu0
      %v1690 = vadd.f32 %v1467, %v1689
      %v1691 = vpop.f32.mrf.mxu0
      %v1692 = vadd.f32 %v1469, %v1691
      %1693 = vmatmul.bf16.gmra.mxu0 %v1620
      %v1694 = vpop.f32.mrf.mxu0
      %v1695 = vadd.f32 %v1472, %v1694
      %v1696 = vpop.f32.mrf.mxu0
      %v1697 = vadd.f32 %v1474, %v1696
      %1698 = vmatmul.bf16.gmra.mxu0 %v1623
      %v1699 = vpop.f32.mrf.mxu0
      %v1700 = vadd.f32 %v1477, %v1699
      %v1701 = vpop.f32.mrf.mxu0
      %v1702 = vadd.f32 %v1479, %v1701
      %1703 = vmatmul.bf16.gmra.mxu0 %v1626
      %v1704 = vpop.f32.mrf.mxu0
      %v1705 = vadd.f32 %v1482, %v1704
      %v1706 = vpop.f32.mrf.mxu0
      %v1707 = vadd.f32 %v1484, %v1706
      %1708 = vmatmul.bf16.gmra.mxu0 %v1629
      %v1709 = vpop.f32.mrf.mxu0
      %v1710 = vadd.f32 %v1487, %v1709
      %v1711 = vpop.f32.mrf.mxu0
      %v1712 = vadd.f32 %v1489, %v1711
      %1713 = vmatmul.bf16.gmra.mxu0 %v1632
      %v1714 = vpop.f32.mrf.mxu0
      %v1715 = vadd.f32 %v1492, %v1714
      %v1716 = vpop.f32.mrf.mxu0
      %v1717 = vadd.f32 %v1494, %v1716
      %1718 = vmatmul.bf16.gmra.mxu0 %v1635
      %v1719 = vpop.f32.mrf.mxu0
      %v1720 = vadd.f32 %v1497, %v1719
      %v1721 = vpop.f32.mrf.mxu0
      %v1722 = vadd.f32 %v1499, %v1721
      %1723 = vmatmul.bf16.gmra.mxu0 %v1638
      %v1724 = vpop.f32.mrf.mxu0
      %v1725 = vadd.f32 %v1502, %v1724
      %v1726 = vpop.f32.mrf.mxu0
      %v1727 = vadd.f32 %v1504, %v1726
      %1728 = vdwg.mxu0
      %v1729 = vld [vmem:[%s296] sm:$0xe]
      %v1730 = vld [vmem:[%s296 + $0xc] sm:$0xe]
      %v1731 = vld [vmem:[%s296 + $0x18] sm:$0xe]
      %v1732 = vld [vmem:[%s296 + $0x24] sm:$0xe]
      %v1733 = vld [vmem:[%s296 + $0x30] sm:$0xe]
      %v1734 = vld [vmem:[%s296 + $0x3c] sm:$0xe]
      %v1735 = vld [vmem:[%s296 + $0x48] sm:$0xe]
      %v1736 = vld [vmem:[%s296 + $0x54] sm:$0xe]
      %v1737 = vld [vmem:[%s296 + $0x60] sm:$0xe]
      %v1738 = vld [vmem:[%s296 + $0x6c] sm:$0xe]
      %v1739 = vld [vmem:[%s296 + $0x78] sm:$0xe]
      %v1740 = vld [vmem:[%s296 + $0x84] sm:$0xe]
      %v1741 = vld [vmem:[%s296 + $0x90] sm:$0xe]
      %v1742 = vld [vmem:[%s296 + $0x9c] sm:$0xe]
      %v1743 = vld [vmem:[%s296 + $0xa8] sm:$0xe]
      %v1744 = vld [vmem:[%s296 + $0xb4] sm:$0xe]
      %v1745 = vunpack.c.l.bf16 %v1729
      %v1746 = vunpack.c.l.bf16 %v1730
      %v1747 = vunpack.c.l.bf16 %v1731
      %v1748 = vunpack.c.l.bf16 %v1732
      %v1749 = vunpack.c.l.bf16 %v1733
      %v1750 = vunpack.c.l.bf16 %v1734
      %v1751 = vunpack.c.l.bf16 %v1735
      %v1752 = vunpack.c.l.bf16 %v1736
      %v1753 = vunpack.c.l.bf16 %v1737
      %v1754 = vunpack.c.l.bf16 %v1738
      %v1755 = vunpack.c.l.bf16 %v1739
      %v1756 = vunpack.c.l.bf16 %v1740
      %v1757 = vunpack.c.l.bf16 %v1741
      %v1758 = vunpack.c.l.bf16 %v1742
      %v1759 = vunpack.c.l.bf16 %v1743
      %v1760 = vunpack.c.l.bf16 %v1744
      %v1761 = vmul.f32 %v1745, %v388
      %v1762 = vmul.f32 %v1746, %v388
      %v1763 = vmul.f32 %v1747, %v388
      %v1764 = vmul.f32 %v1748, %v388
      %v1765 = vmul.f32 %v1749, %v388
      %v1766 = vmul.f32 %v1750, %v388
      %v1767 = vmul.f32 %v1751, %v388
      %v1768 = vmul.f32 %v1752, %v388
      %v1769 = vmul.f32 %v1753, %v388
      %v1770 = vmul.f32 %v1754, %v388
      %v1771 = vmul.f32 %v1755, %v388
      %v1772 = vmul.f32 %v1756, %v388
      %v1773 = vmul.f32 %v1757, %v388
      %v1774 = vmul.f32 %v1758, %v388
      %v1775 = vmul.f32 %v1759, %v388
      %v1776 = vmul.f32 %v1760, %v388
      %v1777 = vadd.f32 %v1761, %v423
      %v1778 = vadd.f32 %v1762, %v423
      %v1779 = vadd.f32 %v1763, %v423
      %v1780 = vadd.f32 %v1764, %v423
      %v1781 = vadd.f32 %v1765, %v423
      %v1782 = vadd.f32 %v1766, %v423
      %v1783 = vadd.f32 %v1767, %v423
      %v1784 = vadd.f32 %v1768, %v423
      %v1785 = vadd.f32 %v1769, %v423
      %v1786 = vadd.f32 %v1770, %v423
      %v1787 = vadd.f32 %v1771, %v423
      %v1788 = vadd.f32 %v1772, %v423
      %v1789 = vadd.f32 %v1773, %v423
      %v1790 = vadd.f32 %v1774, %v423
      %v1791 = vadd.f32 %v1775, %v423
      %v1792 = vadd.f32 %v1776, %v423
      %v1793 = vmax.f32 %v1777, 0.0
      %v1794 = vmax.f32 %v1778, 0.0
      %v1795 = vmax.f32 %v1779, 0.0
      %v1796 = vmax.f32 %v1780, 0.0
      %v1797 = vmax.f32 %v1781, 0.0
      %v1798 = vmax.f32 %v1782, 0.0
      %v1799 = vmax.f32 %v1783, 0.0
      %v1800 = vmax.f32 %v1784, 0.0
      %v1801 = vmax.f32 %v1785, 0.0
      %v1802 = vmax.f32 %v1786, 0.0
      %v1803 = vmax.f32 %v1787, 0.0
      %v1804 = vmax.f32 %v1788, 0.0
      %v1805 = vmax.f32 %v1789, 0.0
      %v1806 = vmax.f32 %v1790, 0.0
      %v1807 = vmax.f32 %v1791, 0.0
      %v1808 = vmax.f32 %v1792, 0.0
      %v1809 = vld [vmem:[%s302 + $0x2] sm:$0xff]
      %v1810 = vld [vmem:[%s302 + $0xa] sm:$0xff]
      %v1811 = vld [vmem:[%s302 + $0x1a] sm:$0xff]
      %v1812 = vld [vmem:[%s302 + $0x22] sm:$0xff]
      %v1813 = vld [vmem:[%s302 + $0x32] sm:$0xff]
      %v1814 = vld [vmem:[%s302 + $0x3a] sm:$0xff]
      %v1815 = vld [vmem:[%s302 + $0x4a] sm:$0xff]
      %v1816 = vld [vmem:[%s302 + $0x52] sm:$0xff]
      %v1817 = vld [vmem:[%s302 + $0x62] sm:$0xff]
      %v1818 = vld [vmem:[%s302 + $0x6a] sm:$0xff]
      %v1819 = vld [vmem:[%s302 + $0x7a] sm:$0xff]
      %v1820 = vld [vmem:[%s302 + $0x82] sm:$0xff]
      %v1821 = vld [vmem:[%s302 + $0x92] sm:$0xff]
      %v1822 = vld [vmem:[%s302 + $0x9a] sm:$0xff]
      %v1823 = vld [vmem:[%s302 + $0xaa] sm:$0xff]
      %v1824 = vld [vmem:[%s302 + $0xb2] sm:$0xff]
      %v1825 = vld [vmem:[%s302 + $0xc2] sm:$0xff]
      %v1826 = vld [vmem:[%s302 + $0xca] sm:$0xff]
      %v1827 = vld [vmem:[%s302 + $0xda] sm:$0xff]
      %v1828 = vld [vmem:[%s302 + $0xe2] sm:$0xff]
      %v1829 = vld [vmem:[%s302 + $0xf2] sm:$0xff]
      %v1830 = vld [vmem:[%s302 + $0xfa] sm:$0xff]
      %v1831 = vld [vmem:[%s302 + $0x10a] sm:$0xff]
      %v1832 = vld [vmem:[%s302 + $0x112] sm:$0xff]
      %v1833 = vld [vmem:[%s302 + $0x122] sm:$0xff]
      %v1834 = vld [vmem:[%s302 + $0x12a] sm:$0xff]
      %v1835 = vld [vmem:[%s302 + $0x13a] sm:$0xff]
      %v1836 = vld [vmem:[%s302 + $0x142] sm:$0xff]
      %v1837 = vld [vmem:[%s302 + $0x152] sm:$0xff]
      %v1838 = vld [vmem:[%s302 + $0x15a] sm:$0xff]
      %v1839 = vld [vmem:[%s302 + $0x16a] sm:$0xff]
      %v1840 = vld [vmem:[%s302 + $0x172] sm:$0xff]
      %vm1873 = vcmask 1041408
      %v1874 = vrot.slane %v1809, 6
      %v1875 = vrot.slane %v1810, 6
      %v1876 = vsel %vm1873, %v1874, %v1875
      %v1877 = vrot.slane %v1811, 6
      %v1878 = vrot.slane %v1812, 6
      %v1879 = vsel %vm1873, %v1877, %v1878
      %v1880 = vrot.slane %v1813, 6
      %v1881 = vrot.slane %v1814, 6
      %v1882 = vsel %vm1873, %v1880, %v1881
      %v1883 = vrot.slane %v1815, 6
      %v1884 = vrot.slane %v1816, 6
      %v1885 = vsel %vm1873, %v1883, %v1884
      %v1886 = vrot.slane %v1817, 6
      %v1887 = vrot.slane %v1818, 6
      %v1888 = vsel %vm1873, %v1886, %v1887
      %v1889 = vrot.slane %v1819, 6
      %v1890 = vrot.slane %v1820, 6
      %v1891 = vsel %vm1873, %v1889, %v1890
      %v1892 = vrot.slane %v1821, 6
      %v1893 = vrot.slane %v1822, 6
      %v1894 = vsel %vm1873, %v1892, %v1893
      %v1895 = vrot.slane %v1823, 6
      %v1896 = vrot.slane %v1824, 6
      %v1897 = vsel %vm1873, %v1895, %v1896
      %v1898 = vrot.slane %v1825, 6
      %v1899 = vrot.slane %v1826, 6
      %v1900 = vsel %vm1873, %v1898, %v1899
      %v1901 = vrot.slane %v1827, 6
      %v1902 = vrot.slane %v1828, 6
      %v1903 = vsel %vm1873, %v1901, %v1902
      %v1904 = vrot.slane %v1829, 6
      %v1905 = vrot.slane %v1830, 6
      %v1906 = vsel %vm1873, %v1904, %v1905
      %v1907 = vrot.slane %v1831, 6
      %v1908 = vrot.slane %v1832, 6
      %v1909 = vsel %vm1873, %v1907, %v1908
      %v1910 = vrot.slane %v1833, 6
      %v1911 = vrot.slane %v1834, 6
      %v1912 = vsel %vm1873, %v1910, %v1911
      %v1913 = vrot.slane %v1835, 6
      %v1914 = vrot.slane %v1836, 6
      %v1915 = vsel %vm1873, %v1913, %v1914
      %v1916 = vrot.slane %v1837, 6
      %v1917 = vrot.slane %v1838, 6
      %v1918 = vsel %vm1873, %v1916, %v1917
      %v1919 = vrot.slane %v1839, 6
      %v1920 = vrot.slane %v1840, 6
      %v1921 = vsel %vm1873, %v1919, %v1920
      %v1970 = vmul.f32 %v1793, %v1874
      %v1971 = vmul.f32 %v458, %v1876
      %v1972 = vmul.f32 %v651, %v1875
      %v1973 = vmul.f32 %v1794, %v1877
      %v1974 = vmul.f32 %v460, %v1879
      %v1975 = vmul.f32 %v652, %v1878
      %v1976 = vmul.f32 %v1795, %v1880
      %v1977 = vmul.f32 %v462, %v1882
      %v1978 = vmul.f32 %v653, %v1881
      %v1979 = vmul.f32 %v1796, %v1883
      %v1980 = vmul.f32 %v464, %v1885
      %v1981 = vmul.f32 %v654, %v1884
      %v1982 = vmul.f32 %v1797, %v1886
      %v1983 = vmul.f32 %v466, %v1888
      %v1984 = vmul.f32 %v655, %v1887
      %v1985 = vmul.f32 %v1798, %v1889
      %v1986 = vmul.f32 %v468, %v1891
      %v1987 = vmul.f32 %v656, %v1890
      %v1988 = vmul.f32 %v1799, %v1892
      %v1989 = vmul.f32 %v470, %v1894
      %v1990 = vmul.f32 %v657, %v1893
      %v1991 = vmul.f32 %v1800, %v1895
      %v1992 = vmul.f32 %v472, %v1897
      %v1993 = vmul.f32 %v658, %v1896
      %v1994 = vmul.f32 %v1801, %v1898
      %v1995 = vmul.f32 %v474, %v1900
      %v1996 = vmul.f32 %v659, %v1899
      %v1997 = vmul.f32 %v1802, %v1901
      %v1998 = vmul.f32 %v476, %v1903
      %v1999 = vmul.f32 %v660, %v1902
      %v2000 = vmul.f32 %v1803, %v1904
      %v2001 = vmul.f32 %v478, %v1906
      %v2002 = vmul.f32 %v661, %v1905
      %v2003 = vmul.f32 %v1804, %v1907
      %v2004 = vmul.f32 %v480, %v1909
      %v2005 = vmul.f32 %v662, %v1908
      %v2006 = vmul.f32 %v1805, %v1910
      %v2007 = vmul.f32 %v482, %v1912
      %v2008 = vmul.f32 %v663, %v1911
      %v2009 = vmul.f32 %v1806, %v1913
      %v2010 = vmul.f32 %v484, %v1915
      %v2011 = vmul.f32 %v664, %v1914
      %v2012 = vmul.f32 %v1807, %v1916
      %v2013 = vmul.f32 %v486, %v1918
      %v2014 = vmul.f32 %v665, %v1917
      %v2015 = vmul.f32 %v1808, %v1919
      %v2016 = vmul.f32 %v488, %v1921
      %v2017 = vmul.f32 %v666, %v1920
      %v2018 = vpack.c.bf16 %v1970, %v1970
      %v2019 = vpack.c.bf16 %v1971, %v1971
      %v2020 = vpack.c.bf16 %v1972, %v1972
      %v2021 = vpack.c.bf16 %v1973, %v1973
      %v2022 = vpack.c.bf16 %v1974, %v1974
      %v2023 = vpack.c.bf16 %v1975, %v1975
      %v2024 = vpack.c.bf16 %v1976, %v1976
      %v2025 = vpack.c.bf16 %v1977, %v1977
      %v2026 = vpack.c.bf16 %v1978, %v1978
      %v2027 = vpack.c.bf16 %v1979, %v1979
      %v2028 = vpack.c.bf16 %v1980, %v1980
      %v2029 = vpack.c.bf16 %v1981, %v1981
      %v2030 = vpack.c.bf16 %v1982, %v1982
      %v2031 = vpack.c.bf16 %v1983, %v1983
      %v2032 = vpack.c.bf16 %v1984, %v1984
      %v2033 = vpack.c.bf16 %v1985, %v1985
      %v2034 = vpack.c.bf16 %v1986, %v1986
      %v2035 = vpack.c.bf16 %v1987, %v1987
      %v2036 = vpack.c.bf16 %v1988, %v1988
      %v2037 = vpack.c.bf16 %v1989, %v1989
      %v2038 = vpack.c.bf16 %v1990, %v1990
      %v2039 = vpack.c.bf16 %v1991, %v1991
      %v2040 = vpack.c.bf16 %v1992, %v1992
      %v2041 = vpack.c.bf16 %v1993, %v1993
      %v2042 = vpack.c.bf16 %v1994, %v1994
      %v2043 = vpack.c.bf16 %v1995, %v1995
      %v2044 = vpack.c.bf16 %v1996, %v1996
      %v2045 = vpack.c.bf16 %v1997, %v1997
      %v2046 = vpack.c.bf16 %v1998, %v1998
      %v2047 = vpack.c.bf16 %v1999, %v1999
      %v2048 = vpack.c.bf16 %v2000, %v2000
      %v2049 = vpack.c.bf16 %v2001, %v2001
      %v2050 = vpack.c.bf16 %v2002, %v2002
      %v2051 = vpack.c.bf16 %v2003, %v2003
      %v2052 = vpack.c.bf16 %v2004, %v2004
      %v2053 = vpack.c.bf16 %v2005, %v2005
      %v2054 = vpack.c.bf16 %v2006, %v2006
      %v2055 = vpack.c.bf16 %v2007, %v2007
      %v2056 = vpack.c.bf16 %v2008, %v2008
      %v2057 = vpack.c.bf16 %v2009, %v2009
      %v2058 = vpack.c.bf16 %v2010, %v2010
      %v2059 = vpack.c.bf16 %v2011, %v2011
      %v2060 = vpack.c.bf16 %v2012, %v2012
      %v2061 = vpack.c.bf16 %v2013, %v2013
      %v2062 = vpack.c.bf16 %v2014, %v2014
      %v2063 = vpack.c.bf16 %v2015, %v2015
      %v2064 = vpack.c.bf16 %v2016, %v2016
      %v2065 = vpack.c.bf16 %v2017, %v2017
      %vm2114 = vcmask 1042432
      %vm2115 = vcmask 1046532
      %vm2116 = vmor %vm2114, %vm2115
      %v2117 = vrot.slane %v2018, 5
      %v2118 = vrot.slane %v2117, 4
      %v2119 = vrot.slane %v2019, 5
      %v2120 = vsel %vm2116, %v2118, %v2119
      %v2121 = vrot.slane %v2119, 4
      %v2122 = vrot.slane %v2020, 5
      %v2123 = vsel %vm2116, %v2121, %v2122
      %v2124 = vrot.slane %v2021, 5
      %v2125 = vrot.slane %v2124, 4
      %v2126 = vrot.slane %v2022, 5
      %v2127 = vsel %vm2116, %v2125, %v2126
      %v2128 = vrot.slane %v2126, 4
      %v2129 = vrot.slane %v2023, 5
      %v2130 = vsel %vm2116, %v2128, %v2129
      %v2131 = vrot.slane %v2024, 5
      %v2132 = vrot.slane %v2131, 4
      %v2133 = vrot.slane %v2025, 5
      %v2134 = vsel %vm2116, %v2132, %v2133
      %v2135 = vrot.slane %v2133, 4
      %v2136 = vrot.slane %v2026, 5
      %v2137 = vsel %vm2116, %v2135, %v2136
      %v2138 = vrot.slane %v2027, 5
      %v2139 = vrot.slane %v2138, 4
      %v2140 = vrot.slane %v2028, 5
      %v2141 = vsel %vm2116, %v2139, %v2140
      %v2142 = vrot.slane %v2140, 4
      %v2143 = vrot.slane %v2029, 5
      %v2144 = vsel %vm2116, %v2142, %v2143
      %v2145 = vrot.slane %v2030, 5
      %v2146 = vrot.slane %v2145, 4
      %v2147 = vrot.slane %v2031, 5
      %v2148 = vsel %vm2116, %v2146, %v2147
      %v2149 = vrot.slane %v2147, 4
      %v2150 = vrot.slane %v2032, 5
      %v2151 = vsel %vm2116, %v2149, %v2150
      %v2152 = vrot.slane %v2033, 5
      %v2153 = vrot.slane %v2152, 4
      %v2154 = vrot.slane %v2034, 5
      %v2155 = vsel %vm2116, %v2153, %v2154
      %v2156 = vrot.slane %v2154, 4
      %v2157 = vrot.slane %v2035, 5
      %v2158 = vsel %vm2116, %v2156, %v2157
      %v2159 = vrot.slane %v2036, 5
      %v2160 = vrot.slane %v2159, 4
      %v2161 = vrot.slane %v2037, 5
      %v2162 = vsel %vm2116, %v2160, %v2161
      %v2163 = vrot.slane %v2161, 4
      %v2164 = vrot.slane %v2038, 5
      %v2165 = vsel %vm2116, %v2163, %v2164
      %v2166 = vrot.slane %v2039, 5
      %v2167 = vrot.slane %v2166, 4
      %v2168 = vrot.slane %v2040, 5
      %v2169 = vsel %vm2116, %v2167, %v2168
      %v2170 = vrot.slane %v2168, 4
      %v2171 = vrot.slane %v2041, 5
      %v2172 = vsel %vm2116, %v2170, %v2171
      %v2173 = vrot.slane %v2042, 5
      %v2174 = vrot.slane %v2173, 4
      %v2175 = vrot.slane %v2043, 5
      %v2176 = vsel %vm2116, %v2174, %v2175
      %v2177 = vrot.slane %v2175, 4
      %v2178 = vrot.slane %v2044, 5
      %v2179 = vsel %vm2116, %v2177, %v2178
      %v2180 = vrot.slane %v2045, 5
      %v2181 = vrot.slane %v2180, 4
      %v2182 = vrot.slane %v2046, 5
      %v2183 = vsel %vm2116, %v2181, %v2182
      %v2184 = vrot.slane %v2182, 4
      %v2185 = vrot.slane %v2047, 5
      %v2186 = vsel %vm2116, %v2184, %v2185
      %v2187 = vrot.slane %v2048, 5
      %v2188 = vrot.slane %v2187, 4
      %v2189 = vrot.slane %v2049, 5
      %v2190 = vsel %vm2116, %v2188, %v2189
      %v2191 = vrot.slane %v2189, 4
      %v2192 = vrot.slane %v2050, 5
      %v2193 = vsel %vm2116, %v2191, %v2192
      %v2194 = vrot.slane %v2051, 5
      %v2195 = vrot.slane %v2194, 4
      %v2196 = vrot.slane %v2052, 5
      %v2197 = vsel %vm2116, %v2195, %v2196
      %v2198 = vrot.slane %v2196, 4
      %v2199 = vrot.slane %v2053, 5
      %v2200 = vsel %vm2116, %v2198, %v2199
      %v2201 = vrot.slane %v2054, 5
      %v2202 = vrot.slane %v2201, 4
      %v2203 = vrot.slane %v2055, 5
      %v2204 = vsel %vm2116, %v2202, %v2203
      %v2205 = vrot.slane %v2203, 4
      %v2206 = vrot.slane %v2056, 5
      %v2207 = vsel %vm2116, %v2205, %v2206
      %v2208 = vrot.slane %v2057, 5
      %v2209 = vrot.slane %v2208, 4
      %v2210 = vrot.slane %v2058, 5
      %v2211 = vsel %vm2116, %v2209, %v2210
      %v2212 = vrot.slane %v2210, 4
      %v2213 = vrot.slane %v2059, 5
      %v2214 = vsel %vm2116, %v2212, %v2213
      %v2215 = vrot.slane %v2060, 5
      %v2216 = vrot.slane %v2215, 4
      %v2217 = vrot.slane %v2061, 5
      %v2218 = vsel %vm2116, %v2216, %v2217
      %v2219 = vrot.slane %v2217, 4
      %v2220 = vrot.slane %v2062, 5
      %v2221 = vsel %vm2116, %v2219, %v2220
      %v2222 = vrot.slane %v2063, 5
      %v2223 = vrot.slane %v2222, 4
      %v2224 = vrot.slane %v2064, 5
      %v2225 = vsel %vm2116, %v2223, %v2224
      %v2226 = vrot.slane %v2224, 4
      %v2227 = vrot.slane %v2065, 5
      %v2228 = vsel %vm2116, %v2226, %v2227
      %s2229 = scalar_lea.vmem %s4, 16
      %v2230 = vld [vmem:[%s2229] sm:$0xf]
      %v2231 = vld [vmem:[%s2229 + $0x4] sm:$0xf]
      %v2232 = vunpack.c.l.b16 %v2120
      %v2233 = vunpack.c.l.b16 %v2123
      %v2234 = vunpack.c.l.b16 %v2127
      %v2235 = vunpack.c.l.b16 %v2130
      %v2236 = vunpack.c.l.b16 %v2134
      %v2237 = vunpack.c.l.b16 %v2137
      %v2238 = vunpack.c.l.b16 %v2141
      %v2239 = vunpack.c.l.b16 %v2144
      %v2240 = vunpack.c.l.b16 %v2148
      %v2241 = vunpack.c.l.b16 %v2151
      %v2242 = vunpack.c.l.b16 %v2155
      %v2243 = vunpack.c.l.b16 %v2158
      %v2244 = vunpack.c.l.b16 %v2162
      %v2245 = vunpack.c.l.b16 %v2165
      %v2246 = vunpack.c.l.b16 %v2169
      %v2247 = vunpack.c.l.b16 %v2172
      %v2248 = vunpack.c.l.b16 %v2176
      %v2249 = vunpack.c.l.b16 %v2179
      %v2250 = vunpack.c.l.b16 %v2183
      %v2251 = vunpack.c.l.b16 %v2186
      %v2252 = vunpack.c.l.b16 %v2190
      %v2253 = vunpack.c.l.b16 %v2193
      %v2254 = vunpack.c.l.b16 %v2197
      %v2255 = vunpack.c.l.b16 %v2200
      %v2256 = vunpack.c.l.b16 %v2204
      %v2257 = vunpack.c.l.b16 %v2207
      %v2258 = vunpack.c.l.b16 %v2211
      %v2259 = vunpack.c.l.b16 %v2214
      %v2260 = vunpack.c.l.b16 %v2218
      %v2261 = vunpack.c.l.b16 %v2221
      %v2262 = vunpack.c.l.b16 %v2225
      %v2263 = vunpack.c.l.b16 %v2228
      %v2264 = vpack.c.b16 %v2233, %v2232
      %v2265 = vpack.c.b16 %v2235, %v2234
      %v2266 = vpack.c.b16 %v2237, %v2236
      %v2267 = vpack.c.b16 %v2239, %v2238
      %v2268 = vpack.c.b16 %v2241, %v2240
      %v2269 = vpack.c.b16 %v2243, %v2242
      %v2270 = vpack.c.b16 %v2245, %v2244
      %v2271 = vpack.c.b16 %v2247, %v2246
      %v2272 = vpack.c.b16 %v2249, %v2248
      %v2273 = vpack.c.b16 %v2251, %v2250
      %v2274 = vpack.c.b16 %v2253, %v2252
      %v2275 = vpack.c.b16 %v2255, %v2254
      %v2276 = vpack.c.b16 %v2257, %v2256
      %v2277 = vpack.c.b16 %v2259, %v2258
      %v2278 = vpack.c.b16 %v2261, %v2260
      %v2279 = vpack.c.b16 %v2263, %v2262
      %v2282 = vunpack.c.l.b16 %v2230
      %v2283 = vunpack.c.l.b16 %v2231
      %v2284 = vpack.c.b16 %v2283, %v2282
      %v2287 = vsel %vm1368, %v2264, 0
      %v2290 = vsel %vm1368, %v2265, 0
      %v2293 = vsel %vm1368, %v2266, 0
      %v2296 = vsel %vm1368, %v2267, 0
      %v2299 = vsel %vm1368, %v2268, 0
      %v2302 = vsel %vm1368, %v2269, 0
      %v2305 = vsel %vm1368, %v2270, 0
      %v2308 = vsel %vm1368, %v2271, 0
      %v2311 = vsel %vm1368, %v2272, 0
      %v2314 = vsel %vm1368, %v2273, 0
      %v2317 = vsel %vm1368, %v2274, 0
      %v2320 = vsel %vm1368, %v2275, 0
      %v2323 = vsel %vm1368, %v2276, 0
      %v2326 = vsel %vm1368, %v2277, 0
      %v2329 = vsel %vm1368, %v2278, 0
      %v2332 = vsel %vm1368, %v2279, 0
      %2334 = vmatpush.bf16.msra.mxu0 0
      %2335 = vmatpush.bf16.msra.mxu0 0
      %2336 = vmatpush.bf16.msra.mxu0 0
      %2337 = vmatpush.bf16.msra.mxu0 0
      %2338 = vmatpush.bf16.msra.mxu0 0
      %2339 = vmatpush.bf16.msra.mxu0 0
      %2340 = vmatpush.bf16.msra.mxu0 0
      %2341 = vmatpush.bf16.msra.mxu0 %v2284
      %2342 = vmatmul.bf16.gmra.mxu0 %v2287
      %v2343 = vpop.f32.mrf.mxu0
      %v2344 = vadd.f32 0.0, %v2343
      %v2345 = vpop.f32.mrf.mxu0
      %v2346 = vadd.f32 0.0, %v2345
      %2347 = vmatmul.bf16.gmra.mxu0 %v2290
      %v2348 = vpop.f32.mrf.mxu0
      %v2349 = vadd.f32 0.0, %v2348
      %v2350 = vpop.f32.mrf.mxu0
      %v2351 = vadd.f32 0.0, %v2350
      %2352 = vmatmul.bf16.gmra.mxu0 %v2293
      %v2353 = vpop.f32.mrf.mxu0
      %v2354 = vadd.f32 0.0, %v2353
      %v2355 = vpop.f32.mrf.mxu0
      %v2356 = vadd.f32 0.0, %v2355
      %2357 = vmatmul.bf16.gmra.mxu0 %v2296
      %v2358 = vpop.f32.mrf.mxu0
      %v2359 = vadd.f32 0.0, %v2358
      %v2360 = vpop.f32.mrf.mxu0
      %v2361 = vadd.f32 0.0, %v2360
      %2362 = vmatmul.bf16.gmra.mxu0 %v2299
      %v2363 = vpop.f32.mrf.mxu0
      %v2364 = vadd.f32 0.0, %v2363
      %v2365 = vpop.f32.mrf.mxu0
      %v2366 = vadd.f32 0.0, %v2365
      %2367 = vmatmul.bf16.gmra.mxu0 %v2302
      %v2368 = vpop.f32.mrf.mxu0
      %v2369 = vadd.f32 0.0, %v2368
      %v2370 = vpop.f32.mrf.mxu0
      %v2371 = vadd.f32 0.0, %v2370
      %2372 = vmatmul.bf16.gmra.mxu0 %v2305
      %v2373 = vpop.f32.mrf.mxu0
      %v2374 = vadd.f32 0.0, %v2373
      %v2375 = vpop.f32.mrf.mxu0
      %v2376 = vadd.f32 0.0, %v2375
      %2377 = vmatmul.bf16.gmra.mxu0 %v2308
      %v2378 = vpop.f32.mrf.mxu0
      %v2379 = vadd.f32 0.0, %v2378
      %v2380 = vpop.f32.mrf.mxu0
      %v2381 = vadd.f32 0.0, %v2380
      %2382 = vmatmul.bf16.gmra.mxu0 %v2311
      %v2383 = vpop.f32.mrf.mxu0
      %v2384 = vadd.f32 0.0, %v2383
      %v2385 = vpop.f32.mrf.mxu0
      %v2386 = vadd.f32 0.0, %v2385
      %2387 = vmatmul.bf16.gmra.mxu0 %v2314
      %v2388 = vpop.f32.mrf.mxu0
      %v2389 = vadd.f32 0.0, %v2388
      %v2390 = vpop.f32.mrf.mxu0
      %v2391 = vadd.f32 0.0, %v2390
      %2392 = vmatmul.bf16.gmra.mxu0 %v2317
      %v2393 = vpop.f32.mrf.mxu0
      %v2394 = vadd.f32 0.0, %v2393
      %v2395 = vpop.f32.mrf.mxu0
      %v2396 = vadd.f32 0.0, %v2395
      %2397 = vmatmul.bf16.gmra.mxu0 %v2320
      %v2398 = vpop.f32.mrf.mxu0
      %v2399 = vadd.f32 0.0, %v2398
      %v2400 = vpop.f32.mrf.mxu0
      %v2401 = vadd.f32 0.0, %v2400
      %2402 = vmatmul.bf16.gmra.mxu0 %v2323
      %v2403 = vpop.f32.mrf.mxu0
      %v2404 = vadd.f32 0.0, %v2403
      %v2405 = vpop.f32.mrf.mxu0
      %v2406 = vadd.f32 0.0, %v2405
      %2407 = vmatmul.bf16.gmra.mxu0 %v2326
      %v2408 = vpop.f32.mrf.mxu0
      %v2409 = vadd.f32 0.0, %v2408
      %v2410 = vpop.f32.mrf.mxu0
      %v2411 = vadd.f32 0.0, %v2410
      %2412 = vmatmul.bf16.gmra.mxu0 %v2329
      %v2413 = vpop.f32.mrf.mxu0
      %v2414 = vadd.f32 0.0, %v2413
      %v2415 = vpop.f32.mrf.mxu0
      %v2416 = vadd.f32 0.0, %v2415
      %2417 = vmatmul.bf16.gmra.mxu0 %v2332
      %v2418 = vpop.f32.mrf.mxu0
      %v2419 = vadd.f32 0.0, %v2418
      %v2420 = vpop.f32.mrf.mxu0
      %v2421 = vadd.f32 0.0, %v2420
      %2422 = vdwg.mxu0
      %v2423 = vadd.f32 %v1650, %v2344
      %v2424 = vadd.f32 %v1652, %v2346
      %v2425 = vadd.f32 %v1655, %v2349
      %v2426 = vadd.f32 %v1657, %v2351
      %v2427 = vadd.f32 %v1660, %v2354
      %v2428 = vadd.f32 %v1662, %v2356
      %v2429 = vadd.f32 %v1665, %v2359
      %v2430 = vadd.f32 %v1667, %v2361
      %v2431 = vadd.f32 %v1670, %v2364
      %v2432 = vadd.f32 %v1672, %v2366
      %v2433 = vadd.f32 %v1675, %v2369
      %v2434 = vadd.f32 %v1677, %v2371
      %v2435 = vadd.f32 %v1680, %v2374
      %v2436 = vadd.f32 %v1682, %v2376
      %v2437 = vadd.f32 %v1685, %v2379
      %v2438 = vadd.f32 %v1687, %v2381
      %v2439 = vadd.f32 %v1690, %v2384
      %v2440 = vadd.f32 %v1692, %v2386
      %v2441 = vadd.f32 %v1695, %v2389
      %v2442 = vadd.f32 %v1697, %v2391
      %v2443 = vadd.f32 %v1700, %v2394
      %v2444 = vadd.f32 %v1702, %v2396
      %v2445 = vadd.f32 %v1705, %v2399
      %v2446 = vadd.f32 %v1707, %v2401
      %v2447 = vadd.f32 %v1710, %v2404
      %v2448 = vadd.f32 %v1712, %v2406
      %v2449 = vadd.f32 %v1715, %v2409
      %v2450 = vadd.f32 %v1717, %v2411
      %v2451 = vadd.f32 %v1720, %v2414
      %v2452 = vadd.f32 %v1722, %v2416
      %v2453 = vadd.f32 %v1725, %v2419
      %v2454 = vadd.f32 %v1727, %v2421
      %s2455 = scalar_lea.vmem %s296, 12
      %v2456 = vld [vmem:[%s2455] sm:$0xf]
      %v2457 = vld [vmem:[%s2455 + $0x4] sm:$0xf]
      %v2458 = vld [vmem:[%s2455 + $0xc] sm:$0xf]
      %v2459 = vld [vmem:[%s2455 + $0x10] sm:$0xf]
      %v2460 = vld [vmem:[%s2455 + $0x18] sm:$0xf]
      %v2461 = vld [vmem:[%s2455 + $0x1c] sm:$0xf]
      %v2462 = vld [vmem:[%s2455 + $0x24] sm:$0xf]
      %v2463 = vld [vmem:[%s2455 + $0x28] sm:$0xf]
      %v2464 = vld [vmem:[%s2455 + $0x30] sm:$0xf]
      %v2465 = vld [vmem:[%s2455 + $0x34] sm:$0xf]
      %v2466 = vld [vmem:[%s2455 + $0x3c] sm:$0xf]
      %v2467 = vld [vmem:[%s2455 + $0x40] sm:$0xf]
      %v2468 = vld [vmem:[%s2455 + $0x48] sm:$0xf]
      %v2469 = vld [vmem:[%s2455 + $0x4c] sm:$0xf]
      %v2470 = vld [vmem:[%s2455 + $0x54] sm:$0xf]
      %v2471 = vld [vmem:[%s2455 + $0x58] sm:$0xf]
      %v2472 = vld [vmem:[%s2455 + $0x60] sm:$0xf]
      %v2473 = vld [vmem:[%s2455 + $0x64] sm:$0xf]
      %v2474 = vld [vmem:[%s2455 + $0x6c] sm:$0xf]
      %v2475 = vld [vmem:[%s2455 + $0x70] sm:$0xf]
      %v2476 = vld [vmem:[%s2455 + $0x78] sm:$0xf]
      %v2477 = vld [vmem:[%s2455 + $0x7c] sm:$0xf]
      %v2478 = vld [vmem:[%s2455 + $0x84] sm:$0xf]
      %v2479 = vld [vmem:[%s2455 + $0x88] sm:$0xf]
      %v2480 = vld [vmem:[%s2455 + $0x90] sm:$0xf]
      %v2481 = vld [vmem:[%s2455 + $0x94] sm:$0xf]
      %v2482 = vld [vmem:[%s2455 + $0x9c] sm:$0xf]
      %v2483 = vld [vmem:[%s2455 + $0xa0] sm:$0xf]
      %v2484 = vld [vmem:[%s2455 + $0xa8] sm:$0xf]
      %v2485 = vld [vmem:[%s2455 + $0xac] sm:$0xf]
      %v2486 = vld [vmem:[%s2455 + $0xb4] sm:$0xf]
      %v2487 = vld [vmem:[%s2455 + $0xb8] sm:$0xf]
      %v2488 = vunpack.c.l.bf16 %v2456
      %v2489 = vunpack.c.l.bf16 %v2457
      %v2490 = vunpack.c.l.bf16 %v2458
      %v2491 = vunpack.c.l.bf16 %v2459
      %v2492 = vunpack.c.l.bf16 %v2460
      %v2493 = vunpack.c.l.bf16 %v2461
      %v2494 = vunpack.c.l.bf16 %v2462
      %v2495 = vunpack.c.l.bf16 %v2463
      %v2496 = vunpack.c.l.bf16 %v2464
      %v2497 = vunpack.c.l.bf16 %v2465
      %v2498 = vunpack.c.l.bf16 %v2466
      %v2499 = vunpack.c.l.bf16 %v2467
      %v2500 = vunpack.c.l.bf16 %v2468
      %v2501 = vunpack.c.l.bf16 %v2469
      %v2502 = vunpack.c.l.bf16 %v2470
      %v2503 = vunpack.c.l.bf16 %v2471
      %v2504 = vunpack.c.l.bf16 %v2472
      %v2505 = vunpack.c.l.bf16 %v2473
      %v2506 = vunpack.c.l.bf16 %v2474
      %v2507 = vunpack.c.l.bf16 %v2475
      %v2508 = vunpack.c.l.bf16 %v2476
      %v2509 = vunpack.c.l.bf16 %v2477
      %v2510 = vunpack.c.l.bf16 %v2478
      %v2511 = vunpack.c.l.bf16 %v2479
      %v2512 = vunpack.c.l.bf16 %v2480
      %v2513 = vunpack.c.l.bf16 %v2481
      %v2514 = vunpack.c.l.bf16 %v2482
      %v2515 = vunpack.c.l.bf16 %v2483
      %v2516 = vunpack.c.l.bf16 %v2484
      %v2517 = vunpack.c.l.bf16 %v2485
      %v2518 = vunpack.c.l.bf16 %v2486
      %v2519 = vunpack.c.l.bf16 %v2487
      %v2520 = vmul.f32 %v2488, %v388
      %v2521 = vmul.f32 %v2489, %v388
      %v2522 = vmul.f32 %v2490, %v388
      %v2523 = vmul.f32 %v2491, %v388
      %v2524 = vmul.f32 %v2492, %v388
      %v2525 = vmul.f32 %v2493, %v388
      %v2526 = vmul.f32 %v2494, %v388
      %v2527 = vmul.f32 %v2495, %v388
      %v2528 = vmul.f32 %v2496, %v388
      %v2529 = vmul.f32 %v2497, %v388
      %v2530 = vmul.f32 %v2498, %v388
      %v2531 = vmul.f32 %v2499, %v388
      %v2532 = vmul.f32 %v2500, %v388
      %v2533 = vmul.f32 %v2501, %v388
      %v2534 = vmul.f32 %v2502, %v388
      %v2535 = vmul.f32 %v2503, %v388
      %v2536 = vmul.f32 %v2504, %v388
      %v2537 = vmul.f32 %v2505, %v388
      %v2538 = vmul.f32 %v2506, %v388
      %v2539 = vmul.f32 %v2507, %v388
      %v2540 = vmul.f32 %v2508, %v388
      %v2541 = vmul.f32 %v2509, %v388
      %v2542 = vmul.f32 %v2510, %v388
      %v2543 = vmul.f32 %v2511, %v388
      %v2544 = vmul.f32 %v2512, %v388
      %v2545 = vmul.f32 %v2513, %v388
      %v2546 = vmul.f32 %v2514, %v388
      %v2547 = vmul.f32 %v2515, %v388
      %v2548 = vmul.f32 %v2516, %v388
      %v2549 = vmul.f32 %v2517, %v388
      %v2550 = vmul.f32 %v2518, %v388
      %v2551 = vmul.f32 %v2519, %v388
      %v2552 = vadd.f32 %v2520, %v423
      %v2553 = vadd.f32 %v2521, %v423
      %v2554 = vadd.f32 %v2522, %v423
      %v2555 = vadd.f32 %v2523, %v423
      %v2556 = vadd.f32 %v2524, %v423
      %v2557 = vadd.f32 %v2525, %v423
      %v2558 = vadd.f32 %v2526, %v423
      %v2559 = vadd.f32 %v2527, %v423
      %v2560 = vadd.f32 %v2528, %v423
      %v2561 = vadd.f32 %v2529, %v423
      %v2562 = vadd.f32 %v2530, %v423
      %v2563 = vadd.f32 %v2531, %v423
      %v2564 = vadd.f32 %v2532, %v423
      %v2565 = vadd.f32 %v2533, %v423
      %v2566 = vadd.f32 %v2534, %v423
      %v2567 = vadd.f32 %v2535, %v423
      %v2568 = vadd.f32 %v2536, %v423
      %v2569 = vadd.f32 %v2537, %v423
      %v2570 = vadd.f32 %v2538, %v423
      %v2571 = vadd.f32 %v2539, %v423
      %v2572 = vadd.f32 %v2540, %v423
      %v2573 = vadd.f32 %v2541, %v423
      %v2574 = vadd.f32 %v2542, %v423
      %v2575 = vadd.f32 %v2543, %v423
      %v2576 = vadd.f32 %v2544, %v423
      %v2577 = vadd.f32 %v2545, %v423
      %v2578 = vadd.f32 %v2546, %v423
      %v2579 = vadd.f32 %v2547, %v423
      %v2580 = vadd.f32 %v2548, %v423
      %v2581 = vadd.f32 %v2549, %v423
      %v2582 = vadd.f32 %v2550, %v423
      %v2583 = vadd.f32 %v2551, %v423
      %v2584 = vmax.f32 %v2552, 0.0
      %v2585 = vmax.f32 %v2553, 0.0
      %v2586 = vmax.f32 %v2554, 0.0
      %v2587 = vmax.f32 %v2555, 0.0
      %v2588 = vmax.f32 %v2556, 0.0
      %v2589 = vmax.f32 %v2557, 0.0
      %v2590 = vmax.f32 %v2558, 0.0
      %v2591 = vmax.f32 %v2559, 0.0
      %v2592 = vmax.f32 %v2560, 0.0
      %v2593 = vmax.f32 %v2561, 0.0
      %v2594 = vmax.f32 %v2562, 0.0
      %v2595 = vmax.f32 %v2563, 0.0
      %v2596 = vmax.f32 %v2564, 0.0
      %v2597 = vmax.f32 %v2565, 0.0
      %v2598 = vmax.f32 %v2566, 0.0
      %v2599 = vmax.f32 %v2567, 0.0
      %v2600 = vmax.f32 %v2568, 0.0
      %v2601 = vmax.f32 %v2569, 0.0
      %v2602 = vmax.f32 %v2570, 0.0
      %v2603 = vmax.f32 %v2571, 0.0
      %v2604 = vmax.f32 %v2572, 0.0
      %v2605 = vmax.f32 %v2573, 0.0
      %v2606 = vmax.f32 %v2574, 0.0
      %v2607 = vmax.f32 %v2575, 0.0
      %v2608 = vmax.f32 %v2576, 0.0
      %v2609 = vmax.f32 %v2577, 0.0
      %v2610 = vmax.f32 %v2578, 0.0
      %v2611 = vmax.f32 %v2579, 0.0
      %v2612 = vmax.f32 %v2580, 0.0
      %v2613 = vmax.f32 %v2581, 0.0
      %v2614 = vmax.f32 %v2582, 0.0
      %v2615 = vmax.f32 %v2583, 0.0
      %s2616 = scalar_lea.vmem %s302, 24
      %v2617 = vld [vmem:[%s2616] sm:$0xff]
      %v2618 = vld [vmem:[%s2616 + $0x8] sm:$0xff]
      %v2619 = vld [vmem:[%s2616 + $0x18] sm:$0xff]
      %v2620 = vld [vmem:[%s2616 + $0x20] sm:$0xff]
      %v2621 = vld [vmem:[%s2616 + $0x30] sm:$0xff]
      %v2622 = vld [vmem:[%s2616 + $0x38] sm:$0xff]
      %v2623 = vld [vmem:[%s2616 + $0x48] sm:$0xff]
      %v2624 = vld [vmem:[%s2616 + $0x50] sm:$0xff]
      %v2625 = vld [vmem:[%s2616 + $0x60] sm:$0xff]
      %v2626 = vld [vmem:[%s2616 + $0x68] sm:$0xff]
      %v2627 = vld [vmem:[%s2616 + $0x78] sm:$0xff]
      %v2628 = vld [vmem:[%s2616 + $0x80] sm:$0xff]
      %v2629 = vld [vmem:[%s2616 + $0x90] sm:$0xff]
      %v2630 = vld [vmem:[%s2616 + $0x98] sm:$0xff]
      %v2631 = vld [vmem:[%s2616 + $0xa8] sm:$0xff]
      %v2632 = vld [vmem:[%s2616 + $0xb0] sm:$0xff]
      %v2633 = vld [vmem:[%s2616 + $0xc0] sm:$0xff]
      %v2634 = vld [vmem:[%s2616 + $0xc8] sm:$0xff]
      %v2635 = vld [vmem:[%s2616 + $0xd8] sm:$0xff]
      %v2636 = vld [vmem:[%s2616 + $0xe0] sm:$0xff]
      %v2637 = vld [vmem:[%s2616 + $0xf0] sm:$0xff]
      %v2638 = vld [vmem:[%s2616 + $0xf8] sm:$0xff]
      %v2639 = vld [vmem:[%s2616 + $0x108] sm:$0xff]
      %v2640 = vld [vmem:[%s2616 + $0x110] sm:$0xff]
      %v2641 = vld [vmem:[%s2616 + $0x120] sm:$0xff]
      %v2642 = vld [vmem:[%s2616 + $0x128] sm:$0xff]
      %v2643 = vld [vmem:[%s2616 + $0x138] sm:$0xff]
      %v2644 = vld [vmem:[%s2616 + $0x140] sm:$0xff]
      %v2645 = vld [vmem:[%s2616 + $0x150] sm:$0xff]
      %v2646 = vld [vmem:[%s2616 + $0x158] sm:$0xff]
      %v2647 = vld [vmem:[%s2616 + $0x168] sm:$0xff]
      %v2648 = vld [vmem:[%s2616 + $0x170] sm:$0xff]
      %v2649 = vmul.f32 %v2584, %v2617
      %v2650 = vmul.f32 %v2585, %v2618
      %v2651 = vmul.f32 %v2586, %v2619
      %v2652 = vmul.f32 %v2587, %v2620
      %v2653 = vmul.f32 %v2588, %v2621
      %v2654 = vmul.f32 %v2589, %v2622
      %v2655 = vmul.f32 %v2590, %v2623
      %v2656 = vmul.f32 %v2591, %v2624
      %v2657 = vmul.f32 %v2592, %v2625
      %v2658 = vmul.f32 %v2593, %v2626
      %v2659 = vmul.f32 %v2594, %v2627
      %v2660 = vmul.f32 %v2595, %v2628
      %v2661 = vmul.f32 %v2596, %v2629
      %v2662 = vmul.f32 %v2597, %v2630
      %v2663 = vmul.f32 %v2598, %v2631
      %v2664 = vmul.f32 %v2599, %v2632
      %v2665 = vmul.f32 %v2600, %v2633
      %v2666 = vmul.f32 %v2601, %v2634
      %v2667 = vmul.f32 %v2602, %v2635
      %v2668 = vmul.f32 %v2603, %v2636
      %v2669 = vmul.f32 %v2604, %v2637
      %v2670 = vmul.f32 %v2605, %v2638
      %v2671 = vmul.f32 %v2606, %v2639
      %v2672 = vmul.f32 %v2607, %v2640
      %v2673 = vmul.f32 %v2608, %v2641
      %v2674 = vmul.f32 %v2609, %v2642
      %v2675 = vmul.f32 %v2610, %v2643
      %v2676 = vmul.f32 %v2611, %v2644
      %v2677 = vmul.f32 %v2612, %v2645
      %v2678 = vmul.f32 %v2613, %v2646
      %v2679 = vmul.f32 %v2614, %v2647
      %v2680 = vmul.f32 %v2615, %v2648
      %v2681 = vpack.c.bf16 %v2649, %v2649
      %v2682 = vpack.c.bf16 %v2650, %v2650
      %v2683 = vpack.c.bf16 %v2651, %v2651
      %v2684 = vpack.c.bf16 %v2652, %v2652
      %v2685 = vpack.c.bf16 %v2653, %v2653
      %v2686 = vpack.c.bf16 %v2654, %v2654
      %v2687 = vpack.c.bf16 %v2655, %v2655
      %v2688 = vpack.c.bf16 %v2656, %v2656
      %v2689 = vpack.c.bf16 %v2657, %v2657
      %v2690 = vpack.c.bf16 %v2658, %v2658
      %v2691 = vpack.c.bf16 %v2659, %v2659
      %v2692 = vpack.c.bf16 %v2660, %v2660
      %v2693 = vpack.c.bf16 %v2661, %v2661
      %v2694 = vpack.c.bf16 %v2662, %v2662
      %v2695 = vpack.c.bf16 %v2663, %v2663
      %v2696 = vpack.c.bf16 %v2664, %v2664
      %v2697 = vpack.c.bf16 %v2665, %v2665
      %v2698 = vpack.c.bf16 %v2666, %v2666
      %v2699 = vpack.c.bf16 %v2667, %v2667
      %v2700 = vpack.c.bf16 %v2668, %v2668
      %v2701 = vpack.c.bf16 %v2669, %v2669
      %v2702 = vpack.c.bf16 %v2670, %v2670
      %v2703 = vpack.c.bf16 %v2671, %v2671
      %v2704 = vpack.c.bf16 %v2672, %v2672
      %v2705 = vpack.c.bf16 %v2673, %v2673
      %v2706 = vpack.c.bf16 %v2674, %v2674
      %v2707 = vpack.c.bf16 %v2675, %v2675
      %v2708 = vpack.c.bf16 %v2676, %v2676
      %v2709 = vpack.c.bf16 %v2677, %v2677
      %v2710 = vpack.c.bf16 %v2678, %v2678
      %v2711 = vpack.c.bf16 %v2679, %v2679
      %v2712 = vpack.c.bf16 %v2680, %v2680
      %s2713 = scalar_lea.vmem %s4, 24
      %v2714 = vld [vmem:[%s2713] sm:$0xf]
      %v2715 = vld [vmem:[%s2713 + $0x4] sm:$0xf]
      %v2748 = vunpack.c.l.b16 %v2681
      %v2749 = vunpack.c.l.b16 %v2682
      %v2750 = vunpack.c.l.b16 %v2683
      %v2751 = vunpack.c.l.b16 %v2684
      %v2752 = vunpack.c.l.b16 %v2685
      %v2753 = vunpack.c.l.b16 %v2686
      %v2754 = vunpack.c.l.b16 %v2687
      %v2755 = vunpack.c.l.b16 %v2688
      %v2756 = vunpack.c.l.b16 %v2689
      %v2757 = vunpack.c.l.b16 %v2690
      %v2758 = vunpack.c.l.b16 %v2691
      %v2759 = vunpack.c.l.b16 %v2692
      %v2760 = vunpack.c.l.b16 %v2693
      %v2761 = vunpack.c.l.b16 %v2694
      %v2762 = vunpack.c.l.b16 %v2695
      %v2763 = vunpack.c.l.b16 %v2696
      %v2764 = vunpack.c.l.b16 %v2697
      %v2765 = vunpack.c.l.b16 %v2698
      %v2766 = vunpack.c.l.b16 %v2699
      %v2767 = vunpack.c.l.b16 %v2700
      %v2768 = vunpack.c.l.b16 %v2701
      %v2769 = vunpack.c.l.b16 %v2702
      %v2770 = vunpack.c.l.b16 %v2703
      %v2771 = vunpack.c.l.b16 %v2704
      %v2772 = vunpack.c.l.b16 %v2705
      %v2773 = vunpack.c.l.b16 %v2706
      %v2774 = vunpack.c.l.b16 %v2707
      %v2775 = vunpack.c.l.b16 %v2708
      %v2776 = vunpack.c.l.b16 %v2709
      %v2777 = vunpack.c.l.b16 %v2710
      %v2778 = vunpack.c.l.b16 %v2711
      %v2779 = vunpack.c.l.b16 %v2712
      %v2780 = vpack.c.b16 %v2749, %v2748
      %v2781 = vpack.c.b16 %v2751, %v2750
      %v2782 = vpack.c.b16 %v2753, %v2752
      %v2783 = vpack.c.b16 %v2755, %v2754
      %v2784 = vpack.c.b16 %v2757, %v2756
      %v2785 = vpack.c.b16 %v2759, %v2758
      %v2786 = vpack.c.b16 %v2761, %v2760
      %v2787 = vpack.c.b16 %v2763, %v2762
      %v2788 = vpack.c.b16 %v2765, %v2764
      %v2789 = vpack.c.b16 %v2767, %v2766
      %v2790 = vpack.c.b16 %v2769, %v2768
      %v2791 = vpack.c.b16 %v2771, %v2770
      %v2792 = vpack.c.b16 %v2773, %v2772
      %v2793 = vpack.c.b16 %v2775, %v2774
      %v2794 = vpack.c.b16 %v2777, %v2776
      %v2795 = vpack.c.b16 %v2779, %v2778
      %v2798 = vunpack.c.l.b16 %v2714
      %v2799 = vunpack.c.l.b16 %v2715
      %v2800 = vpack.c.b16 %v2799, %v2798
      %v2803 = vsel %vm1368, %v2780, 0
      %v2806 = vsel %vm1368, %v2781, 0
      %v2809 = vsel %vm1368, %v2782, 0
      %v2812 = vsel %vm1368, %v2783, 0
      %v2815 = vsel %vm1368, %v2784, 0
      %v2818 = vsel %vm1368, %v2785, 0
      %v2821 = vsel %vm1368, %v2786, 0
      %v2824 = vsel %vm1368, %v2787, 0
      %v2827 = vsel %vm1368, %v2788, 0
      %v2830 = vsel %vm1368, %v2789, 0
      %v2833 = vsel %vm1368, %v2790, 0
      %v2836 = vsel %vm1368, %v2791, 0
      %v2839 = vsel %vm1368, %v2792, 0
      %v2842 = vsel %vm1368, %v2793, 0
      %v2845 = vsel %vm1368, %v2794, 0
      %v2848 = vsel %vm1368, %v2795, 0
      %2850 = vmatpush.bf16.msra.mxu0 0
      %2851 = vmatpush.bf16.msra.mxu0 0
      %2852 = vmatpush.bf16.msra.mxu0 0
      %2853 = vmatpush.bf16.msra.mxu0 0
      %2854 = vmatpush.bf16.msra.mxu0 0
      %2855 = vmatpush.bf16.msra.mxu0 0
      %2856 = vmatpush.bf16.msra.mxu0 0
      %2857 = vmatpush.bf16.msra.mxu0 %v2800
      %2858 = vmatmul.bf16.gmra.mxu0 %v2803
      %v2859 = vpop.f32.mrf.mxu0
      %v2860 = vadd.f32 0.0, %v2859
      %v2861 = vpop.f32.mrf.mxu0
      %v2862 = vadd.f32 0.0, %v2861
      %2863 = vmatmul.bf16.gmra.mxu0 %v2806
      %v2864 = vpop.f32.mrf.mxu0
      %v2865 = vadd.f32 0.0, %v2864
      %v2866 = vpop.f32.mrf.mxu0
      %v2867 = vadd.f32 0.0, %v2866
      %2868 = vmatmul.bf16.gmra.mxu0 %v2809
      %v2869 = vpop.f32.mrf.mxu0
      %v2870 = vadd.f32 0.0, %v2869
      %v2871 = vpop.f32.mrf.mxu0
      %v2872 = vadd.f32 0.0, %v2871
      %2873 = vmatmul.bf16.gmra.mxu0 %v2812
      %v2874 = vpop.f32.mrf.mxu0
      %v2875 = vadd.f32 0.0, %v2874
      %v2876 = vpop.f32.mrf.mxu0
      %v2877 = vadd.f32 0.0, %v2876
      %2878 = vmatmul.bf16.gmra.mxu0 %v2815
      %v2879 = vpop.f32.mrf.mxu0
      %v2880 = vadd.f32 0.0, %v2879
      %v2881 = vpop.f32.mrf.mxu0
      %v2882 = vadd.f32 0.0, %v2881
      %2883 = vmatmul.bf16.gmra.mxu0 %v2818
      %v2884 = vpop.f32.mrf.mxu0
      %v2885 = vadd.f32 0.0, %v2884
      %v2886 = vpop.f32.mrf.mxu0
      %v2887 = vadd.f32 0.0, %v2886
      %2888 = vmatmul.bf16.gmra.mxu0 %v2821
      %v2889 = vpop.f32.mrf.mxu0
      %v2890 = vadd.f32 0.0, %v2889
      %v2891 = vpop.f32.mrf.mxu0
      %v2892 = vadd.f32 0.0, %v2891
      %2893 = vmatmul.bf16.gmra.mxu0 %v2824
      %v2894 = vpop.f32.mrf.mxu0
      %v2895 = vadd.f32 0.0, %v2894
      %v2896 = vpop.f32.mrf.mxu0
      %v2897 = vadd.f32 0.0, %v2896
      %2898 = vmatmul.bf16.gmra.mxu0 %v2827
      %v2899 = vpop.f32.mrf.mxu0
      %v2900 = vadd.f32 0.0, %v2899
      %v2901 = vpop.f32.mrf.mxu0
      %v2902 = vadd.f32 0.0, %v2901
      %2903 = vmatmul.bf16.gmra.mxu0 %v2830
      %v2904 = vpop.f32.mrf.mxu0
      %v2905 = vadd.f32 0.0, %v2904
      %v2906 = vpop.f32.mrf.mxu0
      %v2907 = vadd.f32 0.0, %v2906
      %2908 = vmatmul.bf16.gmra.mxu0 %v2833
      %v2909 = vpop.f32.mrf.mxu0
      %v2910 = vadd.f32 0.0, %v2909
      %v2911 = vpop.f32.mrf.mxu0
      %v2912 = vadd.f32 0.0, %v2911
      %2913 = vmatmul.bf16.gmra.mxu0 %v2836
      %v2914 = vpop.f32.mrf.mxu0
      %v2915 = vadd.f32 0.0, %v2914
      %v2916 = vpop.f32.mrf.mxu0
      %v2917 = vadd.f32 0.0, %v2916
      %2918 = vmatmul.bf16.gmra.mxu0 %v2839
      %v2919 = vpop.f32.mrf.mxu0
      %v2920 = vadd.f32 0.0, %v2919
      %v2921 = vpop.f32.mrf.mxu0
      %v2922 = vadd.f32 0.0, %v2921
      %2923 = vmatmul.bf16.gmra.mxu0 %v2842
      %v2924 = vpop.f32.mrf.mxu0
      %v2925 = vadd.f32 0.0, %v2924
      %v2926 = vpop.f32.mrf.mxu0
      %v2927 = vadd.f32 0.0, %v2926
      %2928 = vmatmul.bf16.gmra.mxu0 %v2845
      %v2929 = vpop.f32.mrf.mxu0
      %v2930 = vadd.f32 0.0, %v2929
      %v2931 = vpop.f32.mrf.mxu0
      %v2932 = vadd.f32 0.0, %v2931
      %2933 = vmatmul.bf16.gmra.mxu0 %v2848
      %v2934 = vpop.f32.mrf.mxu0
      %v2935 = vadd.f32 0.0, %v2934
      %v2936 = vpop.f32.mrf.mxu0
      %v2937 = vadd.f32 0.0, %v2936
      %2938 = vdwg.mxu0
      %v2939 = vadd.f32 %v2423, %v2860
      %v2940 = vadd.f32 %v2424, %v2862
      %v2941 = vadd.f32 %v2425, %v2865
      %v2942 = vadd.f32 %v2426, %v2867
      %v2943 = vadd.f32 %v2427, %v2870
      %v2944 = vadd.f32 %v2428, %v2872
      %v2945 = vadd.f32 %v2429, %v2875
      %v2946 = vadd.f32 %v2430, %v2877
      %v2947 = vadd.f32 %v2431, %v2880
      %v2948 = vadd.f32 %v2432, %v2882
      %v2949 = vadd.f32 %v2433, %v2885
      %v2950 = vadd.f32 %v2434, %v2887
      %v2951 = vadd.f32 %v2435, %v2890
      %v2952 = vadd.f32 %v2436, %v2892
      %v2953 = vadd.f32 %v2437, %v2895
      %v2954 = vadd.f32 %v2438, %v2897
      %v2955 = vadd.f32 %v2439, %v2900
      %v2956 = vadd.f32 %v2440, %v2902
      %v2957 = vadd.f32 %v2441, %v2905
      %v2958 = vadd.f32 %v2442, %v2907
      %v2959 = vadd.f32 %v2443, %v2910
      %v2960 = vadd.f32 %v2444, %v2912
      %v2961 = vadd.f32 %v2445, %v2915
      %v2962 = vadd.f32 %v2446, %v2917
      %v2963 = vadd.f32 %v2447, %v2920
      %v2964 = vadd.f32 %v2448, %v2922
      %v2965 = vadd.f32 %v2449, %v2925
      %v2966 = vadd.f32 %v2450, %v2927
      %v2967 = vadd.f32 %v2451, %v2930
      %v2968 = vadd.f32 %v2452, %v2932
      %v2969 = vadd.f32 %v2453, %v2935
      %v2970 = vadd.f32 %v2454, %v2937
      %v2971 = vld [vmem:[%s2455] sm:$0xf]
      %v2972 = vld [vmem:[%s2455 + $0x4] sm:$0xf]
      %v2973 = vld [vmem:[%s2455 + $0x8] sm:$0x1]
      %v2974 = vld [vmem:[%s2455 + $0xc] sm:$0xf]
      %v2975 = vld [vmem:[%s2455 + $0x10] sm:$0xf]
      %v2976 = vld [vmem:[%s2455 + $0x14] sm:$0x1]
      %v2977 = vld [vmem:[%s2455 + $0x18] sm:$0xf]
      %v2978 = vld [vmem:[%s2455 + $0x1c] sm:$0xf]
      %v2979 = vld [vmem:[%s2455 + $0x20] sm:$0x1]
      %v2980 = vld [vmem:[%s2455 + $0x24] sm:$0xf]
      %v2981 = vld [vmem:[%s2455 + $0x28] sm:$0xf]
      %v2982 = vld [vmem:[%s2455 + $0x2c] sm:$0x1]
      %v2983 = vld [vmem:[%s2455 + $0x30] sm:$0xf]
      %v2984 = vld [vmem:[%s2455 + $0x34] sm:$0xf]
      %v2985 = vld [vmem:[%s2455 + $0x38] sm:$0x1]
      %v2986 = vld [vmem:[%s2455 + $0x3c] sm:$0xf]
      %v2987 = vld [vmem:[%s2455 + $0x40] sm:$0xf]
      %v2988 = vld [vmem:[%s2455 + $0x44] sm:$0x1]
      %v2989 = vld [vmem:[%s2455 + $0x48] sm:$0xf]
      %v2990 = vld [vmem:[%s2455 + $0x4c] sm:$0xf]
      %v2991 = vld [vmem:[%s2455 + $0x50] sm:$0x1]
      %v2992 = vld [vmem:[%s2455 + $0x54] sm:$0xf]
      %v2993 = vld [vmem:[%s2455 + $0x58] sm:$0xf]
      %v2994 = vld [vmem:[%s2455 + $0x5c] sm:$0x1]
      %v2995 = vld [vmem:[%s2455 + $0x60] sm:$0xf]
      %v2996 = vld [vmem:[%s2455 + $0x64] sm:$0xf]
      %v2997 = vld [vmem:[%s2455 + $0x68] sm:$0x1]
      %v2998 = vld [vmem:[%s2455 + $0x6c] sm:$0xf]
      %v2999 = vld [vmem:[%s2455 + $0x70] sm:$0xf]
      %v3000 = vld [vmem:[%s2455 + $0x74] sm:$0x1]
      %v3001 = vld [vmem:[%s2455 + $0x78] sm:$0xf]
      %v3002 = vld [vmem:[%s2455 + $0x7c] sm:$0xf]
      %v3003 = vld [vmem:[%s2455 + $0x80] sm:$0x1]
      %v3004 = vld [vmem:[%s2455 + $0x84] sm:$0xf]
      %v3005 = vld [vmem:[%s2455 + $0x88] sm:$0xf]
      %v3006 = vld [vmem:[%s2455 + $0x8c] sm:$0x1]
      %v3007 = vld [vmem:[%s2455 + $0x90] sm:$0xf]
      %v3008 = vld [vmem:[%s2455 + $0x94] sm:$0xf]
      %v3009 = vld [vmem:[%s2455 + $0x98] sm:$0x1]
      %v3010 = vld [vmem:[%s2455 + $0x9c] sm:$0xf]
      %v3011 = vld [vmem:[%s2455 + $0xa0] sm:$0xf]
      %v3012 = vld [vmem:[%s2455 + $0xa4] sm:$0x1]
      %v3013 = vld [vmem:[%s2455 + $0xa8] sm:$0xf]
      %v3014 = vld [vmem:[%s2455 + $0xac] sm:$0xf]
      %v3015 = vld [vmem:[%s2455 + $0xb0] sm:$0x1]
      %v3016 = vld [vmem:[%s2455 + $0xb4] sm:$0xf]
      %v3017 = vld [vmem:[%s2455 + $0xb8] sm:$0xf]
      %v3018 = vld [vmem:[%s2455 + $0xbc] sm:$0x1]
      %v3019 = vunpack.c.l.bf16 %v2971
      %v3020 = vunpack.c.l.bf16 %v2972
      %v3021 = vunpack.c.l.bf16 %v2973
      %v3022 = vunpack.c.l.bf16 %v2974
      %v3023 = vunpack.c.l.bf16 %v2975
      %v3024 = vunpack.c.l.bf16 %v2976
      %v3025 = vunpack.c.l.bf16 %v2977
      %v3026 = vunpack.c.l.bf16 %v2978
      %v3027 = vunpack.c.l.bf16 %v2979
      %v3028 = vunpack.c.l.bf16 %v2980
      %v3029 = vunpack.c.l.bf16 %v2981
      %v3030 = vunpack.c.l.bf16 %v2982
      %v3031 = vunpack.c.l.bf16 %v2983
      %v3032 = vunpack.c.l.bf16 %v2984
      %v3033 = vunpack.c.l.bf16 %v2985
      %v3034 = vunpack.c.l.bf16 %v2986
      %v3035 = vunpack.c.l.bf16 %v2987
      %v3036 = vunpack.c.l.bf16 %v2988
      %v3037 = vunpack.c.l.bf16 %v2989
      %v3038 = vunpack.c.l.bf16 %v2990
      %v3039 = vunpack.c.l.bf16 %v2991
      %v3040 = vunpack.c.l.bf16 %v2992
      %v3041 = vunpack.c.l.bf16 %v2993
      %v3042 = vunpack.c.l.bf16 %v2994
      %v3043 = vunpack.c.l.bf16 %v2995
      %v3044 = vunpack.c.l.bf16 %v2996
      %v3045 = vunpack.c.l.bf16 %v2997
      %v3046 = vunpack.c.l.bf16 %v2998
      %v3047 = vunpack.c.l.bf16 %v2999
      %v3048 = vunpack.c.l.bf16 %v3000
      %v3049 = vunpack.c.l.bf16 %v3001
      %v3050 = vunpack.c.l.bf16 %v3002
      %v3051 = vunpack.c.l.bf16 %v3003
      %v3052 = vunpack.c.l.bf16 %v3004
      %v3053 = vunpack.c.l.bf16 %v3005
      %v3054 = vunpack.c.l.bf16 %v3006
      %v3055 = vunpack.c.l.bf16 %v3007
      %v3056 = vunpack.c.l.bf16 %v3008
      %v3057 = vunpack.c.l.bf16 %v3009
      %v3058 = vunpack.c.l.bf16 %v3010
      %v3059 = vunpack.c.l.bf16 %v3011
      %v3060 = vunpack.c.l.bf16 %v3012
      %v3061 = vunpack.c.l.bf16 %v3013
      %v3062 = vunpack.c.l.bf16 %v3014
      %v3063 = vunpack.c.l.bf16 %v3015
      %v3064 = vunpack.c.l.bf16 %v3016
      %v3065 = vunpack.c.l.bf16 %v3017
      %v3066 = vunpack.c.l.bf16 %v3018
      %v3067 = vmul.f32 %v3019, %v388
      %v3068 = vmul.f32 %v3020, %v388
      %v3069 = vmul.f32 %v3021, %v388
      %v3070 = vmul.f32 %v3022, %v388
      %v3071 = vmul.f32 %v3023, %v388
      %v3072 = vmul.f32 %v3024, %v388
      %v3073 = vmul.f32 %v3025, %v388
      %v3074 = vmul.f32 %v3026, %v388
      %v3075 = vmul.f32 %v3027, %v388
      %v3076 = vmul.f32 %v3028, %v388
      %v3077 = vmul.f32 %v3029, %v388
      %v3078 = vmul.f32 %v3030, %v388
      %v3079 = vmul.f32 %v3031, %v388
      %v3080 = vmul.f32 %v3032, %v388
      %v3081 = vmul.f32 %v3033, %v388
      %v3082 = vmul.f32 %v3034, %v388
      %v3083 = vmul.f32 %v3035, %v388
      %v3084 = vmul.f32 %v3036, %v388
      %v3085 = vmul.f32 %v3037, %v388
      %v3086 = vmul.f32 %v3038, %v388
      %v3087 = vmul.f32 %v3039, %v388
      %v3088 = vmul.f32 %v3040, %v388
      %v3089 = vmul.f32 %v3041, %v388
      %v3090 = vmul.f32 %v3042, %v388
      %v3091 = vmul.f32 %v3043, %v388
      %v3092 = vmul.f32 %v3044, %v388
      %v3093 = vmul.f32 %v3045, %v388
      %v3094 = vmul.f32 %v3046, %v388
      %v3095 = vmul.f32 %v3047, %v388
      %v3096 = vmul.f32 %v3048, %v388
      %v3097 = vmul.f32 %v3049, %v388
      %v3098 = vmul.f32 %v3050, %v388
      %v3099 = vmul.f32 %v3051, %v388
      %v3100 = vmul.f32 %v3052, %v388
      %v3101 = vmul.f32 %v3053, %v388
      %v3102 = vmul.f32 %v3054, %v388
      %v3103 = vmul.f32 %v3055, %v388
      %v3104 = vmul.f32 %v3056, %v388
      %v3105 = vmul.f32 %v3057, %v388
      %v3106 = vmul.f32 %v3058, %v388
      %v3107 = vmul.f32 %v3059, %v388
      %v3108 = vmul.f32 %v3060, %v388
      %v3109 = vmul.f32 %v3061, %v388
      %v3110 = vmul.f32 %v3062, %v388
      %v3111 = vmul.f32 %v3063, %v388
      %v3112 = vmul.f32 %v3064, %v388
      %v3113 = vmul.f32 %v3065, %v388
      %v3114 = vmul.f32 %v3066, %v388
      %v3115 = vadd.f32 %v3067, %v423
      %v3116 = vadd.f32 %v3068, %v423
      %v3117 = vadd.f32 %v3069, %v423
      %v3118 = vadd.f32 %v3070, %v423
      %v3119 = vadd.f32 %v3071, %v423
      %v3120 = vadd.f32 %v3072, %v423
      %v3121 = vadd.f32 %v3073, %v423
      %v3122 = vadd.f32 %v3074, %v423
      %v3123 = vadd.f32 %v3075, %v423
      %v3124 = vadd.f32 %v3076, %v423
      %v3125 = vadd.f32 %v3077, %v423
      %v3126 = vadd.f32 %v3078, %v423
      %v3127 = vadd.f32 %v3079, %v423
      %v3128 = vadd.f32 %v3080, %v423
      %v3129 = vadd.f32 %v3081, %v423
      %v3130 = vadd.f32 %v3082, %v423
      %v3131 = vadd.f32 %v3083, %v423
      %v3132 = vadd.f32 %v3084, %v423
      %v3133 = vadd.f32 %v3085, %v423
      %v3134 = vadd.f32 %v3086, %v423
      %v3135 = vadd.f32 %v3087, %v423
      %v3136 = vadd.f32 %v3088, %v423
      %v3137 = vadd.f32 %v3089, %v423
      %v3138 = vadd.f32 %v3090, %v423
      %v3139 = vadd.f32 %v3091, %v423
      %v3140 = vadd.f32 %v3092, %v423
      %v3141 = vadd.f32 %v3093, %v423
      %v3142 = vadd.f32 %v3094, %v423
      %v3143 = vadd.f32 %v3095, %v423
      %v3144 = vadd.f32 %v3096, %v423
      %v3145 = vadd.f32 %v3097, %v423
      %v3146 = vadd.f32 %v3098, %v423
      %v3147 = vadd.f32 %v3099, %v423
      %v3148 = vadd.f32 %v3100, %v423
      %v3149 = vadd.f32 %v3101, %v423
      %v3150 = vadd.f32 %v3102, %v423
      %v3151 = vadd.f32 %v3103, %v423
      %v3152 = vadd.f32 %v3104, %v423
      %v3153 = vadd.f32 %v3105, %v423
      %v3154 = vadd.f32 %v3106, %v423
      %v3155 = vadd.f32 %v3107, %v423
      %v3156 = vadd.f32 %v3108, %v423
      %v3157 = vadd.f32 %v3109, %v423
      %v3158 = vadd.f32 %v3110, %v423
      %v3159 = vadd.f32 %v3111, %v423
      %v3160 = vadd.f32 %v3112, %v423
      %v3161 = vadd.f32 %v3113, %v423
      %v3162 = vadd.f32 %v3114, %v423
      %v3163 = vmax.f32 %v3115, 0.0
      %v3164 = vmax.f32 %v3116, 0.0
      %v3165 = vmax.f32 %v3117, 0.0
      %v3166 = vmax.f32 %v3118, 0.0
      %v3167 = vmax.f32 %v3119, 0.0
      %v3168 = vmax.f32 %v3120, 0.0
      %v3169 = vmax.f32 %v3121, 0.0
      %v3170 = vmax.f32 %v3122, 0.0
      %v3171 = vmax.f32 %v3123, 0.0
      %v3172 = vmax.f32 %v3124, 0.0
      %v3173 = vmax.f32 %v3125, 0.0
      %v3174 = vmax.f32 %v3126, 0.0
      %v3175 = vmax.f32 %v3127, 0.0
      %v3176 = vmax.f32 %v3128, 0.0
      %v3177 = vmax.f32 %v3129, 0.0
      %v3178 = vmax.f32 %v3130, 0.0
      %v3179 = vmax.f32 %v3131, 0.0
      %v3180 = vmax.f32 %v3132, 0.0
      %v3181 = vmax.f32 %v3133, 0.0
      %v3182 = vmax.f32 %v3134, 0.0
      %v3183 = vmax.f32 %v3135, 0.0
      %v3184 = vmax.f32 %v3136, 0.0
      %v3185 = vmax.f32 %v3137, 0.0
      %v3186 = vmax.f32 %v3138, 0.0
      %v3187 = vmax.f32 %v3139, 0.0
      %v3188 = vmax.f32 %v3140, 0.0
      %v3189 = vmax.f32 %v3141, 0.0
      %v3190 = vmax.f32 %v3142, 0.0
      %v3191 = vmax.f32 %v3143, 0.0
      %v3192 = vmax.f32 %v3144, 0.0
      %v3193 = vmax.f32 %v3145, 0.0
      %v3194 = vmax.f32 %v3146, 0.0
      %v3195 = vmax.f32 %v3147, 0.0
      %v3196 = vmax.f32 %v3148, 0.0
      %v3197 = vmax.f32 %v3149, 0.0
      %v3198 = vmax.f32 %v3150, 0.0
      %v3199 = vmax.f32 %v3151, 0.0
      %v3200 = vmax.f32 %v3152, 0.0
      %v3201 = vmax.f32 %v3153, 0.0
      %v3202 = vmax.f32 %v3154, 0.0
      %v3203 = vmax.f32 %v3155, 0.0
      %v3204 = vmax.f32 %v3156, 0.0
      %v3205 = vmax.f32 %v3157, 0.0
      %v3206 = vmax.f32 %v3158, 0.0
      %v3207 = vmax.f32 %v3159, 0.0
      %v3208 = vmax.f32 %v3160, 0.0
      %v3209 = vmax.f32 %v3161, 0.0
      %v3210 = vmax.f32 %v3162, 0.0
      %v3211 = vld [vmem:[%s2616 + $0x1] sm:$0xff]
      %v3212 = vld [vmem:[%s2616 + $0x9] sm:$0xff]
      %v3213 = vld [vmem:[%s2616 + $0x19] sm:$0xff]
      %v3214 = vld [vmem:[%s2616 + $0x21] sm:$0xff]
      %v3215 = vld [vmem:[%s2616 + $0x31] sm:$0xff]
      %v3216 = vld [vmem:[%s2616 + $0x39] sm:$0xff]
      %v3217 = vld [vmem:[%s2616 + $0x49] sm:$0xff]
      %v3218 = vld [vmem:[%s2616 + $0x51] sm:$0xff]
      %v3219 = vld [vmem:[%s2616 + $0x61] sm:$0xff]
      %v3220 = vld [vmem:[%s2616 + $0x69] sm:$0xff]
      %v3221 = vld [vmem:[%s2616 + $0x79] sm:$0xff]
      %v3222 = vld [vmem:[%s2616 + $0x81] sm:$0xff]
      %v3223 = vld [vmem:[%s2616 + $0x91] sm:$0xff]
      %v3224 = vld [vmem:[%s2616 + $0x99] sm:$0xff]
      %v3225 = vld [vmem:[%s2616 + $0xa9] sm:$0xff]
      %v3226 = vld [vmem:[%s2616 + $0xb1] sm:$0xff]
      %v3227 = vld [vmem:[%s2616 + $0xc1] sm:$0xff]
      %v3228 = vld [vmem:[%s2616 + $0xc9] sm:$0xff]
      %v3229 = vld [vmem:[%s2616 + $0xd9] sm:$0xff]
      %v3230 = vld [vmem:[%s2616 + $0xe1] sm:$0xff]
      %v3231 = vld [vmem:[%s2616 + $0xf1] sm:$0xff]
      %v3232 = vld [vmem:[%s2616 + $0xf9] sm:$0xff]
      %v3233 = vld [vmem:[%s2616 + $0x109] sm:$0xff]
      %v3234 = vld [vmem:[%s2616 + $0x111] sm:$0xff]
      %v3235 = vld [vmem:[%s2616 + $0x121] sm:$0xff]
      %v3236 = vld [vmem:[%s2616 + $0x129] sm:$0xff]
      %v3237 = vld [vmem:[%s2616 + $0x139] sm:$0xff]
      %v3238 = vld [vmem:[%s2616 + $0x141] sm:$0xff]
      %v3239 = vld [vmem:[%s2616 + $0x151] sm:$0xff]
      %v3240 = vld [vmem:[%s2616 + $0x159] sm:$0xff]
      %v3241 = vld [vmem:[%s2616 + $0x169] sm:$0xff]
      %v3242 = vld [vmem:[%s2616 + $0x171] sm:$0xff]
      %v3275 = vrot.slane %v3211, 7
      %v3276 = vrot.slane %v3212, 7
      %v3277 = vsel %vm731, %v3275, %v3276
      %v3278 = vrot.slane %v3213, 7
      %v3279 = vrot.slane %v3214, 7
      %v3280 = vsel %vm731, %v3278, %v3279
      %v3281 = vrot.slane %v3215, 7
      %v3282 = vrot.slane %v3216, 7
      %v3283 = vsel %vm731, %v3281, %v3282
      %v3284 = vrot.slane %v3217, 7
      %v3285 = vrot.slane %v3218, 7
      %v3286 = vsel %vm731, %v3284, %v3285
      %v3287 = vrot.slane %v3219, 7
      %v3288 = vrot.slane %v3220, 7
      %v3289 = vsel %vm731, %v3287, %v3288
      %v3290 = vrot.slane %v3221, 7
      %v3291 = vrot.slane %v3222, 7
      %v3292 = vsel %vm731, %v3290, %v3291
      %v3293 = vrot.slane %v3223, 7
      %v3294 = vrot.slane %v3224, 7
      %v3295 = vsel %vm731, %v3293, %v3294
      %v3296 = vrot.slane %v3225, 7
      %v3297 = vrot.slane %v3226, 7
      %v3298 = vsel %vm731, %v3296, %v3297
      %v3299 = vrot.slane %v3227, 7
      %v3300 = vrot.slane %v3228, 7
      %v3301 = vsel %vm731, %v3299, %v3300
      %v3302 = vrot.slane %v3229, 7
      %v3303 = vrot.slane %v3230, 7
      %v3304 = vsel %vm731, %v3302, %v3303
      %v3305 = vrot.slane %v3231, 7
      %v3306 = vrot.slane %v3232, 7
      %v3307 = vsel %vm731, %v3305, %v3306
      %v3308 = vrot.slane %v3233, 7
      %v3309 = vrot.slane %v3234, 7
      %v3310 = vsel %vm731, %v3308, %v3309
      %v3311 = vrot.slane %v3235, 7
      %v3312 = vrot.slane %v3236, 7
      %v3313 = vsel %vm731, %v3311, %v3312
      %v3314 = vrot.slane %v3237, 7
      %v3315 = vrot.slane %v3238, 7
      %v3316 = vsel %vm731, %v3314, %v3315
      %v3317 = vrot.slane %v3239, 7
      %v3318 = vrot.slane %v3240, 7
      %v3319 = vsel %vm731, %v3317, %v3318
      %v3320 = vrot.slane %v3241, 7
      %v3321 = vrot.slane %v3242, 7
      %v3322 = vsel %vm731, %v3320, %v3321
      %v3371 = vmul.f32 %v3163, %v3275
      %v3372 = vmul.f32 %v3164, %v3277
      %v3373 = vmul.f32 %v3165, %v3276
      %v3374 = vmul.f32 %v3166, %v3278
      %v3375 = vmul.f32 %v3167, %v3280
      %v3376 = vmul.f32 %v3168, %v3279
      %v3377 = vmul.f32 %v3169, %v3281
      %v3378 = vmul.f32 %v3170, %v3283
      %v3379 = vmul.f32 %v3171, %v3282
      %v3380 = vmul.f32 %v3172, %v3284
      %v3381 = vmul.f32 %v3173, %v3286
      %v3382 = vmul.f32 %v3174, %v3285
      %v3383 = vmul.f32 %v3175, %v3287
      %v3384 = vmul.f32 %v3176, %v3289
      %v3385 = vmul.f32 %v3177, %v3288
      %v3386 = vmul.f32 %v3178, %v3290
      %v3387 = vmul.f32 %v3179, %v3292
      %v3388 = vmul.f32 %v3180, %v3291
      %v3389 = vmul.f32 %v3181, %v3293
      %v3390 = vmul.f32 %v3182, %v3295
      %v3391 = vmul.f32 %v3183, %v3294
      %v3392 = vmul.f32 %v3184, %v3296
      %v3393 = vmul.f32 %v3185, %v3298
      %v3394 = vmul.f32 %v3186, %v3297
      %v3395 = vmul.f32 %v3187, %v3299
      %v3396 = vmul.f32 %v3188, %v3301
      %v3397 = vmul.f32 %v3189, %v3300
      %v3398 = vmul.f32 %v3190, %v3302
      %v3399 = vmul.f32 %v3191, %v3304
      %v3400 = vmul.f32 %v3192, %v3303
      %v3401 = vmul.f32 %v3193, %v3305
      %v3402 = vmul.f32 %v3194, %v3307
      %v3403 = vmul.f32 %v3195, %v3306
      %v3404 = vmul.f32 %v3196, %v3308
      %v3405 = vmul.f32 %v3197, %v3310
      %v3406 = vmul.f32 %v3198, %v3309
      %v3407 = vmul.f32 %v3199, %v3311
      %v3408 = vmul.f32 %v3200, %v3313
      %v3409 = vmul.f32 %v3201, %v3312
      %v3410 = vmul.f32 %v3202, %v3314
      %v3411 = vmul.f32 %v3203, %v3316
      %v3412 = vmul.f32 %v3204, %v3315
      %v3413 = vmul.f32 %v3205, %v3317
      %v3414 = vmul.f32 %v3206, %v3319
      %v3415 = vmul.f32 %v3207, %v3318
      %v3416 = vmul.f32 %v3208, %v3320
      %v3417 = vmul.f32 %v3209, %v3322
      %v3418 = vmul.f32 %v3210, %v3321
      %v3419 = vpack.c.bf16 %v3371, %v3371
      %v3420 = vpack.c.bf16 %v3372, %v3372
      %v3421 = vpack.c.bf16 %v3373, %v3373
      %v3422 = vpack.c.bf16 %v3374, %v3374
      %v3423 = vpack.c.bf16 %v3375, %v3375
      %v3424 = vpack.c.bf16 %v3376, %v3376
      %v3425 = vpack.c.bf16 %v3377, %v3377
      %v3426 = vpack.c.bf16 %v3378, %v3378
      %v3427 = vpack.c.bf16 %v3379, %v3379
      %v3428 = vpack.c.bf16 %v3380, %v3380
      %v3429 = vpack.c.bf16 %v3381, %v3381
      %v3430 = vpack.c.bf16 %v3382, %v3382
      %v3431 = vpack.c.bf16 %v3383, %v3383
      %v3432 = vpack.c.bf16 %v3384, %v3384
      %v3433 = vpack.c.bf16 %v3385, %v3385
      %v3434 = vpack.c.bf16 %v3386, %v3386
      %v3435 = vpack.c.bf16 %v3387, %v3387
      %v3436 = vpack.c.bf16 %v3388, %v3388
      %v3437 = vpack.c.bf16 %v3389, %v3389
      %v3438 = vpack.c.bf16 %v3390, %v3390
      %v3439 = vpack.c.bf16 %v3391, %v3391
      %v3440 = vpack.c.bf16 %v3392, %v3392
      %v3441 = vpack.c.bf16 %v3393, %v3393
      %v3442 = vpack.c.bf16 %v3394, %v3394
      %v3443 = vpack.c.bf16 %v3395, %v3395
      %v3444 = vpack.c.bf16 %v3396, %v3396
      %v3445 = vpack.c.bf16 %v3397, %v3397
      %v3446 = vpack.c.bf16 %v3398, %v3398
      %v3447 = vpack.c.bf16 %v3399, %v3399
      %v3448 = vpack.c.bf16 %v3400, %v3400
      %v3449 = vpack.c.bf16 %v3401, %v3401
      %v3450 = vpack.c.bf16 %v3402, %v3402
      %v3451 = vpack.c.bf16 %v3403, %v3403
      %v3452 = vpack.c.bf16 %v3404, %v3404
      %v3453 = vpack.c.bf16 %v3405, %v3405
      %v3454 = vpack.c.bf16 %v3406, %v3406
      %v3455 = vpack.c.bf16 %v3407, %v3407
      %v3456 = vpack.c.bf16 %v3408, %v3408
      %v3457 = vpack.c.bf16 %v3409, %v3409
      %v3458 = vpack.c.bf16 %v3410, %v3410
      %v3459 = vpack.c.bf16 %v3411, %v3411
      %v3460 = vpack.c.bf16 %v3412, %v3412
      %v3461 = vpack.c.bf16 %v3413, %v3413
      %v3462 = vpack.c.bf16 %v3414, %v3414
      %v3463 = vpack.c.bf16 %v3415, %v3415
      %v3464 = vpack.c.bf16 %v3416, %v3416
      %v3465 = vpack.c.bf16 %v3417, %v3417
      %v3466 = vpack.c.bf16 %v3418, %v3418
      %v3468 = vshrl.u32 %v3419, 16
      %v3470 = vrot.slane %v3468, 4
      %v3471 = vshll.u32 %v3419, 16
      %v3473 = vrot.slane %v3471, 5
      %v3474 = vor.u32 %v3470, %v3473
      %v3475 = vrot.slane %v3474, 4
      %v3477 = vshll.u32 %v3420, 16
      %v3479 = vrot.slane %v3477, 5
      %v3480 = vsel %vm926, %v3475, %v3479
      %v3481 = vshrl.u32 %v3420, 16
      %v3483 = vrot.slane %v3481, 4
      %v3484 = vor.u32 %v3483, %v3479
      %v3485 = vrot.slane %v3484, 4
      %v3487 = vshll.u32 %v3421, 16
      %v3489 = vrot.slane %v3487, 5
      %v3490 = vsel %vm926, %v3485, %v3489
      %v3492 = vshrl.u32 %v3422, 16
      %v3494 = vrot.slane %v3492, 4
      %v3495 = vshll.u32 %v3422, 16
      %v3497 = vrot.slane %v3495, 5
      %v3498 = vor.u32 %v3494, %v3497
      %v3499 = vrot.slane %v3498, 4
      %v3501 = vshll.u32 %v3423, 16
      %v3503 = vrot.slane %v3501, 5
      %v3504 = vsel %vm926, %v3499, %v3503
      %v3505 = vshrl.u32 %v3423, 16
      %v3507 = vrot.slane %v3505, 4
      %v3508 = vor.u32 %v3507, %v3503
      %v3509 = vrot.slane %v3508, 4
      %v3511 = vshll.u32 %v3424, 16
      %v3513 = vrot.slane %v3511, 5
      %v3514 = vsel %vm926, %v3509, %v3513
      %v3516 = vshrl.u32 %v3425, 16
      %v3518 = vrot.slane %v3516, 4
      %v3519 = vshll.u32 %v3425, 16
      %v3521 = vrot.slane %v3519, 5
      %v3522 = vor.u32 %v3518, %v3521
      %v3523 = vrot.slane %v3522, 4
      %v3525 = vshll.u32 %v3426, 16
      %v3527 = vrot.slane %v3525, 5
      %v3528 = vsel %vm926, %v3523, %v3527
      %v3529 = vshrl.u32 %v3426, 16
      %v3531 = vrot.slane %v3529, 4
      %v3532 = vor.u32 %v3531, %v3527
      %v3533 = vrot.slane %v3532, 4
      %v3535 = vshll.u32 %v3427, 16
      %v3537 = vrot.slane %v3535, 5
      %v3538 = vsel %vm926, %v3533, %v3537
      %v3540 = vshrl.u32 %v3428, 16
      %v3542 = vrot.slane %v3540, 4
      %v3543 = vshll.u32 %v3428, 16
      %v3545 = vrot.slane %v3543, 5
      %v3546 = vor.u32 %v3542, %v3545
      %v3547 = vrot.slane %v3546, 4
      %v3549 = vshll.u32 %v3429, 16
      %v3551 = vrot.slane %v3549, 5
      %v3552 = vsel %vm926, %v3547, %v3551
      %v3553 = vshrl.u32 %v3429, 16
      %v3555 = vrot.slane %v3553, 4
      %v3556 = vor.u32 %v3555, %v3551
      %v3557 = vrot.slane %v3556, 4
      %v3559 = vshll.u32 %v3430, 16
      %v3561 = vrot.slane %v3559, 5
      %v3562 = vsel %vm926, %v3557, %v3561
      %v3564 = vshrl.u32 %v3431, 16
      %v3566 = vrot.slane %v3564, 4
      %v3567 = vshll.u32 %v3431, 16
      %v3569 = vrot.slane %v3567, 5
      %v3570 = vor.u32 %v3566, %v3569
      %v3571 = vrot.slane %v3570, 4
      %v3573 = vshll.u32 %v3432, 16
      %v3575 = vrot.slane %v3573, 5
      %v3576 = vsel %vm926, %v3571, %v3575
      %v3577 = vshrl.u32 %v3432, 16
      %v3579 = vrot.slane %v3577, 4
      %v3580 = vor.u32 %v3579, %v3575
      %v3581 = vrot.slane %v3580, 4
      %v3583 = vshll.u32 %v3433, 16
      %v3585 = vrot.slane %v3583, 5
      %v3586 = vsel %vm926, %v3581, %v3585
      %v3588 = vshrl.u32 %v3434, 16
      %v3590 = vrot.slane %v3588, 4
      %v3591 = vshll.u32 %v3434, 16
      %v3593 = vrot.slane %v3591, 5
      %v3594 = vor.u32 %v3590, %v3593
      %v3595 = vrot.slane %v3594, 4
      %v3597 = vshll.u32 %v3435, 16
      %v3599 = vrot.slane %v3597, 5
      %v3600 = vsel %vm926, %v3595, %v3599
      %v3601 = vshrl.u32 %v3435, 16
      %v3603 = vrot.slane %v3601, 4
      %v3604 = vor.u32 %v3603, %v3599
      %v3605 = vrot.slane %v3604, 4
      %v3607 = vshll.u32 %v3436, 16
      %v3609 = vrot.slane %v3607, 5
      %v3610 = vsel %vm926, %v3605, %v3609
      %v3612 = vshrl.u32 %v3437, 16
      %v3614 = vrot.slane %v3612, 4
      %v3615 = vshll.u32 %v3437, 16
      %v3617 = vrot.slane %v3615, 5
      %v3618 = vor.u32 %v3614, %v3617
      %v3619 = vrot.slane %v3618, 4
      %v3621 = vshll.u32 %v3438, 16
      %v3623 = vrot.slane %v3621, 5
      %v3624 = vsel %vm926, %v3619, %v3623
      %v3625 = vshrl.u32 %v3438, 16
      %v3627 = vrot.slane %v3625, 4
      %v3628 = vor.u32 %v3627, %v3623
      %v3629 = vrot.slane %v3628, 4
      %v3631 = vshll.u32 %v3439, 16
      %v3633 = vrot.slane %v3631, 5
      %v3634 = vsel %vm926, %v3629, %v3633
      %v3636 = vshrl.u32 %v3440, 16
      %v3638 = vrot.slane %v3636, 4
      %v3639 = vshll.u32 %v3440, 16
      %v3641 = vrot.slane %v3639, 5
      %v3642 = vor.u32 %v3638, %v3641
      %v3643 = vrot.slane %v3642, 4
      %v3645 = vshll.u32 %v3441, 16
      %v3647 = vrot.slane %v3645, 5
      %v3648 = vsel %vm926, %v3643, %v3647
      %v3649 = vshrl.u32 %v3441, 16
      %v3651 = vrot.slane %v3649, 4
      %v3652 = vor.u32 %v3651, %v3647
      %v3653 = vrot.slane %v3652, 4
      %v3655 = vshll.u32 %v3442, 16
      %v3657 = vrot.slane %v3655, 5
      %v3658 = vsel %vm926, %v3653, %v3657
      %v3660 = vshrl.u32 %v3443, 16
      %v3662 = vrot.slane %v3660, 4
      %v3663 = vshll.u32 %v3443, 16
      %v3665 = vrot.slane %v3663, 5
      %v3666 = vor.u32 %v3662, %v3665
      %v3667 = vrot.slane %v3666, 4
      %v3669 = vshll.u32 %v3444, 16
      %v3671 = vrot.slane %v3669, 5
      %v3672 = vsel %vm926, %v3667, %v3671
      %v3673 = vshrl.u32 %v3444, 16
      %v3675 = vrot.slane %v3673, 4
      %v3676 = vor.u32 %v3675, %v3671
      %v3677 = vrot.slane %v3676, 4
      %v3679 = vshll.u32 %v3445, 16
      %v3681 = vrot.slane %v3679, 5
      %v3682 = vsel %vm926, %v3677, %v3681
      %v3684 = vshrl.u32 %v3446, 16
      %v3686 = vrot.slane %v3684, 4
      %v3687 = vshll.u32 %v3446, 16
      %v3689 = vrot.slane %v3687, 5
      %v3690 = vor.u32 %v3686, %v3689
      %v3691 = vrot.slane %v3690, 4
      %v3693 = vshll.u32 %v3447, 16
      %v3695 = vrot.slane %v3693, 5
      %v3696 = vsel %vm926, %v3691, %v3695
      %v3697 = vshrl.u32 %v3447, 16
      %v3699 = vrot.slane %v3697, 4
      %v3700 = vor.u32 %v3699, %v3695
      %v3701 = vrot.slane %v3700, 4
      %v3703 = vshll.u32 %v3448, 16
      %v3705 = vrot.slane %v3703, 5
      %v3706 = vsel %vm926, %v3701, %v3705
      %v3708 = vshrl.u32 %v3449, 16
      %v3710 = vrot.slane %v3708, 4
      %v3711 = vshll.u32 %v3449, 16
      %v3713 = vrot.slane %v3711, 5
      %v3714 = vor.u32 %v3710, %v3713
      %v3715 = vrot.slane %v3714, 4
      %v3717 = vshll.u32 %v3450, 16
      %v3719 = vrot.slane %v3717, 5
      %v3720 = vsel %vm926, %v3715, %v3719
      %v3721 = vshrl.u32 %v3450, 16
      %v3723 = vrot.slane %v3721, 4
      %v3724 = vor.u32 %v3723, %v3719
      %v3725 = vrot.slane %v3724, 4
      %v3727 = vshll.u32 %v3451, 16
      %v3729 = vrot.slane %v3727, 5
      %v3730 = vsel %vm926, %v3725, %v3729
      %v3732 = vshrl.u32 %v3452, 16
      %v3734 = vrot.slane %v3732, 4
      %v3735 = vshll.u32 %v3452, 16
      %v3737 = vrot.slane %v3735, 5
      %v3738 = vor.u32 %v3734, %v3737
      %v3739 = vrot.slane %v3738, 4
      %v3741 = vshll.u32 %v3453, 16
      %v3743 = vrot.slane %v3741, 5
      %v3744 = vsel %vm926, %v3739, %v3743
      %v3745 = vshrl.u32 %v3453, 16
      %v3747 = vrot.slane %v3745, 4
      %v3748 = vor.u32 %v3747, %v3743
      %v3749 = vrot.slane %v3748, 4
      %v3751 = vshll.u32 %v3454, 16
      %v3753 = vrot.slane %v3751, 5
      %v3754 = vsel %vm926, %v3749, %v3753
      %v3756 = vshrl.u32 %v3455, 16
      %v3758 = vrot.slane %v3756, 4
      %v3759 = vshll.u32 %v3455, 16
      %v3761 = vrot.slane %v3759, 5
      %v3762 = vor.u32 %v3758, %v3761
      %v3763 = vrot.slane %v3762, 4
      %v3765 = vshll.u32 %v3456, 16
      %v3767 = vrot.slane %v3765, 5
      %v3768 = vsel %vm926, %v3763, %v3767
      %v3769 = vshrl.u32 %v3456, 16
      %v3771 = vrot.slane %v3769, 4
      %v3772 = vor.u32 %v3771, %v3767
      %v3773 = vrot.slane %v3772, 4
      %v3775 = vshll.u32 %v3457, 16
      %v3777 = vrot.slane %v3775, 5
      %v3778 = vsel %vm926, %v3773, %v3777
      %v3780 = vshrl.u32 %v3458, 16
      %v3782 = vrot.slane %v3780, 4
      %v3783 = vshll.u32 %v3458, 16
      %v3785 = vrot.slane %v3783, 5
      %v3786 = vor.u32 %v3782, %v3785
      %v3787 = vrot.slane %v3786, 4
      %v3789 = vshll.u32 %v3459, 16
      %v3791 = vrot.slane %v3789, 5
      %v3792 = vsel %vm926, %v3787, %v3791
      %v3793 = vshrl.u32 %v3459, 16
      %v3795 = vrot.slane %v3793, 4
      %v3796 = vor.u32 %v3795, %v3791
      %v3797 = vrot.slane %v3796, 4
      %v3799 = vshll.u32 %v3460, 16
      %v3801 = vrot.slane %v3799, 5
      %v3802 = vsel %vm926, %v3797, %v3801
      %v3804 = vshrl.u32 %v3461, 16
      %v3806 = vrot.slane %v3804, 4
      %v3807 = vshll.u32 %v3461, 16
      %v3809 = vrot.slane %v3807, 5
      %v3810 = vor.u32 %v3806, %v3809
      %v3811 = vrot.slane %v3810, 4
      %v3813 = vshll.u32 %v3462, 16
      %v3815 = vrot.slane %v3813, 5
      %v3816 = vsel %vm926, %v3811, %v3815
      %v3817 = vshrl.u32 %v3462, 16
      %v3819 = vrot.slane %v3817, 4
      %v3820 = vor.u32 %v3819, %v3815
      %v3821 = vrot.slane %v3820, 4
      %v3823 = vshll.u32 %v3463, 16
      %v3825 = vrot.slane %v3823, 5
      %v3826 = vsel %vm926, %v3821, %v3825
      %v3828 = vshrl.u32 %v3464, 16
      %v3830 = vrot.slane %v3828, 4
      %v3831 = vshll.u32 %v3464, 16
      %v3833 = vrot.slane %v3831, 5
      %v3834 = vor.u32 %v3830, %v3833
      %v3835 = vrot.slane %v3834, 4
      %v3837 = vshll.u32 %v3465, 16
      %v3839 = vrot.slane %v3837, 5
      %v3840 = vsel %vm926, %v3835, %v3839
      %v3841 = vshrl.u32 %v3465, 16
      %v3843 = vrot.slane %v3841, 4
      %v3844 = vor.u32 %v3843, %v3839
      %v3845 = vrot.slane %v3844, 4
      %v3847 = vshll.u32 %v3466, 16
      %v3849 = vrot.slane %v3847, 5
      %v3850 = vsel %vm926, %v3845, %v3849
      %s3851 = scalar_lea.vmem %s4, 32
      %v3852 = vld [vmem:[%s3851] sm:$0xf]
      %v3853 = vld [vmem:[%s3851 + $0x4] sm:$0xf]
      %v3854 = vunpack.c.l.b16 %v3480
      %v3855 = vunpack.c.l.b16 %v3490
      %v3856 = vunpack.c.l.b16 %v3504
      %v3857 = vunpack.c.l.b16 %v3514
      %v3858 = vunpack.c.l.b16 %v3528
      %v3859 = vunpack.c.l.b16 %v3538
      %v3860 = vunpack.c.l.b16 %v3552
      %v3861 = vunpack.c.l.b16 %v3562
      %v3862 = vunpack.c.l.b16 %v3576
      %v3863 = vunpack.c.l.b16 %v3586
      %v3864 = vunpack.c.l.b16 %v3600
      %v3865 = vunpack.c.l.b16 %v3610
      %v3866 = vunpack.c.l.b16 %v3624
      %v3867 = vunpack.c.l.b16 %v3634
      %v3868 = vunpack.c.l.b16 %v3648
      %v3869 = vunpack.c.l.b16 %v3658
      %v3870 = vunpack.c.l.b16 %v3672
      %v3871 = vunpack.c.l.b16 %v3682
      %v3872 = vunpack.c.l.b16 %v3696
      %v3873 = vunpack.c.l.b16 %v3706
      %v3874 = vunpack.c.l.b16 %v3720
      %v3875 = vunpack.c.l.b16 %v3730
      %v3876 = vunpack.c.l.b16 %v3744
      %v3877 = vunpack.c.l.b16 %v3754
      %v3878 = vunpack.c.l.b16 %v3768
      %v3879 = vunpack.c.l.b16 %v3778
      %v3880 = vunpack.c.l.b16 %v3792
      %v3881 = vunpack.c.l.b16 %v3802
      %v3882 = vunpack.c.l.b16 %v3816
      %v3883 = vunpack.c.l.b16 %v3826
      %v3884 = vunpack.c.l.b16 %v3840
      %v3885 = vunpack.c.l.b16 %v3850
      %v3886 = vpack.c.b16 %v3855, %v3854
      %v3887 = vpack.c.b16 %v3857, %v3856
      %v3888 = vpack.c.b16 %v3859, %v3858
      %v3889 = vpack.c.b16 %v3861, %v3860
      %v3890 = vpack.c.b16 %v3863, %v3862
      %v3891 = vpack.c.b16 %v3865, %v3864
      %v3892 = vpack.c.b16 %v3867, %v3866
      %v3893 = vpack.c.b16 %v3869, %v3868
      %v3894 = vpack.c.b16 %v3871, %v3870
      %v3895 = vpack.c.b16 %v3873, %v3872
      %v3896 = vpack.c.b16 %v3875, %v3874
      %v3897 = vpack.c.b16 %v3877, %v3876
      %v3898 = vpack.c.b16 %v3879, %v3878
      %v3899 = vpack.c.b16 %v3881, %v3880
      %v3900 = vpack.c.b16 %v3883, %v3882
      %v3901 = vpack.c.b16 %v3885, %v3884
      %v3904 = vunpack.c.l.b16 %v3852
      %v3905 = vunpack.c.l.b16 %v3853
      %v3906 = vpack.c.b16 %v3905, %v3904
      %v3909 = vsel %vm1368, %v3886, 0
      %v3912 = vsel %vm1368, %v3887, 0
      %v3915 = vsel %vm1368, %v3888, 0
      %v3918 = vsel %vm1368, %v3889, 0
      %v3921 = vsel %vm1368, %v3890, 0
      %v3924 = vsel %vm1368, %v3891, 0
      %v3927 = vsel %vm1368, %v3892, 0
      %v3930 = vsel %vm1368, %v3893, 0
      %v3933 = vsel %vm1368, %v3894, 0
      %v3936 = vsel %vm1368, %v3895, 0
      %v3939 = vsel %vm1368, %v3896, 0
      %v3942 = vsel %vm1368, %v3897, 0
      %v3945 = vsel %vm1368, %v3898, 0
      %v3948 = vsel %vm1368, %v3899, 0
      %v3951 = vsel %vm1368, %v3900, 0
      %v3954 = vsel %vm1368, %v3901, 0
      %3956 = vmatpush.bf16.msra.mxu0 0
      %3957 = vmatpush.bf16.msra.mxu0 0
      %3958 = vmatpush.bf16.msra.mxu0 0
      %3959 = vmatpush.bf16.msra.mxu0 0
      %3960 = vmatpush.bf16.msra.mxu0 0
      %3961 = vmatpush.bf16.msra.mxu0 0
      %3962 = vmatpush.bf16.msra.mxu0 0
      %3963 = vmatpush.bf16.msra.mxu0 %v3906
      %3964 = vmatmul.bf16.gmra.mxu0 %v3909
      %v3965 = vpop.f32.mrf.mxu0
      %v3966 = vadd.f32 0.0, %v3965
      %v3967 = vpop.f32.mrf.mxu0
      %v3968 = vadd.f32 0.0, %v3967
      %3969 = vmatmul.bf16.gmra.mxu0 %v3912
      %v3970 = vpop.f32.mrf.mxu0
      %v3971 = vadd.f32 0.0, %v3970
      %v3972 = vpop.f32.mrf.mxu0
      %v3973 = vadd.f32 0.0, %v3972
      %3974 = vmatmul.bf16.gmra.mxu0 %v3915
      %v3975 = vpop.f32.mrf.mxu0
      %v3976 = vadd.f32 0.0, %v3975
      %v3977 = vpop.f32.mrf.mxu0
      %v3978 = vadd.f32 0.0, %v3977
      %3979 = vmatmul.bf16.gmra.mxu0 %v3918
      %v3980 = vpop.f32.mrf.mxu0
      %v3981 = vadd.f32 0.0, %v3980
      %v3982 = vpop.f32.mrf.mxu0
      %v3983 = vadd.f32 0.0, %v3982
      %3984 = vmatmul.bf16.gmra.mxu0 %v3921
      %v3985 = vpop.f32.mrf.mxu0
      %v3986 = vadd.f32 0.0, %v3985
      %v3987 = vpop.f32.mrf.mxu0
      %v3988 = vadd.f32 0.0, %v3987
      %3989 = vmatmul.bf16.gmra.mxu0 %v3924
      %v3990 = vpop.f32.mrf.mxu0
      %v3991 = vadd.f32 0.0, %v3990
      %v3992 = vpop.f32.mrf.mxu0
      %v3993 = vadd.f32 0.0, %v3992
      %3994 = vmatmul.bf16.gmra.mxu0 %v3927
      %v3995 = vpop.f32.mrf.mxu0
      %v3996 = vadd.f32 0.0, %v3995
      %v3997 = vpop.f32.mrf.mxu0
      %v3998 = vadd.f32 0.0, %v3997
      %3999 = vmatmul.bf16.gmra.mxu0 %v3930
      %v4000 = vpop.f32.mrf.mxu0
      %v4001 = vadd.f32 0.0, %v4000
      %v4002 = vpop.f32.mrf.mxu0
      %v4003 = vadd.f32 0.0, %v4002
      %4004 = vmatmul.bf16.gmra.mxu0 %v3933
      %v4005 = vpop.f32.mrf.mxu0
      %v4006 = vadd.f32 0.0, %v4005
      %v4007 = vpop.f32.mrf.mxu0
      %v4008 = vadd.f32 0.0, %v4007
      %4009 = vmatmul.bf16.gmra.mxu0 %v3936
      %v4010 = vpop.f32.mrf.mxu0
      %v4011 = vadd.f32 0.0, %v4010
      %v4012 = vpop.f32.mrf.mxu0
      %v4013 = vadd.f32 0.0, %v4012
      %4014 = vmatmul.bf16.gmra.mxu0 %v3939
      %v4015 = vpop.f32.mrf.mxu0
      %v4016 = vadd.f32 0.0, %v4015
      %v4017 = vpop.f32.mrf.mxu0
      %v4018 = vadd.f32 0.0, %v4017
      %4019 = vmatmul.bf16.gmra.mxu0 %v3942
      %v4020 = vpop.f32.mrf.mxu0
      %v4021 = vadd.f32 0.0, %v4020
      %v4022 = vpop.f32.mrf.mxu0
      %v4023 = vadd.f32 0.0, %v4022
      %4024 = vmatmul.bf16.gmra.mxu0 %v3945
      %v4025 = vpop.f32.mrf.mxu0
      %v4026 = vadd.f32 0.0, %v4025
      %v4027 = vpop.f32.mrf.mxu0
      %v4028 = vadd.f32 0.0, %v4027
      %4029 = vmatmul.bf16.gmra.mxu0 %v3948
      %v4030 = vpop.f32.mrf.mxu0
      %v4031 = vadd.f32 0.0, %v4030
      %v4032 = vpop.f32.mrf.mxu0
      %v4033 = vadd.f32 0.0, %v4032
      %4034 = vmatmul.bf16.gmra.mxu0 %v3951
      %v4035 = vpop.f32.mrf.mxu0
      %v4036 = vadd.f32 0.0, %v4035
      %v4037 = vpop.f32.mrf.mxu0
      %v4038 = vadd.f32 0.0, %v4037
      %4039 = vmatmul.bf16.gmra.mxu0 %v3954
      %v4040 = vpop.f32.mrf.mxu0
      %v4041 = vadd.f32 0.0, %v4040
      %v4042 = vpop.f32.mrf.mxu0
      %v4043 = vadd.f32 0.0, %v4042
      %4044 = vdwg.mxu0
      %v4045 = vadd.f32 %v2939, %v3966
      %v4046 = vadd.f32 %v2940, %v3968
      %v4047 = vadd.f32 %v2941, %v3971
      %v4048 = vadd.f32 %v2942, %v3973
      %v4049 = vadd.f32 %v2943, %v3976
      %v4050 = vadd.f32 %v2944, %v3978
      %v4051 = vadd.f32 %v2945, %v3981
      %v4052 = vadd.f32 %v2946, %v3983
      %v4053 = vadd.f32 %v2947, %v3986
      %v4054 = vadd.f32 %v2948, %v3988
      %v4055 = vadd.f32 %v2949, %v3991
      %v4056 = vadd.f32 %v2950, %v3993
      %v4057 = vadd.f32 %v2951, %v3996
      %v4058 = vadd.f32 %v2952, %v3998
      %v4059 = vadd.f32 %v2953, %v4001
      %v4060 = vadd.f32 %v2954, %v4003
      %v4061 = vadd.f32 %v2955, %v4006
      %v4062 = vadd.f32 %v2956, %v4008
      %v4063 = vadd.f32 %v2957, %v4011
      %v4064 = vadd.f32 %v2958, %v4013
      %v4065 = vadd.f32 %v2959, %v4016
      %v4066 = vadd.f32 %v2960, %v4018
      %v4067 = vadd.f32 %v2961, %v4021
      %v4068 = vadd.f32 %v2962, %v4023
      %v4069 = vadd.f32 %v2963, %v4026
      %v4070 = vadd.f32 %v2964, %v4028
      %v4071 = vadd.f32 %v2965, %v4031
      %v4072 = vadd.f32 %v2966, %v4033
      %v4073 = vadd.f32 %v2967, %v4036
      %v4074 = vadd.f32 %v2968, %v4038
      %v4075 = vadd.f32 %v2969, %v4041
      %v4076 = vadd.f32 %v2970, %v4043
      %v4077 = vld [vmem:[%s2455] sm:$0xe]
      %v4078 = vld [vmem:[%s2455 + $0xc] sm:$0xe]
      %v4079 = vld [vmem:[%s2455 + $0x18] sm:$0xe]
      %v4080 = vld [vmem:[%s2455 + $0x24] sm:$0xe]
      %v4081 = vld [vmem:[%s2455 + $0x30] sm:$0xe]
      %v4082 = vld [vmem:[%s2455 + $0x3c] sm:$0xe]
      %v4083 = vld [vmem:[%s2455 + $0x48] sm:$0xe]
      %v4084 = vld [vmem:[%s2455 + $0x54] sm:$0xe]
      %v4085 = vld [vmem:[%s2455 + $0x60] sm:$0xe]
      %v4086 = vld [vmem:[%s2455 + $0x6c] sm:$0xe]
      %v4087 = vld [vmem:[%s2455 + $0x78] sm:$0xe]
      %v4088 = vld [vmem:[%s2455 + $0x84] sm:$0xe]
      %v4089 = vld [vmem:[%s2455 + $0x90] sm:$0xe]
      %v4090 = vld [vmem:[%s2455 + $0x9c] sm:$0xe]
      %v4091 = vld [vmem:[%s2455 + $0xa8] sm:$0xe]
      %v4092 = vld [vmem:[%s2455 + $0xb4] sm:$0xe]
      %v4093 = vunpack.c.l.bf16 %v4077
      %v4094 = vunpack.c.l.bf16 %v4078
      %v4095 = vunpack.c.l.bf16 %v4079
      %v4096 = vunpack.c.l.bf16 %v4080
      %v4097 = vunpack.c.l.bf16 %v4081
      %v4098 = vunpack.c.l.bf16 %v4082
      %v4099 = vunpack.c.l.bf16 %v4083
      %v4100 = vunpack.c.l.bf16 %v4084
      %v4101 = vunpack.c.l.bf16 %v4085
      %v4102 = vunpack.c.l.bf16 %v4086
      %v4103 = vunpack.c.l.bf16 %v4087
      %v4104 = vunpack.c.l.bf16 %v4088
      %v4105 = vunpack.c.l.bf16 %v4089
      %v4106 = vunpack.c.l.bf16 %v4090
      %v4107 = vunpack.c.l.bf16 %v4091
      %v4108 = vunpack.c.l.bf16 %v4092
      %v4109 = vmul.f32 %v4093, %v388
      %v4110 = vmul.f32 %v4094, %v388
      %v4111 = vmul.f32 %v4095, %v388
      %v4112 = vmul.f32 %v4096, %v388
      %v4113 = vmul.f32 %v4097, %v388
      %v4114 = vmul.f32 %v4098, %v388
      %v4115 = vmul.f32 %v4099, %v388
      %v4116 = vmul.f32 %v4100, %v388
      %v4117 = vmul.f32 %v4101, %v388
      %v4118 = vmul.f32 %v4102, %v388
      %v4119 = vmul.f32 %v4103, %v388
      %v4120 = vmul.f32 %v4104, %v388
      %v4121 = vmul.f32 %v4105, %v388
      %v4122 = vmul.f32 %v4106, %v388
      %v4123 = vmul.f32 %v4107, %v388
      %v4124 = vmul.f32 %v4108, %v388
      %v4125 = vadd.f32 %v4109, %v423
      %v4126 = vadd.f32 %v4110, %v423
      %v4127 = vadd.f32 %v4111, %v423
      %v4128 = vadd.f32 %v4112, %v423
      %v4129 = vadd.f32 %v4113, %v423
      %v4130 = vadd.f32 %v4114, %v423
      %v4131 = vadd.f32 %v4115, %v423
      %v4132 = vadd.f32 %v4116, %v423
      %v4133 = vadd.f32 %v4117, %v423
      %v4134 = vadd.f32 %v4118, %v423
      %v4135 = vadd.f32 %v4119, %v423
      %v4136 = vadd.f32 %v4120, %v423
      %v4137 = vadd.f32 %v4121, %v423
      %v4138 = vadd.f32 %v4122, %v423
      %v4139 = vadd.f32 %v4123, %v423
      %v4140 = vadd.f32 %v4124, %v423
      %v4141 = vmax.f32 %v4125, 0.0
      %v4142 = vmax.f32 %v4126, 0.0
      %v4143 = vmax.f32 %v4127, 0.0
      %v4144 = vmax.f32 %v4128, 0.0
      %v4145 = vmax.f32 %v4129, 0.0
      %v4146 = vmax.f32 %v4130, 0.0
      %v4147 = vmax.f32 %v4131, 0.0
      %v4148 = vmax.f32 %v4132, 0.0
      %v4149 = vmax.f32 %v4133, 0.0
      %v4150 = vmax.f32 %v4134, 0.0
      %v4151 = vmax.f32 %v4135, 0.0
      %v4152 = vmax.f32 %v4136, 0.0
      %v4153 = vmax.f32 %v4137, 0.0
      %v4154 = vmax.f32 %v4138, 0.0
      %v4155 = vmax.f32 %v4139, 0.0
      %v4156 = vmax.f32 %v4140, 0.0
      %v4157 = vld [vmem:[%s2616 + $0x2] sm:$0xff]
      %v4158 = vld [vmem:[%s2616 + $0xa] sm:$0xff]
      %v4159 = vld [vmem:[%s2616 + $0x1a] sm:$0xff]
      %v4160 = vld [vmem:[%s2616 + $0x22] sm:$0xff]
      %v4161 = vld [vmem:[%s2616 + $0x32] sm:$0xff]
      %v4162 = vld [vmem:[%s2616 + $0x3a] sm:$0xff]
      %v4163 = vld [vmem:[%s2616 + $0x4a] sm:$0xff]
      %v4164 = vld [vmem:[%s2616 + $0x52] sm:$0xff]
      %v4165 = vld [vmem:[%s2616 + $0x62] sm:$0xff]
      %v4166 = vld [vmem:[%s2616 + $0x6a] sm:$0xff]
      %v4167 = vld [vmem:[%s2616 + $0x7a] sm:$0xff]
      %v4168 = vld [vmem:[%s2616 + $0x82] sm:$0xff]
      %v4169 = vld [vmem:[%s2616 + $0x92] sm:$0xff]
      %v4170 = vld [vmem:[%s2616 + $0x9a] sm:$0xff]
      %v4171 = vld [vmem:[%s2616 + $0xaa] sm:$0xff]
      %v4172 = vld [vmem:[%s2616 + $0xb2] sm:$0xff]
      %v4173 = vld [vmem:[%s2616 + $0xc2] sm:$0xff]
      %v4174 = vld [vmem:[%s2616 + $0xca] sm:$0xff]
      %v4175 = vld [vmem:[%s2616 + $0xda] sm:$0xff]
      %v4176 = vld [vmem:[%s2616 + $0xe2] sm:$0xff]
      %v4177 = vld [vmem:[%s2616 + $0xf2] sm:$0xff]
      %v4178 = vld [vmem:[%s2616 + $0xfa] sm:$0xff]
      %v4179 = vld [vmem:[%s2616 + $0x10a] sm:$0xff]
      %v4180 = vld [vmem:[%s2616 + $0x112] sm:$0xff]
      %v4181 = vld [vmem:[%s2616 + $0x122] sm:$0xff]
      %v4182 = vld [vmem:[%s2616 + $0x12a] sm:$0xff]
      %v4183 = vld [vmem:[%s2616 + $0x13a] sm:$0xff]
      %v4184 = vld [vmem:[%s2616 + $0x142] sm:$0xff]
      %v4185 = vld [vmem:[%s2616 + $0x152] sm:$0xff]
      %v4186 = vld [vmem:[%s2616 + $0x15a] sm:$0xff]
      %v4187 = vld [vmem:[%s2616 + $0x16a] sm:$0xff]
      %v4188 = vld [vmem:[%s2616 + $0x172] sm:$0xff]
      %v4221 = vrot.slane %v4157, 6
      %v4222 = vrot.slane %v4158, 6
      %v4223 = vsel %vm1873, %v4221, %v4222
      %v4224 = vrot.slane %v4159, 6
      %v4225 = vrot.slane %v4160, 6
      %v4226 = vsel %vm1873, %v4224, %v4225
      %v4227 = vrot.slane %v4161, 6
      %v4228 = vrot.slane %v4162, 6
      %v4229 = vsel %vm1873, %v4227, %v4228
      %v4230 = vrot.slane %v4163, 6
      %v4231 = vrot.slane %v4164, 6
      %v4232 = vsel %vm1873, %v4230, %v4231
      %v4233 = vrot.slane %v4165, 6
      %v4234 = vrot.slane %v4166, 6
      %v4235 = vsel %vm1873, %v4233, %v4234
      %v4236 = vrot.slane %v4167, 6
      %v4237 = vrot.slane %v4168, 6
      %v4238 = vsel %vm1873, %v4236, %v4237
      %v4239 = vrot.slane %v4169, 6
      %v4240 = vrot.slane %v4170, 6
      %v4241 = vsel %vm1873, %v4239, %v4240
      %v4242 = vrot.slane %v4171, 6
      %v4243 = vrot.slane %v4172, 6
      %v4244 = vsel %vm1873, %v4242, %v4243
      %v4245 = vrot.slane %v4173, 6
      %v4246 = vrot.slane %v4174, 6
      %v4247 = vsel %vm1873, %v4245, %v4246
      %v4248 = vrot.slane %v4175, 6
      %v4249 = vrot.slane %v4176, 6
      %v4250 = vsel %vm1873, %v4248, %v4249
      %v4251 = vrot.slane %v4177, 6
      %v4252 = vrot.slane %v4178, 6
      %v4253 = vsel %vm1873, %v4251, %v4252
      %v4254 = vrot.slane %v4179, 6
      %v4255 = vrot.slane %v4180, 6
      %v4256 = vsel %vm1873, %v4254, %v4255
      %v4257 = vrot.slane %v4181, 6
      %v4258 = vrot.slane %v4182, 6
      %v4259 = vsel %vm1873, %v4257, %v4258
      %v4260 = vrot.slane %v4183, 6
      %v4261 = vrot.slane %v4184, 6
      %v4262 = vsel %vm1873, %v4260, %v4261
      %v4263 = vrot.slane %v4185, 6
      %v4264 = vrot.slane %v4186, 6
      %v4265 = vsel %vm1873, %v4263, %v4264
      %v4266 = vrot.slane %v4187, 6
      %v4267 = vrot.slane %v4188, 6
      %v4268 = vsel %vm1873, %v4266, %v4267
      %v4317 = vmul.f32 %v4141, %v4221
      %v4318 = vmul.f32 %v3164, %v4223
      %v4319 = vmul.f32 %v3165, %v4222
      %v4320 = vmul.f32 %v4142, %v4224
      %v4321 = vmul.f32 %v3167, %v4226
      %v4322 = vmul.f32 %v3168, %v4225
      %v4323 = vmul.f32 %v4143, %v4227
      %v4324 = vmul.f32 %v3170, %v4229
      %v4325 = vmul.f32 %v3171, %v4228
      %v4326 = vmul.f32 %v4144, %v4230
      %v4327 = vmul.f32 %v3173, %v4232
      %v4328 = vmul.f32 %v3174, %v4231
      %v4329 = vmul.f32 %v4145, %v4233
      %v4330 = vmul.f32 %v3176, %v4235
      %v4331 = vmul.f32 %v3177, %v4234
      %v4332 = vmul.f32 %v4146, %v4236
      %v4333 = vmul.f32 %v3179, %v4238
      %v4334 = vmul.f32 %v3180, %v4237
      %v4335 = vmul.f32 %v4147, %v4239
      %v4336 = vmul.f32 %v3182, %v4241
      %v4337 = vmul.f32 %v3183, %v4240
      %v4338 = vmul.f32 %v4148, %v4242
      %v4339 = vmul.f32 %v3185, %v4244
      %v4340 = vmul.f32 %v3186, %v4243
      %v4341 = vmul.f32 %v4149, %v4245
      %v4342 = vmul.f32 %v3188, %v4247
      %v4343 = vmul.f32 %v3189, %v4246
      %v4344 = vmul.f32 %v4150, %v4248
      %v4345 = vmul.f32 %v3191, %v4250
      %v4346 = vmul.f32 %v3192, %v4249
      %v4347 = vmul.f32 %v4151, %v4251
      %v4348 = vmul.f32 %v3194, %v4253
      %v4349 = vmul.f32 %v3195, %v4252
      %v4350 = vmul.f32 %v4152, %v4254
      %v4351 = vmul.f32 %v3197, %v4256
      %v4352 = vmul.f32 %v3198, %v4255
      %v4353 = vmul.f32 %v4153, %v4257
      %v4354 = vmul.f32 %v3200, %v4259
      %v4355 = vmul.f32 %v3201, %v4258
      %v4356 = vmul.f32 %v4154, %v4260
      %v4357 = vmul.f32 %v3203, %v4262
      %v4358 = vmul.f32 %v3204, %v4261
      %v4359 = vmul.f32 %v4155, %v4263
      %v4360 = vmul.f32 %v3206, %v4265
      %v4361 = vmul.f32 %v3207, %v4264
      %v4362 = vmul.f32 %v4156, %v4266
      %v4363 = vmul.f32 %v3209, %v4268
      %v4364 = vmul.f32 %v3210, %v4267
      %v4365 = vpack.c.bf16 %v4317, %v4317
      %v4366 = vpack.c.bf16 %v4318, %v4318
      %v4367 = vpack.c.bf16 %v4319, %v4319
      %v4368 = vpack.c.bf16 %v4320, %v4320
      %v4369 = vpack.c.bf16 %v4321, %v4321
      %v4370 = vpack.c.bf16 %v4322, %v4322
      %v4371 = vpack.c.bf16 %v4323, %v4323
      %v4372 = vpack.c.bf16 %v4324, %v4324
      %v4373 = vpack.c.bf16 %v4325, %v4325
      %v4374 = vpack.c.bf16 %v4326, %v4326
      %v4375 = vpack.c.bf16 %v4327, %v4327
      %v4376 = vpack.c.bf16 %v4328, %v4328
      %v4377 = vpack.c.bf16 %v4329, %v4329
      %v4378 = vpack.c.bf16 %v4330, %v4330
      %v4379 = vpack.c.bf16 %v4331, %v4331
      %v4380 = vpack.c.bf16 %v4332, %v4332
      %v4381 = vpack.c.bf16 %v4333, %v4333
      %v4382 = vpack.c.bf16 %v4334, %v4334
      %v4383 = vpack.c.bf16 %v4335, %v4335
      %v4384 = vpack.c.bf16 %v4336, %v4336
      %v4385 = vpack.c.bf16 %v4337, %v4337
      %v4386 = vpack.c.bf16 %v4338, %v4338
      %v4387 = vpack.c.bf16 %v4339, %v4339
      %v4388 = vpack.c.bf16 %v4340, %v4340
      %v4389 = vpack.c.bf16 %v4341, %v4341
      %v4390 = vpack.c.bf16 %v4342, %v4342
      %v4391 = vpack.c.bf16 %v4343, %v4343
      %v4392 = vpack.c.bf16 %v4344, %v4344
      %v4393 = vpack.c.bf16 %v4345, %v4345
      %v4394 = vpack.c.bf16 %v4346, %v4346
      %v4395 = vpack.c.bf16 %v4347, %v4347
      %v4396 = vpack.c.bf16 %v4348, %v4348
      %v4397 = vpack.c.bf16 %v4349, %v4349
      %v4398 = vpack.c.bf16 %v4350, %v4350
      %v4399 = vpack.c.bf16 %v4351, %v4351
      %v4400 = vpack.c.bf16 %v4352, %v4352
      %v4401 = vpack.c.bf16 %v4353, %v4353
      %v4402 = vpack.c.bf16 %v4354, %v4354
      %v4403 = vpack.c.bf16 %v4355, %v4355
      %v4404 = vpack.c.bf16 %v4356, %v4356
      %v4405 = vpack.c.bf16 %v4357, %v4357
      %v4406 = vpack.c.bf16 %v4358, %v4358
      %v4407 = vpack.c.bf16 %v4359, %v4359
      %v4408 = vpack.c.bf16 %v4360, %v4360
      %v4409 = vpack.c.bf16 %v4361, %v4361
      %v4410 = vpack.c.bf16 %v4362, %v4362
      %v4411 = vpack.c.bf16 %v4363, %v4363
      %v4412 = vpack.c.bf16 %v4364, %v4364
      %v4461 = vrot.slane %v4365, 5
      %v4462 = vrot.slane %v4461, 4
      %v4463 = vrot.slane %v4366, 5
      %v4464 = vsel %vm2116, %v4462, %v4463
      %v4465 = vrot.slane %v4463, 4
      %v4466 = vrot.slane %v4367, 5
      %v4467 = vsel %vm2116, %v4465, %v4466
      %v4468 = vrot.slane %v4368, 5
      %v4469 = vrot.slane %v4468, 4
      %v4470 = vrot.slane %v4369, 5
      %v4471 = vsel %vm2116, %v4469, %v4470
      %v4472 = vrot.slane %v4470, 4
      %v4473 = vrot.slane %v4370, 5
      %v4474 = vsel %vm2116, %v4472, %v4473
      %v4475 = vrot.slane %v4371, 5
      %v4476 = vrot.slane %v4475, 4
      %v4477 = vrot.slane %v4372, 5
      %v4478 = vsel %vm2116, %v4476, %v4477
      %v4479 = vrot.slane %v4477, 4
      %v4480 = vrot.slane %v4373, 5
      %v4481 = vsel %vm2116, %v4479, %v4480
      %v4482 = vrot.slane %v4374, 5
      %v4483 = vrot.slane %v4482, 4
      %v4484 = vrot.slane %v4375, 5
      %v4485 = vsel %vm2116, %v4483, %v4484
      %v4486 = vrot.slane %v4484, 4
      %v4487 = vrot.slane %v4376, 5
      %v4488 = vsel %vm2116, %v4486, %v4487
      %v4489 = vrot.slane %v4377, 5
      %v4490 = vrot.slane %v4489, 4
      %v4491 = vrot.slane %v4378, 5
      %v4492 = vsel %vm2116, %v4490, %v4491
      %v4493 = vrot.slane %v4491, 4
      %v4494 = vrot.slane %v4379, 5
      %v4495 = vsel %vm2116, %v4493, %v4494
      %v4496 = vrot.slane %v4380, 5
      %v4497 = vrot.slane %v4496, 4
      %v4498 = vrot.slane %v4381, 5
      %v4499 = vsel %vm2116, %v4497, %v4498
      %v4500 = vrot.slane %v4498, 4
      %v4501 = vrot.slane %v4382, 5
      %v4502 = vsel %vm2116, %v4500, %v4501
      %v4503 = vrot.slane %v4383, 5
      %v4504 = vrot.slane %v4503, 4
      %v4505 = vrot.slane %v4384, 5
      %v4506 = vsel %vm2116, %v4504, %v4505
      %v4507 = vrot.slane %v4505, 4
      %v4508 = vrot.slane %v4385, 5
      %v4509 = vsel %vm2116, %v4507, %v4508
      %v4510 = vrot.slane %v4386, 5
      %v4511 = vrot.slane %v4510, 4
      %v4512 = vrot.slane %v4387, 5
      %v4513 = vsel %vm2116, %v4511, %v4512
      %v4514 = vrot.slane %v4512, 4
      %v4515 = vrot.slane %v4388, 5
      %v4516 = vsel %vm2116, %v4514, %v4515
      %v4517 = vrot.slane %v4389, 5
      %v4518 = vrot.slane %v4517, 4
      %v4519 = vrot.slane %v4390, 5
      %v4520 = vsel %vm2116, %v4518, %v4519
      %v4521 = vrot.slane %v4519, 4
      %v4522 = vrot.slane %v4391, 5
      %v4523 = vsel %vm2116, %v4521, %v4522
      %v4524 = vrot.slane %v4392, 5
      %v4525 = vrot.slane %v4524, 4
      %v4526 = vrot.slane %v4393, 5
      %v4527 = vsel %vm2116, %v4525, %v4526
      %v4528 = vrot.slane %v4526, 4
      %v4529 = vrot.slane %v4394, 5
      %v4530 = vsel %vm2116, %v4528, %v4529
      %v4531 = vrot.slane %v4395, 5
      %v4532 = vrot.slane %v4531, 4
      %v4533 = vrot.slane %v4396, 5
      %v4534 = vsel %vm2116, %v4532, %v4533
      %v4535 = vrot.slane %v4533, 4
      %v4536 = vrot.slane %v4397, 5
      %v4537 = vsel %vm2116, %v4535, %v4536
      %v4538 = vrot.slane %v4398, 5
      %v4539 = vrot.slane %v4538, 4
      %v4540 = vrot.slane %v4399, 5
      %v4541 = vsel %vm2116, %v4539, %v4540
      %v4542 = vrot.slane %v4540, 4
      %v4543 = vrot.slane %v4400, 5
      %v4544 = vsel %vm2116, %v4542, %v4543
      %v4545 = vrot.slane %v4401, 5
      %v4546 = vrot.slane %v4545, 4
      %v4547 = vrot.slane %v4402, 5
      %v4548 = vsel %vm2116, %v4546, %v4547
      %v4549 = vrot.slane %v4547, 4
      %v4550 = vrot.slane %v4403, 5
      %v4551 = vsel %vm2116, %v4549, %v4550
      %v4552 = vrot.slane %v4404, 5
      %v4553 = vrot.slane %v4552, 4
      %v4554 = vrot.slane %v4405, 5
      %v4555 = vsel %vm2116, %v4553, %v4554
      %v4556 = vrot.slane %v4554, 4
      %v4557 = vrot.slane %v4406, 5
      %v4558 = vsel %vm2116, %v4556, %v4557
      %v4559 = vrot.slane %v4407, 5
      %v4560 = vrot.slane %v4559, 4
      %v4561 = vrot.slane %v4408, 5
      %v4562 = vsel %vm2116, %v4560, %v4561
      %v4563 = vrot.slane %v4561, 4
      %v4564 = vrot.slane %v4409, 5
      %v4565 = vsel %vm2116, %v4563, %v4564
      %v4566 = vrot.slane %v4410, 5
      %v4567 = vrot.slane %v4566, 4
      %v4568 = vrot.slane %v4411, 5
      %v4569 = vsel %vm2116, %v4567, %v4568
      %v4570 = vrot.slane %v4568, 4
      %v4571 = vrot.slane %v4412, 5
      %v4572 = vsel %vm2116, %v4570, %v4571
      %s4573 = scalar_lea.vmem %s4, 40
      %v4574 = vld [vmem:[%s4573] sm:$0xf]
      %v4575 = vld [vmem:[%s4573 + $0x4] sm:$0xf]
      %v4576 = vunpack.c.l.b16 %v4464
      %v4577 = vunpack.c.l.b16 %v4467
      %v4578 = vunpack.c.l.b16 %v4471
      %v4579 = vunpack.c.l.b16 %v4474
      %v4580 = vunpack.c.l.b16 %v4478
      %v4581 = vunpack.c.l.b16 %v4481
      %v4582 = vunpack.c.l.b16 %v4485
      %v4583 = vunpack.c.l.b16 %v4488
      %v4584 = vunpack.c.l.b16 %v4492
      %v4585 = vunpack.c.l.b16 %v4495
      %v4586 = vunpack.c.l.b16 %v4499
      %v4587 = vunpack.c.l.b16 %v4502
      %v4588 = vunpack.c.l.b16 %v4506
      %v4589 = vunpack.c.l.b16 %v4509
      %v4590 = vunpack.c.l.b16 %v4513
      %v4591 = vunpack.c.l.b16 %v4516
      %v4592 = vunpack.c.l.b16 %v4520
      %v4593 = vunpack.c.l.b16 %v4523
      %v4594 = vunpack.c.l.b16 %v4527
      %v4595 = vunpack.c.l.b16 %v4530
      %v4596 = vunpack.c.l.b16 %v4534
      %v4597 = vunpack.c.l.b16 %v4537
      %v4598 = vunpack.c.l.b16 %v4541
      %v4599 = vunpack.c.l.b16 %v4544
      %v4600 = vunpack.c.l.b16 %v4548
      %v4601 = vunpack.c.l.b16 %v4551
      %v4602 = vunpack.c.l.b16 %v4555
      %v4603 = vunpack.c.l.b16 %v4558
      %v4604 = vunpack.c.l.b16 %v4562
      %v4605 = vunpack.c.l.b16 %v4565
      %v4606 = vunpack.c.l.b16 %v4569
      %v4607 = vunpack.c.l.b16 %v4572
      %v4608 = vpack.c.b16 %v4577, %v4576
      %v4609 = vpack.c.b16 %v4579, %v4578
      %v4610 = vpack.c.b16 %v4581, %v4580
      %v4611 = vpack.c.b16 %v4583, %v4582
      %v4612 = vpack.c.b16 %v4585, %v4584
      %v4613 = vpack.c.b16 %v4587, %v4586
      %v4614 = vpack.c.b16 %v4589, %v4588
      %v4615 = vpack.c.b16 %v4591, %v4590
      %v4616 = vpack.c.b16 %v4593, %v4592
      %v4617 = vpack.c.b16 %v4595, %v4594
      %v4618 = vpack.c.b16 %v4597, %v4596
      %v4619 = vpack.c.b16 %v4599, %v4598
      %v4620 = vpack.c.b16 %v4601, %v4600
      %v4621 = vpack.c.b16 %v4603, %v4602
      %v4622 = vpack.c.b16 %v4605, %v4604
      %v4623 = vpack.c.b16 %v4607, %v4606
      %v4626 = vunpack.c.l.b16 %v4574
      %v4627 = vunpack.c.l.b16 %v4575
      %v4628 = vpack.c.b16 %v4627, %v4626
      %v4631 = vsel %vm1368, %v4608, 0
      %v4634 = vsel %vm1368, %v4609, 0
      %v4637 = vsel %vm1368, %v4610, 0
      %v4640 = vsel %vm1368, %v4611, 0
      %v4643 = vsel %vm1368, %v4612, 0
      %v4646 = vsel %vm1368, %v4613, 0
      %v4649 = vsel %vm1368, %v4614, 0
      %v4652 = vsel %vm1368, %v4615, 0
      %v4655 = vsel %vm1368, %v4616, 0
      %v4658 = vsel %vm1368, %v4617, 0
      %v4661 = vsel %vm1368, %v4618, 0
      %v4664 = vsel %vm1368, %v4619, 0
      %v4667 = vsel %vm1368, %v4620, 0
      %v4670 = vsel %vm1368, %v4621, 0
      %v4673 = vsel %vm1368, %v4622, 0
      %v4676 = vsel %vm1368, %v4623, 0
      %4678 = vmatpush.bf16.msra.mxu0 0
      %4679 = vmatpush.bf16.msra.mxu0 0
      %4680 = vmatpush.bf16.msra.mxu0 0
      %4681 = vmatpush.bf16.msra.mxu0 0
      %4682 = vmatpush.bf16.msra.mxu0 0
      %4683 = vmatpush.bf16.msra.mxu0 0
      %4684 = vmatpush.bf16.msra.mxu0 0
      %4685 = vmatpush.bf16.msra.mxu0 %v4628
      %4686 = vmatmul.bf16.gmra.mxu0 %v4631
      %v4687 = vpop.f32.mrf.mxu0
      %v4688 = vadd.f32 0.0, %v4687
      %v4689 = vpop.f32.mrf.mxu0
      %v4690 = vadd.f32 0.0, %v4689
      %4691 = vmatmul.bf16.gmra.mxu0 %v4634
      %v4692 = vpop.f32.mrf.mxu0
      %v4693 = vadd.f32 0.0, %v4692
      %v4694 = vpop.f32.mrf.mxu0
      %v4695 = vadd.f32 0.0, %v4694
      %4696 = vmatmul.bf16.gmra.mxu0 %v4637
      %v4697 = vpop.f32.mrf.mxu0
      %v4698 = vadd.f32 0.0, %v4697
      %v4699 = vpop.f32.mrf.mxu0
      %v4700 = vadd.f32 0.0, %v4699
      %4701 = vmatmul.bf16.gmra.mxu0 %v4640
      %v4702 = vpop.f32.mrf.mxu0
      %v4703 = vadd.f32 0.0, %v4702
      %v4704 = vpop.f32.mrf.mxu0
      %v4705 = vadd.f32 0.0, %v4704
      %4706 = vmatmul.bf16.gmra.mxu0 %v4643
      %v4707 = vpop.f32.mrf.mxu0
      %v4708 = vadd.f32 0.0, %v4707
      %v4709 = vpop.f32.mrf.mxu0
      %v4710 = vadd.f32 0.0, %v4709
      %4711 = vmatmul.bf16.gmra.mxu0 %v4646
      %v4712 = vpop.f32.mrf.mxu0
      %v4713 = vadd.f32 0.0, %v4712
      %v4714 = vpop.f32.mrf.mxu0
      %v4715 = vadd.f32 0.0, %v4714
      %4716 = vmatmul.bf16.gmra.mxu0 %v4649
      %v4717 = vpop.f32.mrf.mxu0
      %v4718 = vadd.f32 0.0, %v4717
      %v4719 = vpop.f32.mrf.mxu0
      %v4720 = vadd.f32 0.0, %v4719
      %4721 = vmatmul.bf16.gmra.mxu0 %v4652
      %v4722 = vpop.f32.mrf.mxu0
      %v4723 = vadd.f32 0.0, %v4722
      %v4724 = vpop.f32.mrf.mxu0
      %v4725 = vadd.f32 0.0, %v4724
      %4726 = vmatmul.bf16.gmra.mxu0 %v4655
      %v4727 = vpop.f32.mrf.mxu0
      %v4728 = vadd.f32 0.0, %v4727
      %v4729 = vpop.f32.mrf.mxu0
      %v4730 = vadd.f32 0.0, %v4729
      %4731 = vmatmul.bf16.gmra.mxu0 %v4658
      %v4732 = vpop.f32.mrf.mxu0
      %v4733 = vadd.f32 0.0, %v4732
      %v4734 = vpop.f32.mrf.mxu0
      %v4735 = vadd.f32 0.0, %v4734
      %4736 = vmatmul.bf16.gmra.mxu0 %v4661
      %v4737 = vpop.f32.mrf.mxu0
      %v4738 = vadd.f32 0.0, %v4737
      %v4739 = vpop.f32.mrf.mxu0
      %v4740 = vadd.f32 0.0, %v4739
      %4741 = vmatmul.bf16.gmra.mxu0 %v4664
      %v4742 = vpop.f32.mrf.mxu0
      %v4743 = vadd.f32 0.0, %v4742
      %v4744 = vpop.f32.mrf.mxu0
      %v4745 = vadd.f32 0.0, %v4744
      %4746 = vmatmul.bf16.gmra.mxu0 %v4667
      %v4747 = vpop.f32.mrf.mxu0
      %v4748 = vadd.f32 0.0, %v4747
      %v4749 = vpop.f32.mrf.mxu0
      %v4750 = vadd.f32 0.0, %v4749
      %4751 = vmatmul.bf16.gmra.mxu0 %v4670
      %v4752 = vpop.f32.mrf.mxu0
      %v4753 = vadd.f32 0.0, %v4752
      %v4754 = vpop.f32.mrf.mxu0
      %v4755 = vadd.f32 0.0, %v4754
      %4756 = vmatmul.bf16.gmra.mxu0 %v4673
      %v4757 = vpop.f32.mrf.mxu0
      %v4758 = vadd.f32 0.0, %v4757
      %v4759 = vpop.f32.mrf.mxu0
      %v4760 = vadd.f32 0.0, %v4759
      %4761 = vmatmul.bf16.gmra.mxu0 %v4676
      %v4762 = vpop.f32.mrf.mxu0
      %v4763 = vadd.f32 0.0, %v4762
      %v4764 = vpop.f32.mrf.mxu0
      %v4765 = vadd.f32 0.0, %v4764
      %4766 = vdwg.mxu0
      %v4767 = vadd.f32 %v4045, %v4688
      %v4768 = vadd.f32 %v4046, %v4690
      %v4769 = vadd.f32 %v4047, %v4693
      %v4770 = vadd.f32 %v4048, %v4695
      %v4771 = vadd.f32 %v4049, %v4698
      %v4772 = vadd.f32 %v4050, %v4700
      %v4773 = vadd.f32 %v4051, %v4703
      %v4774 = vadd.f32 %v4052, %v4705
      %v4775 = vadd.f32 %v4053, %v4708
      %v4776 = vadd.f32 %v4054, %v4710
      %v4777 = vadd.f32 %v4055, %v4713
      %v4778 = vadd.f32 %v4056, %v4715
      %v4779 = vadd.f32 %v4057, %v4718
      %v4780 = vadd.f32 %v4058, %v4720
      %v4781 = vadd.f32 %v4059, %v4723
      %v4782 = vadd.f32 %v4060, %v4725
      %v4783 = vadd.f32 %v4061, %v4728
      %v4784 = vadd.f32 %v4062, %v4730
      %v4785 = vadd.f32 %v4063, %v4733
      %v4786 = vadd.f32 %v4064, %v4735
      %v4787 = vadd.f32 %v4065, %v4738
      %v4788 = vadd.f32 %v4066, %v4740
      %v4789 = vadd.f32 %v4067, %v4743
      %v4790 = vadd.f32 %v4068, %v4745
      %v4791 = vadd.f32 %v4069, %v4748
      %v4792 = vadd.f32 %v4070, %v4750
      %v4793 = vadd.f32 %v4071, %v4753
      %v4794 = vadd.f32 %v4072, %v4755
      %v4795 = vadd.f32 %v4073, %v4758
      %v4796 = vadd.f32 %v4074, %v4760
      %v4797 = vadd.f32 %v4075, %v4763
      %v4798 = vadd.f32 %v4076, %v4765
      %s4799 = scalar_lea.vmem %s296, 24
      %v4800 = vld [vmem:[%s4799] sm:$0xf]
      %v4801 = vld [vmem:[%s4799 + $0x4] sm:$0xf]
      %v4802 = vld [vmem:[%s4799 + $0xc] sm:$0xf]
      %v4803 = vld [vmem:[%s4799 + $0x10] sm:$0xf]
      %v4804 = vld [vmem:[%s4799 + $0x18] sm:$0xf]
      %v4805 = vld [vmem:[%s4799 + $0x1c] sm:$0xf]
      %v4806 = vld [vmem:[%s4799 + $0x24] sm:$0xf]
      %v4807 = vld [vmem:[%s4799 + $0x28] sm:$0xf]
      %v4808 = vld [vmem:[%s4799 + $0x30] sm:$0xf]
      %v4809 = vld [vmem:[%s4799 + $0x34] sm:$0xf]
      %v4810 = vld [vmem:[%s4799 + $0x3c] sm:$0xf]
      %v4811 = vld [vmem:[%s4799 + $0x40] sm:$0xf]
      %v4812 = vld [vmem:[%s4799 + $0x48] sm:$0xf]
      %v4813 = vld [vmem:[%s4799 + $0x4c] sm:$0xf]
      %v4814 = vld [vmem:[%s4799 + $0x54] sm:$0xf]
      %v4815 = vld [vmem:[%s4799 + $0x58] sm:$0xf]
      %v4816 = vld [vmem:[%s4799 + $0x60] sm:$0xf]
      %v4817 = vld [vmem:[%s4799 + $0x64] sm:$0xf]
      %v4818 = vld [vmem:[%s4799 + $0x6c] sm:$0xf]
      %v4819 = vld [vmem:[%s4799 + $0x70] sm:$0xf]
      %v4820 = vld [vmem:[%s4799 + $0x78] sm:$0xf]
      %v4821 = vld [vmem:[%s4799 + $0x7c] sm:$0xf]
      %v4822 = vld [vmem:[%s4799 + $0x84] sm:$0xf]
      %v4823 = vld [vmem:[%s4799 + $0x88] sm:$0xf]
      %v4824 = vld [vmem:[%s4799 + $0x90] sm:$0xf]
      %v4825 = vld [vmem:[%s4799 + $0x94] sm:$0xf]
      %v4826 = vld [vmem:[%s4799 + $0x9c] sm:$0xf]
      %v4827 = vld [vmem:[%s4799 + $0xa0] sm:$0xf]
      %v4828 = vld [vmem:[%s4799 + $0xa8] sm:$0xf]
      %v4829 = vld [vmem:[%s4799 + $0xac] sm:$0xf]
      %v4830 = vld [vmem:[%s4799 + $0xb4] sm:$0xf]
      %v4831 = vld [vmem:[%s4799 + $0xb8] sm:$0xf]
      %v4832 = vunpack.c.l.bf16 %v4800
      %v4833 = vunpack.c.l.bf16 %v4801
      %v4834 = vunpack.c.l.bf16 %v4802
      %v4835 = vunpack.c.l.bf16 %v4803
      %v4836 = vunpack.c.l.bf16 %v4804
      %v4837 = vunpack.c.l.bf16 %v4805
      %v4838 = vunpack.c.l.bf16 %v4806
      %v4839 = vunpack.c.l.bf16 %v4807
      %v4840 = vunpack.c.l.bf16 %v4808
      %v4841 = vunpack.c.l.bf16 %v4809
      %v4842 = vunpack.c.l.bf16 %v4810
      %v4843 = vunpack.c.l.bf16 %v4811
      %v4844 = vunpack.c.l.bf16 %v4812
      %v4845 = vunpack.c.l.bf16 %v4813
      %v4846 = vunpack.c.l.bf16 %v4814
      %v4847 = vunpack.c.l.bf16 %v4815
      %v4848 = vunpack.c.l.bf16 %v4816
      %v4849 = vunpack.c.l.bf16 %v4817
      %v4850 = vunpack.c.l.bf16 %v4818
      %v4851 = vunpack.c.l.bf16 %v4819
      %v4852 = vunpack.c.l.bf16 %v4820
      %v4853 = vunpack.c.l.bf16 %v4821
      %v4854 = vunpack.c.l.bf16 %v4822
      %v4855 = vunpack.c.l.bf16 %v4823
      %v4856 = vunpack.c.l.bf16 %v4824
      %v4857 = vunpack.c.l.bf16 %v4825
      %v4858 = vunpack.c.l.bf16 %v4826
      %v4859 = vunpack.c.l.bf16 %v4827
      %v4860 = vunpack.c.l.bf16 %v4828
      %v4861 = vunpack.c.l.bf16 %v4829
      %v4862 = vunpack.c.l.bf16 %v4830
      %v4863 = vunpack.c.l.bf16 %v4831
      %v4864 = vmul.f32 %v4832, %v388
      %v4865 = vmul.f32 %v4833, %v388
      %v4866 = vmul.f32 %v4834, %v388
      %v4867 = vmul.f32 %v4835, %v388
      %v4868 = vmul.f32 %v4836, %v388
      %v4869 = vmul.f32 %v4837, %v388
      %v4870 = vmul.f32 %v4838, %v388
      %v4871 = vmul.f32 %v4839, %v388
      %v4872 = vmul.f32 %v4840, %v388
      %v4873 = vmul.f32 %v4841, %v388
      %v4874 = vmul.f32 %v4842, %v388
      %v4875 = vmul.f32 %v4843, %v388
      %v4876 = vmul.f32 %v4844, %v388
      %v4877 = vmul.f32 %v4845, %v388
      %v4878 = vmul.f32 %v4846, %v388
      %v4879 = vmul.f32 %v4847, %v388
      %v4880 = vmul.f32 %v4848, %v388
      %v4881 = vmul.f32 %v4849, %v388
      %v4882 = vmul.f32 %v4850, %v388
      %v4883 = vmul.f32 %v4851, %v388
      %v4884 = vmul.f32 %v4852, %v388
      %v4885 = vmul.f32 %v4853, %v388
      %v4886 = vmul.f32 %v4854, %v388
      %v4887 = vmul.f32 %v4855, %v388
      %v4888 = vmul.f32 %v4856, %v388
      %v4889 = vmul.f32 %v4857, %v388
      %v4890 = vmul.f32 %v4858, %v388
      %v4891 = vmul.f32 %v4859, %v388
      %v4892 = vmul.f32 %v4860, %v388
      %v4893 = vmul.f32 %v4861, %v388
      %v4894 = vmul.f32 %v4862, %v388
      %v4895 = vmul.f32 %v4863, %v388
      %v4896 = vadd.f32 %v4864, %v423
      %v4897 = vadd.f32 %v4865, %v423
      %v4898 = vadd.f32 %v4866, %v423
      %v4899 = vadd.f32 %v4867, %v423
      %v4900 = vadd.f32 %v4868, %v423
      %v4901 = vadd.f32 %v4869, %v423
      %v4902 = vadd.f32 %v4870, %v423
      %v4903 = vadd.f32 %v4871, %v423
      %v4904 = vadd.f32 %v4872, %v423
      %v4905 = vadd.f32 %v4873, %v423
      %v4906 = vadd.f32 %v4874, %v423
      %v4907 = vadd.f32 %v4875, %v423
      %v4908 = vadd.f32 %v4876, %v423
      %v4909 = vadd.f32 %v4877, %v423
      %v4910 = vadd.f32 %v4878, %v423
      %v4911 = vadd.f32 %v4879, %v423
      %v4912 = vadd.f32 %v4880, %v423
      %v4913 = vadd.f32 %v4881, %v423
      %v4914 = vadd.f32 %v4882, %v423
      %v4915 = vadd.f32 %v4883, %v423
      %v4916 = vadd.f32 %v4884, %v423
      %v4917 = vadd.f32 %v4885, %v423
      %v4918 = vadd.f32 %v4886, %v423
      %v4919 = vadd.f32 %v4887, %v423
      %v4920 = vadd.f32 %v4888, %v423
      %v4921 = vadd.f32 %v4889, %v423
      %v4922 = vadd.f32 %v4890, %v423
      %v4923 = vadd.f32 %v4891, %v423
      %v4924 = vadd.f32 %v4892, %v423
      %v4925 = vadd.f32 %v4893, %v423
      %v4926 = vadd.f32 %v4894, %v423
      %v4927 = vadd.f32 %v4895, %v423
      %v4928 = vmax.f32 %v4896, 0.0
      %v4929 = vmax.f32 %v4897, 0.0
      %v4930 = vmax.f32 %v4898, 0.0
      %v4931 = vmax.f32 %v4899, 0.0
      %v4932 = vmax.f32 %v4900, 0.0
      %v4933 = vmax.f32 %v4901, 0.0
      %v4934 = vmax.f32 %v4902, 0.0
      %v4935 = vmax.f32 %v4903, 0.0
      %v4936 = vmax.f32 %v4904, 0.0
      %v4937 = vmax.f32 %v4905, 0.0
      %v4938 = vmax.f32 %v4906, 0.0
      %v4939 = vmax.f32 %v4907, 0.0
      %v4940 = vmax.f32 %v4908, 0.0
      %v4941 = vmax.f32 %v4909, 0.0
      %v4942 = vmax.f32 %v4910, 0.0
      %v4943 = vmax.f32 %v4911, 0.0
      %v4944 = vmax.f32 %v4912, 0.0
      %v4945 = vmax.f32 %v4913, 0.0
      %v4946 = vmax.f32 %v4914, 0.0
      %v4947 = vmax.f32 %v4915, 0.0
      %v4948 = vmax.f32 %v4916, 0.0
      %v4949 = vmax.f32 %v4917, 0.0
      %v4950 = vmax.f32 %v4918, 0.0
      %v4951 = vmax.f32 %v4919, 0.0
      %v4952 = vmax.f32 %v4920, 0.0
      %v4953 = vmax.f32 %v4921, 0.0
      %v4954 = vmax.f32 %v4922, 0.0
      %v4955 = vmax.f32 %v4923, 0.0
      %v4956 = vmax.f32 %v4924, 0.0
      %v4957 = vmax.f32 %v4925, 0.0
      %v4958 = vmax.f32 %v4926, 0.0
      %v4959 = vmax.f32 %v4927, 0.0
      %s4960 = scalar_lea.vmem %s302, 48
      %v4961 = vld [vmem:[%s4960] sm:$0xff]
      %v4962 = vld [vmem:[%s4960 + $0x8] sm:$0xff]
      %v4963 = vld [vmem:[%s4960 + $0x18] sm:$0xff]
      %v4964 = vld [vmem:[%s4960 + $0x20] sm:$0xff]
      %v4965 = vld [vmem:[%s4960 + $0x30] sm:$0xff]
      %v4966 = vld [vmem:[%s4960 + $0x38] sm:$0xff]
      %v4967 = vld [vmem:[%s4960 + $0x48] sm:$0xff]
      %v4968 = vld [vmem:[%s4960 + $0x50] sm:$0xff]
      %v4969 = vld [vmem:[%s4960 + $0x60] sm:$0xff]
      %v4970 = vld [vmem:[%s4960 + $0x68] sm:$0xff]
      %v4971 = vld [vmem:[%s4960 + $0x78] sm:$0xff]
      %v4972 = vld [vmem:[%s4960 + $0x80] sm:$0xff]
      %v4973 = vld [vmem:[%s4960 + $0x90] sm:$0xff]
      %v4974 = vld [vmem:[%s4960 + $0x98] sm:$0xff]
      %v4975 = vld [vmem:[%s4960 + $0xa8] sm:$0xff]
      %v4976 = vld [vmem:[%s4960 + $0xb0] sm:$0xff]
      %v4977 = vld [vmem:[%s4960 + $0xc0] sm:$0xff]
      %v4978 = vld [vmem:[%s4960 + $0xc8] sm:$0xff]
      %v4979 = vld [vmem:[%s4960 + $0xd8] sm:$0xff]
      %v4980 = vld [vmem:[%s4960 + $0xe0] sm:$0xff]
      %v4981 = vld [vmem:[%s4960 + $0xf0] sm:$0xff]
      %v4982 = vld [vmem:[%s4960 + $0xf8] sm:$0xff]
      %v4983 = vld [vmem:[%s4960 + $0x108] sm:$0xff]
      %v4984 = vld [vmem:[%s4960 + $0x110] sm:$0xff]
      %v4985 = vld [vmem:[%s4960 + $0x120] sm:$0xff]
      %v4986 = vld [vmem:[%s4960 + $0x128] sm:$0xff]
      %v4987 = vld [vmem:[%s4960 + $0x138] sm:$0xff]
      %v4988 = vld [vmem:[%s4960 + $0x140] sm:$0xff]
      %v4989 = vld [vmem:[%s4960 + $0x150] sm:$0xff]
      %v4990 = vld [vmem:[%s4960 + $0x158] sm:$0xff]
      %v4991 = vld [vmem:[%s4960 + $0x168] sm:$0xff]
      %v4992 = vld [vmem:[%s4960 + $0x170] sm:$0xff]
      %v4993 = vmul.f32 %v4928, %v4961
      %v4994 = vmul.f32 %v4929, %v4962
      %v4995 = vmul.f32 %v4930, %v4963
      %v4996 = vmul.f32 %v4931, %v4964
      %v4997 = vmul.f32 %v4932, %v4965
      %v4998 = vmul.f32 %v4933, %v4966
      %v4999 = vmul.f32 %v4934, %v4967
      %v5000 = vmul.f32 %v4935, %v4968
      %v5001 = vmul.f32 %v4936, %v4969
      %v5002 = vmul.f32 %v4937, %v4970
      %v5003 = vmul.f32 %v4938, %v4971
      %v5004 = vmul.f32 %v4939, %v4972
      %v5005 = vmul.f32 %v4940, %v4973
      %v5006 = vmul.f32 %v4941, %v4974
      %v5007 = vmul.f32 %v4942, %v4975
      %v5008 = vmul.f32 %v4943, %v4976
      %v5009 = vmul.f32 %v4944, %v4977
      %v5010 = vmul.f32 %v4945, %v4978
      %v5011 = vmul.f32 %v4946, %v4979
      %v5012 = vmul.f32 %v4947, %v4980
      %v5013 = vmul.f32 %v4948, %v4981
      %v5014 = vmul.f32 %v4949, %v4982
      %v5015 = vmul.f32 %v4950, %v4983
      %v5016 = vmul.f32 %v4951, %v4984
      %v5017 = vmul.f32 %v4952, %v4985
      %v5018 = vmul.f32 %v4953, %v4986
      %v5019 = vmul.f32 %v4954, %v4987
      %v5020 = vmul.f32 %v4955, %v4988
      %v5021 = vmul.f32 %v4956, %v4989
      %v5022 = vmul.f32 %v4957, %v4990
      %v5023 = vmul.f32 %v4958, %v4991
      %v5024 = vmul.f32 %v4959, %v4992
      %v5025 = vpack.c.bf16 %v4993, %v4993
      %v5026 = vpack.c.bf16 %v4994, %v4994
      %v5027 = vpack.c.bf16 %v4995, %v4995
      %v5028 = vpack.c.bf16 %v4996, %v4996
      %v5029 = vpack.c.bf16 %v4997, %v4997
      %v5030 = vpack.c.bf16 %v4998, %v4998
      %v5031 = vpack.c.bf16 %v4999, %v4999
      %v5032 = vpack.c.bf16 %v5000, %v5000
      %v5033 = vpack.c.bf16 %v5001, %v5001
      %v5034 = vpack.c.bf16 %v5002, %v5002
      %v5035 = vpack.c.bf16 %v5003, %v5003
      %v5036 = vpack.c.bf16 %v5004, %v5004
      %v5037 = vpack.c.bf16 %v5005, %v5005
      %v5038 = vpack.c.bf16 %v5006, %v5006
      %v5039 = vpack.c.bf16 %v5007, %v5007
      %v5040 = vpack.c.bf16 %v5008, %v5008
      %v5041 = vpack.c.bf16 %v5009, %v5009
      %v5042 = vpack.c.bf16 %v5010, %v5010
      %v5043 = vpack.c.bf16 %v5011, %v5011
      %v5044 = vpack.c.bf16 %v5012, %v5012
      %v5045 = vpack.c.bf16 %v5013, %v5013
      %v5046 = vpack.c.bf16 %v5014, %v5014
      %v5047 = vpack.c.bf16 %v5015, %v5015
      %v5048 = vpack.c.bf16 %v5016, %v5016
      %v5049 = vpack.c.bf16 %v5017, %v5017
      %v5050 = vpack.c.bf16 %v5018, %v5018
      %v5051 = vpack.c.bf16 %v5019, %v5019
      %v5052 = vpack.c.bf16 %v5020, %v5020
      %v5053 = vpack.c.bf16 %v5021, %v5021
      %v5054 = vpack.c.bf16 %v5022, %v5022
      %v5055 = vpack.c.bf16 %v5023, %v5023
      %v5056 = vpack.c.bf16 %v5024, %v5024
      %s5057 = scalar_lea.vmem %s4, 48
      %v5058 = vld [vmem:[%s5057] sm:$0xf]
      %v5059 = vld [vmem:[%s5057 + $0x4] sm:$0xf]
      %v5092 = vunpack.c.l.b16 %v5025
      %v5093 = vunpack.c.l.b16 %v5026
      %v5094 = vunpack.c.l.b16 %v5027
      %v5095 = vunpack.c.l.b16 %v5028
      %v5096 = vunpack.c.l.b16 %v5029
      %v5097 = vunpack.c.l.b16 %v5030
      %v5098 = vunpack.c.l.b16 %v5031
      %v5099 = vunpack.c.l.b16 %v5032
      %v5100 = vunpack.c.l.b16 %v5033
      %v5101 = vunpack.c.l.b16 %v5034
      %v5102 = vunpack.c.l.b16 %v5035
      %v5103 = vunpack.c.l.b16 %v5036
      %v5104 = vunpack.c.l.b16 %v5037
      %v5105 = vunpack.c.l.b16 %v5038
      %v5106 = vunpack.c.l.b16 %v5039
      %v5107 = vunpack.c.l.b16 %v5040
      %v5108 = vunpack.c.l.b16 %v5041
      %v5109 = vunpack.c.l.b16 %v5042
      %v5110 = vunpack.c.l.b16 %v5043
      %v5111 = vunpack.c.l.b16 %v5044
      %v5112 = vunpack.c.l.b16 %v5045
      %v5113 = vunpack.c.l.b16 %v5046
      %v5114 = vunpack.c.l.b16 %v5047
      %v5115 = vunpack.c.l.b16 %v5048
      %v5116 = vunpack.c.l.b16 %v5049
      %v5117 = vunpack.c.l.b16 %v5050
      %v5118 = vunpack.c.l.b16 %v5051
      %v5119 = vunpack.c.l.b16 %v5052
      %v5120 = vunpack.c.l.b16 %v5053
      %v5121 = vunpack.c.l.b16 %v5054
      %v5122 = vunpack.c.l.b16 %v5055
      %v5123 = vunpack.c.l.b16 %v5056
      %v5124 = vpack.c.b16 %v5093, %v5092
      %v5125 = vpack.c.b16 %v5095, %v5094
      %v5126 = vpack.c.b16 %v5097, %v5096
      %v5127 = vpack.c.b16 %v5099, %v5098
      %v5128 = vpack.c.b16 %v5101, %v5100
      %v5129 = vpack.c.b16 %v5103, %v5102
      %v5130 = vpack.c.b16 %v5105, %v5104
      %v5131 = vpack.c.b16 %v5107, %v5106
      %v5132 = vpack.c.b16 %v5109, %v5108
      %v5133 = vpack.c.b16 %v5111, %v5110
      %v5134 = vpack.c.b16 %v5113, %v5112
      %v5135 = vpack.c.b16 %v5115, %v5114
      %v5136 = vpack.c.b16 %v5117, %v5116
      %v5137 = vpack.c.b16 %v5119, %v5118
      %v5138 = vpack.c.b16 %v5121, %v5120
      %v5139 = vpack.c.b16 %v5123, %v5122
      %v5142 = vunpack.c.l.b16 %v5058
      %v5143 = vunpack.c.l.b16 %v5059
      %v5144 = vpack.c.b16 %v5143, %v5142
      %v5147 = vsel %vm1368, %v5124, 0
      %v5150 = vsel %vm1368, %v5125, 0
      %v5153 = vsel %vm1368, %v5126, 0
      %v5156 = vsel %vm1368, %v5127, 0
      %v5159 = vsel %vm1368, %v5128, 0
      %v5162 = vsel %vm1368, %v5129, 0
      %v5165 = vsel %vm1368, %v5130, 0
      %v5168 = vsel %vm1368, %v5131, 0
      %v5171 = vsel %vm1368, %v5132, 0
      %v5174 = vsel %vm1368, %v5133, 0
      %v5177 = vsel %vm1368, %v5134, 0
      %v5180 = vsel %vm1368, %v5135, 0
      %v5183 = vsel %vm1368, %v5136, 0
      %v5186 = vsel %vm1368, %v5137, 0
      %v5189 = vsel %vm1368, %v5138, 0
      %v5192 = vsel %vm1368, %v5139, 0
      %5194 = vmatpush.bf16.msra.mxu0 0
      %5195 = vmatpush.bf16.msra.mxu0 0
      %5196 = vmatpush.bf16.msra.mxu0 0
      %5197 = vmatpush.bf16.msra.mxu0 0
      %5198 = vmatpush.bf16.msra.mxu0 0
      %5199 = vmatpush.bf16.msra.mxu0 0
      %5200 = vmatpush.bf16.msra.mxu0 0
      %5201 = vmatpush.bf16.msra.mxu0 %v5144
      %5202 = vmatmul.bf16.gmra.mxu0 %v5147
      %v5203 = vpop.f32.mrf.mxu0
      %v5204 = vadd.f32 0.0, %v5203
      %v5205 = vpop.f32.mrf.mxu0
      %v5206 = vadd.f32 0.0, %v5205
      %5207 = vmatmul.bf16.gmra.mxu0 %v5150
      %v5208 = vpop.f32.mrf.mxu0
      %v5209 = vadd.f32 0.0, %v5208
      %v5210 = vpop.f32.mrf.mxu0
      %v5211 = vadd.f32 0.0, %v5210
      %5212 = vmatmul.bf16.gmra.mxu0 %v5153
      %v5213 = vpop.f32.mrf.mxu0
      %v5214 = vadd.f32 0.0, %v5213
      %v5215 = vpop.f32.mrf.mxu0
      %v5216 = vadd.f32 0.0, %v5215
      %5217 = vmatmul.bf16.gmra.mxu0 %v5156
      %v5218 = vpop.f32.mrf.mxu0
      %v5219 = vadd.f32 0.0, %v5218
      %v5220 = vpop.f32.mrf.mxu0
      %v5221 = vadd.f32 0.0, %v5220
      %5222 = vmatmul.bf16.gmra.mxu0 %v5159
      %v5223 = vpop.f32.mrf.mxu0
      %v5224 = vadd.f32 0.0, %v5223
      %v5225 = vpop.f32.mrf.mxu0
      %v5226 = vadd.f32 0.0, %v5225
      %5227 = vmatmul.bf16.gmra.mxu0 %v5162
      %v5228 = vpop.f32.mrf.mxu0
      %v5229 = vadd.f32 0.0, %v5228
      %v5230 = vpop.f32.mrf.mxu0
      %v5231 = vadd.f32 0.0, %v5230
      %5232 = vmatmul.bf16.gmra.mxu0 %v5165
      %v5233 = vpop.f32.mrf.mxu0
      %v5234 = vadd.f32 0.0, %v5233
      %v5235 = vpop.f32.mrf.mxu0
      %v5236 = vadd.f32 0.0, %v5235
      %5237 = vmatmul.bf16.gmra.mxu0 %v5168
      %v5238 = vpop.f32.mrf.mxu0
      %v5239 = vadd.f32 0.0, %v5238
      %v5240 = vpop.f32.mrf.mxu0
      %v5241 = vadd.f32 0.0, %v5240
      %5242 = vmatmul.bf16.gmra.mxu0 %v5171
      %v5243 = vpop.f32.mrf.mxu0
      %v5244 = vadd.f32 0.0, %v5243
      %v5245 = vpop.f32.mrf.mxu0
      %v5246 = vadd.f32 0.0, %v5245
      %5247 = vmatmul.bf16.gmra.mxu0 %v5174
      %v5248 = vpop.f32.mrf.mxu0
      %v5249 = vadd.f32 0.0, %v5248
      %v5250 = vpop.f32.mrf.mxu0
      %v5251 = vadd.f32 0.0, %v5250
      %5252 = vmatmul.bf16.gmra.mxu0 %v5177
      %v5253 = vpop.f32.mrf.mxu0
      %v5254 = vadd.f32 0.0, %v5253
      %v5255 = vpop.f32.mrf.mxu0
      %v5256 = vadd.f32 0.0, %v5255
      %5257 = vmatmul.bf16.gmra.mxu0 %v5180
      %v5258 = vpop.f32.mrf.mxu0
      %v5259 = vadd.f32 0.0, %v5258
      %v5260 = vpop.f32.mrf.mxu0
      %v5261 = vadd.f32 0.0, %v5260
      %5262 = vmatmul.bf16.gmra.mxu0 %v5183
      %v5263 = vpop.f32.mrf.mxu0
      %v5264 = vadd.f32 0.0, %v5263
      %v5265 = vpop.f32.mrf.mxu0
      %v5266 = vadd.f32 0.0, %v5265
      %5267 = vmatmul.bf16.gmra.mxu0 %v5186
      %v5268 = vpop.f32.mrf.mxu0
      %v5269 = vadd.f32 0.0, %v5268
      %v5270 = vpop.f32.mrf.mxu0
      %v5271 = vadd.f32 0.0, %v5270
      %5272 = vmatmul.bf16.gmra.mxu0 %v5189
      %v5273 = vpop.f32.mrf.mxu0
      %v5274 = vadd.f32 0.0, %v5273
      %v5275 = vpop.f32.mrf.mxu0
      %v5276 = vadd.f32 0.0, %v5275
      %5277 = vmatmul.bf16.gmra.mxu0 %v5192
      %v5278 = vpop.f32.mrf.mxu0
      %v5279 = vadd.f32 0.0, %v5278
      %v5280 = vpop.f32.mrf.mxu0
      %v5281 = vadd.f32 0.0, %v5280
      %5282 = vdwg.mxu0
      %v5283 = vadd.f32 %v4767, %v5204
      %v5284 = vadd.f32 %v4768, %v5206
      %v5285 = vadd.f32 %v4769, %v5209
      %v5286 = vadd.f32 %v4770, %v5211
      %v5287 = vadd.f32 %v4771, %v5214
      %v5288 = vadd.f32 %v4772, %v5216
      %v5289 = vadd.f32 %v4773, %v5219
      %v5290 = vadd.f32 %v4774, %v5221
      %v5291 = vadd.f32 %v4775, %v5224
      %v5292 = vadd.f32 %v4776, %v5226
      %v5293 = vadd.f32 %v4777, %v5229
      %v5294 = vadd.f32 %v4778, %v5231
      %v5295 = vadd.f32 %v4779, %v5234
      %v5296 = vadd.f32 %v4780, %v5236
      %v5297 = vadd.f32 %v4781, %v5239
      %v5298 = vadd.f32 %v4782, %v5241
      %v5299 = vadd.f32 %v4783, %v5244
      %v5300 = vadd.f32 %v4784, %v5246
      %v5301 = vadd.f32 %v4785, %v5249
      %v5302 = vadd.f32 %v4786, %v5251
      %v5303 = vadd.f32 %v4787, %v5254
      %v5304 = vadd.f32 %v4788, %v5256
      %v5305 = vadd.f32 %v4789, %v5259
      %v5306 = vadd.f32 %v4790, %v5261
      %v5307 = vadd.f32 %v4791, %v5264
      %v5308 = vadd.f32 %v4792, %v5266
      %v5309 = vadd.f32 %v4793, %v5269
      %v5310 = vadd.f32 %v4794, %v5271
      %v5311 = vadd.f32 %v4795, %v5274
      %v5312 = vadd.f32 %v4796, %v5276
      %v5313 = vadd.f32 %v4797, %v5279
      %v5314 = vadd.f32 %v4798, %v5281
      %v5315 = vld [vmem:[%s4799] sm:$0xf]
      %v5316 = vld [vmem:[%s4799 + $0x4] sm:$0xf]
      %v5317 = vld [vmem:[%s4799 + $0x8] sm:$0x1]
      %v5318 = vld [vmem:[%s4799 + $0xc] sm:$0xf]
      %v5319 = vld [vmem:[%s4799 + $0x10] sm:$0xf]
      %v5320 = vld [vmem:[%s4799 + $0x14] sm:$0x1]
      %v5321 = vld [vmem:[%s4799 + $0x18] sm:$0xf]
      %v5322 = vld [vmem:[%s4799 + $0x1c] sm:$0xf]
      %v5323 = vld [vmem:[%s4799 + $0x20] sm:$0x1]
      %v5324 = vld [vmem:[%s4799 + $0x24] sm:$0xf]
      %v5325 = vld [vmem:[%s4799 + $0x28] sm:$0xf]
      %v5326 = vld [vmem:[%s4799 + $0x2c] sm:$0x1]
      %v5327 = vld [vmem:[%s4799 + $0x30] sm:$0xf]
      %v5328 = vld [vmem:[%s4799 + $0x34] sm:$0xf]
      %v5329 = vld [vmem:[%s4799 + $0x38] sm:$0x1]
      %v5330 = vld [vmem:[%s4799 + $0x3c] sm:$0xf]
      %v5331 = vld [vmem:[%s4799 + $0x40] sm:$0xf]
      %v5332 = vld [vmem:[%s4799 + $0x44] sm:$0x1]
      %v5333 = vld [vmem:[%s4799 + $0x48] sm:$0xf]
      %v5334 = vld [vmem:[%s4799 + $0x4c] sm:$0xf]
      %v5335 = vld [vmem:[%s4799 + $0x50] sm:$0x1]
      %v5336 = vld [vmem:[%s4799 + $0x54] sm:$0xf]
      %v5337 = vld [vmem:[%s4799 + $0x58] sm:$0xf]
      %v5338 = vld [vmem:[%s4799 + $0x5c] sm:$0x1]
      %v5339 = vld [vmem:[%s4799 + $0x60] sm:$0xf]
      %v5340 = vld [vmem:[%s4799 + $0x64] sm:$0xf]
      %v5341 = vld [vmem:[%s4799 + $0x68] sm:$0x1]
      %v5342 = vld [vmem:[%s4799 + $0x6c] sm:$0xf]
      %v5343 = vld [vmem:[%s4799 + $0x70] sm:$0xf]
      %v5344 = vld [vmem:[%s4799 + $0x74] sm:$0x1]
      %v5345 = vld [vmem:[%s4799 + $0x78] sm:$0xf]
      %v5346 = vld [vmem:[%s4799 + $0x7c] sm:$0xf]
      %v5347 = vld [vmem:[%s4799 + $0x80] sm:$0x1]
      %v5348 = vld [vmem:[%s4799 + $0x84] sm:$0xf]
      %v5349 = vld [vmem:[%s4799 + $0x88] sm:$0xf]
      %v5350 = vld [vmem:[%s4799 + $0x8c] sm:$0x1]
      %v5351 = vld [vmem:[%s4799 + $0x90] sm:$0xf]
      %v5352 = vld [vmem:[%s4799 + $0x94] sm:$0xf]
      %v5353 = vld [vmem:[%s4799 + $0x98] sm:$0x1]
      %v5354 = vld [vmem:[%s4799 + $0x9c] sm:$0xf]
      %v5355 = vld [vmem:[%s4799 + $0xa0] sm:$0xf]
      %v5356 = vld [vmem:[%s4799 + $0xa4] sm:$0x1]
      %v5357 = vld [vmem:[%s4799 + $0xa8] sm:$0xf]
      %v5358 = vld [vmem:[%s4799 + $0xac] sm:$0xf]
      %v5359 = vld [vmem:[%s4799 + $0xb0] sm:$0x1]
      %v5360 = vld [vmem:[%s4799 + $0xb4] sm:$0xf]
      %v5361 = vld [vmem:[%s4799 + $0xb8] sm:$0xf]
      %v5362 = vld [vmem:[%s4799 + $0xbc] sm:$0x1]
      %v5363 = vunpack.c.l.bf16 %v5315
      %v5364 = vunpack.c.l.bf16 %v5316
      %v5365 = vunpack.c.l.bf16 %v5317
      %v5366 = vunpack.c.l.bf16 %v5318
      %v5367 = vunpack.c.l.bf16 %v5319
      %v5368 = vunpack.c.l.bf16 %v5320
      %v5369 = vunpack.c.l.bf16 %v5321
      %v5370 = vunpack.c.l.bf16 %v5322
      %v5371 = vunpack.c.l.bf16 %v5323
      %v5372 = vunpack.c.l.bf16 %v5324
      %v5373 = vunpack.c.l.bf16 %v5325
      %v5374 = vunpack.c.l.bf16 %v5326
      %v5375 = vunpack.c.l.bf16 %v5327
      %v5376 = vunpack.c.l.bf16 %v5328
      %v5377 = vunpack.c.l.bf16 %v5329
      %v5378 = vunpack.c.l.bf16 %v5330
      %v5379 = vunpack.c.l.bf16 %v5331
      %v5380 = vunpack.c.l.bf16 %v5332
      %v5381 = vunpack.c.l.bf16 %v5333
      %v5382 = vunpack.c.l.bf16 %v5334
      %v5383 = vunpack.c.l.bf16 %v5335
      %v5384 = vunpack.c.l.bf16 %v5336
      %v5385 = vunpack.c.l.bf16 %v5337
      %v5386 = vunpack.c.l.bf16 %v5338
      %v5387 = vunpack.c.l.bf16 %v5339
      %v5388 = vunpack.c.l.bf16 %v5340
      %v5389 = vunpack.c.l.bf16 %v5341
      %v5390 = vunpack.c.l.bf16 %v5342
      %v5391 = vunpack.c.l.bf16 %v5343
      %v5392 = vunpack.c.l.bf16 %v5344
      %v5393 = vunpack.c.l.bf16 %v5345
      %v5394 = vunpack.c.l.bf16 %v5346
      %v5395 = vunpack.c.l.bf16 %v5347
      %v5396 = vunpack.c.l.bf16 %v5348
      %v5397 = vunpack.c.l.bf16 %v5349
      %v5398 = vunpack.c.l.bf16 %v5350
      %v5399 = vunpack.c.l.bf16 %v5351
      %v5400 = vunpack.c.l.bf16 %v5352
      %v5401 = vunpack.c.l.bf16 %v5353
      %v5402 = vunpack.c.l.bf16 %v5354
      %v5403 = vunpack.c.l.bf16 %v5355
      %v5404 = vunpack.c.l.bf16 %v5356
      %v5405 = vunpack.c.l.bf16 %v5357
      %v5406 = vunpack.c.l.bf16 %v5358
      %v5407 = vunpack.c.l.bf16 %v5359
      %v5408 = vunpack.c.l.bf16 %v5360
      %v5409 = vunpack.c.l.bf16 %v5361
      %v5410 = vunpack.c.l.bf16 %v5362
      %v5411 = vmul.f32 %v5363, %v388
      %v5412 = vmul.f32 %v5364, %v388
      %v5413 = vmul.f32 %v5365, %v388
      %v5414 = vmul.f32 %v5366, %v388
      %v5415 = vmul.f32 %v5367, %v388
      %v5416 = vmul.f32 %v5368, %v388
      %v5417 = vmul.f32 %v5369, %v388
      %v5418 = vmul.f32 %v5370, %v388
      %v5419 = vmul.f32 %v5371, %v388
      %v5420 = vmul.f32 %v5372, %v388
      %v5421 = vmul.f32 %v5373, %v388
      %v5422 = vmul.f32 %v5374, %v388
      %v5423 = vmul.f32 %v5375, %v388
      %v5424 = vmul.f32 %v5376, %v388
      %v5425 = vmul.f32 %v5377, %v388
      %v5426 = vmul.f32 %v5378, %v388
      %v5427 = vmul.f32 %v5379, %v388
      %v5428 = vmul.f32 %v5380, %v388
      %v5429 = vmul.f32 %v5381, %v388
      %v5430 = vmul.f32 %v5382, %v388
      %v5431 = vmul.f32 %v5383, %v388
      %v5432 = vmul.f32 %v5384, %v388
      %v5433 = vmul.f32 %v5385, %v388
      %v5434 = vmul.f32 %v5386, %v388
      %v5435 = vmul.f32 %v5387, %v388
      %v5436 = vmul.f32 %v5388, %v388
      %v5437 = vmul.f32 %v5389, %v388
      %v5438 = vmul.f32 %v5390, %v388
      %v5439 = vmul.f32 %v5391, %v388
      %v5440 = vmul.f32 %v5392, %v388
      %v5441 = vmul.f32 %v5393, %v388
      %v5442 = vmul.f32 %v5394, %v388
      %v5443 = vmul.f32 %v5395, %v388
      %v5444 = vmul.f32 %v5396, %v388
      %v5445 = vmul.f32 %v5397, %v388
      %v5446 = vmul.f32 %v5398, %v388
      %v5447 = vmul.f32 %v5399, %v388
      %v5448 = vmul.f32 %v5400, %v388
      %v5449 = vmul.f32 %v5401, %v388
      %v5450 = vmul.f32 %v5402, %v388
      %v5451 = vmul.f32 %v5403, %v388
      %v5452 = vmul.f32 %v5404, %v388
      %v5453 = vmul.f32 %v5405, %v388
      %v5454 = vmul.f32 %v5406, %v388
      %v5455 = vmul.f32 %v5407, %v388
      %v5456 = vmul.f32 %v5408, %v388
      %v5457 = vmul.f32 %v5409, %v388
      %v5458 = vmul.f32 %v5410, %v388
      %v5459 = vadd.f32 %v5411, %v423
      %v5460 = vadd.f32 %v5412, %v423
      %v5461 = vadd.f32 %v5413, %v423
      %v5462 = vadd.f32 %v5414, %v423
      %v5463 = vadd.f32 %v5415, %v423
      %v5464 = vadd.f32 %v5416, %v423
      %v5465 = vadd.f32 %v5417, %v423
      %v5466 = vadd.f32 %v5418, %v423
      %v5467 = vadd.f32 %v5419, %v423
      %v5468 = vadd.f32 %v5420, %v423
      %v5469 = vadd.f32 %v5421, %v423
      %v5470 = vadd.f32 %v5422, %v423
      %v5471 = vadd.f32 %v5423, %v423
      %v5472 = vadd.f32 %v5424, %v423
      %v5473 = vadd.f32 %v5425, %v423
      %v5474 = vadd.f32 %v5426, %v423
      %v5475 = vadd.f32 %v5427, %v423
      %v5476 = vadd.f32 %v5428, %v423
      %v5477 = vadd.f32 %v5429, %v423
      %v5478 = vadd.f32 %v5430, %v423
      %v5479 = vadd.f32 %v5431, %v423
      %v5480 = vadd.f32 %v5432, %v423
      %v5481 = vadd.f32 %v5433, %v423
      %v5482 = vadd.f32 %v5434, %v423
      %v5483 = vadd.f32 %v5435, %v423
      %v5484 = vadd.f32 %v5436, %v423
      %v5485 = vadd.f32 %v5437, %v423
      %v5486 = vadd.f32 %v5438, %v423
      %v5487 = vadd.f32 %v5439, %v423
      %v5488 = vadd.f32 %v5440, %v423
      %v5489 = vadd.f32 %v5441, %v423
      %v5490 = vadd.f32 %v5442, %v423
      %v5491 = vadd.f32 %v5443, %v423
      %v5492 = vadd.f32 %v5444, %v423
      %v5493 = vadd.f32 %v5445, %v423
      %v5494 = vadd.f32 %v5446, %v423
      %v5495 = vadd.f32 %v5447, %v423
      %v5496 = vadd.f32 %v5448, %v423
      %v5497 = vadd.f32 %v5449, %v423
      %v5498 = vadd.f32 %v5450, %v423
      %v5499 = vadd.f32 %v5451, %v423
      %v5500 = vadd.f32 %v5452, %v423
      %v5501 = vadd.f32 %v5453, %v423
      %v5502 = vadd.f32 %v5454, %v423
      %v5503 = vadd.f32 %v5455, %v423
      %v5504 = vadd.f32 %v5456, %v423
      %v5505 = vadd.f32 %v5457, %v423
      %v5506 = vadd.f32 %v5458, %v423
      %v5507 = vmax.f32 %v5459, 0.0
      %v5508 = vmax.f32 %v5460, 0.0
      %v5509 = vmax.f32 %v5461, 0.0
      %v5510 = vmax.f32 %v5462, 0.0
      %v5511 = vmax.f32 %v5463, 0.0
      %v5512 = vmax.f32 %v5464, 0.0
      %v5513 = vmax.f32 %v5465, 0.0
      %v5514 = vmax.f32 %v5466, 0.0
      %v5515 = vmax.f32 %v5467, 0.0
      %v5516 = vmax.f32 %v5468, 0.0
      %v5517 = vmax.f32 %v5469, 0.0
      %v5518 = vmax.f32 %v5470, 0.0
      %v5519 = vmax.f32 %v5471, 0.0
      %v5520 = vmax.f32 %v5472, 0.0
      %v5521 = vmax.f32 %v5473, 0.0
      %v5522 = vmax.f32 %v5474, 0.0
      %v5523 = vmax.f32 %v5475, 0.0
      %v5524 = vmax.f32 %v5476, 0.0
      %v5525 = vmax.f32 %v5477, 0.0
      %v5526 = vmax.f32 %v5478, 0.0
      %v5527 = vmax.f32 %v5479, 0.0
      %v5528 = vmax.f32 %v5480, 0.0
      %v5529 = vmax.f32 %v5481, 0.0
      %v5530 = vmax.f32 %v5482, 0.0
      %v5531 = vmax.f32 %v5483, 0.0
      %v5532 = vmax.f32 %v5484, 0.0
      %v5533 = vmax.f32 %v5485, 0.0
      %v5534 = vmax.f32 %v5486, 0.0
      %v5535 = vmax.f32 %v5487, 0.0
      %v5536 = vmax.f32 %v5488, 0.0
      %v5537 = vmax.f32 %v5489, 0.0
      %v5538 = vmax.f32 %v5490, 0.0
      %v5539 = vmax.f32 %v5491, 0.0
      %v5540 = vmax.f32 %v5492, 0.0
      %v5541 = vmax.f32 %v5493, 0.0
      %v5542 = vmax.f32 %v5494, 0.0
      %v5543 = vmax.f32 %v5495, 0.0
      %v5544 = vmax.f32 %v5496, 0.0
      %v5545 = vmax.f32 %v5497, 0.0
      %v5546 = vmax.f32 %v5498, 0.0
      %v5547 = vmax.f32 %v5499, 0.0
      %v5548 = vmax.f32 %v5500, 0.0
      %v5549 = vmax.f32 %v5501, 0.0
      %v5550 = vmax.f32 %v5502, 0.0
      %v5551 = vmax.f32 %v5503, 0.0
      %v5552 = vmax.f32 %v5504, 0.0
      %v5553 = vmax.f32 %v5505, 0.0
      %v5554 = vmax.f32 %v5506, 0.0
      %v5555 = vld [vmem:[%s4960 + $0x1] sm:$0xff]
      %v5556 = vld [vmem:[%s4960 + $0x9] sm:$0xff]
      %v5557 = vld [vmem:[%s4960 + $0x19] sm:$0xff]
      %v5558 = vld [vmem:[%s4960 + $0x21] sm:$0xff]
      %v5559 = vld [vmem:[%s4960 + $0x31] sm:$0xff]
      %v5560 = vld [vmem:[%s4960 + $0x39] sm:$0xff]
      %v5561 = vld [vmem:[%s4960 + $0x49] sm:$0xff]
      %v5562 = vld [vmem:[%s4960 + $0x51] sm:$0xff]
      %v5563 = vld [vmem:[%s4960 + $0x61] sm:$0xff]
      %v5564 = vld [vmem:[%s4960 + $0x69] sm:$0xff]
      %v5565 = vld [vmem:[%s4960 + $0x79] sm:$0xff]
      %v5566 = vld [vmem:[%s4960 + $0x81] sm:$0xff]
      %v5567 = vld [vmem:[%s4960 + $0x91] sm:$0xff]
      %v5568 = vld [vmem:[%s4960 + $0x99] sm:$0xff]
      %v5569 = vld [vmem:[%s4960 + $0xa9] sm:$0xff]
      %v5570 = vld [vmem:[%s4960 + $0xb1] sm:$0xff]
      %v5571 = vld [vmem:[%s4960 + $0xc1] sm:$0xff]
      %v5572 = vld [vmem:[%s4960 + $0xc9] sm:$0xff]
      %v5573 = vld [vmem:[%s4960 + $0xd9] sm:$0xff]
      %v5574 = vld [vmem:[%s4960 + $0xe1] sm:$0xff]
      %v5575 = vld [vmem:[%s4960 + $0xf1] sm:$0xff]
      %v5576 = vld [vmem:[%s4960 + $0xf9] sm:$0xff]
      %v5577 = vld [vmem:[%s4960 + $0x109] sm:$0xff]
      %v5578 = vld [vmem:[%s4960 + $0x111] sm:$0xff]
      %v5579 = vld [vmem:[%s4960 + $0x121] sm:$0xff]
      %v5580 = vld [vmem:[%s4960 + $0x129] sm:$0xff]
      %v5581 = vld [vmem:[%s4960 + $0x139] sm:$0xff]
      %v5582 = vld [vmem:[%s4960 + $0x141] sm:$0xff]
      %v5583 = vld [vmem:[%s4960 + $0x151] sm:$0xff]
      %v5584 = vld [vmem:[%s4960 + $0x159] sm:$0xff]
      %v5585 = vld [vmem:[%s4960 + $0x169] sm:$0xff]
      %v5586 = vld [vmem:[%s4960 + $0x171] sm:$0xff]
      %v5619 = vrot.slane %v5555, 7
      %v5620 = vrot.slane %v5556, 7
      %v5621 = vsel %vm731, %v5619, %v5620
      %v5622 = vrot.slane %v5557, 7
      %v5623 = vrot.slane %v5558, 7
      %v5624 = vsel %vm731, %v5622, %v5623
      %v5625 = vrot.slane %v5559, 7
      %v5626 = vrot.slane %v5560, 7
      %v5627 = vsel %vm731, %v5625, %v5626
      %v5628 = vrot.slane %v5561, 7
      %v5629 = vrot.slane %v5562, 7
      %v5630 = vsel %vm731, %v5628, %v5629
      %v5631 = vrot.slane %v5563, 7
      %v5632 = vrot.slane %v5564, 7
      %v5633 = vsel %vm731, %v5631, %v5632
      %v5634 = vrot.slane %v5565, 7
      %v5635 = vrot.slane %v5566, 7
      %v5636 = vsel %vm731, %v5634, %v5635
      %v5637 = vrot.slane %v5567, 7
      %v5638 = vrot.slane %v5568, 7
      %v5639 = vsel %vm731, %v5637, %v5638
      %v5640 = vrot.slane %v5569, 7
      %v5641 = vrot.slane %v5570, 7
      %v5642 = vsel %vm731, %v5640, %v5641
      %v5643 = vrot.slane %v5571, 7
      %v5644 = vrot.slane %v5572, 7
      %v5645 = vsel %vm731, %v5643, %v5644
      %v5646 = vrot.slane %v5573, 7
      %v5647 = vrot.slane %v5574, 7
      %v5648 = vsel %vm731, %v5646, %v5647
      %v5649 = vrot.slane %v5575, 7
      %v5650 = vrot.slane %v5576, 7
      %v5651 = vsel %vm731, %v5649, %v5650
      %v5652 = vrot.slane %v5577, 7
      %v5653 = vrot.slane %v5578, 7
      %v5654 = vsel %vm731, %v5652, %v5653
      %v5655 = vrot.slane %v5579, 7
      %v5656 = vrot.slane %v5580, 7
      %v5657 = vsel %vm731, %v5655, %v5656
      %v5658 = vrot.slane %v5581, 7
      %v5659 = vrot.slane %v5582, 7
      %v5660 = vsel %vm731, %v5658, %v5659
      %v5661 = vrot.slane %v5583, 7
      %v5662 = vrot.slane %v5584, 7
      %v5663 = vsel %vm731, %v5661, %v5662
      %v5664 = vrot.slane %v5585, 7
      %v5665 = vrot.slane %v5586, 7
      %v5666 = vsel %vm731, %v5664, %v5665
      %v5715 = vmul.f32 %v5507, %v5619
      %v5716 = vmul.f32 %v5508, %v5621
      %v5717 = vmul.f32 %v5509, %v5620
      %v5718 = vmul.f32 %v5510, %v5622
      %v5719 = vmul.f32 %v5511, %v5624
      %v5720 = vmul.f32 %v5512, %v5623
      %v5721 = vmul.f32 %v5513, %v5625
      %v5722 = vmul.f32 %v5514, %v5627
      %v5723 = vmul.f32 %v5515, %v5626
      %v5724 = vmul.f32 %v5516, %v5628
      %v5725 = vmul.f32 %v5517, %v5630
      %v5726 = vmul.f32 %v5518, %v5629
      %v5727 = vmul.f32 %v5519, %v5631
      %v5728 = vmul.f32 %v5520, %v5633
      %v5729 = vmul.f32 %v5521, %v5632
      %v5730 = vmul.f32 %v5522, %v5634
      %v5731 = vmul.f32 %v5523, %v5636
      %v5732 = vmul.f32 %v5524, %v5635
      %v5733 = vmul.f32 %v5525, %v5637
      %v5734 = vmul.f32 %v5526, %v5639
      %v5735 = vmul.f32 %v5527, %v5638
      %v5736 = vmul.f32 %v5528, %v5640
      %v5737 = vmul.f32 %v5529, %v5642
      %v5738 = vmul.f32 %v5530, %v5641
      %v5739 = vmul.f32 %v5531, %v5643
      %v5740 = vmul.f32 %v5532, %v5645
      %v5741 = vmul.f32 %v5533, %v5644
      %v5742 = vmul.f32 %v5534, %v5646
      %v5743 = vmul.f32 %v5535, %v5648
      %v5744 = vmul.f32 %v5536, %v5647
      %v5745 = vmul.f32 %v5537, %v5649
      %v5746 = vmul.f32 %v5538, %v5651
      %v5747 = vmul.f32 %v5539, %v5650
      %v5748 = vmul.f32 %v5540, %v5652
      %v5749 = vmul.f32 %v5541, %v5654
      %v5750 = vmul.f32 %v5542, %v5653
      %v5751 = vmul.f32 %v5543, %v5655
      %v5752 = vmul.f32 %v5544, %v5657
      %v5753 = vmul.f32 %v5545, %v5656
      %v5754 = vmul.f32 %v5546, %v5658
      %v5755 = vmul.f32 %v5547, %v5660
      %v5756 = vmul.f32 %v5548, %v5659
      %v5757 = vmul.f32 %v5549, %v5661
      %v5758 = vmul.f32 %v5550, %v5663
      %v5759 = vmul.f32 %v5551, %v5662
      %v5760 = vmul.f32 %v5552, %v5664
      %v5761 = vmul.f32 %v5553, %v5666
      %v5762 = vmul.f32 %v5554, %v5665
      %v5763 = vpack.c.bf16 %v5715, %v5715
      %v5764 = vpack.c.bf16 %v5716, %v5716
      %v5765 = vpack.c.bf16 %v5717, %v5717
      %v5766 = vpack.c.bf16 %v5718, %v5718
      %v5767 = vpack.c.bf16 %v5719, %v5719
      %v5768 = vpack.c.bf16 %v5720, %v5720
      %v5769 = vpack.c.bf16 %v5721, %v5721
      %v5770 = vpack.c.bf16 %v5722, %v5722
      %v5771 = vpack.c.bf16 %v5723, %v5723
      %v5772 = vpack.c.bf16 %v5724, %v5724
      %v5773 = vpack.c.bf16 %v5725, %v5725
      %v5774 = vpack.c.bf16 %v5726, %v5726
      %v5775 = vpack.c.bf16 %v5727, %v5727
      %v5776 = vpack.c.bf16 %v5728, %v5728
      %v5777 = vpack.c.bf16 %v5729, %v5729
      %v5778 = vpack.c.bf16 %v5730, %v5730
      %v5779 = vpack.c.bf16 %v5731, %v5731
      %v5780 = vpack.c.bf16 %v5732, %v5732
      %v5781 = vpack.c.bf16 %v5733, %v5733
      %v5782 = vpack.c.bf16 %v5734, %v5734
      %v5783 = vpack.c.bf16 %v5735, %v5735
      %v5784 = vpack.c.bf16 %v5736, %v5736
      %v5785 = vpack.c.bf16 %v5737, %v5737
      %v5786 = vpack.c.bf16 %v5738, %v5738
      %v5787 = vpack.c.bf16 %v5739, %v5739
      %v5788 = vpack.c.bf16 %v5740, %v5740
      %v5789 = vpack.c.bf16 %v5741, %v5741
      %v5790 = vpack.c.bf16 %v5742, %v5742
      %v5791 = vpack.c.bf16 %v5743, %v5743
      %v5792 = vpack.c.bf16 %v5744, %v5744
      %v5793 = vpack.c.bf16 %v5745, %v5745
      %v5794 = vpack.c.bf16 %v5746, %v5746
      %v5795 = vpack.c.bf16 %v5747, %v5747
      %v5796 = vpack.c.bf16 %v5748, %v5748
      %v5797 = vpack.c.bf16 %v5749, %v5749
      %v5798 = vpack.c.bf16 %v5750, %v5750
      %v5799 = vpack.c.bf16 %v5751, %v5751
      %v5800 = vpack.c.bf16 %v5752, %v5752
      %v5801 = vpack.c.bf16 %v5753, %v5753
      %v5802 = vpack.c.bf16 %v5754, %v5754
      %v5803 = vpack.c.bf16 %v5755, %v5755
      %v5804 = vpack.c.bf16 %v5756, %v5756
      %v5805 = vpack.c.bf16 %v5757, %v5757
      %v5806 = vpack.c.bf16 %v5758, %v5758
      %v5807 = vpack.c.bf16 %v5759, %v5759
      %v5808 = vpack.c.bf16 %v5760, %v5760
      %v5809 = vpack.c.bf16 %v5761, %v5761
      %v5810 = vpack.c.bf16 %v5762, %v5762
      %v5812 = vshrl.u32 %v5763, 16
      %v5814 = vrot.slane %v5812, 4
      %v5815 = vshll.u32 %v5763, 16
      %v5817 = vrot.slane %v5815, 5
      %v5818 = vor.u32 %v5814, %v5817
      %v5819 = vrot.slane %v5818, 4
      %v5821 = vshll.u32 %v5764, 16
      %v5823 = vrot.slane %v5821, 5
      %v5824 = vsel %vm926, %v5819, %v5823
      %v5825 = vshrl.u32 %v5764, 16
      %v5827 = vrot.slane %v5825, 4
      %v5828 = vor.u32 %v5827, %v5823
      %v5829 = vrot.slane %v5828, 4
      %v5831 = vshll.u32 %v5765, 16
      %v5833 = vrot.slane %v5831, 5
      %v5834 = vsel %vm926, %v5829, %v5833
      %v5836 = vshrl.u32 %v5766, 16
      %v5838 = vrot.slane %v5836, 4
      %v5839 = vshll.u32 %v5766, 16
      %v5841 = vrot.slane %v5839, 5
      %v5842 = vor.u32 %v5838, %v5841
      %v5843 = vrot.slane %v5842, 4
      %v5845 = vshll.u32 %v5767, 16
      %v5847 = vrot.slane %v5845, 5
      %v5848 = vsel %vm926, %v5843, %v5847
      %v5849 = vshrl.u32 %v5767, 16
      %v5851 = vrot.slane %v5849, 4
      %v5852 = vor.u32 %v5851, %v5847
      %v5853 = vrot.slane %v5852, 4
      %v5855 = vshll.u32 %v5768, 16
      %v5857 = vrot.slane %v5855, 5
      %v5858 = vsel %vm926, %v5853, %v5857
      %v5860 = vshrl.u32 %v5769, 16
      %v5862 = vrot.slane %v5860, 4
      %v5863 = vshll.u32 %v5769, 16
      %v5865 = vrot.slane %v5863, 5
      %v5866 = vor.u32 %v5862, %v5865
      %v5867 = vrot.slane %v5866, 4
      %v5869 = vshll.u32 %v5770, 16
      %v5871 = vrot.slane %v5869, 5
      %v5872 = vsel %vm926, %v5867, %v5871
      %v5873 = vshrl.u32 %v5770, 16
      %v5875 = vrot.slane %v5873, 4
      %v5876 = vor.u32 %v5875, %v5871
      %v5877 = vrot.slane %v5876, 4
      %v5879 = vshll.u32 %v5771, 16
      %v5881 = vrot.slane %v5879, 5
      %v5882 = vsel %vm926, %v5877, %v5881
      %v5884 = vshrl.u32 %v5772, 16
      %v5886 = vrot.slane %v5884, 4
      %v5887 = vshll.u32 %v5772, 16
      %v5889 = vrot.slane %v5887, 5
      %v5890 = vor.u32 %v5886, %v5889
      %v5891 = vrot.slane %v5890, 4
      %v5893 = vshll.u32 %v5773, 16
      %v5895 = vrot.slane %v5893, 5
      %v5896 = vsel %vm926, %v5891, %v5895
      %v5897 = vshrl.u32 %v5773, 16
      %v5899 = vrot.slane %v5897, 4
      %v5900 = vor.u32 %v5899, %v5895
      %v5901 = vrot.slane %v5900, 4
      %v5903 = vshll.u32 %v5774, 16
      %v5905 = vrot.slane %v5903, 5
      %v5906 = vsel %vm926, %v5901, %v5905
      %v5908 = vshrl.u32 %v5775, 16
      %v5910 = vrot.slane %v5908, 4
      %v5911 = vshll.u32 %v5775, 16
      %v5913 = vrot.slane %v5911, 5
      %v5914 = vor.u32 %v5910, %v5913
      %v5915 = vrot.slane %v5914, 4
      %v5917 = vshll.u32 %v5776, 16
      %v5919 = vrot.slane %v5917, 5
      %v5920 = vsel %vm926, %v5915, %v5919
      %v5921 = vshrl.u32 %v5776, 16
      %v5923 = vrot.slane %v5921, 4
      %v5924 = vor.u32 %v5923, %v5919
      %v5925 = vrot.slane %v5924, 4
      %v5927 = vshll.u32 %v5777, 16
      %v5929 = vrot.slane %v5927, 5
      %v5930 = vsel %vm926, %v5925, %v5929
      %v5932 = vshrl.u32 %v5778, 16
      %v5934 = vrot.slane %v5932, 4
      %v5935 = vshll.u32 %v5778, 16
      %v5937 = vrot.slane %v5935, 5
      %v5938 = vor.u32 %v5934, %v5937
      %v5939 = vrot.slane %v5938, 4
      %v5941 = vshll.u32 %v5779, 16
      %v5943 = vrot.slane %v5941, 5
      %v5944 = vsel %vm926, %v5939, %v5943
      %v5945 = vshrl.u32 %v5779, 16
      %v5947 = vrot.slane %v5945, 4
      %v5948 = vor.u32 %v5947, %v5943
      %v5949 = vrot.slane %v5948, 4
      %v5951 = vshll.u32 %v5780, 16
      %v5953 = vrot.slane %v5951, 5
      %v5954 = vsel %vm926, %v5949, %v5953
      %v5956 = vshrl.u32 %v5781, 16
      %v5958 = vrot.slane %v5956, 4
      %v5959 = vshll.u32 %v5781, 16
      %v5961 = vrot.slane %v5959, 5
      %v5962 = vor.u32 %v5958, %v5961
      %v5963 = vrot.slane %v5962, 4
      %v5965 = vshll.u32 %v5782, 16
      %v5967 = vrot.slane %v5965, 5
      %v5968 = vsel %vm926, %v5963, %v5967
      %v5969 = vshrl.u32 %v5782, 16
      %v5971 = vrot.slane %v5969, 4
      %v5972 = vor.u32 %v5971, %v5967
      %v5973 = vrot.slane %v5972, 4
      %v5975 = vshll.u32 %v5783, 16
      %v5977 = vrot.slane %v5975, 5
      %v5978 = vsel %vm926, %v5973, %v5977
      %v5980 = vshrl.u32 %v5784, 16
      %v5982 = vrot.slane %v5980, 4
      %v5983 = vshll.u32 %v5784, 16
      %v5985 = vrot.slane %v5983, 5
      %v5986 = vor.u32 %v5982, %v5985
      %v5987 = vrot.slane %v5986, 4
      %v5989 = vshll.u32 %v5785, 16
      %v5991 = vrot.slane %v5989, 5
      %v5992 = vsel %vm926, %v5987, %v5991
      %v5993 = vshrl.u32 %v5785, 16
      %v5995 = vrot.slane %v5993, 4
      %v5996 = vor.u32 %v5995, %v5991
      %v5997 = vrot.slane %v5996, 4
      %v5999 = vshll.u32 %v5786, 16
      %v6001 = vrot.slane %v5999, 5
      %v6002 = vsel %vm926, %v5997, %v6001
      %v6004 = vshrl.u32 %v5787, 16
      %v6006 = vrot.slane %v6004, 4
      %v6007 = vshll.u32 %v5787, 16
      %v6009 = vrot.slane %v6007, 5
      %v6010 = vor.u32 %v6006, %v6009
      %v6011 = vrot.slane %v6010, 4
      %v6013 = vshll.u32 %v5788, 16
      %v6015 = vrot.slane %v6013, 5
      %v6016 = vsel %vm926, %v6011, %v6015
      %v6017 = vshrl.u32 %v5788, 16
      %v6019 = vrot.slane %v6017, 4
      %v6020 = vor.u32 %v6019, %v6015
      %v6021 = vrot.slane %v6020, 4
      %v6023 = vshll.u32 %v5789, 16
      %v6025 = vrot.slane %v6023, 5
      %v6026 = vsel %vm926, %v6021, %v6025
      %v6028 = vshrl.u32 %v5790, 16
      %v6030 = vrot.slane %v6028, 4
      %v6031 = vshll.u32 %v5790, 16
      %v6033 = vrot.slane %v6031, 5
      %v6034 = vor.u32 %v6030, %v6033
      %v6035 = vrot.slane %v6034, 4
      %v6037 = vshll.u32 %v5791, 16
      %v6039 = vrot.slane %v6037, 5
      %v6040 = vsel %vm926, %v6035, %v6039
      %v6041 = vshrl.u32 %v5791, 16
      %v6043 = vrot.slane %v6041, 4
      %v6044 = vor.u32 %v6043, %v6039
      %v6045 = vrot.slane %v6044, 4
      %v6047 = vshll.u32 %v5792, 16
      %v6049 = vrot.slane %v6047, 5
      %v6050 = vsel %vm926, %v6045, %v6049
      %v6052 = vshrl.u32 %v5793, 16
      %v6054 = vrot.slane %v6052, 4
      %v6055 = vshll.u32 %v5793, 16
      %v6057 = vrot.slane %v6055, 5
      %v6058 = vor.u32 %v6054, %v6057
      %v6059 = vrot.slane %v6058, 4
      %v6061 = vshll.u32 %v5794, 16
      %v6063 = vrot.slane %v6061, 5
      %v6064 = vsel %vm926, %v6059, %v6063
      %v6065 = vshrl.u32 %v5794, 16
      %v6067 = vrot.slane %v6065, 4
      %v6068 = vor.u32 %v6067, %v6063
      %v6069 = vrot.slane %v6068, 4
      %v6071 = vshll.u32 %v5795, 16
      %v6073 = vrot.slane %v6071, 5
      %v6074 = vsel %vm926, %v6069, %v6073
      %v6076 = vshrl.u32 %v5796, 16
      %v6078 = vrot.slane %v6076, 4
      %v6079 = vshll.u32 %v5796, 16
      %v6081 = vrot.slane %v6079, 5
      %v6082 = vor.u32 %v6078, %v6081
      %v6083 = vrot.slane %v6082, 4
      %v6085 = vshll.u32 %v5797, 16
      %v6087 = vrot.slane %v6085, 5
      %v6088 = vsel %vm926, %v6083, %v6087
      %v6089 = vshrl.u32 %v5797, 16
      %v6091 = vrot.slane %v6089, 4
      %v6092 = vor.u32 %v6091, %v6087
      %v6093 = vrot.slane %v6092, 4
      %v6095 = vshll.u32 %v5798, 16
      %v6097 = vrot.slane %v6095, 5
      %v6098 = vsel %vm926, %v6093, %v6097
      %v6100 = vshrl.u32 %v5799, 16
      %v6102 = vrot.slane %v6100, 4
      %v6103 = vshll.u32 %v5799, 16
      %v6105 = vrot.slane %v6103, 5
      %v6106 = vor.u32 %v6102, %v6105
      %v6107 = vrot.slane %v6106, 4
      %v6109 = vshll.u32 %v5800, 16
      %v6111 = vrot.slane %v6109, 5
      %v6112 = vsel %vm926, %v6107, %v6111
      %v6113 = vshrl.u32 %v5800, 16
      %v6115 = vrot.slane %v6113, 4
      %v6116 = vor.u32 %v6115, %v6111
      %v6117 = vrot.slane %v6116, 4
      %v6119 = vshll.u32 %v5801, 16
      %v6121 = vrot.slane %v6119, 5
      %v6122 = vsel %vm926, %v6117, %v6121
      %v6124 = vshrl.u32 %v5802, 16
      %v6126 = vrot.slane %v6124, 4
      %v6127 = vshll.u32 %v5802, 16
      %v6129 = vrot.slane %v6127, 5
      %v6130 = vor.u32 %v6126, %v6129
      %v6131 = vrot.slane %v6130, 4
      %v6133 = vshll.u32 %v5803, 16
      %v6135 = vrot.slane %v6133, 5
      %v6136 = vsel %vm926, %v6131, %v6135
      %v6137 = vshrl.u32 %v5803, 16
      %v6139 = vrot.slane %v6137, 4
      %v6140 = vor.u32 %v6139, %v6135
      %v6141 = vrot.slane %v6140, 4
      %v6143 = vshll.u32 %v5804, 16
      %v6145 = vrot.slane %v6143, 5
      %v6146 = vsel %vm926, %v6141, %v6145
      %v6148 = vshrl.u32 %v5805, 16
      %v6150 = vrot.slane %v6148, 4
      %v6151 = vshll.u32 %v5805, 16
      %v6153 = vrot.slane %v6151, 5
      %v6154 = vor.u32 %v6150, %v6153
      %v6155 = vrot.slane %v6154, 4
      %v6157 = vshll.u32 %v5806, 16
      %v6159 = vrot.slane %v6157, 5
      %v6160 = vsel %vm926, %v6155, %v6159
      %v6161 = vshrl.u32 %v5806, 16
      %v6163 = vrot.slane %v6161, 4
      %v6164 = vor.u32 %v6163, %v6159
      %v6165 = vrot.slane %v6164, 4
      %v6167 = vshll.u32 %v5807, 16
      %v6169 = vrot.slane %v6167, 5
      %v6170 = vsel %vm926, %v6165, %v6169
      %v6172 = vshrl.u32 %v5808, 16
      %v6174 = vrot.slane %v6172, 4
      %v6175 = vshll.u32 %v5808, 16
      %v6177 = vrot.slane %v6175, 5
      %v6178 = vor.u32 %v6174, %v6177
      %v6179 = vrot.slane %v6178, 4
      %v6181 = vshll.u32 %v5809, 16
      %v6183 = vrot.slane %v6181, 5
      %v6184 = vsel %vm926, %v6179, %v6183
      %v6185 = vshrl.u32 %v5809, 16
      %v6187 = vrot.slane %v6185, 4
      %v6188 = vor.u32 %v6187, %v6183
      %v6189 = vrot.slane %v6188, 4
      %v6191 = vshll.u32 %v5810, 16
      %v6193 = vrot.slane %v6191, 5
      %v6194 = vsel %vm926, %v6189, %v6193
      %s6195 = scalar_lea.vmem %s4, 56
      %v6196 = vld [vmem:[%s6195] sm:$0xf]
      %v6197 = vld [vmem:[%s6195 + $0x4] sm:$0xf]
      %v6198 = vunpack.c.l.b16 %v5824
      %v6199 = vunpack.c.l.b16 %v5834
      %v6200 = vunpack.c.l.b16 %v5848
      %v6201 = vunpack.c.l.b16 %v5858
      %v6202 = vunpack.c.l.b16 %v5872
      %v6203 = vunpack.c.l.b16 %v5882
      %v6204 = vunpack.c.l.b16 %v5896
      %v6205 = vunpack.c.l.b16 %v5906
      %v6206 = vunpack.c.l.b16 %v5920
      %v6207 = vunpack.c.l.b16 %v5930
      %v6208 = vunpack.c.l.b16 %v5944
      %v6209 = vunpack.c.l.b16 %v5954
      %v6210 = vunpack.c.l.b16 %v5968
      %v6211 = vunpack.c.l.b16 %v5978
      %v6212 = vunpack.c.l.b16 %v5992
      %v6213 = vunpack.c.l.b16 %v6002
      %v6214 = vunpack.c.l.b16 %v6016
      %v6215 = vunpack.c.l.b16 %v6026
      %v6216 = vunpack.c.l.b16 %v6040
      %v6217 = vunpack.c.l.b16 %v6050
      %v6218 = vunpack.c.l.b16 %v6064
      %v6219 = vunpack.c.l.b16 %v6074
      %v6220 = vunpack.c.l.b16 %v6088
      %v6221 = vunpack.c.l.b16 %v6098
      %v6222 = vunpack.c.l.b16 %v6112
      %v6223 = vunpack.c.l.b16 %v6122
      %v6224 = vunpack.c.l.b16 %v6136
      %v6225 = vunpack.c.l.b16 %v6146
      %v6226 = vunpack.c.l.b16 %v6160
      %v6227 = vunpack.c.l.b16 %v6170
      %v6228 = vunpack.c.l.b16 %v6184
      %v6229 = vunpack.c.l.b16 %v6194
      %v6230 = vpack.c.b16 %v6199, %v6198
      %v6231 = vpack.c.b16 %v6201, %v6200
      %v6232 = vpack.c.b16 %v6203, %v6202
      %v6233 = vpack.c.b16 %v6205, %v6204
      %v6234 = vpack.c.b16 %v6207, %v6206
      %v6235 = vpack.c.b16 %v6209, %v6208
      %v6236 = vpack.c.b16 %v6211, %v6210
      %v6237 = vpack.c.b16 %v6213, %v6212
      %v6238 = vpack.c.b16 %v6215, %v6214
      %v6239 = vpack.c.b16 %v6217, %v6216
      %v6240 = vpack.c.b16 %v6219, %v6218
      %v6241 = vpack.c.b16 %v6221, %v6220
      %v6242 = vpack.c.b16 %v6223, %v6222
      %v6243 = vpack.c.b16 %v6225, %v6224
      %v6244 = vpack.c.b16 %v6227, %v6226
      %v6245 = vpack.c.b16 %v6229, %v6228
      %v6248 = vunpack.c.l.b16 %v6196
      %v6249 = vunpack.c.l.b16 %v6197
      %v6250 = vpack.c.b16 %v6249, %v6248
      %v6253 = vsel %vm1368, %v6230, 0
      %v6256 = vsel %vm1368, %v6231, 0
      %v6259 = vsel %vm1368, %v6232, 0
      %v6262 = vsel %vm1368, %v6233, 0
      %v6265 = vsel %vm1368, %v6234, 0
      %v6268 = vsel %vm1368, %v6235, 0
      %v6271 = vsel %vm1368, %v6236, 0
      %v6274 = vsel %vm1368, %v6237, 0
      %v6277 = vsel %vm1368, %v6238, 0
      %v6280 = vsel %vm1368, %v6239, 0
      %v6283 = vsel %vm1368, %v6240, 0
      %v6286 = vsel %vm1368, %v6241, 0
      %v6289 = vsel %vm1368, %v6242, 0
      %v6292 = vsel %vm1368, %v6243, 0
      %v6295 = vsel %vm1368, %v6244, 0
      %v6298 = vsel %vm1368, %v6245, 0
      %6300 = vmatpush.bf16.msra.mxu0 0
      %6301 = vmatpush.bf16.msra.mxu0 0
      %6302 = vmatpush.bf16.msra.mxu0 0
      %6303 = vmatpush.bf16.msra.mxu0 0
      %6304 = vmatpush.bf16.msra.mxu0 0
      %6305 = vmatpush.bf16.msra.mxu0 0
      %6306 = vmatpush.bf16.msra.mxu0 0
      %6307 = vmatpush.bf16.msra.mxu0 %v6250
      %6308 = vmatmul.bf16.gmra.mxu0 %v6253
      %v6309 = vpop.f32.mrf.mxu0
      %v6310 = vadd.f32 0.0, %v6309
      %v6311 = vpop.f32.mrf.mxu0
      %v6312 = vadd.f32 0.0, %v6311
      %6313 = vmatmul.bf16.gmra.mxu0 %v6256
      %v6314 = vpop.f32.mrf.mxu0
      %v6315 = vadd.f32 0.0, %v6314
      %v6316 = vpop.f32.mrf.mxu0
      %v6317 = vadd.f32 0.0, %v6316
      %6318 = vmatmul.bf16.gmra.mxu0 %v6259
      %v6319 = vpop.f32.mrf.mxu0
      %v6320 = vadd.f32 0.0, %v6319
      %v6321 = vpop.f32.mrf.mxu0
      %v6322 = vadd.f32 0.0, %v6321
      %6323 = vmatmul.bf16.gmra.mxu0 %v6262
      %v6324 = vpop.f32.mrf.mxu0
      %v6325 = vadd.f32 0.0, %v6324
      %v6326 = vpop.f32.mrf.mxu0
      %v6327 = vadd.f32 0.0, %v6326
      %6328 = vmatmul.bf16.gmra.mxu0 %v6265
      %v6329 = vpop.f32.mrf.mxu0
      %v6330 = vadd.f32 0.0, %v6329
      %v6331 = vpop.f32.mrf.mxu0
      %v6332 = vadd.f32 0.0, %v6331
      %6333 = vmatmul.bf16.gmra.mxu0 %v6268
      %v6334 = vpop.f32.mrf.mxu0
      %v6335 = vadd.f32 0.0, %v6334
      %v6336 = vpop.f32.mrf.mxu0
      %v6337 = vadd.f32 0.0, %v6336
      %6338 = vmatmul.bf16.gmra.mxu0 %v6271
      %v6339 = vpop.f32.mrf.mxu0
      %v6340 = vadd.f32 0.0, %v6339
      %v6341 = vpop.f32.mrf.mxu0
      %v6342 = vadd.f32 0.0, %v6341
      %6343 = vmatmul.bf16.gmra.mxu0 %v6274
      %v6344 = vpop.f32.mrf.mxu0
      %v6345 = vadd.f32 0.0, %v6344
      %v6346 = vpop.f32.mrf.mxu0
      %v6347 = vadd.f32 0.0, %v6346
      %6348 = vmatmul.bf16.gmra.mxu0 %v6277
      %v6349 = vpop.f32.mrf.mxu0
      %v6350 = vadd.f32 0.0, %v6349
      %v6351 = vpop.f32.mrf.mxu0
      %v6352 = vadd.f32 0.0, %v6351
      %6353 = vmatmul.bf16.gmra.mxu0 %v6280
      %v6354 = vpop.f32.mrf.mxu0
      %v6355 = vadd.f32 0.0, %v6354
      %v6356 = vpop.f32.mrf.mxu0
      %v6357 = vadd.f32 0.0, %v6356
      %6358 = vmatmul.bf16.gmra.mxu0 %v6283
      %v6359 = vpop.f32.mrf.mxu0
      %v6360 = vadd.f32 0.0, %v6359
      %v6361 = vpop.f32.mrf.mxu0
      %v6362 = vadd.f32 0.0, %v6361
      %6363 = vmatmul.bf16.gmra.mxu0 %v6286
      %v6364 = vpop.f32.mrf.mxu0
      %v6365 = vadd.f32 0.0, %v6364
      %v6366 = vpop.f32.mrf.mxu0
      %v6367 = vadd.f32 0.0, %v6366
      %6368 = vmatmul.bf16.gmra.mxu0 %v6289
      %v6369 = vpop.f32.mrf.mxu0
      %v6370 = vadd.f32 0.0, %v6369
      %v6371 = vpop.f32.mrf.mxu0
      %v6372 = vadd.f32 0.0, %v6371
      %6373 = vmatmul.bf16.gmra.mxu0 %v6292
      %v6374 = vpop.f32.mrf.mxu0
      %v6375 = vadd.f32 0.0, %v6374
      %v6376 = vpop.f32.mrf.mxu0
      %v6377 = vadd.f32 0.0, %v6376
      %6378 = vmatmul.bf16.gmra.mxu0 %v6295
      %v6379 = vpop.f32.mrf.mxu0
      %v6380 = vadd.f32 0.0, %v6379
      %v6381 = vpop.f32.mrf.mxu0
      %v6382 = vadd.f32 0.0, %v6381
      %6383 = vmatmul.bf16.gmra.mxu0 %v6298
      %v6384 = vpop.f32.mrf.mxu0
      %v6385 = vadd.f32 0.0, %v6384
      %v6386 = vpop.f32.mrf.mxu0
      %v6387 = vadd.f32 0.0, %v6386
      %6388 = vdwg.mxu0
      %v6389 = vadd.f32 %v5283, %v6310
      %v6390 = vadd.f32 %v5284, %v6312
      %v6391 = vadd.f32 %v5285, %v6315
      %v6392 = vadd.f32 %v5286, %v6317
      %v6393 = vadd.f32 %v5287, %v6320
      %v6394 = vadd.f32 %v5288, %v6322
      %v6395 = vadd.f32 %v5289, %v6325
      %v6396 = vadd.f32 %v5290, %v6327
      %v6397 = vadd.f32 %v5291, %v6330
      %v6398 = vadd.f32 %v5292, %v6332
      %v6399 = vadd.f32 %v5293, %v6335
      %v6400 = vadd.f32 %v5294, %v6337
      %v6401 = vadd.f32 %v5295, %v6340
      %v6402 = vadd.f32 %v5296, %v6342
      %v6403 = vadd.f32 %v5297, %v6345
      %v6404 = vadd.f32 %v5298, %v6347
      %v6405 = vadd.f32 %v5299, %v6350
      %v6406 = vadd.f32 %v5300, %v6352
      %v6407 = vadd.f32 %v5301, %v6355
      %v6408 = vadd.f32 %v5302, %v6357
      %v6409 = vadd.f32 %v5303, %v6360
      %v6410 = vadd.f32 %v5304, %v6362
      %v6411 = vadd.f32 %v5305, %v6365
      %v6412 = vadd.f32 %v5306, %v6367
      %v6413 = vadd.f32 %v5307, %v6370
      %v6414 = vadd.f32 %v5308, %v6372
      %v6415 = vadd.f32 %v5309, %v6375
      %v6416 = vadd.f32 %v5310, %v6377
      %v6417 = vadd.f32 %v5311, %v6380
      %v6418 = vadd.f32 %v5312, %v6382
      %v6419 = vadd.f32 %v5313, %v6385
      %v6420 = vadd.f32 %v5314, %v6387
      %v6421 = vld [vmem:[%s4799] sm:$0xe]
      %v6422 = vld [vmem:[%s4799 + $0xc] sm:$0xe]
      %v6423 = vld [vmem:[%s4799 + $0x18] sm:$0xe]
      %v6424 = vld [vmem:[%s4799 + $0x24] sm:$0xe]
      %v6425 = vld [vmem:[%s4799 + $0x30] sm:$0xe]
      %v6426 = vld [vmem:[%s4799 + $0x3c] sm:$0xe]
      %v6427 = vld [vmem:[%s4799 + $0x48] sm:$0xe]
      %v6428 = vld [vmem:[%s4799 + $0x54] sm:$0xe]
      %v6429 = vld [vmem:[%s4799 + $0x60] sm:$0xe]
      %v6430 = vld [vmem:[%s4799 + $0x6c] sm:$0xe]
      %v6431 = vld [vmem:[%s4799 + $0x78] sm:$0xe]
      %v6432 = vld [vmem:[%s4799 + $0x84] sm:$0xe]
      %v6433 = vld [vmem:[%s4799 + $0x90] sm:$0xe]
      %v6434 = vld [vmem:[%s4799 + $0x9c] sm:$0xe]
      %v6435 = vld [vmem:[%s4799 + $0xa8] sm:$0xe]
      %v6436 = vld [vmem:[%s4799 + $0xb4] sm:$0xe]
      %v6437 = vunpack.c.l.bf16 %v6421
      %v6438 = vunpack.c.l.bf16 %v6422
      %v6439 = vunpack.c.l.bf16 %v6423
      %v6440 = vunpack.c.l.bf16 %v6424
      %v6441 = vunpack.c.l.bf16 %v6425
      %v6442 = vunpack.c.l.bf16 %v6426
      %v6443 = vunpack.c.l.bf16 %v6427
      %v6444 = vunpack.c.l.bf16 %v6428
      %v6445 = vunpack.c.l.bf16 %v6429
      %v6446 = vunpack.c.l.bf16 %v6430
      %v6447 = vunpack.c.l.bf16 %v6431
      %v6448 = vunpack.c.l.bf16 %v6432
      %v6449 = vunpack.c.l.bf16 %v6433
      %v6450 = vunpack.c.l.bf16 %v6434
      %v6451 = vunpack.c.l.bf16 %v6435
      %v6452 = vunpack.c.l.bf16 %v6436
      %v6453 = vmul.f32 %v6437, %v388
      %v6454 = vmul.f32 %v6438, %v388
      %v6455 = vmul.f32 %v6439, %v388
      %v6456 = vmul.f32 %v6440, %v388
      %v6457 = vmul.f32 %v6441, %v388
      %v6458 = vmul.f32 %v6442, %v388
      %v6459 = vmul.f32 %v6443, %v388
      %v6460 = vmul.f32 %v6444, %v388
      %v6461 = vmul.f32 %v6445, %v388
      %v6462 = vmul.f32 %v6446, %v388
      %v6463 = vmul.f32 %v6447, %v388
      %v6464 = vmul.f32 %v6448, %v388
      %v6465 = vmul.f32 %v6449, %v388
      %v6466 = vmul.f32 %v6450, %v388
      %v6467 = vmul.f32 %v6451, %v388
      %v6468 = vmul.f32 %v6452, %v388
      %v6469 = vadd.f32 %v6453, %v423
      %v6470 = vadd.f32 %v6454, %v423
      %v6471 = vadd.f32 %v6455, %v423
      %v6472 = vadd.f32 %v6456, %v423
      %v6473 = vadd.f32 %v6457, %v423
      %v6474 = vadd.f32 %v6458, %v423
      %v6475 = vadd.f32 %v6459, %v423
      %v6476 = vadd.f32 %v6460, %v423
      %v6477 = vadd.f32 %v6461, %v423
      %v6478 = vadd.f32 %v6462, %v423
      %v6479 = vadd.f32 %v6463, %v423
      %v6480 = vadd.f32 %v6464, %v423
      %v6481 = vadd.f32 %v6465, %v423
      %v6482 = vadd.f32 %v6466, %v423
      %v6483 = vadd.f32 %v6467, %v423
      %v6484 = vadd.f32 %v6468, %v423
      %v6485 = vmax.f32 %v6469, 0.0
      %v6486 = vmax.f32 %v6470, 0.0
      %v6487 = vmax.f32 %v6471, 0.0
      %v6488 = vmax.f32 %v6472, 0.0
      %v6489 = vmax.f32 %v6473, 0.0
      %v6490 = vmax.f32 %v6474, 0.0
      %v6491 = vmax.f32 %v6475, 0.0
      %v6492 = vmax.f32 %v6476, 0.0
      %v6493 = vmax.f32 %v6477, 0.0
      %v6494 = vmax.f32 %v6478, 0.0
      %v6495 = vmax.f32 %v6479, 0.0
      %v6496 = vmax.f32 %v6480, 0.0
      %v6497 = vmax.f32 %v6481, 0.0
      %v6498 = vmax.f32 %v6482, 0.0
      %v6499 = vmax.f32 %v6483, 0.0
      %v6500 = vmax.f32 %v6484, 0.0
      %v6501 = vld [vmem:[%s4960 + $0x2] sm:$0xff]
      %v6502 = vld [vmem:[%s4960 + $0xa] sm:$0xff]
      %v6503 = vld [vmem:[%s4960 + $0x1a] sm:$0xff]
      %v6504 = vld [vmem:[%s4960 + $0x22] sm:$0xff]
      %v6505 = vld [vmem:[%s4960 + $0x32] sm:$0xff]
      %v6506 = vld [vmem:[%s4960 + $0x3a] sm:$0xff]
      %v6507 = vld [vmem:[%s4960 + $0x4a] sm:$0xff]
      %v6508 = vld [vmem:[%s4960 + $0x52] sm:$0xff]
      %v6509 = vld [vmem:[%s4960 + $0x62] sm:$0xff]
      %v6510 = vld [vmem:[%s4960 + $0x6a] sm:$0xff]
      %v6511 = vld [vmem:[%s4960 + $0x7a] sm:$0xff]
      %v6512 = vld [vmem:[%s4960 + $0x82] sm:$0xff]
      %v6513 = vld [vmem:[%s4960 + $0x92] sm:$0xff]
      %v6514 = vld [vmem:[%s4960 + $0x9a] sm:$0xff]
      %v6515 = vld [vmem:[%s4960 + $0xaa] sm:$0xff]
      %v6516 = vld [vmem:[%s4960 + $0xb2] sm:$0xff]
      %v6517 = vld [vmem:[%s4960 + $0xc2] sm:$0xff]
      %v6518 = vld [vmem:[%s4960 + $0xca] sm:$0xff]
      %v6519 = vld [vmem:[%s4960 + $0xda] sm:$0xff]
      %v6520 = vld [vmem:[%s4960 + $0xe2] sm:$0xff]
      %v6521 = vld [vmem:[%s4960 + $0xf2] sm:$0xff]
      %v6522 = vld [vmem:[%s4960 + $0xfa] sm:$0xff]
      %v6523 = vld [vmem:[%s4960 + $0x10a] sm:$0xff]
      %v6524 = vld [vmem:[%s4960 + $0x112] sm:$0xff]
      %v6525 = vld [vmem:[%s4960 + $0x122] sm:$0xff]
      %v6526 = vld [vmem:[%s4960 + $0x12a] sm:$0xff]
      %v6527 = vld [vmem:[%s4960 + $0x13a] sm:$0xff]
      %v6528 = vld [vmem:[%s4960 + $0x142] sm:$0xff]
      %v6529 = vld [vmem:[%s4960 + $0x152] sm:$0xff]
      %v6530 = vld [vmem:[%s4960 + $0x15a] sm:$0xff]
      %v6531 = vld [vmem:[%s4960 + $0x16a] sm:$0xff]
      %v6532 = vld [vmem:[%s4960 + $0x172] sm:$0xff]
      %v6565 = vrot.slane %v6501, 6
      %v6566 = vrot.slane %v6502, 6
      %v6567 = vsel %vm1873, %v6565, %v6566
      %v6568 = vrot.slane %v6503, 6
      %v6569 = vrot.slane %v6504, 6
      %v6570 = vsel %vm1873, %v6568, %v6569
      %v6571 = vrot.slane %v6505, 6
      %v6572 = vrot.slane %v6506, 6
      %v6573 = vsel %vm1873, %v6571, %v6572
      %v6574 = vrot.slane %v6507, 6
      %v6575 = vrot.slane %v6508, 6
      %v6576 = vsel %vm1873, %v6574, %v6575
      %v6577 = vrot.slane %v6509, 6
      %v6578 = vrot.slane %v6510, 6
      %v6579 = vsel %vm1873, %v6577, %v6578
      %v6580 = vrot.slane %v6511, 6
      %v6581 = vrot.slane %v6512, 6
      %v6582 = vsel %vm1873, %v6580, %v6581
      %v6583 = vrot.slane %v6513, 6
      %v6584 = vrot.slane %v6514, 6
      %v6585 = vsel %vm1873, %v6583, %v6584
      %v6586 = vrot.slane %v6515, 6
      %v6587 = vrot.slane %v6516, 6
      %v6588 = vsel %vm1873, %v6586, %v6587
      %v6589 = vrot.slane %v6517, 6
      %v6590 = vrot.slane %v6518, 6
      %v6591 = vsel %vm1873, %v6589, %v6590
      %v6592 = vrot.slane %v6519, 6
      %v6593 = vrot.slane %v6520, 6
      %v6594 = vsel %vm1873, %v6592, %v6593
      %v6595 = vrot.slane %v6521, 6
      %v6596 = vrot.slane %v6522, 6
      %v6597 = vsel %vm1873, %v6595, %v6596
      %v6598 = vrot.slane %v6523, 6
      %v6599 = vrot.slane %v6524, 6
      %v6600 = vsel %vm1873, %v6598, %v6599
      %v6601 = vrot.slane %v6525, 6
      %v6602 = vrot.slane %v6526, 6
      %v6603 = vsel %vm1873, %v6601, %v6602
      %v6604 = vrot.slane %v6527, 6
      %v6605 = vrot.slane %v6528, 6
      %v6606 = vsel %vm1873, %v6604, %v6605
      %v6607 = vrot.slane %v6529, 6
      %v6608 = vrot.slane %v6530, 6
      %v6609 = vsel %vm1873, %v6607, %v6608
      %v6610 = vrot.slane %v6531, 6
      %v6611 = vrot.slane %v6532, 6
      %v6612 = vsel %vm1873, %v6610, %v6611
      %v6661 = vmul.f32 %v6485, %v6565
      %v6662 = vmul.f32 %v5508, %v6567
      %v6663 = vmul.f32 %v5509, %v6566
      %v6664 = vmul.f32 %v6486, %v6568
      %v6665 = vmul.f32 %v5511, %v6570
      %v6666 = vmul.f32 %v5512, %v6569
      %v6667 = vmul.f32 %v6487, %v6571
      %v6668 = vmul.f32 %v5514, %v6573
      %v6669 = vmul.f32 %v5515, %v6572
      %v6670 = vmul.f32 %v6488, %v6574
      %v6671 = vmul.f32 %v5517, %v6576
      %v6672 = vmul.f32 %v5518, %v6575
      %v6673 = vmul.f32 %v6489, %v6577
      %v6674 = vmul.f32 %v5520, %v6579
      %v6675 = vmul.f32 %v5521, %v6578
      %v6676 = vmul.f32 %v6490, %v6580
      %v6677 = vmul.f32 %v5523, %v6582
      %v6678 = vmul.f32 %v5524, %v6581
      %v6679 = vmul.f32 %v6491, %v6583
      %v6680 = vmul.f32 %v5526, %v6585
      %v6681 = vmul.f32 %v5527, %v6584
      %v6682 = vmul.f32 %v6492, %v6586
      %v6683 = vmul.f32 %v5529, %v6588
      %v6684 = vmul.f32 %v5530, %v6587
      %v6685 = vmul.f32 %v6493, %v6589
      %v6686 = vmul.f32 %v5532, %v6591
      %v6687 = vmul.f32 %v5533, %v6590
      %v6688 = vmul.f32 %v6494, %v6592
      %v6689 = vmul.f32 %v5535, %v6594
      %v6690 = vmul.f32 %v5536, %v6593
      %v6691 = vmul.f32 %v6495, %v6595
      %v6692 = vmul.f32 %v5538, %v6597
      %v6693 = vmul.f32 %v5539, %v6596
      %v6694 = vmul.f32 %v6496, %v6598
      %v6695 = vmul.f32 %v5541, %v6600
      %v6696 = vmul.f32 %v5542, %v6599
      %v6697 = vmul.f32 %v6497, %v6601
      %v6698 = vmul.f32 %v5544, %v6603
      %v6699 = vmul.f32 %v5545, %v6602
      %v6700 = vmul.f32 %v6498, %v6604
      %v6701 = vmul.f32 %v5547, %v6606
      %v6702 = vmul.f32 %v5548, %v6605
      %v6703 = vmul.f32 %v6499, %v6607
      %v6704 = vmul.f32 %v5550, %v6609
      %v6705 = vmul.f32 %v5551, %v6608
      %v6706 = vmul.f32 %v6500, %v6610
      %v6707 = vmul.f32 %v5553, %v6612
      %v6708 = vmul.f32 %v5554, %v6611
      %v6709 = vpack.c.bf16 %v6661, %v6661
      %v6710 = vpack.c.bf16 %v6662, %v6662
      %v6711 = vpack.c.bf16 %v6663, %v6663
      %v6712 = vpack.c.bf16 %v6664, %v6664
      %v6713 = vpack.c.bf16 %v6665, %v6665
      %v6714 = vpack.c.bf16 %v6666, %v6666
      %v6715 = vpack.c.bf16 %v6667, %v6667
      %v6716 = vpack.c.bf16 %v6668, %v6668
      %v6717 = vpack.c.bf16 %v6669, %v6669
      %v6718 = vpack.c.bf16 %v6670, %v6670
      %v6719 = vpack.c.bf16 %v6671, %v6671
      %v6720 = vpack.c.bf16 %v6672, %v6672
      %v6721 = vpack.c.bf16 %v6673, %v6673
      %v6722 = vpack.c.bf16 %v6674, %v6674
      %v6723 = vpack.c.bf16 %v6675, %v6675
      %v6724 = vpack.c.bf16 %v6676, %v6676
      %v6725 = vpack.c.bf16 %v6677, %v6677
      %v6726 = vpack.c.bf16 %v6678, %v6678
      %v6727 = vpack.c.bf16 %v6679, %v6679
      %v6728 = vpack.c.bf16 %v6680, %v6680
      %v6729 = vpack.c.bf16 %v6681, %v6681
      %v6730 = vpack.c.bf16 %v6682, %v6682
      %v6731 = vpack.c.bf16 %v6683, %v6683
      %v6732 = vpack.c.bf16 %v6684, %v6684
      %v6733 = vpack.c.bf16 %v6685, %v6685
      %v6734 = vpack.c.bf16 %v6686, %v6686
      %v6735 = vpack.c.bf16 %v6687, %v6687
      %v6736 = vpack.c.bf16 %v6688, %v6688
      %v6737 = vpack.c.bf16 %v6689, %v6689
      %v6738 = vpack.c.bf16 %v6690, %v6690
      %v6739 = vpack.c.bf16 %v6691, %v6691
      %v6740 = vpack.c.bf16 %v6692, %v6692
      %v6741 = vpack.c.bf16 %v6693, %v6693
      %v6742 = vpack.c.bf16 %v6694, %v6694
      %v6743 = vpack.c.bf16 %v6695, %v6695
      %v6744 = vpack.c.bf16 %v6696, %v6696
      %v6745 = vpack.c.bf16 %v6697, %v6697
      %v6746 = vpack.c.bf16 %v6698, %v6698
      %v6747 = vpack.c.bf16 %v6699, %v6699
      %v6748 = vpack.c.bf16 %v6700, %v6700
      %v6749 = vpack.c.bf16 %v6701, %v6701
      %v6750 = vpack.c.bf16 %v6702, %v6702
      %v6751 = vpack.c.bf16 %v6703, %v6703
      %v6752 = vpack.c.bf16 %v6704, %v6704
      %v6753 = vpack.c.bf16 %v6705, %v6705
      %v6754 = vpack.c.bf16 %v6706, %v6706
      %v6755 = vpack.c.bf16 %v6707, %v6707
      %v6756 = vpack.c.bf16 %v6708, %v6708
      %v6805 = vrot.slane %v6709, 5
      %v6806 = vrot.slane %v6805, 4
      %v6807 = vrot.slane %v6710, 5
      %v6808 = vsel %vm2116, %v6806, %v6807
      %v6809 = vrot.slane %v6807, 4
      %v6810 = vrot.slane %v6711, 5
      %v6811 = vsel %vm2116, %v6809, %v6810
      %v6812 = vrot.slane %v6712, 5
      %v6813 = vrot.slane %v6812, 4
      %v6814 = vrot.slane %v6713, 5
      %v6815 = vsel %vm2116, %v6813, %v6814
      %v6816 = vrot.slane %v6814, 4
      %v6817 = vrot.slane %v6714, 5
      %v6818 = vsel %vm2116, %v6816, %v6817
      %v6819 = vrot.slane %v6715, 5
      %v6820 = vrot.slane %v6819, 4
      %v6821 = vrot.slane %v6716, 5
      %v6822 = vsel %vm2116, %v6820, %v6821
      %v6823 = vrot.slane %v6821, 4
      %v6824 = vrot.slane %v6717, 5
      %v6825 = vsel %vm2116, %v6823, %v6824
      %v6826 = vrot.slane %v6718, 5
      %v6827 = vrot.slane %v6826, 4
      %v6828 = vrot.slane %v6719, 5
      %v6829 = vsel %vm2116, %v6827, %v6828
      %v6830 = vrot.slane %v6828, 4
      %v6831 = vrot.slane %v6720, 5
      %v6832 = vsel %vm2116, %v6830, %v6831
      %v6833 = vrot.slane %v6721, 5
      %v6834 = vrot.slane %v6833, 4
      %v6835 = vrot.slane %v6722, 5
      %v6836 = vsel %vm2116, %v6834, %v6835
      %v6837 = vrot.slane %v6835, 4
      %v6838 = vrot.slane %v6723, 5
      %v6839 = vsel %vm2116, %v6837, %v6838
      %v6840 = vrot.slane %v6724, 5
      %v6841 = vrot.slane %v6840, 4
      %v6842 = vrot.slane %v6725, 5
      %v6843 = vsel %vm2116, %v6841, %v6842
      %v6844 = vrot.slane %v6842, 4
      %v6845 = vrot.slane %v6726, 5
      %v6846 = vsel %vm2116, %v6844, %v6845
      %v6847 = vrot.slane %v6727, 5
      %v6848 = vrot.slane %v6847, 4
      %v6849 = vrot.slane %v6728, 5
      %v6850 = vsel %vm2116, %v6848, %v6849
      %v6851 = vrot.slane %v6849, 4
      %v6852 = vrot.slane %v6729, 5
      %v6853 = vsel %vm2116, %v6851, %v6852
      %v6854 = vrot.slane %v6730, 5
      %v6855 = vrot.slane %v6854, 4
      %v6856 = vrot.slane %v6731, 5
      %v6857 = vsel %vm2116, %v6855, %v6856
      %v6858 = vrot.slane %v6856, 4
      %v6859 = vrot.slane %v6732, 5
      %v6860 = vsel %vm2116, %v6858, %v6859
      %v6861 = vrot.slane %v6733, 5
      %v6862 = vrot.slane %v6861, 4
      %v6863 = vrot.slane %v6734, 5
      %v6864 = vsel %vm2116, %v6862, %v6863
      %v6865 = vrot.slane %v6863, 4
      %v6866 = vrot.slane %v6735, 5
      %v6867 = vsel %vm2116, %v6865, %v6866
      %v6868 = vrot.slane %v6736, 5
      %v6869 = vrot.slane %v6868, 4
      %v6870 = vrot.slane %v6737, 5
      %v6871 = vsel %vm2116, %v6869, %v6870
      %v6872 = vrot.slane %v6870, 4
      %v6873 = vrot.slane %v6738, 5
      %v6874 = vsel %vm2116, %v6872, %v6873
      %v6875 = vrot.slane %v6739, 5
      %v6876 = vrot.slane %v6875, 4
      %v6877 = vrot.slane %v6740, 5
      %v6878 = vsel %vm2116, %v6876, %v6877
      %v6879 = vrot.slane %v6877, 4
      %v6880 = vrot.slane %v6741, 5
      %v6881 = vsel %vm2116, %v6879, %v6880
      %v6882 = vrot.slane %v6742, 5
      %v6883 = vrot.slane %v6882, 4
      %v6884 = vrot.slane %v6743, 5
      %v6885 = vsel %vm2116, %v6883, %v6884
      %v6886 = vrot.slane %v6884, 4
      %v6887 = vrot.slane %v6744, 5
      %v6888 = vsel %vm2116, %v6886, %v6887
      %v6889 = vrot.slane %v6745, 5
      %v6890 = vrot.slane %v6889, 4
      %v6891 = vrot.slane %v6746, 5
      %v6892 = vsel %vm2116, %v6890, %v6891
      %v6893 = vrot.slane %v6891, 4
      %v6894 = vrot.slane %v6747, 5
      %v6895 = vsel %vm2116, %v6893, %v6894
      %v6896 = vrot.slane %v6748, 5
      %v6897 = vrot.slane %v6896, 4
      %v6898 = vrot.slane %v6749, 5
      %v6899 = vsel %vm2116, %v6897, %v6898
      %v6900 = vrot.slane %v6898, 4
      %v6901 = vrot.slane %v6750, 5
      %v6902 = vsel %vm2116, %v6900, %v6901
      %v6903 = vrot.slane %v6751, 5
      %v6904 = vrot.slane %v6903, 4
      %v6905 = vrot.slane %v6752, 5
      %v6906 = vsel %vm2116, %v6904, %v6905
      %v6907 = vrot.slane %v6905, 4
      %v6908 = vrot.slane %v6753, 5
      %v6909 = vsel %vm2116, %v6907, %v6908
      %v6910 = vrot.slane %v6754, 5
      %v6911 = vrot.slane %v6910, 4
      %v6912 = vrot.slane %v6755, 5
      %v6913 = vsel %vm2116, %v6911, %v6912
      %v6914 = vrot.slane %v6912, 4
      %v6915 = vrot.slane %v6756, 5
      %v6916 = vsel %vm2116, %v6914, %v6915
      %s6917 = scalar_lea.vmem %s4, 64
      %v6918 = vld [vmem:[%s6917] sm:$0xf]
      %v6919 = vld [vmem:[%s6917 + $0x4] sm:$0xf]
      %v6920 = vunpack.c.l.b16 %v6808
      %v6921 = vunpack.c.l.b16 %v6811
      %v6922 = vunpack.c.l.b16 %v6815
      %v6923 = vunpack.c.l.b16 %v6818
      %v6924 = vunpack.c.l.b16 %v6822
      %v6925 = vunpack.c.l.b16 %v6825
      %v6926 = vunpack.c.l.b16 %v6829
      %v6927 = vunpack.c.l.b16 %v6832
      %v6928 = vunpack.c.l.b16 %v6836
      %v6929 = vunpack.c.l.b16 %v6839
      %v6930 = vunpack.c.l.b16 %v6843
      %v6931 = vunpack.c.l.b16 %v6846
      %v6932 = vunpack.c.l.b16 %v6850
      %v6933 = vunpack.c.l.b16 %v6853
      %v6934 = vunpack.c.l.b16 %v6857
      %v6935 = vunpack.c.l.b16 %v6860
      %v6936 = vunpack.c.l.b16 %v6864
      %v6937 = vunpack.c.l.b16 %v6867
      %v6938 = vunpack.c.l.b16 %v6871
      %v6939 = vunpack.c.l.b16 %v6874
      %v6940 = vunpack.c.l.b16 %v6878
      %v6941 = vunpack.c.l.b16 %v6881
      %v6942 = vunpack.c.l.b16 %v6885
      %v6943 = vunpack.c.l.b16 %v6888
      %v6944 = vunpack.c.l.b16 %v6892
      %v6945 = vunpack.c.l.b16 %v6895
      %v6946 = vunpack.c.l.b16 %v6899
      %v6947 = vunpack.c.l.b16 %v6902
      %v6948 = vunpack.c.l.b16 %v6906
      %v6949 = vunpack.c.l.b16 %v6909
      %v6950 = vunpack.c.l.b16 %v6913
      %v6951 = vunpack.c.l.b16 %v6916
      %v6952 = vpack.c.b16 %v6921, %v6920
      %v6953 = vpack.c.b16 %v6923, %v6922
      %v6954 = vpack.c.b16 %v6925, %v6924
      %v6955 = vpack.c.b16 %v6927, %v6926
      %v6956 = vpack.c.b16 %v6929, %v6928
      %v6957 = vpack.c.b16 %v6931, %v6930
      %v6958 = vpack.c.b16 %v6933, %v6932
      %v6959 = vpack.c.b16 %v6935, %v6934
      %v6960 = vpack.c.b16 %v6937, %v6936
      %v6961 = vpack.c.b16 %v6939, %v6938
      %v6962 = vpack.c.b16 %v6941, %v6940
      %v6963 = vpack.c.b16 %v6943, %v6942
      %v6964 = vpack.c.b16 %v6945, %v6944
      %v6965 = vpack.c.b16 %v6947, %v6946
      %v6966 = vpack.c.b16 %v6949, %v6948
      %v6967 = vpack.c.b16 %v6951, %v6950
      %v6970 = vunpack.c.l.b16 %v6918
      %v6971 = vunpack.c.l.b16 %v6919
      %v6972 = vpack.c.b16 %v6971, %v6970
      %v6975 = vsel %vm1368, %v6952, 0
      %v6978 = vsel %vm1368, %v6953, 0
      %v6981 = vsel %vm1368, %v6954, 0
      %v6984 = vsel %vm1368, %v6955, 0
      %v6987 = vsel %vm1368, %v6956, 0
      %v6990 = vsel %vm1368, %v6957, 0
      %v6993 = vsel %vm1368, %v6958, 0
      %v6996 = vsel %vm1368, %v6959, 0
      %v6999 = vsel %vm1368, %v6960, 0
      %v7002 = vsel %vm1368, %v6961, 0
      %v7005 = vsel %vm1368, %v6962, 0
      %v7008 = vsel %vm1368, %v6963, 0
      %v7011 = vsel %vm1368, %v6964, 0
      %v7014 = vsel %vm1368, %v6965, 0
      %v7017 = vsel %vm1368, %v6966, 0
      %v7020 = vsel %vm1368, %v6967, 0
      %7022 = vmatpush.bf16.msra.mxu0 0
      %7023 = vmatpush.bf16.msra.mxu0 0
      %7024 = vmatpush.bf16.msra.mxu0 0
      %7025 = vmatpush.bf16.msra.mxu0 0
      %7026 = vmatpush.bf16.msra.mxu0 0
      %7027 = vmatpush.bf16.msra.mxu0 0
      %7028 = vmatpush.bf16.msra.mxu0 0
      %7029 = vmatpush.bf16.msra.mxu0 %v6972
      %7030 = vmatmul.bf16.gmra.mxu0 %v6975
      %v7031 = vpop.f32.mrf.mxu0
      %v7032 = vadd.f32 0.0, %v7031
      %v7033 = vpop.f32.mrf.mxu0
      %v7034 = vadd.f32 0.0, %v7033
      %7035 = vmatmul.bf16.gmra.mxu0 %v6978
      %v7036 = vpop.f32.mrf.mxu0
      %v7037 = vadd.f32 0.0, %v7036
      %v7038 = vpop.f32.mrf.mxu0
      %v7039 = vadd.f32 0.0, %v7038
      %7040 = vmatmul.bf16.gmra.mxu0 %v6981
      %v7041 = vpop.f32.mrf.mxu0
      %v7042 = vadd.f32 0.0, %v7041
      %v7043 = vpop.f32.mrf.mxu0
      %v7044 = vadd.f32 0.0, %v7043
      %7045 = vmatmul.bf16.gmra.mxu0 %v6984
      %v7046 = vpop.f32.mrf.mxu0
      %v7047 = vadd.f32 0.0, %v7046
      %v7048 = vpop.f32.mrf.mxu0
      %v7049 = vadd.f32 0.0, %v7048
      %7050 = vmatmul.bf16.gmra.mxu0 %v6987
      %v7051 = vpop.f32.mrf.mxu0
      %v7052 = vadd.f32 0.0, %v7051
      %v7053 = vpop.f32.mrf.mxu0
      %v7054 = vadd.f32 0.0, %v7053
      %7055 = vmatmul.bf16.gmra.mxu0 %v6990
      %v7056 = vpop.f32.mrf.mxu0
      %v7057 = vadd.f32 0.0, %v7056
      %v7058 = vpop.f32.mrf.mxu0
      %v7059 = vadd.f32 0.0, %v7058
      %7060 = vmatmul.bf16.gmra.mxu0 %v6993
      %v7061 = vpop.f32.mrf.mxu0
      %v7062 = vadd.f32 0.0, %v7061
      %v7063 = vpop.f32.mrf.mxu0
      %v7064 = vadd.f32 0.0, %v7063
      %7065 = vmatmul.bf16.gmra.mxu0 %v6996
      %v7066 = vpop.f32.mrf.mxu0
      %v7067 = vadd.f32 0.0, %v7066
      %v7068 = vpop.f32.mrf.mxu0
      %v7069 = vadd.f32 0.0, %v7068
      %7070 = vmatmul.bf16.gmra.mxu0 %v6999
      %v7071 = vpop.f32.mrf.mxu0
      %v7072 = vadd.f32 0.0, %v7071
      %v7073 = vpop.f32.mrf.mxu0
      %v7074 = vadd.f32 0.0, %v7073
      %7075 = vmatmul.bf16.gmra.mxu0 %v7002
      %v7076 = vpop.f32.mrf.mxu0
      %v7077 = vadd.f32 0.0, %v7076
      %v7078 = vpop.f32.mrf.mxu0
      %v7079 = vadd.f32 0.0, %v7078
      %7080 = vmatmul.bf16.gmra.mxu0 %v7005
      %v7081 = vpop.f32.mrf.mxu0
      %v7082 = vadd.f32 0.0, %v7081
      %v7083 = vpop.f32.mrf.mxu0
      %v7084 = vadd.f32 0.0, %v7083
      %7085 = vmatmul.bf16.gmra.mxu0 %v7008
      %v7086 = vpop.f32.mrf.mxu0
      %v7087 = vadd.f32 0.0, %v7086
      %v7088 = vpop.f32.mrf.mxu0
      %v7089 = vadd.f32 0.0, %v7088
      %7090 = vmatmul.bf16.gmra.mxu0 %v7011
      %v7091 = vpop.f32.mrf.mxu0
      %v7092 = vadd.f32 0.0, %v7091
      %v7093 = vpop.f32.mrf.mxu0
      %v7094 = vadd.f32 0.0, %v7093
      %7095 = vmatmul.bf16.gmra.mxu0 %v7014
      %v7096 = vpop.f32.mrf.mxu0
      %v7097 = vadd.f32 0.0, %v7096
      %v7098 = vpop.f32.mrf.mxu0
      %v7099 = vadd.f32 0.0, %v7098
      %7100 = vmatmul.bf16.gmra.mxu0 %v7017
      %v7101 = vpop.f32.mrf.mxu0
      %v7102 = vadd.f32 0.0, %v7101
      %v7103 = vpop.f32.mrf.mxu0
      %v7104 = vadd.f32 0.0, %v7103
      %7105 = vmatmul.bf16.gmra.mxu0 %v7020
      %v7106 = vpop.f32.mrf.mxu0
      %v7107 = vadd.f32 0.0, %v7106
      %v7108 = vpop.f32.mrf.mxu0
      %v7109 = vadd.f32 0.0, %v7108
      %7110 = vdwg.mxu0
      %v7111 = vadd.f32 %v6389, %v7032
      %v7112 = vadd.f32 %v6390, %v7034
      %v7113 = vadd.f32 %v6391, %v7037
      %v7114 = vadd.f32 %v6392, %v7039
      %v7115 = vadd.f32 %v6393, %v7042
      %v7116 = vadd.f32 %v6394, %v7044
      %v7117 = vadd.f32 %v6395, %v7047
      %v7118 = vadd.f32 %v6396, %v7049
      %v7119 = vadd.f32 %v6397, %v7052
      %v7120 = vadd.f32 %v6398, %v7054
      %v7121 = vadd.f32 %v6399, %v7057
      %v7122 = vadd.f32 %v6400, %v7059
      %v7123 = vadd.f32 %v6401, %v7062
      %v7124 = vadd.f32 %v6402, %v7064
      %v7125 = vadd.f32 %v6403, %v7067
      %v7126 = vadd.f32 %v6404, %v7069
      %v7127 = vadd.f32 %v6405, %v7072
      %v7128 = vadd.f32 %v6406, %v7074
      %v7129 = vadd.f32 %v6407, %v7077
      %v7130 = vadd.f32 %v6408, %v7079
      %v7131 = vadd.f32 %v6409, %v7082
      %v7132 = vadd.f32 %v6410, %v7084
      %v7133 = vadd.f32 %v6411, %v7087
      %v7134 = vadd.f32 %v6412, %v7089
      %v7135 = vadd.f32 %v6413, %v7092
      %v7136 = vadd.f32 %v6414, %v7094
      %v7137 = vadd.f32 %v6415, %v7097
      %v7138 = vadd.f32 %v6416, %v7099
      %v7139 = vadd.f32 %v6417, %v7102
      %v7140 = vadd.f32 %v6418, %v7104
      %v7141 = vadd.f32 %v6419, %v7107
      %v7142 = vadd.f32 %v6420, %v7109
      %v7143 = vpack.c.bf16 %v7111, %v7111
      %v7144 = vpack.c.bf16 %v7112, %v7112
      %v7145 = vpack.c.bf16 %v7113, %v7113
      %v7146 = vpack.c.bf16 %v7114, %v7114
      %v7147 = vpack.c.bf16 %v7115, %v7115
      %v7148 = vpack.c.bf16 %v7116, %v7116
      %v7149 = vpack.c.bf16 %v7117, %v7117
      %v7150 = vpack.c.bf16 %v7118, %v7118
      %v7151 = vpack.c.bf16 %v7119, %v7119
      %v7152 = vpack.c.bf16 %v7120, %v7120
      %v7153 = vpack.c.bf16 %v7121, %v7121
      %v7154 = vpack.c.bf16 %v7122, %v7122
      %v7155 = vpack.c.bf16 %v7123, %v7123
      %v7156 = vpack.c.bf16 %v7124, %v7124
      %v7157 = vpack.c.bf16 %v7125, %v7125
      %v7158 = vpack.c.bf16 %v7126, %v7126
      %v7159 = vpack.c.bf16 %v7127, %v7127
      %v7160 = vpack.c.bf16 %v7128, %v7128
      %v7161 = vpack.c.bf16 %v7129, %v7129
      %v7162 = vpack.c.bf16 %v7130, %v7130
      %v7163 = vpack.c.bf16 %v7131, %v7131
      %v7164 = vpack.c.bf16 %v7132, %v7132
      %v7165 = vpack.c.bf16 %v7133, %v7133
      %v7166 = vpack.c.bf16 %v7134, %v7134
      %v7167 = vpack.c.bf16 %v7135, %v7135
      %v7168 = vpack.c.bf16 %v7136, %v7136
      %v7169 = vpack.c.bf16 %v7137, %v7137
      %v7170 = vpack.c.bf16 %v7138, %v7138
      %v7171 = vpack.c.bf16 %v7139, %v7139
      %v7172 = vpack.c.bf16 %v7140, %v7140
      %v7173 = vpack.c.bf16 %v7141, %v7141
      %v7174 = vpack.c.bf16 %v7142, %v7142
      %vm7175 = vcmask 125952
      %7176 = vst.msk [vmem:[%s312] sm:$0xf] %vm7175, %v7143
      %7177 = vst.msk [vmem:[%s312 + $0x4] sm:$0xf] %vm7175, %v7144
      %7178 = vst.msk [vmem:[%s312 + $0x8] sm:$0xf] %vm7175, %v7145
      %7179 = vst.msk [vmem:[%s312 + $0xc] sm:$0xf] %vm7175, %v7146
      %7180 = vst.msk [vmem:[%s312 + $0x10] sm:$0xf] %vm7175, %v7147
      %7181 = vst.msk [vmem:[%s312 + $0x14] sm:$0xf] %vm7175, %v7148
      %7182 = vst.msk [vmem:[%s312 + $0x18] sm:$0xf] %vm7175, %v7149
      %7183 = vst.msk [vmem:[%s312 + $0x1c] sm:$0xf] %vm7175, %v7150
      %7184 = vst.msk [vmem:[%s312 + $0x20] sm:$0xf] %vm7175, %v7151
      %7185 = vst.msk [vmem:[%s312 + $0x24] sm:$0xf] %vm7175, %v7152
      %7186 = vst.msk [vmem:[%s312 + $0x28] sm:$0xf] %vm7175, %v7153
      %7187 = vst.msk [vmem:[%s312 + $0x2c] sm:$0xf] %vm7175, %v7154
      %7188 = vst.msk [vmem:[%s312 + $0x30] sm:$0xf] %vm7175, %v7155
      %7189 = vst.msk [vmem:[%s312 + $0x34] sm:$0xf] %vm7175, %v7156
      %7190 = vst.msk [vmem:[%s312 + $0x38] sm:$0xf] %vm7175, %v7157
      %7191 = vst.msk [vmem:[%s312 + $0x3c] sm:$0xf] %vm7175, %v7158
      %7192 = vst.msk [vmem:[%s312 + $0x40] sm:$0xf] %vm7175, %v7159
      %7193 = vst.msk [vmem:[%s312 + $0x44] sm:$0xf] %vm7175, %v7160
      %7194 = vst.msk [vmem:[%s312 + $0x48] sm:$0xf] %vm7175, %v7161
      %7195 = vst.msk [vmem:[%s312 + $0x4c] sm:$0xf] %vm7175, %v7162
      %7196 = vst.msk [vmem:[%s312 + $0x50] sm:$0xf] %vm7175, %v7163
      %7197 = vst.msk [vmem:[%s312 + $0x54] sm:$0xf] %vm7175, %v7164
      %7198 = vst.msk [vmem:[%s312 + $0x58] sm:$0xf] %vm7175, %v7165
      %7199 = vst.msk [vmem:[%s312 + $0x5c] sm:$0xf] %vm7175, %v7166
      %7200 = vst.msk [vmem:[%s312 + $0x60] sm:$0xf] %vm7175, %v7167
      %7201 = vst.msk [vmem:[%s312 + $0x64] sm:$0xf] %vm7175, %v7168
      %7202 = vst.msk [vmem:[%s312 + $0x68] sm:$0xf] %vm7175, %v7169
      %7203 = vst.msk [vmem:[%s312 + $0x6c] sm:$0xf] %vm7175, %v7170
      %7204 = vst.msk [vmem:[%s312 + $0x70] sm:$0xf] %vm7175, %v7171
      %7205 = vst.msk [vmem:[%s312 + $0x74] sm:$0xf] %vm7175, %v7172
      %7206 = vst.msk [vmem:[%s312 + $0x78] sm:$0xf] %vm7175, %v7173
      %7207 = vst.msk [vmem:[%s312 + $0x7c] sm:$0xf] %vm7175, %v7174
      %v7208 = vsel %vm1368, %v7111, 0.0
      %v7209 = vsel %vm1368, %v7112, 0.0
      %v7210 = vadd.f32 %v7208, %v7209
      %v7211 = vsel %vm1368, %v7113, 0.0
      %v7212 = vadd.f32 %v7210, %v7211
      %v7213 = vsel %vm1368, %v7114, 0.0
      %v7214 = vadd.f32 %v7212, %v7213
      %v7215 = vsel %vm1368, %v7115, 0.0
      %v7216 = vadd.f32 %v7214, %v7215
      %v7217 = vsel %vm1368, %v7116, 0.0
      %v7218 = vadd.f32 %v7216, %v7217
      %v7219 = vsel %vm1368, %v7117, 0.0
      %v7220 = vadd.f32 %v7218, %v7219
      %v7221 = vsel %vm1368, %v7118, 0.0
      %v7222 = vadd.f32 %v7220, %v7221
      %v7223 = vsel %vm1368, %v7119, 0.0
      %v7224 = vadd.f32 %v7222, %v7223
      %v7225 = vsel %vm1368, %v7120, 0.0
      %v7226 = vadd.f32 %v7224, %v7225
      %v7227 = vsel %vm1368, %v7121, 0.0
      %v7228 = vadd.f32 %v7226, %v7227
      %v7229 = vsel %vm1368, %v7122, 0.0
      %v7230 = vadd.f32 %v7228, %v7229
      %v7231 = vsel %vm1368, %v7123, 0.0
      %v7232 = vadd.f32 %v7230, %v7231
      %v7233 = vsel %vm1368, %v7124, 0.0
      %v7234 = vadd.f32 %v7232, %v7233
      %v7235 = vsel %vm1368, %v7125, 0.0
      %v7236 = vadd.f32 %v7234, %v7235
      %v7237 = vsel %vm1368, %v7126, 0.0
      %v7238 = vadd.f32 %v7236, %v7237
      %v7239 = vsel %vm1368, %v7127, 0.0
      %v7240 = vadd.f32 %v7238, %v7239
      %v7241 = vsel %vm1368, %v7128, 0.0
      %v7242 = vadd.f32 %v7240, %v7241
      %v7243 = vsel %vm1368, %v7129, 0.0
      %v7244 = vadd.f32 %v7242, %v7243
      %v7245 = vsel %vm1368, %v7130, 0.0
      %v7246 = vadd.f32 %v7244, %v7245
      %v7247 = vsel %vm1368, %v7131, 0.0
      %v7248 = vadd.f32 %v7246, %v7247
      %v7249 = vsel %vm1368, %v7132, 0.0
      %v7250 = vadd.f32 %v7248, %v7249
      %v7251 = vsel %vm1368, %v7133, 0.0
      %v7252 = vadd.f32 %v7250, %v7251
      %v7253 = vsel %vm1368, %v7134, 0.0
      %v7254 = vadd.f32 %v7252, %v7253
      %v7255 = vsel %vm1368, %v7135, 0.0
      %v7256 = vadd.f32 %v7254, %v7255
      %v7257 = vsel %vm1368, %v7136, 0.0
      %v7258 = vadd.f32 %v7256, %v7257
      %v7259 = vsel %vm1368, %v7137, 0.0
      %v7260 = vadd.f32 %v7258, %v7259
      %v7261 = vsel %vm1368, %v7138, 0.0
      %v7262 = vadd.f32 %v7260, %v7261
      %v7263 = vsel %vm1368, %v7139, 0.0
      %v7264 = vadd.f32 %v7262, %v7263
      %v7265 = vsel %vm1368, %v7140, 0.0
      %v7266 = vadd.f32 %v7264, %v7265
      %v7267 = vsel %vm1368, %v7141, 0.0
      %v7268 = vadd.f32 %v7266, %v7267
      %v7269 = vsel %vm1368, %v7142, 0.0
      %v7270 = vadd.f32 %v7268, %v7269
      %v7271 = vrot.slane %v7270, 4
      %v7272 = vadd.f32 %v7270, %v7271
      %v7273 = vrot.slane %v7272, 2
      %v7274 = vadd.f32 %v7272, %v7273
      %v7275 = vrot.slane %v7274, 1
      %v7276 = vadd.f32 %v7274, %v7275
      %v7277 = vadd.f32 %v7276, 0.0
      %v7278 = vmul.f32 %v7111, %v7111
      %v7279 = vmul.f32 %v7112, %v7112
      %v7280 = vmul.f32 %v7113, %v7113
      %v7281 = vmul.f32 %v7114, %v7114
      %v7282 = vmul.f32 %v7115, %v7115
      %v7283 = vmul.f32 %v7116, %v7116
      %v7284 = vmul.f32 %v7117, %v7117
      %v7285 = vmul.f32 %v7118, %v7118
      %v7286 = vmul.f32 %v7119, %v7119
      %v7287 = vmul.f32 %v7120, %v7120
      %v7288 = vmul.f32 %v7121, %v7121
      %v7289 = vmul.f32 %v7122, %v7122
      %v7290 = vmul.f32 %v7123, %v7123
      %v7291 = vmul.f32 %v7124, %v7124
      %v7292 = vmul.f32 %v7125, %v7125
      %v7293 = vmul.f32 %v7126, %v7126
      %v7294 = vmul.f32 %v7127, %v7127
      %v7295 = vmul.f32 %v7128, %v7128
      %v7296 = vmul.f32 %v7129, %v7129
      %v7297 = vmul.f32 %v7130, %v7130
      %v7298 = vmul.f32 %v7131, %v7131
      %v7299 = vmul.f32 %v7132, %v7132
      %v7300 = vmul.f32 %v7133, %v7133
      %v7301 = vmul.f32 %v7134, %v7134
      %v7302 = vmul.f32 %v7135, %v7135
      %v7303 = vmul.f32 %v7136, %v7136
      %v7304 = vmul.f32 %v7137, %v7137
      %v7305 = vmul.f32 %v7138, %v7138
      %v7306 = vmul.f32 %v7139, %v7139
      %v7307 = vmul.f32 %v7140, %v7140
      %v7308 = vmul.f32 %v7141, %v7141
      %v7309 = vmul.f32 %v7142, %v7142
      %v7310 = vsel %vm1368, %v7278, 0.0
      %v7311 = vsel %vm1368, %v7279, 0.0
      %v7312 = vadd.f32 %v7310, %v7311
      %v7313 = vsel %vm1368, %v7280, 0.0
      %v7314 = vadd.f32 %v7312, %v7313
      %v7315 = vsel %vm1368, %v7281, 0.0
      %v7316 = vadd.f32 %v7314, %v7315
      %v7317 = vsel %vm1368, %v7282, 0.0
      %v7318 = vadd.f32 %v7316, %v7317
      %v7319 = vsel %vm1368, %v7283, 0.0
      %v7320 = vadd.f32 %v7318, %v7319
      %v7321 = vsel %vm1368, %v7284, 0.0
      %v7322 = vadd.f32 %v7320, %v7321
      %v7323 = vsel %vm1368, %v7285, 0.0
      %v7324 = vadd.f32 %v7322, %v7323
      %v7325 = vsel %vm1368, %v7286, 0.0
      %v7326 = vadd.f32 %v7324, %v7325
      %v7327 = vsel %vm1368, %v7287, 0.0
      %v7328 = vadd.f32 %v7326, %v7327
      %v7329 = vsel %vm1368, %v7288, 0.0
      %v7330 = vadd.f32 %v7328, %v7329
      %v7331 = vsel %vm1368, %v7289, 0.0
      %v7332 = vadd.f32 %v7330, %v7331
      %v7333 = vsel %vm1368, %v7290, 0.0
      %v7334 = vadd.f32 %v7332, %v7333
      %v7335 = vsel %vm1368, %v7291, 0.0
      %v7336 = vadd.f32 %v7334, %v7335
      %v7337 = vsel %vm1368, %v7292, 0.0
      %v7338 = vadd.f32 %v7336, %v7337
      %v7339 = vsel %vm1368, %v7293, 0.0
      %v7340 = vadd.f32 %v7338, %v7339
      %v7341 = vsel %vm1368, %v7294, 0.0
      %v7342 = vadd.f32 %v7340, %v7341
      %v7343 = vsel %vm1368, %v7295, 0.0
      %v7344 = vadd.f32 %v7342, %v7343
      %v7345 = vsel %vm1368, %v7296, 0.0
      %v7346 = vadd.f32 %v7344, %v7345
      %v7347 = vsel %vm1368, %v7297, 0.0
      %v7348 = vadd.f32 %v7346, %v7347
      %v7349 = vsel %vm1368, %v7298, 0.0
      %v7350 = vadd.f32 %v7348, %v7349
      %v7351 = vsel %vm1368, %v7299, 0.0
      %v7352 = vadd.f32 %v7350, %v7351
      %v7353 = vsel %vm1368, %v7300, 0.0
      %v7354 = vadd.f32 %v7352, %v7353
      %v7355 = vsel %vm1368, %v7301, 0.0
      %v7356 = vadd.f32 %v7354, %v7355
      %v7357 = vsel %vm1368, %v7302, 0.0
      %v7358 = vadd.f32 %v7356, %v7357
      %v7359 = vsel %vm1368, %v7303, 0.0
      %v7360 = vadd.f32 %v7358, %v7359
      %v7361 = vsel %vm1368, %v7304, 0.0
      %v7362 = vadd.f32 %v7360, %v7361
      %v7363 = vsel %vm1368, %v7305, 0.0
      %v7364 = vadd.f32 %v7362, %v7363
      %v7365 = vsel %vm1368, %v7306, 0.0
      %v7366 = vadd.f32 %v7364, %v7365
      %v7367 = vsel %vm1368, %v7307, 0.0
      %v7368 = vadd.f32 %v7366, %v7367
      %v7369 = vsel %vm1368, %v7308, 0.0
      %v7370 = vadd.f32 %v7368, %v7369
      %v7371 = vsel %vm1368, %v7309, 0.0
      %v7372 = vadd.f32 %v7370, %v7371
      %v7373 = vrot.slane %v7372, 4
      %v7374 = vadd.f32 %v7372, %v7373
      %v7375 = vrot.slane %v7374, 2
      %v7376 = vadd.f32 %v7374, %v7375
      %v7377 = vrot.slane %v7376, 1
      %v7378 = vadd.f32 %v7376, %v7377
      %v7379 = vadd.f32 %v7378, 0.0
      %v7380 = vsel %vm731, %v7277, %v7379
      %vm7381 = vcmask 123904
      %7382 = vst.msk [vmem:[%s318] sm:$0x3] %vm7381, %v7380
      %s7383 = smul.u32 16, %s23
      %p7384 = scmp.lt.s32.totalorder %s22, 1
      %s7385 = scalar_select %p7384, %s22, 1
      %p7386 = scmp.lt.s32.totalorder %s7383, 15
      %s7387 = scalar_select %p7386, %s7383, 15
      %s7388 = smul.addr %s7387, 2
      %s7389 = smul.addr %s7385, 32
      %s7390 = sadd.s32 %s7388, %s7389
      %s7391 = smul.addr %s7390, 4
      %s7392 = scalar_lea.vmem %s5, %s7391
      %s7393 = sadd.s32 %s22, %s23
      %p7394 = scmp.lt.s32.totalorder %s7393, 1
      %s7395 = scalar_select %p7394, %s7393, 1
      %s7396 = smul.addr %s7395, 2
      %s7397 = scalar_lea.vmem %s6, %s7396
      // Predicated region
      $region41: #{resnet_block_forward.4} parent=39 // pred_check
        %p7398 = pneg %p167
      $region42: #{resnet_block_forward.4} parent=39 // pred_check_branch
        %7400 = sbr.rel (%p7398) target = $region44
      $region43: #{resnet_block_forward.4} parent=39 // pred_region
        %s7401 = smul.u32 16, %s23
      $region44: #{resnet_block_forward.4} parent=39 // pred_fallthru
        _
      // Predicated region
      $region45: #{resnet_block_forward.4} parent=39 // pred_check
        %p7402 = pneg %p195
      $region46: #{resnet_block_forward.4} parent=39 // pred_check_branch
        %7404 = sbr.rel (%p7402) target = $region48
      $region47: #{resnet_block_forward.4} parent=39 // pred_region
        %s7405 = sadd.s32 %s22, %s23
      $region48: #{resnet_block_forward.4} parent=39 // pred_fallthru
        _
    $region40: #{resnet_block_forward.4} parent=5 // pred_fallthru
      _
    %p7406 = scmp.le.s32.totalorder 2, %s13
    // Predicated region
    $region49: #{resnet_block_forward.4} parent=5 // pred_check
      %p7407 = pneg %p7406
    $region50: #{resnet_block_forward.4} parent=5 // pred_check_branch
      %7409 = sbr.rel (%p7407) target = $region52
    $region51: #{resnet_block_forward.4} parent=5 // pred_region
      %s7410 = ssub.s32 %s13, 2
      // Predicated region
      $region53: #{resnet_block_forward.4} parent=51 // pred_check
        %p7411 = pneg %p173
      $region54: #{resnet_block_forward.4} parent=51 // pred_check_branch
        %7413 = sbr.rel (%p7411) target = $region56
      $region55: #{resnet_block_forward.4} parent=51 // pred_region
        %s7414 = smul.u32 16, %s25
        %p7415 = scmp.lt.s32.totalorder %s24, 1
        %s7416 = scalar_select %p7415, %s24, 1
        %p7417 = scmp.lt.s32.totalorder %s7414, 15
        %s7418 = scalar_select %p7417, %s7414, 15
        %s7419 = smul.addr %s7418, 2
        %s7420 = smul.addr %s7416, 32
        %s7421 = sadd.s32 %s7419, %s7420
        %s7422 = smul.addr %s7421, 4
        %s7423 = scalar_lea.vmem %s5, %s7422
      $region56: #{resnet_block_forward.4} parent=51 // pred_fallthru
        _
      // Predicated region
      $region57: #{resnet_block_forward.4} parent=51 // pred_check
        %p7424 = pneg %p201
      $region58: #{resnet_block_forward.4} parent=51 // pred_check_branch
        %7426 = sbr.rel (%p7424) target = $region60
      $region59: #{resnet_block_forward.4} parent=51 // pred_region
        %s7427 = sadd.s32 %s24, %s25
        %p7428 = scmp.lt.s32.totalorder %s7427, 1
        %s7429 = scalar_select %p7428, %s7427, 1
        %s7430 = smul.addr %s7429, 2
        %s7431 = scalar_lea.vmem %s6, %s7430
      $region60: #{resnet_block_forward.4} parent=51 // pred_fallthru
        _
    $region52: #{resnet_block_forward.4} parent=5 // pred_fallthru
      _
  $region6: #{resnet_block_forward.4} parent=0 // loop_footer
    %s17 = sadd.s32 1, %s13
  $region7: #{resnet_block_forward.4} parent=0 // loop_footer_branch
    %12 = sbr.rel target = $region3
  $region8: #{resnet_block_forward.4} parent=0 // loop_exit
    _

</llo_original>
